<compile_context>
chip_gen: v7x
topology: tpu7x:2x2x1
jax: 0.10.0
libtpu: 0.0.40
codegen_flags: <defaults>
</compile_context>

<pallas_src>
import jax
import jax.numpy as jnp
from jax.experimental import pallas as pl
from jax.experimental.pallas import tpu as pltpu

INPUT_DIM = 28
PADDED_INPUT_DIM = 32            # bf16 sublane-friendly contraction dim
OUTPUT_DIM = 21
PADDED_OUTPUT_DIM = 128          # lane-dense output (multiple of 128)
LAYER_SIZE = 512


def _round_up(n, m):
    return ((n + m - 1) // m) * m


def mlp2_kernel(x_ref,
                w1_ref, b1_ref,
                w2_ref, b2_ref,
                w3_ref, b3_ref,
                w4_ref, b4_ref,
                w5_ref, b5_ref,
                o_ref,
                h_ref):
    # Layer 1: Linear(28->512, padded to 32 rows) + ReLU (Dropout = identity).
    z = jnp.dot(x_ref[...], w1_ref[...], preferred_element_type=jnp.float32)
    h_ref[...] = jnp.maximum(z + b1_ref[...], 0.0).astype(jnp.bfloat16)
    # Layer 2: Linear(512, 512) + ReLU
    z = jnp.dot(h_ref[...], w2_ref[...], preferred_element_type=jnp.float32)
    h_ref[...] = jnp.maximum(z + b2_ref[...], 0.0).astype(jnp.bfloat16)
    # Layer 3: Linear(512, 512) + ReLU
    z = jnp.dot(h_ref[...], w3_ref[...], preferred_element_type=jnp.float32)
    h_ref[...] = jnp.maximum(z + b3_ref[...], 0.0).astype(jnp.bfloat16)
    # Layer 4: Linear(512, 512) + ReLU
    z = jnp.dot(h_ref[...], w4_ref[...], preferred_element_type=jnp.float32)
    h_ref[...] = jnp.maximum(z + b4_ref[...], 0.0).astype(jnp.bfloat16)
    # Layer 5: Linear(512, 128-padded) + Sigmoid (cols >= 21 are zero weights).
    z = jnp.dot(h_ref[...], w5_ref[...], preferred_element_type=jnp.float32)
    o_ref[...] = jax.nn.sigmoid(z + b5_ref[...]).astype(o_ref.dtype)


def _pick_batch_tile(batch, batch_tile):
    """Multiple of 16; >= 2 grid tiles whenever the batch allows it."""
    b_aligned = _round_up(batch, 16)
    if b_aligned <= 32:
        return b_aligned                                  # tiny batch: one tile
    return min(_round_up(batch_tile, 16),
               _round_up(pl.cdiv(b_aligned, 2), 16))      # at least 2 tiles


def mlp2_forward(x, params, *, batch_tile=1024):
    """x: (B, INPUT_DIM). params: list of 5 (W, b) with W (in, out), b (1, out)."""
    B = x.shape[0]
    tb = _pick_batch_tile(B, batch_tile)
    padded_b = _round_up(B, tb)
    grid = (padded_b // tb,)

    # bf16 input; zero-pad batch tail and the 28->32 feature dim.
    x = x.astype(jnp.bfloat16)
    x = jnp.pad(x, ((0, padded_b - B), (0, PADDED_INPUT_DIM - INPUT_DIM)))

    prepared = []
    for li, (w, b) in enumerate(params):
        w = w.astype(jnp.bfloat16)
        b = b.astype(jnp.float32)
        if li == 0:   # pad contraction dim 28 -> 32 with zero rows
            w = jnp.pad(w, ((0, PADDED_INPUT_DIM - INPUT_DIM), (0, 0)))
        if li == 4:   # pad last layer to a lane-dense 128-wide output
            w = jnp.pad(w, ((0, 0), (0, PADDED_OUTPUT_DIM - OUTPUT_DIM)))
            b = jnp.pad(b, ((0, 0), (0, PADDED_OUTPUT_DIM - OUTPUT_DIM)))
        prepared.append((w, b))

    flat_args = [x] + [a for wb in prepared for a in wb]

    # Advisory cost estimate for XLA's scheduler.
    flops = 2 * padded_b * (PADDED_INPUT_DIM * LAYER_SIZE
                            + 3 * LAYER_SIZE * LAYER_SIZE
                            + LAYER_SIZE * PADDED_OUTPUT_DIM)
    weight_bytes = sum(int(w.size) * w.dtype.itemsize
                       + int(b.size) * b.dtype.itemsize for w, b in prepared)
    cost = pl.CostEstimate(
        flops=flops,
        transcendentals=padded_b * PADDED_OUTPUT_DIM,
        bytes_accessed=weight_bytes + int(x.size) * 2
                       + padded_b * PADDED_OUTPUT_DIM * 2)

    compiler_kwargs = dict(dimension_semantics=("parallel",))
    if tb > 4096:   # only very large tiles approach the scoped-VMEM defaults
        compiler_kwargs["vmem_limit_bytes"] = 64 * 1024 * 1024

    def run(single_buffer_weights):
        in_specs = [pl.BlockSpec((tb, PADDED_INPUT_DIM), lambda i: (i, 0))]
        for w, b in prepared:
            extra = ({"pipeline_mode": pl.Buffered(1)}
                     if single_buffer_weights else {})
            # Constant index maps -> weights/biases stay resident in VMEM.
            in_specs.append(pl.BlockSpec(w.shape, lambda i: (0, 0), **extra))
            in_specs.append(pl.BlockSpec(b.shape, lambda i: (0, 0), **extra))
        return pl.pallas_call(
            mlp2_kernel,
            out_shape=jax.ShapeDtypeStruct((padded_b, PADDED_OUTPUT_DIM),
                                           jnp.bfloat16),
            grid=grid,
            in_specs=in_specs,
            out_specs=pl.BlockSpec((tb, PADDED_OUTPUT_DIM), lambda i: (i, 0)),
            scratch_shapes=[pltpu.VMEM((tb, LAYER_SIZE), jnp.bfloat16)],
            compiler_params=pltpu.CompilerParams(**compiler_kwargs),
            cost_estimate=cost,
        )(*flat_args)

    try:
        out = run(single_buffer_weights=True)
    except Exception:
        # Defensive fallback: if this jax build rejects pl.Buffered(1) on a
        # resident block, fall back to default double-buffering (correctness
        # identical, slightly more VMEM).
        out = run(single_buffer_weights=False)

    return out[:B, :OUTPUT_DIM].astype(jnp.float32)


def init_params(key):
    """Deterministic init mimicking torch.nn.Linear (uniform +/- 1/sqrt(fan_in)).

    Weights stored bf16 (halves weight HBM traffic); biases stay f32.
    """
    dims = [INPUT_DIM, LAYER_SIZE, LAYER_SIZE, LAYER_SIZE, LAYER_SIZE, OUTPUT_DIM]
    params = []
    for i in range(5):
        fan_in, fan_out = dims[i], dims[i + 1]
        key, kw, kb = jax.random.split(key, 3)
        bound = 1.0 / (fan_in ** 0.5)
        w = jax.random.uniform(kw, (fan_in, fan_out), jnp.float32, -bound, bound)
        b = jax.random.uniform(kb, (1, fan_out), jnp.float32, -bound, bound)
        params.append((w.astype(jnp.bfloat16), b))
    return params


def reference_forward(x, params):
    """Pure-JAX reference mirroring the kernel's bf16-in / f32-accumulate math
    (final sigmoid rounded through bf16 to match the kernel's bf16 output)."""
    h = x.astype(jnp.bfloat16)
    for i, (w, b) in enumerate(params):
        z = jnp.dot(h, w.astype(jnp.bfloat16),
                    preferred_element_type=jnp.float32) + b.astype(jnp.float32)
        if i < 4:
            h = jnp.maximum(z, 0.0).astype(jnp.bfloat16)
        else:
            return jax.nn.sigmoid(z).astype(jnp.bfloat16).astype(jnp.float32)


if __name__ == "__main__":
    key = jax.random.PRNGKey(0)
    key, kx1, kx2, kx3 = jax.random.split(key, 4)
    params = init_params(key)

    # Tiny single-tile batch.
    B1 = 8
    x1 = jax.random.normal(kx1, (B1, INPUT_DIM), jnp.float32)
    out1 = jax.block_until_ready(mlp2_forward(x1, params))
    ref1 = reference_forward(x1, params)
    assert out1.shape == (B1, OUTPUT_DIM)
    assert jnp.allclose(out1, ref1, atol=4e-3, rtol=4e-3)

    # Multi-tile batch with an explicit small tile + tail padding.
    B2 = 40
    x2 = jax.random.normal(kx2, (B2, INPUT_DIM), jnp.float32)
    out2 = jax.block_until_ready(mlp2_forward(x2, params, batch_tile=16))
    ref2 = reference_forward(x2, params)
    assert out2.shape == (B2, OUTPUT_DIM)
    assert jnp.allclose(out2, ref2, atol=4e-3, rtol=4e-3)

    # Default path: batch large enough to trigger the >=2-tile split
    # (so both v7x TensorCores get work) plus tail padding.
    B3 = 300
    x3 = jax.random.normal(kx3, (B3, INPUT_DIM), jnp.float32)
    out3 = jax.block_until_ready(mlp2_forward(x3, params))
    ref3 = reference_forward(x3, params)
    assert out3.shape == (B3, OUTPUT_DIM)
    assert jnp.allclose(out3, ref3, atol=4e-3, rtol=4e-3)

    print("KERNEL_OK")
</pallas_src>

<mosaic_0001>
module attributes {stable_mosaic.version = 11 : i64} {
  func.func @mlp2_kernel(%arg0: i32, %arg1: memref<16x32xbf16, #tpu.memory_space<vmem>>, %arg2: memref<32x512xbf16, #tpu.memory_space<vmem>>, %arg3: memref<1x512xf32, #tpu.memory_space<vmem>>, %arg4: memref<512x512xbf16, #tpu.memory_space<vmem>>, %arg5: memref<1x512xf32, #tpu.memory_space<vmem>>, %arg6: memref<512x512xbf16, #tpu.memory_space<vmem>>, %arg7: memref<1x512xf32, #tpu.memory_space<vmem>>, %arg8: memref<512x512xbf16, #tpu.memory_space<vmem>>, %arg9: memref<1x512xf32, #tpu.memory_space<vmem>>, %arg10: memref<512x128xbf16, #tpu.memory_space<vmem>>, %arg11: memref<1x128xf32, #tpu.memory_space<vmem>>, %arg12: memref<16x128xbf16, #tpu.memory_space<vmem>>, %arg13: memref<16x512xbf16, #tpu.memory_space<vmem>>) attributes {dimension_semantics = [#tpu.dimension_semantics<parallel>], iteration_bounds = array<i64: 1>, scalar_prefetch = 0 : i64, scratch_operands = 1 : i64, tpu.core_type = #tpu.core_type<tc>, window_params = [{transform_indices = @transform_0, window_bounds = array<i64: 16, 32>}, {pipeline_mode = #tpu.pipeline_mode<synchronous>, transform_indices = @transform_1, window_bounds = array<i64: 32, 512>}, {pipeline_mode = #tpu.pipeline_mode<synchronous>, transform_indices = @transform_2, window_bounds = array<i64: 1, 512>}, {pipeline_mode = #tpu.pipeline_mode<synchronous>, transform_indices = @transform_3, window_bounds = array<i64: 512, 512>}, {pipeline_mode = #tpu.pipeline_mode<synchronous>, transform_indices = @transform_4, window_bounds = array<i64: 1, 512>}, {pipeline_mode = #tpu.pipeline_mode<synchronous>, transform_indices = @transform_5, window_bounds = array<i64: 512, 512>}, {pipeline_mode = #tpu.pipeline_mode<synchronous>, transform_indices = @transform_6, window_bounds = array<i64: 1, 512>}, {pipeline_mode = #tpu.pipeline_mode<synchronous>, transform_indices = @transform_7, window_bounds = array<i64: 512, 512>}, {pipeline_mode = #tpu.pipeline_mode<synchronous>, transform_indices = @transform_8, window_bounds = array<i64: 1, 512>}, {pipeline_mode = #tpu.pipeline_mode<synchronous>, transform_indices = @transform_9, window_bounds = array<i64: 512, 128>}, {pipeline_mode = #tpu.pipeline_mode<synchronous>, transform_indices = @transform_10, window_bounds = array<i64: 1, 128>}, {transform_indices = @transform_11, window_bounds = array<i64: 16, 128>}]} {
    %c0 = arith.constant 0 : index
    %c0_0 = arith.constant 0 : index
    %0 = vector.load %arg1[%c0, %c0_0] : memref<16x32xbf16, #tpu.memory_space<vmem>>, vector<16x32xbf16>
    %c0_1 = arith.constant 0 : index
    %c0_2 = arith.constant 0 : index
    %1 = vector.load %arg2[%c0_1, %c0_2] : memref<32x512xbf16, #tpu.memory_space<vmem>>, vector<32x512xbf16>
    %cst = arith.constant dense<0.000000e+00> : vector<16x512xf32>
    %2 = tpu.matmul %0, %1, %cst {dimension_numbers = #tpu.dot_dimension_numbers<[1], [0], [0], [1], [0, 0, 1, 1], [], []>} : vector<16x32xbf16>, vector<32x512xbf16>, vector<16x512xf32> -> vector<16x512xf32>
    %c0_3 = arith.constant 0 : index
    %c0_4 = arith.constant 0 : index
    %3 = vector.load %arg3[%c0_3, %c0_4] : memref<1x512xf32, #tpu.memory_space<vmem>>, vector<1x512xf32>
    %4 = vector.broadcast %3 : vector<1x512xf32> to vector<16x512xf32>
    %5 = arith.addf %2, %4 : vector<16x512xf32>
    %cst_5 = arith.constant 0.000000e+00 : f32
    %6 = vector.broadcast %cst_5 : f32 to vector<16x512xf32>
    %7 = arith.maximumf %5, %6 : vector<16x512xf32>
    %8 = arith.truncf %7 : vector<16x512xf32> to vector<16x512xbf16>
    %c0_6 = arith.constant 0 : index
    %c0_7 = arith.constant 0 : index
    %9 = vector.load %arg13[%c0_6, %c0_7] : memref<16x512xbf16, #tpu.memory_space<vmem>>, vector<16x512xbf16>
    tpu.vector_store %arg13[%c0_6, %c0_7], %8 {strides = array<i32>} : memref<16x512xbf16, #tpu.memory_space<vmem>>, vector<16x512xbf16>,
    %c0_8 = arith.constant 0 : index
    %c0_9 = arith.constant 0 : index
    %10 = vector.load %arg13[%c0_8, %c0_9] : memref<16x512xbf16, #tpu.memory_space<vmem>>, vector<16x512xbf16>
    %c0_10 = arith.constant 0 : index
    %c0_11 = arith.constant 0 : index
    %11 = vector.load %arg4[%c0_10, %c0_11] : memref<512x512xbf16, #tpu.memory_space<vmem>>, vector<512x512xbf16>
    %cst_12 = arith.constant dense<0.000000e+00> : vector<16x512xf32>
    %12 = tpu.matmul %10, %11, %cst_12 {dimension_numbers = #tpu.dot_dimension_numbers<[1], [0], [0], [1], [0, 0, 1, 1], [], []>} : vector<16x512xbf16>, vector<512x512xbf16>, vector<16x512xf32> -> vector<16x512xf32>
    %c0_13 = arith.constant 0 : index
    %c0_14 = arith.constant 0 : index
    %13 = vector.load %arg5[%c0_13, %c0_14] : memref<1x512xf32, #tpu.memory_space<vmem>>, vector<1x512xf32>
    %14 = vector.broadcast %13 : vector<1x512xf32> to vector<16x512xf32>
    %15 = arith.addf %12, %14 : vector<16x512xf32>
    %cst_15 = arith.constant 0.000000e+00 : f32
    %16 = vector.broadcast %cst_15 : f32 to vector<16x512xf32>
    %17 = arith.maximumf %15, %16 : vector<16x512xf32>
    %18 = arith.truncf %17 : vector<16x512xf32> to vector<16x512xbf16>
    %c0_16 = arith.constant 0 : index
    %c0_17 = arith.constant 0 : index
    %19 = vector.load %arg13[%c0_16, %c0_17] : memref<16x512xbf16, #tpu.memory_space<vmem>>, vector<16x512xbf16>
    tpu.vector_store %arg13[%c0_16, %c0_17], %18 {strides = array<i32>} : memref<16x512xbf16, #tpu.memory_space<vmem>>, vector<16x512xbf16>,
    %c0_18 = arith.constant 0 : index
    %c0_19 = arith.constant 0 : index
    %20 = vector.load %arg13[%c0_18, %c0_19] : memref<16x512xbf16, #tpu.memory_space<vmem>>, vector<16x512xbf16>
    %c0_20 = arith.constant 0 : index
    %c0_21 = arith.constant 0 : index
    %21 = vector.load %arg6[%c0_20, %c0_21] : memref<512x512xbf16, #tpu.memory_space<vmem>>, vector<512x512xbf16>
    %cst_22 = arith.constant dense<0.000000e+00> : vector<16x512xf32>
    %22 = tpu.matmul %20, %21, %cst_22 {dimension_numbers = #tpu.dot_dimension_numbers<[1], [0], [0], [1], [0, 0, 1, 1], [], []>} : vector<16x512xbf16>, vector<512x512xbf16>, vector<16x512xf32> -> vector<16x512xf32>
    %c0_23 = arith.constant 0 : index
    %c0_24 = arith.constant 0 : index
    %23 = vector.load %arg7[%c0_23, %c0_24] : memref<1x512xf32, #tpu.memory_space<vmem>>, vector<1x512xf32>
    %24 = vector.broadcast %23 : vector<1x512xf32> to vector<16x512xf32>
    %25 = arith.addf %22, %24 : vector<16x512xf32>
    %cst_25 = arith.constant 0.000000e+00 : f32
    %26 = vector.broadcast %cst_25 : f32 to vector<16x512xf32>
    %27 = arith.maximumf %25, %26 : vector<16x512xf32>
    %28 = arith.truncf %27 : vector<16x512xf32> to vector<16x512xbf16>
    %c0_26 = arith.constant 0 : index
    %c0_27 = arith.constant 0 : index
    %29 = vector.load %arg13[%c0_26, %c0_27] : memref<16x512xbf16, #tpu.memory_space<vmem>>, vector<16x512xbf16>
    tpu.vector_store %arg13[%c0_26, %c0_27], %28 {strides = array<i32>} : memref<16x512xbf16, #tpu.memory_space<vmem>>, vector<16x512xbf16>,
    %c0_28 = arith.constant 0 : index
    %c0_29 = arith.constant 0 : index
    %30 = vector.load %arg13[%c0_28, %c0_29] : memref<16x512xbf16, #tpu.memory_space<vmem>>, vector<16x512xbf16>
    %c0_30 = arith.constant 0 : index
    %c0_31 = arith.constant 0 : index
    %31 = vector.load %arg8[%c0_30, %c0_31] : memref<512x512xbf16, #tpu.memory_space<vmem>>, vector<512x512xbf16>
    %cst_32 = arith.constant dense<0.000000e+00> : vector<16x512xf32>
    %32 = tpu.matmul %30, %31, %cst_32 {dimension_numbers = #tpu.dot_dimension_numbers<[1], [0], [0], [1], [0, 0, 1, 1], [], []>} : vector<16x512xbf16>, vector<512x512xbf16>, vector<16x512xf32> -> vector<16x512xf32>
    %c0_33 = arith.constant 0 : index
    %c0_34 = arith.constant 0 : index
    %33 = vector.load %arg9[%c0_33, %c0_34] : memref<1x512xf32, #tpu.memory_space<vmem>>, vector<1x512xf32>
    %34 = vector.broadcast %33 : vector<1x512xf32> to vector<16x512xf32>
    %35 = arith.addf %32, %34 : vector<16x512xf32>
    %cst_35 = arith.constant 0.000000e+00 : f32
    %36 = vector.broadcast %cst_35 : f32 to vector<16x512xf32>
    %37 = arith.maximumf %35, %36 : vector<16x512xf32>
    %38 = arith.truncf %37 : vector<16x512xf32> to vector<16x512xbf16>
    %c0_36 = arith.constant 0 : index
    %c0_37 = arith.constant 0 : index
    %39 = vector.load %arg13[%c0_36, %c0_37] : memref<16x512xbf16, #tpu.memory_space<vmem>>, vector<16x512xbf16>
    tpu.vector_store %arg13[%c0_36, %c0_37], %38 {strides = array<i32>} : memref<16x512xbf16, #tpu.memory_space<vmem>>, vector<16x512xbf16>,
    %c0_38 = arith.constant 0 : index
    %c0_39 = arith.constant 0 : index
    %40 = vector.load %arg13[%c0_38, %c0_39] : memref<16x512xbf16, #tpu.memory_space<vmem>>, vector<16x512xbf16>
    %c0_40 = arith.constant 0 : index
    %c0_41 = arith.constant 0 : index
    %41 = vector.load %arg10[%c0_40, %c0_41] : memref<512x128xbf16, #tpu.memory_space<vmem>>, vector<512x128xbf16>
    %cst_42 = arith.constant dense<0.000000e+00> : vector<16x128xf32>
    %42 = tpu.matmul %40, %41, %cst_42 {dimension_numbers = #tpu.dot_dimension_numbers<[1], [0], [0], [1], [0, 0, 1, 1], [], []>} : vector<16x512xbf16>, vector<512x128xbf16>, vector<16x128xf32> -> vector<16x128xf32>
    %c0_43 = arith.constant 0 : index
    %c0_44 = arith.constant 0 : index
    %43 = vector.load %arg11[%c0_43, %c0_44] : memref<1x128xf32, #tpu.memory_space<vmem>>, vector<1x128xf32>
    %44 = vector.broadcast %43 : vector<1x128xf32> to vector<16x128xf32>
    %45 = arith.addf %42, %44 : vector<16x128xf32>
    %46 = arith.negf %45 : vector<16x128xf32>
    %47 = math.exp %46 : vector<16x128xf32>
    %cst_45 = arith.constant 1.000000e+00 : f32
    %48 = vector.broadcast %cst_45 : f32 to vector<16x128xf32>
    %49 = arith.addf %48, %47 : vector<16x128xf32>
    %50 = arith.divf %48, %49 : vector<16x128xf32>
    %51 = arith.truncf %50 : vector<16x128xf32> to vector<16x128xbf16>
    %c0_46 = arith.constant 0 : index
    %c0_47 = arith.constant 0 : index
    %52 = vector.load %arg12[%c0_46, %c0_47] : memref<16x128xbf16, #tpu.memory_space<vmem>>, vector<16x128xbf16>
    tpu.vector_store %arg12[%c0_46, %c0_47], %51 {strides = array<i32>} : memref<16x128xbf16, #tpu.memory_space<vmem>>, vector<16x128xbf16>,
    return
  }
  func.func @transform_0(%arg0: i32) -> (i32, i32) {
    %c0_i32 = arith.constant 0 : i32
    %c0_i32_0 = arith.constant 0 : i32
    return %arg0, %c0_i32 : i32, i32
  }
  func.func @transform_1(%arg0: i32) -> (i32, i32) {
    %c0_i32 = arith.constant 0 : i32
    %c0_i32_0 = arith.constant 0 : i32
    %c0_i32_1 = arith.constant 0 : i32
    return %c0_i32, %c0_i32_0 : i32, i32
  }
  func.func @transform_2(%arg0: i32) -> (i32, i32) {
    %c0_i32 = arith.constant 0 : i32
    %c0_i32_0 = arith.constant 0 : i32
    %c0_i32_1 = arith.constant 0 : i32
    return %c0_i32, %c0_i32_0 : i32, i32
  }
  func.func @transform_3(%arg0: i32) -> (i32, i32) {
    %c0_i32 = arith.constant 0 : i32
    %c0_i32_0 = arith.constant 0 : i32
    %c0_i32_1 = arith.constant 0 : i32
    return %c0_i32, %c0_i32_0 : i32, i32
  }
  func.func @transform_4(%arg0: i32) -> (i32, i32) {
    %c0_i32 = arith.constant 0 : i32
    %c0_i32_0 = arith.constant 0 : i32
    %c0_i32_1 = arith.constant 0 : i32
    return %c0_i32, %c0_i32_0 : i32, i32
  }
  func.func @transform_5(%arg0: i32) -> (i32, i32) {
    %c0_i32 = arith.constant 0 : i32
    %c0_i32_0 = arith.constant 0 : i32
    %c0_i32_1 = arith.constant 0 : i32
    return %c0_i32, %c0_i32_0 : i32, i32
  }
  func.func @transform_6(%arg0: i32) -> (i32, i32) {
    %c0_i32 = arith.constant 0 : i32
    %c0_i32_0 = arith.constant 0 : i32
    %c0_i32_1 = arith.constant 0 : i32
    return %c0_i32, %c0_i32_0 : i32, i32
  }
  func.func @transform_7(%arg0: i32) -> (i32, i32) {
    %c0_i32 = arith.constant 0 : i32
    %c0_i32_0 = arith.constant 0 : i32
    %c0_i32_1 = arith.constant 0 : i32
    return %c0_i32, %c0_i32_0 : i32, i32
  }
  func.func @transform_8(%arg0: i32) -> (i32, i32) {
    %c0_i32 = arith.constant 0 : i32
    %c0_i32_0 = arith.constant 0 : i32
    %c0_i32_1 = arith.constant 0 : i32
    return %c0_i32, %c0_i32_0 : i32, i32
  }
  func.func @transform_9(%arg0: i32) -> (i32, i32) {
    %c0_i32 = arith.constant 0 : i32
    %c0_i32_0 = arith.constant 0 : i32
    %c0_i32_1 = arith.constant 0 : i32
    return %c0_i32, %c0_i32_0 : i32, i32
  }
  func.func @transform_10(%arg0: i32) -> (i32, i32) {
    %c0_i32 = arith.constant 0 : i32
    %c0_i32_0 = arith.constant 0 : i32
    %c0_i32_1 = arith.constant 0 : i32
    return %c0_i32, %c0_i32_0 : i32, i32
  }
  func.func @transform_11(%arg0: i32) -> (i32, i32) {
    %c0_i32 = arith.constant 0 : i32
    %c0_i32_0 = arith.constant 0 : i32
    return %arg0, %c0_i32 : i32, i32
  }
}

module attributes {stable_mosaic.version = 11 : i64} {
  func.func @mlp2_kernel(%arg0: i32, %arg1: memref<16x32xbf16, #tpu.memory_space<vmem>>, %arg2: memref<32x512xbf16, #tpu.memory_space<vmem>>, %arg3: memref<1x512xf32, #tpu.memory_space<vmem>>, %arg4: memref<512x512xbf16, #tpu.memory_space<vmem>>, %arg5: memref<1x512xf32, #tpu.memory_space<vmem>>, %arg6: memref<512x512xbf16, #tpu.memory_space<vmem>>, %arg7: memref<1x512xf32, #tpu.memory_space<vmem>>, %arg8: memref<512x512xbf16, #tpu.memory_space<vmem>>, %arg9: memref<1x512xf32, #tpu.memory_space<vmem>>, %arg10: memref<512x128xbf16, #tpu.memory_space<vmem>>, %arg11: memref<1x128xf32, #tpu.memory_space<vmem>>, %arg12: memref<16x128xbf16, #tpu.memory_space<vmem>>, %arg13: memref<16x512xbf16, #tpu.memory_space<vmem>>) attributes {dimension_semantics = [#tpu.dimension_semantics<parallel>], iteration_bounds = array<i64: 1>, scalar_prefetch = 0 : i64, scratch_operands = 1 : i64, tpu.core_type = #tpu.core_type<tc>, window_params = [{transform_indices = @transform_0, window_bounds = array<i64: 16, 32>}, {pipeline_mode = #tpu.pipeline_mode<synchronous>, transform_indices = @transform_1, window_bounds = array<i64: 32, 512>}, {pipeline_mode = #tpu.pipeline_mode<synchronous>, transform_indices = @transform_2, window_bounds = array<i64: 1, 512>}, {pipeline_mode = #tpu.pipeline_mode<synchronous>, transform_indices = @transform_3, window_bounds = array<i64: 512, 512>}, {pipeline_mode = #tpu.pipeline_mode<synchronous>, transform_indices = @transform_4, window_bounds = array<i64: 1, 512>}, {pipeline_mode = #tpu.pipeline_mode<synchronous>, transform_indices = @transform_5, window_bounds = array<i64: 512, 512>}, {pipeline_mode = #tpu.pipeline_mode<synchronous>, transform_indices = @transform_6, window_bounds = array<i64: 1, 512>}, {pipeline_mode = #tpu.pipeline_mode<synchronous>, transform_indices = @transform_7, window_bounds = array<i64: 512, 512>}, {pipeline_mode = #tpu.pipeline_mode<synchronous>, transform_indices = @transform_8, window_bounds = array<i64: 1, 512>}, {pipeline_mode = #tpu.pipeline_mode<synchronous>, transform_indices = @transform_9, window_bounds = array<i64: 512, 128>}, {pipeline_mode = #tpu.pipeline_mode<synchronous>, transform_indices = @transform_10, window_bounds = array<i64: 1, 128>}, {transform_indices = @transform_11, window_bounds = array<i64: 16, 128>}]} {
    %c0 = arith.constant 0 : index
    %c0_0 = arith.constant 0 : index
    %0 = vector.load %arg1[%c0, %c0_0] : memref<16x32xbf16, #tpu.memory_space<vmem>>, vector<16x32xbf16>
    %c0_1 = arith.constant 0 : index
    %c0_2 = arith.constant 0 : index
    %1 = vector.load %arg2[%c0_1, %c0_2] : memref<32x512xbf16, #tpu.memory_space<vmem>>, vector<32x512xbf16>
    %cst = arith.constant dense<0.000000e+00> : vector<16x512xf32>
    %2 = tpu.matmul %0, %1, %cst {dimension_numbers = #tpu.dot_dimension_numbers<[1], [0], [0], [1], [0, 0, 1, 1], [], []>} : vector<16x32xbf16>, vector<32x512xbf16>, vector<16x512xf32> -> vector<16x512xf32>
    %c0_3 = arith.constant 0 : index
    %c0_4 = arith.constant 0 : index
    %3 = vector.load %arg3[%c0_3, %c0_4] : memref<1x512xf32, #tpu.memory_space<vmem>>, vector<1x512xf32>
    %4 = vector.broadcast %3 : vector<1x512xf32> to vector<16x512xf32>
    %5 = arith.addf %2, %4 : vector<16x512xf32>
    %cst_5 = arith.constant 0.000000e+00 : f32
    %6 = vector.broadcast %cst_5 : f32 to vector<16x512xf32>
    %7 = arith.maximumf %5, %6 : vector<16x512xf32>
    %8 = arith.truncf %7 : vector<16x512xf32> to vector<16x512xbf16>
    %c0_6 = arith.constant 0 : index
    %c0_7 = arith.constant 0 : index
    %9 = vector.load %arg13[%c0_6, %c0_7] : memref<16x512xbf16, #tpu.memory_space<vmem>>, vector<16x512xbf16>
    tpu.vector_store %arg13[%c0_6, %c0_7], %8 {strides = array<i32>} : memref<16x512xbf16, #tpu.memory_space<vmem>>, vector<16x512xbf16>,
    %c0_8 = arith.constant 0 : index
    %c0_9 = arith.constant 0 : index
    %10 = vector.load %arg13[%c0_8, %c0_9] : memref<16x512xbf16, #tpu.memory_space<vmem>>, vector<16x512xbf16>
    %c0_10 = arith.constant 0 : index
    %c0_11 = arith.constant 0 : index
    %11 = vector.load %arg4[%c0_10, %c0_11] : memref<512x512xbf16, #tpu.memory_space<vmem>>, vector<512x512xbf16>
    %cst_12 = arith.constant dense<0.000000e+00> : vector<16x512xf32>
    %12 = tpu.matmul %10, %11, %cst_12 {dimension_numbers = #tpu.dot_dimension_numbers<[1], [0], [0], [1], [0, 0, 1, 1], [], []>} : vector<16x512xbf16>, vector<512x512xbf16>, vector<16x512xf32> -> vector<16x512xf32>
    %c0_13 = arith.constant 0 : index
    %c0_14 = arith.constant 0 : index
    %13 = vector.load %arg5[%c0_13, %c0_14] : memref<1x512xf32, #tpu.memory_space<vmem>>, vector<1x512xf32>
    %14 = vector.broadcast %13 : vector<1x512xf32> to vector<16x512xf32>
    %15 = arith.addf %12, %14 : vector<16x512xf32>
    %cst_15 = arith.constant 0.000000e+00 : f32
    %16 = vector.broadcast %cst_15 : f32 to vector<16x512xf32>
    %17 = arith.maximumf %15, %16 : vector<16x512xf32>
    %18 = arith.truncf %17 : vector<16x512xf32> to vector<16x512xbf16>
    %c0_16 = arith.constant 0 : index
    %c0_17 = arith.constant 0 : index
    %19 = vector.load %arg13[%c0_16, %c0_17] : memref<16x512xbf16, #tpu.memory_space<vmem>>, vector<16x512xbf16>
    tpu.vector_store %arg13[%c0_16, %c0_17], %18 {strides = array<i32>} : memref<16x512xbf16, #tpu.memory_space<vmem>>, vector<16x512xbf16>,
    %c0_18 = arith.constant 0 : index
    %c0_19 = arith.constant 0 : index
    %20 = vector.load %arg13[%c0_18, %c0_19] : memref<16x512xbf16, #tpu.memory_space<vmem>>, vector<16x512xbf16>
    %c0_20 = arith.constant 0 : index
    %c0_21 = arith.constant 0 : index
    %21 = vector.load %arg6[%c0_20, %c0_21] : memref<512x512xbf16, #tpu.memory_space<vmem>>, vector<512x512xbf16>
    %cst_22 = arith.constant dense<0.000000e+00> : vector<16x512xf32>
    %22 = tpu.matmul %20, %21, %cst_22 {dimension_numbers = #tpu.dot_dimension_numbers<[1], [0], [0], [1], [0, 0, 1, 1], [], []>} : vector<16x512xbf16>, vector<512x512xbf16>, vector<16x512xf32> -> vector<16x512xf32>
    %c0_23 = arith.constant 0 : index
    %c0_24 = arith.constant 0 : index
    %23 = vector.load %arg7[%c0_23, %c0_24] : memref<1x512xf32, #tpu.memory_space<vmem>>, vector<1x512xf32>
    %24 = vector.broadcast %23 : vector<1x512xf32> to vector<16x512xf32>
    %25 = arith.addf %22, %24 : vector<16x512xf32>
    %cst_25 = arith.constant 0.000000e+00 : f32
    %26 = vector.broadcast %cst_25 : f32 to vector<16x512xf32>
    %27 = arith.maximumf %25, %26 : vector<16x512xf32>
    %28 = arith.truncf %27 : vector<16x512xf32> to vector<16x512xbf16>
    %c0_26 = arith.constant 0 : index
    %c0_27 = arith.constant 0 : index
    %29 = vector.load %arg13[%c0_26, %c0_27] : memref<16x512xbf16, #tpu.memory_space<vmem>>, vector<16x512xbf16>
    tpu.vector_store %arg13[%c0_26, %c0_27], %28 {strides = array<i32>} : memref<16x512xbf16, #tpu.memory_space<vmem>>, vector<16x512xbf16>,
    %c0_28 = arith.constant 0 : index
    %c0_29 = arith.constant 0 : index
    %30 = vector.load %arg13[%c0_28, %c0_29] : memref<16x512xbf16, #tpu.memory_space<vmem>>, vector<16x512xbf16>
    %c0_30 = arith.constant 0 : index
    %c0_31 = arith.constant 0 : index
    %31 = vector.load %arg8[%c0_30, %c0_31] : memref<512x512xbf16, #tpu.memory_space<vmem>>, vector<512x512xbf16>
    %cst_32 = arith.constant dense<0.000000e+00> : vector<16x512xf32>
    %32 = tpu.matmul %30, %31, %cst_32 {dimension_numbers = #tpu.dot_dimension_numbers<[1], [0], [0], [1], [0, 0, 1, 1], [], []>} : vector<16x512xbf16>, vector<512x512xbf16>, vector<16x512xf32> -> vector<16x512xf32>
    %c0_33 = arith.constant 0 : index
    %c0_34 = arith.constant 0 : index
    %33 = vector.load %arg9[%c0_33, %c0_34] : memref<1x512xf32, #tpu.memory_space<vmem>>, vector<1x512xf32>
    %34 = vector.broadcast %33 : vector<1x512xf32> to vector<16x512xf32>
    %35 = arith.addf %32, %34 : vector<16x512xf32>
    %cst_35 = arith.constant 0.000000e+00 : f32
    %36 = vector.broadcast %cst_35 : f32 to vector<16x512xf32>
    %37 = arith.maximumf %35, %36 : vector<16x512xf32>
    %38 = arith.truncf %37 : vector<16x512xf32> to vector<16x512xbf16>
    %c0_36 = arith.constant 0 : index
    %c0_37 = arith.constant 0 : index
    %39 = vector.load %arg13[%c0_36, %c0_37] : memref<16x512xbf16, #tpu.memory_space<vmem>>, vector<16x512xbf16>
    tpu.vector_store %arg13[%c0_36, %c0_37], %38 {strides = array<i32>} : memref<16x512xbf16, #tpu.memory_space<vmem>>, vector<16x512xbf16>,
    %c0_38 = arith.constant 0 : index
    %c0_39 = arith.constant 0 : index
    %40 = vector.load %arg13[%c0_38, %c0_39] : memref<16x512xbf16, #tpu.memory_space<vmem>>, vector<16x512xbf16>
    %c0_40 = arith.constant 0 : index
    %c0_41 = arith.constant 0 : index
    %41 = vector.load %arg10[%c0_40, %c0_41] : memref<512x128xbf16, #tpu.memory_space<vmem>>, vector<512x128xbf16>
    %cst_42 = arith.constant dense<0.000000e+00> : vector<16x128xf32>
    %42 = tpu.matmul %40, %41, %cst_42 {dimension_numbers = #tpu.dot_dimension_numbers<[1], [0], [0], [1], [0, 0, 1, 1], [], []>} : vector<16x512xbf16>, vector<512x128xbf16>, vector<16x128xf32> -> vector<16x128xf32>
    %c0_43 = arith.constant 0 : index
    %c0_44 = arith.constant 0 : index
    %43 = vector.load %arg11[%c0_43, %c0_44] : memref<1x128xf32, #tpu.memory_space<vmem>>, vector<1x128xf32>
    %44 = vector.broadcast %43 : vector<1x128xf32> to vector<16x128xf32>
    %45 = arith.addf %42, %44 : vector<16x128xf32>
    %46 = arith.negf %45 : vector<16x128xf32>
    %47 = math.exp %46 : vector<16x128xf32>
    %cst_45 = arith.constant 1.000000e+00 : f32
    %48 = vector.broadcast %cst_45 : f32 to vector<16x128xf32>
    %49 = arith.addf %48, %47 : vector<16x128xf32>
    %50 = arith.divf %48, %49 : vector<16x128xf32>
    %51 = arith.truncf %50 : vector<16x128xf32> to vector<16x128xbf16>
    %c0_46 = arith.constant 0 : index
    %c0_47 = arith.constant 0 : index
    %52 = vector.load %arg12[%c0_46, %c0_47] : memref<16x128xbf16, #tpu.memory_space<vmem>>, vector<16x128xbf16>
    tpu.vector_store %arg12[%c0_46, %c0_47], %51 {strides = array<i32>} : memref<16x128xbf16, #tpu.memory_space<vmem>>, vector<16x128xbf16>,
    return
  }
  func.func @transform_0(%arg0: i32) -> (i32, i32) {
    %c0_i32 = arith.constant 0 : i32
    %c0_i32_0 = arith.constant 0 : i32
    return %arg0, %c0_i32 : i32, i32
  }
  func.func @transform_1(%arg0: i32) -> (i32, i32) {
    %c0_i32 = arith.constant 0 : i32
    %c0_i32_0 = arith.constant 0 : i32
    %c0_i32_1 = arith.constant 0 : i32
    return %c0_i32, %c0_i32_0 : i32, i32
  }
  func.func @transform_2(%arg0: i32) -> (i32, i32) {
    %c0_i32 = arith.constant 0 : i32
    %c0_i32_0 = arith.constant 0 : i32
    %c0_i32_1 = arith.constant 0 : i32
    return %c0_i32, %c0_i32_0 : i32, i32
  }
  func.func @transform_3(%arg0: i32) -> (i32, i32) {
    %c0_i32 = arith.constant 0 : i32
    %c0_i32_0 = arith.constant 0 : i32
    %c0_i32_1 = arith.constant 0 : i32
    return %c0_i32, %c0_i32_0 : i32, i32
  }
  func.func @transform_4(%arg0: i32) -> (i32, i32) {
    %c0_i32 = arith.constant 0 : i32
    %c0_i32_0 = arith.constant 0 : i32
    %c0_i32_1 = arith.constant 0 : i32
    return %c0_i32, %c0_i32_0 : i32, i32
  }
  func.func @transform_5(%arg0: i32) -> (i32, i32) {
    %c0_i32 = arith.constant 0 : i32
    %c0_i32_0 = arith.constant 0 : i32
    %c0_i32_1 = arith.constant 0 : i32
    return %c0_i32, %c0_i32_0 : i32, i32
  }
  func.func @transform_6(%arg0: i32) -> (i32, i32) {
    %c0_i32 = arith.constant 0 : i32
    %c0_i32_0 = arith.constant 0 : i32
    %c0_i32_1 = arith.constant 0 : i32
    return %c0_i32, %c0_i32_0 : i32, i32
  }
  func.func @transform_7(%arg0: i32) -> (i32, i32) {
    %c0_i32 = arith.constant 0 : i32
    %c0_i32_0 = arith.constant 0 : i32
    %c0_i32_1 = arith.constant 0 : i32
    return %c0_i32, %c0_i32_0 : i32, i32
  }
  func.func @transform_8(%arg0: i32) -> (i32, i32) {
    %c0_i32 = arith.constant 0 : i32
    %c0_i32_0 = arith.constant 0 : i32
    %c0_i32_1 = arith.constant 0 : i32
    return %c0_i32, %c0_i32_0 : i32, i32
  }
  func.func @transform_9(%arg0: i32) -> (i32, i32) {
    %c0_i32 = arith.constant 0 : i32
    %c0_i32_0 = arith.constant 0 : i32
    %c0_i32_1 = arith.constant 0 : i32
    return %c0_i32, %c0_i32_0 : i32, i32
  }
  func.func @transform_10(%arg0: i32) -> (i32, i32) {
    %c0_i32 = arith.constant 0 : i32
    %c0_i32_0 = arith.constant 0 : i32
    %c0_i32_1 = arith.constant 0 : i32
    return %c0_i32, %c0_i32_0 : i32, i32
  }
  func.func @transform_11(%arg0: i32) -> (i32, i32) {
    %c0_i32 = arith.constant 0 : i32
    %c0_i32_0 = arith.constant 0 : i32
    return %arg0, %c0_i32 : i32, i32
  }
}

</mosaic_0001>

<llo_original>
// kernel: tpu_custom_call.1
$region0: #{tpu_custom_call.1}
  #allocation0 [shape = 'u32[]', space=smem, size = 0x4, offset = 0x4, fixed_abs, tag = 'smem constant byte address 0x4 - core index']
  #allocation1 [shape = 'u32[144,128]{1,0:T(1,128)}', space=vmem, size = 0x12000, scoped, tag = 'internal scratch']
  #allocation2 [shape = 'bf16[16,512]{1,0:T(16,128)(2,1)}', space=vmem, size = 0x4000, scoped, tag = 'scratch operand']
  %s0 = inlined_call_operand.hbm [shape: bf16[16,32], index: 0, kind: input, shape index: {}]
  %s1 = inlined_call_operand.hbm [shape: bf16[32,512], index: 1, kind: input, shape index: {}]
  %s2 = inlined_call_operand.vmem [shape: f32[1,512], index: 2, kind: input, shape index: {}]
  %s3 = inlined_call_operand.hbm [shape: bf16[512,512], index: 3, kind: input, shape index: {}]
  %s4 = inlined_call_operand.vmem [shape: f32[1,512], index: 4, kind: input, shape index: {}]
  %s5 = inlined_call_operand.hbm [shape: bf16[512,512], index: 5, kind: input, shape index: {}]
  %s6 = inlined_call_operand.vmem [shape: f32[1,512], index: 6, kind: input, shape index: {}]
  %s7 = inlined_call_operand.hbm [shape: bf16[512,512], index: 7, kind: input, shape index: {}]
  %s8 = inlined_call_operand.vmem [shape: f32[1,512], index: 8, kind: input, shape index: {}]
  %s9 = inlined_call_operand.hbm [shape: bf16[512,128], index: 9, kind: input, shape index: {}]
  %s10 = inlined_call_operand.vmem [shape: f32[1,128], index: 10, kind: input, shape index: {}]
  %s11 = inlined_call_operand.hbm [shape: bf16[16,128], index: 11, kind: output, shape index: {}]
  %s12 = sld [smem:[#allocation0]]
  $region78: #{tpu_custom_call.1} parent=0
    _
  %s14 = ssub.s32 1, %s12
  %s15 = scalar_select 0, %s14, %s12
  $region1: #{tpu_custom_call.1} parent=0
    #allocation3 [shape = 'u8[4096]{0}', space=vmem, size = 0x1000, scoped, tag = 'input window, operand 0, single buffered']
    #allocation4 [shape = 's32[1]{0}', space=sflag, size = 0x4, scoped, tag = 'scoped memory for tpu_custom_call.1']
    #allocation5 [shape = 's32[1]{0}', space=sflag, size = 0x4, scoped, tag = 'scoped memory for tpu_custom_call.1']
    #allocation6 [shape = 'u8[32768]{0}', space=vmem, size = 0x8000, scoped, tag = 'input window, operand 1, single buffered']
    #allocation7 [shape = 's32[1]{0}', space=sflag, size = 0x4, scoped, tag = 'scoped memory for tpu_custom_call.1']
    #allocation8 [shape = 'u8[524288]{0}', space=vmem, size = 0x80000, scoped, tag = 'input window, operand 3, single buffered']
    #allocation9 [shape = 'u8[524288]{0}', space=vmem, size = 0x80000, scoped, tag = 'input window, operand 5, single buffered']
    #allocation10 [shape = 's32[1]{0}', space=sflag, size = 0x4, scoped, tag = 'scoped memory for tpu_custom_call.1']
    #allocation11 [shape = 'u8[524288]{0}', space=vmem, size = 0x80000, scoped, tag = 'input window, operand 7, single buffered']
    #allocation12 [shape = 'u8[131072]{0}', space=vmem, size = 0x20000, scoped, tag = 'input window, operand 9, single buffered']
    #allocation13 [shape = 's32[1]{0}', space=sflag, size = 0x4, scoped, tag = 'scoped memory for tpu_custom_call.1']
    #allocation14 [shape = 'u8[4096]{0}', space=vmem, size = 0x1000, scoped, tag = 'output window, operand 0, single buffered']
    %16 = vsyncpa [#allocation4], 0
    %17 = vsyncpa [#allocation7], 0
    %18 = vsyncpa [#allocation10], 0
    %19 = vsyncpa [#allocation13], 0
    %20 = vsyncpa [#allocation5], 0
    // Predicated region
    $region2: #{tpu_custom_call.1} parent=1 // pred_check
      _
    $region3: #{tpu_custom_call.1} parent=1 // pred_check_branch
      %22 = sbr.rel (0) target = $region5
    $region4: #{tpu_custom_call.1} parent=1 // pred_region
      %s24 = ssub.s32 128, 128
      %25 = vsyncadd [#allocation4], %s24
      %s26 = sshll.u32 [#allocation3], 4
      %s27 = int_to_ptr.vmem [resolvable:$true] %s26
      %32 = dma.hbm_to_vmem [thread:$0]  %s0, 128, %s27, [#allocation4], 64, 64, 4
    $region5: #{tpu_custom_call.1} parent=1 // pred_fallthru
      _
    // Predicated region
    $region6: #{tpu_custom_call.1} parent=1 // pred_check
      _
    $region7: #{tpu_custom_call.1} parent=1 // pred_check_branch
      %34 = sbr.rel (0) target = $region9
    $region8: #{tpu_custom_call.1} parent=1 // pred_region
      %s36 = ssub.s32 1024, 1024
      %37 = vsyncadd [#allocation7], %s36
      %s38 = sshll.u32 [#allocation6], 4
      %s39 = int_to_ptr.vmem [resolvable:$true] %s38
      %44 = dma.hbm_to_vmem [thread:$0]  %s1, 1024, %s39, [#allocation7], 256, 256, 16
    $region9: #{tpu_custom_call.1} parent=1 // pred_fallthru
      _
    // Predicated region
    $region10: #{tpu_custom_call.1} parent=1 // pred_check
      _
    $region11: #{tpu_custom_call.1} parent=1 // pred_check_branch
      %46 = sbr.rel (0) target = $region13
    $region12: #{tpu_custom_call.1} parent=1 // pred_region
      _
    $region13: #{tpu_custom_call.1} parent=1 // pred_fallthru
      _
    // Predicated region
    $region14: #{tpu_custom_call.1} parent=1 // pred_check
      _
    $region15: #{tpu_custom_call.1} parent=1 // pred_check_branch
      %48 = sbr.rel (0) target = $region17
    $region16: #{tpu_custom_call.1} parent=1 // pred_region
      %s50 = ssub.s32 16384, 16384
      %51 = vsyncadd [#allocation7], %s50
      %s52 = sshll.u32 [#allocation8], 4
      %s53 = int_to_ptr.vmem [resolvable:$true] %s52
      %58 = dma.hbm_to_vmem [thread:$0]  %s3, 16384, %s53, [#allocation7], 256, 256, 16
    $region17: #{tpu_custom_call.1} parent=1 // pred_fallthru
      _
    // Predicated region
    $region18: #{tpu_custom_call.1} parent=1 // pred_check
      _
    $region19: #{tpu_custom_call.1} parent=1 // pred_check_branch
      %60 = sbr.rel (0) target = $region21
    $region20: #{tpu_custom_call.1} parent=1 // pred_region
      _
    $region21: #{tpu_custom_call.1} parent=1 // pred_fallthru
      _
    // Predicated region
    $region22: #{tpu_custom_call.1} parent=1 // pred_check
      _
    $region23: #{tpu_custom_call.1} parent=1 // pred_check_branch
      %62 = sbr.rel (0) target = $region25
    $region24: #{tpu_custom_call.1} parent=1 // pred_region
      %s64 = ssub.s32 16384, 16384
      %65 = vsyncadd [#allocation10], %s64
      %s66 = sshll.u32 [#allocation9], 4
      %s67 = int_to_ptr.vmem [resolvable:$true] %s66
      %72 = dma.hbm_to_vmem [thread:$0]  %s5, 16384, %s67, [#allocation10], 256, 256, 16
    $region25: #{tpu_custom_call.1} parent=1 // pred_fallthru
      _
    // Predicated region
    $region26: #{tpu_custom_call.1} parent=1 // pred_check
      _
    $region27: #{tpu_custom_call.1} parent=1 // pred_check_branch
      %74 = sbr.rel (0) target = $region29
    $region28: #{tpu_custom_call.1} parent=1 // pred_region
      _
    $region29: #{tpu_custom_call.1} parent=1 // pred_fallthru
      _
    // Predicated region
    $region30: #{tpu_custom_call.1} parent=1 // pred_check
      _
    $region31: #{tpu_custom_call.1} parent=1 // pred_check_branch
      %76 = sbr.rel (0) target = $region33
    $region32: #{tpu_custom_call.1} parent=1 // pred_region
      %s78 = ssub.s32 16384, 16384
      %79 = vsyncadd [#allocation10], %s78
      %s80 = sshll.u32 [#allocation11], 4
      %s81 = int_to_ptr.vmem [resolvable:$true] %s80
      %86 = dma.hbm_to_vmem [thread:$0]  %s7, 16384, %s81, [#allocation10], 256, 256, 16
    $region33: #{tpu_custom_call.1} parent=1 // pred_fallthru
      _
    // Predicated region
    $region34: #{tpu_custom_call.1} parent=1 // pred_check
      _
    $region35: #{tpu_custom_call.1} parent=1 // pred_check_branch
      %88 = sbr.rel (0) target = $region37
    $region36: #{tpu_custom_call.1} parent=1 // pred_region
      _
    $region37: #{tpu_custom_call.1} parent=1 // pred_fallthru
      _
    // Predicated region
    $region38: #{tpu_custom_call.1} parent=1 // pred_check
      _
    $region39: #{tpu_custom_call.1} parent=1 // pred_check_branch
      %90 = sbr.rel (0) target = $region41
    $region40: #{tpu_custom_call.1} parent=1 // pred_region
      %s92 = ssub.s32 4096, 4096
      %93 = vsyncadd [#allocation13], %s92
      %s94 = sshll.u32 [#allocation12], 4
      %s95 = int_to_ptr.vmem [resolvable:$true] %s94
      %100 = dma.hbm_to_vmem [thread:$0]  %s9, 4096, %s95, [#allocation13], 64, 64, 4
    $region41: #{tpu_custom_call.1} parent=1 // pred_fallthru
      _
    // Predicated region
    $region42: #{tpu_custom_call.1} parent=1 // pred_check
      _
    $region43: #{tpu_custom_call.1} parent=1 // pred_check_branch
      %102 = sbr.rel (0) target = $region45
    $region44: #{tpu_custom_call.1} parent=1 // pred_region
      _
    $region45: #{tpu_custom_call.1} parent=1 // pred_fallthru
      _
    // Predicated region
    $region46: #{tpu_custom_call.1} parent=1 // pred_check
      _
    $region47: #{tpu_custom_call.1} parent=1 // pred_check_branch
      %104 = sbr.rel (0) target = $region49
    $region48: #{tpu_custom_call.1} parent=1 // pred_region
      %105 = dma.done [#allocation4], 128
    $region49: #{tpu_custom_call.1} parent=1 // pred_fallthru
      _
    // Predicated region
    $region50: #{tpu_custom_call.1} parent=1 // pred_check
      _
    $region51: #{tpu_custom_call.1} parent=1 // pred_check_branch
      %107 = sbr.rel (0) target = $region53
    $region52: #{tpu_custom_call.1} parent=1 // pred_region
      %108 = dma.done [#allocation7], 1024
    $region53: #{tpu_custom_call.1} parent=1 // pred_fallthru
      _
    // Predicated region
    $region54: #{tpu_custom_call.1} parent=1 // pred_check
      _
    $region55: #{tpu_custom_call.1} parent=1 // pred_check_branch
      %110 = sbr.rel (0) target = $region57
    $region56: #{tpu_custom_call.1} parent=1 // pred_region
      %111 = dma.done [#allocation7], 16384
    $region57: #{tpu_custom_call.1} parent=1 // pred_fallthru
      _
    // Predicated region
    $region58: #{tpu_custom_call.1} parent=1 // pred_check
      _
    $region59: #{tpu_custom_call.1} parent=1 // pred_check_branch
      %113 = sbr.rel (0) target = $region61
    $region60: #{tpu_custom_call.1} parent=1 // pred_region
      %114 = dma.done [#allocation10], 16384
    $region61: #{tpu_custom_call.1} parent=1 // pred_fallthru
      _
    // Predicated region
    $region62: #{tpu_custom_call.1} parent=1 // pred_check
      _
    $region63: #{tpu_custom_call.1} parent=1 // pred_check_branch
      %116 = sbr.rel (0) target = $region65
    $region64: #{tpu_custom_call.1} parent=1 // pred_region
      %117 = dma.done [#allocation10], 16384
    $region65: #{tpu_custom_call.1} parent=1 // pred_fallthru
      _
    // Predicated region
    $region66: #{tpu_custom_call.1} parent=1 // pred_check
      _
    $region67: #{tpu_custom_call.1} parent=1 // pred_check_branch
      %119 = sbr.rel (0) target = $region69
    $region68: #{tpu_custom_call.1} parent=1 // pred_region
      %120 = dma.done [#allocation13], 4096
    $region69: #{tpu_custom_call.1} parent=1 // pred_fallthru
      _
    %v122 = vld [vmem:[#allocation3] sm:$0xf]
    %v123 = vld [vmem:[#allocation3 + $0x4] sm:$0xf]
    %v124 = vld [vmem:[#allocation6] sm:$0xff]
    %v125 = vld [vmem:[#allocation6 + $0x8] sm:$0xff]
    %v126 = vld [vmem:[#allocation6 + $0x10] sm:$0xff]
    %v127 = vld [vmem:[#allocation6 + $0x18] sm:$0xff]
    %v128 = vld [vmem:[#allocation6 + $0x20] sm:$0xff]
    %v129 = vld [vmem:[#allocation6 + $0x28] sm:$0xff]
    %v130 = vld [vmem:[#allocation6 + $0x30] sm:$0xff]
    %v131 = vld [vmem:[#allocation6 + $0x38] sm:$0xff]
    %v132 = vld [vmem:[%s2] sm:$0xf]
    %v134 = vlaneseq
    %v135 = vshrl.u32 %v134, 7
    %v136 = vsub.s32 0, %v135
    %v137 = vrot.slane %v132, %v136
    %v138 = vlaneseq
    %v139 = vshrl.u32 %v138, 7
    %v140 = vsub.s32 1, %v139
    %v141 = vrot.slane %v132, %v140
    %v142 = vlaneseq
    %v143 = vshrl.u32 %v142, 7
    %v144 = vsub.s32 2, %v143
    %v145 = vrot.slane %v132, %v144
    %v146 = vlaneseq
    %v147 = vshrl.u32 %v146, 7
    %v148 = vsub.s32 3, %v147
    %v149 = vrot.slane %v132, %v148
    %v156 = vunpack.c.l.b16 %v122
    %v157 = vunpack.c.l.b16 %v123
    %v158 = vpack.c.b16 %v157, %v156
    %v167 = vunpack.c.l.b16 %v124
    %v168 = vunpack.c.h.b16 %v124
    %v169 = vunpack.c.l.b16 %v125
    %v170 = vunpack.c.h.b16 %v125
    %v171 = vunpack.c.l.b16 %v126
    %v172 = vunpack.c.h.b16 %v126
    %v173 = vunpack.c.l.b16 %v127
    %v174 = vunpack.c.h.b16 %v127
    %v175 = vunpack.c.l.b16 %v128
    %v176 = vunpack.c.h.b16 %v128
    %v177 = vunpack.c.l.b16 %v129
    %v178 = vunpack.c.h.b16 %v129
    %v179 = vunpack.c.l.b16 %v130
    %v180 = vunpack.c.h.b16 %v130
    %v181 = vunpack.c.l.b16 %v131
    %v182 = vunpack.c.h.b16 %v131
    %v183 = vpack.c.b16 %v171, %v167
    %v184 = vpack.c.b16 %v172, %v168
    %v185 = vpack.c.b16 %v173, %v169
    %v186 = vpack.c.b16 %v174, %v170
    %v187 = vpack.c.b16 %v179, %v175
    %v188 = vpack.c.b16 %v180, %v176
    %v189 = vpack.c.b16 %v181, %v177
    %v190 = vpack.c.b16 %v182, %v178
    %vm199 = vcmask 261120
    %v201 = vsel %vm199, %v158, 0
    %203 = vmatprep.subr.bf16.mxu0 %v184
    %204 = vmatpush1.bf16.msra.mxu0 %v183
    %205 = vmatprep.subr.bf16.mxu0 %v188
    %206 = vmatpush1.bf16.msra.mxu0 %v187
    %207 = vmatprep.subr.bf16.mxu0 0
    %208 = vmatpush1.bf16.msra.mxu0 0
    %209 = vmatprep.subr.bf16.mxu0 0
    %210 = vmatpush1.bf16.msra.mxu0 0
    %211 = vmatprep.subr.bf16.mxu0 0
    %212 = vmatpush1.bf16.msra.mxu0 0
    %213 = vmatprep.subr.bf16.mxu0 0
    %214 = vmatpush1.bf16.msra.mxu0 0
    %215 = vmatprep.subr.bf16.mxu0 0
    %216 = vmatpush1.bf16.msra.mxu0 0
    %217 = vmatprep.subr.bf16.mxu0 0
    %218 = vmatpush1.bf16.msra.mxu0 0
    %219 = vmatprep.subr.bf16.mxu0 0
    %220 = vmatpush1.bf16.msra.mxu0 0
    %221 = vmatprep.subr.bf16.mxu0 0
    %222 = vmatpush1.bf16.msra.mxu0 0
    %223 = vmatprep.subr.bf16.mxu0 0
    %224 = vmatpush1.bf16.msra.mxu0 0
    %225 = vmatprep.subr.bf16.mxu0 0
    %226 = vmatpush1.bf16.msra.mxu0 0
    %227 = vmatprep.subr.bf16.mxu0 0
    %228 = vmatpush1.bf16.msra.mxu0 0
    %229 = vmatprep.subr.bf16.mxu0 0
    %230 = vmatpush1.bf16.msra.mxu0 0
    %231 = vmatprep.subr.bf16.mxu0 0
    %232 = vmatpush1.bf16.msra.mxu0 0
    %233 = vmatprep.subr.bf16.mxu0 0
    %234 = vmatpush1.bf16.msra.mxu0 0
    %235 = vmatprep.mubr.bf16.mxu0 0
    %236 = vmatmul.mubr.bf16.gmra.mrb[0].mxu0 %v201
    %v237 = vpop.f32.mrb[0].mxu0
    %v238 = vadd.f32 %v137, %v237
    %v239 = vpop.f32.mrb[0].mxu0
    %v240 = vadd.f32 %v141, %v239
    %v241 = vpop.f32.mrb[0].mxu0
    %v242 = vadd.f32 %v137, %v241
    %v243 = vpop.f32.mrb[0].mxu0
    %v244 = vadd.f32 %v141, %v243
    %245 = vdwg.mxu0
    %246 = vmatprep.subr.bf16.mxu0 %v186
    %247 = vmatpush1.bf16.msra.mxu0 %v185
    %248 = vmatprep.subr.bf16.mxu0 %v190
    %249 = vmatpush1.bf16.msra.mxu0 %v189
    %250 = vmatprep.subr.bf16.mxu0 0
    %251 = vmatpush1.bf16.msra.mxu0 0
    %252 = vmatprep.subr.bf16.mxu0 0
    %253 = vmatpush1.bf16.msra.mxu0 0
    %254 = vmatprep.subr.bf16.mxu0 0
    %255 = vmatpush1.bf16.msra.mxu0 0
    %256 = vmatprep.subr.bf16.mxu0 0
    %257 = vmatpush1.bf16.msra.mxu0 0
    %258 = vmatprep.subr.bf16.mxu0 0
    %259 = vmatpush1.bf16.msra.mxu0 0
    %260 = vmatprep.subr.bf16.mxu0 0
    %261 = vmatpush1.bf16.msra.mxu0 0
    %262 = vmatprep.subr.bf16.mxu0 0
    %263 = vmatpush1.bf16.msra.mxu0 0
    %264 = vmatprep.subr.bf16.mxu0 0
    %265 = vmatpush1.bf16.msra.mxu0 0
    %266 = vmatprep.subr.bf16.mxu0 0
    %267 = vmatpush1.bf16.msra.mxu0 0
    %268 = vmatprep.subr.bf16.mxu0 0
    %269 = vmatpush1.bf16.msra.mxu0 0
    %270 = vmatprep.subr.bf16.mxu0 0
    %271 = vmatpush1.bf16.msra.mxu0 0
    %272 = vmatprep.subr.bf16.mxu0 0
    %273 = vmatpush1.bf16.msra.mxu0 0
    %274 = vmatprep.subr.bf16.mxu0 0
    %275 = vmatpush1.bf16.msra.mxu0 0
    %276 = vmatprep.subr.bf16.mxu0 0
    %277 = vmatpush1.bf16.msra.mxu0 0
    %278 = vmatprep.mubr.bf16.mxu0 0
    %279 = vmatmul.mubr.bf16.gmra.mrb[0].mxu0 %v201
    %v280 = vpop.f32.mrb[0].mxu0
    %v281 = vadd.f32 %v145, %v280
    %v282 = vpop.f32.mrb[0].mxu0
    %v283 = vadd.f32 %v149, %v282
    %v284 = vpop.f32.mrb[0].mxu0
    %v285 = vadd.f32 %v145, %v284
    %v286 = vpop.f32.mrb[0].mxu0
    %v287 = vadd.f32 %v149, %v286
    %288 = vdwg.mxu0
    %v289 = vmax.f32 %v238, 0.0
    %v290 = vmax.f32 %v240, 0.0
    %v291 = vmax.f32 %v281, 0.0
    %v292 = vmax.f32 %v283, 0.0
    %v293 = vmax.f32 %v242, 0.0
    %v294 = vmax.f32 %v244, 0.0
    %v295 = vmax.f32 %v285, 0.0
    %v296 = vmax.f32 %v287, 0.0
    %v297 = vpack.c.bf16 %v293, %v289
    %v298 = vpack.c.bf16 %v294, %v290
    %v299 = vpack.c.bf16 %v295, %v291
    %v300 = vpack.c.bf16 %v296, %v292
    %301 = vst [vmem:[#allocation2] sm:$0xff] %v297
    %302 = vst [vmem:[#allocation2 + $0x8] sm:$0xff] %v298
    %303 = vst [vmem:[#allocation2 + $0x10] sm:$0xff] %v299
    %304 = vst [vmem:[#allocation2 + $0x18] sm:$0xff] %v300
    %v305 = vld [vmem:[#allocation2] sm:$0xff]
    %v306 = vld [vmem:[#allocation2 + $0x8] sm:$0xff]
    %v307 = vld [vmem:[#allocation2 + $0x10] sm:$0xff]
    %v308 = vld [vmem:[#allocation2 + $0x18] sm:$0xff]
    %v309 = vld [vmem:[#allocation8] sm:$0xff]
    %v310 = vld [vmem:[#allocation8 + $0x8] sm:$0xff]
    %v311 = vld [vmem:[#allocation8 + $0x10] sm:$0xff]
    %v312 = vld [vmem:[#allocation8 + $0x18] sm:$0xff]
    %v313 = vld [vmem:[#allocation8 + $0x20] sm:$0xff]
    %v314 = vld [vmem:[#allocation8 + $0x28] sm:$0xff]
    %v315 = vld [vmem:[#allocation8 + $0x30] sm:$0xff]
    %v316 = vld [vmem:[#allocation8 + $0x38] sm:$0xff]
    %v317 = vld [vmem:[#allocation8 + $0x40] sm:$0xff]
    %v318 = vld [vmem:[#allocation8 + $0x48] sm:$0xff]
    %v319 = vld [vmem:[#allocation8 + $0x50] sm:$0xff]
    %v320 = vld [vmem:[#allocation8 + $0x58] sm:$0xff]
    %v321 = vld [vmem:[#allocation8 + $0x60] sm:$0xff]
    %v322 = vld [vmem:[#allocation8 + $0x68] sm:$0xff]
    %v323 = vld [vmem:[#allocation8 + $0x70] sm:$0xff]
    %v324 = vld [vmem:[#allocation8 + $0x78] sm:$0xff]
    %v325 = vld [vmem:[#allocation8 + $0x80] sm:$0xff]
    %v326 = vld [vmem:[#allocation8 + $0x88] sm:$0xff]
    %v327 = vld [vmem:[#allocation8 + $0x90] sm:$0xff]
    %v328 = vld [vmem:[#allocation8 + $0x98] sm:$0xff]
    %v329 = vld [vmem:[#allocation8 + $0xa0] sm:$0xff]
    %v330 = vld [vmem:[#allocation8 + $0xa8] sm:$0xff]
    %v331 = vld [vmem:[#allocation8 + $0xb0] sm:$0xff]
    %v332 = vld [vmem:[#allocation8 + $0xb8] sm:$0xff]
    %v333 = vld [vmem:[#allocation8 + $0xc0] sm:$0xff]
    %v334 = vld [vmem:[#allocation8 + $0xc8] sm:$0xff]
    %v335 = vld [vmem:[#allocation8 + $0xd0] sm:$0xff]
    %v336 = vld [vmem:[#allocation8 + $0xd8] sm:$0xff]
    %v337 = vld [vmem:[#allocation8 + $0xe0] sm:$0xff]
    %v338 = vld [vmem:[#allocation8 + $0xe8] sm:$0xff]
    %v339 = vld [vmem:[#allocation8 + $0xf0] sm:$0xff]
    %v340 = vld [vmem:[#allocation8 + $0xf8] sm:$0xff]
    %v341 = vld [vmem:[#allocation8 + $0x100] sm:$0xff]
    %v342 = vld [vmem:[#allocation8 + $0x108] sm:$0xff]
    %v343 = vld [vmem:[#allocation8 + $0x110] sm:$0xff]
    %v344 = vld [vmem:[#allocation8 + $0x118] sm:$0xff]
    %v345 = vld [vmem:[#allocation8 + $0x120] sm:$0xff]
    %v346 = vld [vmem:[#allocation8 + $0x128] sm:$0xff]
    %v347 = vld [vmem:[#allocation8 + $0x130] sm:$0xff]
    %v348 = vld [vmem:[#allocation8 + $0x138] sm:$0xff]
    %v349 = vld [vmem:[#allocation8 + $0x140] sm:$0xff]
    %v350 = vld [vmem:[#allocation8 + $0x148] sm:$0xff]
    %v351 = vld [vmem:[#allocation8 + $0x150] sm:$0xff]
    %v352 = vld [vmem:[#allocation8 + $0x158] sm:$0xff]
    %v353 = vld [vmem:[#allocation8 + $0x160] sm:$0xff]
    %v354 = vld [vmem:[#allocation8 + $0x168] sm:$0xff]
    %v355 = vld [vmem:[#allocation8 + $0x170] sm:$0xff]
    %v356 = vld [vmem:[#allocation8 + $0x178] sm:$0xff]
    %v357 = vld [vmem:[#allocation8 + $0x180] sm:$0xff]
    %v358 = vld [vmem:[#allocation8 + $0x188] sm:$0xff]
    %v359 = vld [vmem:[#allocation8 + $0x190] sm:$0xff]
    %v360 = vld [vmem:[#allocation8 + $0x198] sm:$0xff]
    %v361 = vld [vmem:[#allocation8 + $0x1a0] sm:$0xff]
    %v362 = vld [vmem:[#allocation8 + $0x1a8] sm:$0xff]
    %v363 = vld [vmem:[#allocation8 + $0x1b0] sm:$0xff]
    %v364 = vld [vmem:[#allocation8 + $0x1b8] sm:$0xff]
    %v365 = vld [vmem:[#allocation8 + $0x1c0] sm:$0xff]
    %v366 = vld [vmem:[#allocation8 + $0x1c8] sm:$0xff]
    %v367 = vld [vmem:[#allocation8 + $0x1d0] sm:$0xff]
    %v368 = vld [vmem:[#allocation8 + $0x1d8] sm:$0xff]
    %v369 = vld [vmem:[#allocation8 + $0x1e0] sm:$0xff]
    %v370 = vld [vmem:[#allocation8 + $0x1e8] sm:$0xff]
    %v371 = vld [vmem:[#allocation8 + $0x1f0] sm:$0xff]
    %v372 = vld [vmem:[#allocation8 + $0x1f8] sm:$0xff]
    %v373 = vld [vmem:[#allocation8 + $0x200] sm:$0xff]
    %v374 = vld [vmem:[#allocation8 + $0x208] sm:$0xff]
    %v375 = vld [vmem:[#allocation8 + $0x210] sm:$0xff]
    %v376 = vld [vmem:[#allocation8 + $0x218] sm:$0xff]
    %v377 = vld [vmem:[#allocation8 + $0x220] sm:$0xff]
    %v378 = vld [vmem:[#allocation8 + $0x228] sm:$0xff]
    %v379 = vld [vmem:[#allocation8 + $0x230] sm:$0xff]
    %v380 = vld [vmem:[#allocation8 + $0x238] sm:$0xff]
    %v381 = vld [vmem:[#allocation8 + $0x240] sm:$0xff]
    %v382 = vld [vmem:[#allocation8 + $0x248] sm:$0xff]
    %v383 = vld [vmem:[#allocation8 + $0x250] sm:$0xff]
    %v384 = vld [vmem:[#allocation8 + $0x258] sm:$0xff]
    %v385 = vld [vmem:[#allocation8 + $0x260] sm:$0xff]
    %v386 = vld [vmem:[#allocation8 + $0x268] sm:$0xff]
    %v387 = vld [vmem:[#allocation8 + $0x270] sm:$0xff]
    %v388 = vld [vmem:[#allocation8 + $0x278] sm:$0xff]
    %v389 = vld [vmem:[#allocation8 + $0x280] sm:$0xff]
    %v390 = vld [vmem:[#allocation8 + $0x288] sm:$0xff]
    %v391 = vld [vmem:[#allocation8 + $0x290] sm:$0xff]
    %v392 = vld [vmem:[#allocation8 + $0x298] sm:$0xff]
    %v393 = vld [vmem:[#allocation8 + $0x2a0] sm:$0xff]
    %v394 = vld [vmem:[#allocation8 + $0x2a8] sm:$0xff]
    %v395 = vld [vmem:[#allocation8 + $0x2b0] sm:$0xff]
    %v396 = vld [vmem:[#allocation8 + $0x2b8] sm:$0xff]
    %v397 = vld [vmem:[#allocation8 + $0x2c0] sm:$0xff]
    %v398 = vld [vmem:[#allocation8 + $0x2c8] sm:$0xff]
    %v399 = vld [vmem:[#allocation8 + $0x2d0] sm:$0xff]
    %v400 = vld [vmem:[#allocation8 + $0x2d8] sm:$0xff]
    %v401 = vld [vmem:[#allocation8 + $0x2e0] sm:$0xff]
    %v402 = vld [vmem:[#allocation8 + $0x2e8] sm:$0xff]
    %v403 = vld [vmem:[#allocation8 + $0x2f0] sm:$0xff]
    %v404 = vld [vmem:[#allocation8 + $0x2f8] sm:$0xff]
    %v405 = vld [vmem:[#allocation8 + $0x300] sm:$0xff]
    %v406 = vld [vmem:[#allocation8 + $0x308] sm:$0xff]
    %v407 = vld [vmem:[#allocation8 + $0x310] sm:$0xff]
    %v408 = vld [vmem:[#allocation8 + $0x318] sm:$0xff]
    %v409 = vld [vmem:[#allocation8 + $0x320] sm:$0xff]
    %v410 = vld [vmem:[#allocation8 + $0x328] sm:$0xff]
    %v411 = vld [vmem:[#allocation8 + $0x330] sm:$0xff]
    %v412 = vld [vmem:[#allocation8 + $0x338] sm:$0xff]
    %v413 = vld [vmem:[#allocation8 + $0x340] sm:$0xff]
    %v414 = vld [vmem:[#allocation8 + $0x348] sm:$0xff]
    %v415 = vld [vmem:[#allocation8 + $0x350] sm:$0xff]
    %v416 = vld [vmem:[#allocation8 + $0x358] sm:$0xff]
    %v417 = vld [vmem:[#allocation8 + $0x360] sm:$0xff]
    %v418 = vld [vmem:[#allocation8 + $0x368] sm:$0xff]
    %v419 = vld [vmem:[#allocation8 + $0x370] sm:$0xff]
    %v420 = vld [vmem:[#allocation8 + $0x378] sm:$0xff]
    %v421 = vld [vmem:[#allocation8 + $0x380] sm:$0xff]
    %v422 = vld [vmem:[#allocation8 + $0x388] sm:$0xff]
    %v423 = vld [vmem:[#allocation8 + $0x390] sm:$0xff]
    %v424 = vld [vmem:[#allocation8 + $0x398] sm:$0xff]
    %v425 = vld [vmem:[#allocation8 + $0x3a0] sm:$0xff]
    %v426 = vld [vmem:[#allocation8 + $0x3a8] sm:$0xff]
    %v427 = vld [vmem:[#allocation8 + $0x3b0] sm:$0xff]
    %v428 = vld [vmem:[#allocation8 + $0x3b8] sm:$0xff]
    %v429 = vld [vmem:[#allocation8 + $0x3c0] sm:$0xff]
    %v430 = vld [vmem:[#allocation8 + $0x3c8] sm:$0xff]
    %v431 = vld [vmem:[#allocation8 + $0x3d0] sm:$0xff]
    %v432 = vld [vmem:[#allocation8 + $0x3d8] sm:$0xff]
    %v433 = vld [vmem:[#allocation8 + $0x3e0] sm:$0xff]
    %v434 = vld [vmem:[#allocation8 + $0x3e8] sm:$0xff]
    %v435 = vld [vmem:[#allocation8 + $0x3f0] sm:$0xff]
    %v436 = vld [vmem:[#allocation8 + $0x3f8] sm:$0xff]
    %v437 = vld [vmem:[%s4] sm:$0xf]
    %v439 = vlaneseq
    %v440 = vshrl.u32 %v439, 7
    %v441 = vsub.s32 0, %v440
    %v442 = vrot.slane %v437, %v441
    %v443 = vlaneseq
    %v444 = vshrl.u32 %v443, 7
    %v445 = vsub.s32 1, %v444
    %v446 = vrot.slane %v437, %v445
    %v447 = vlaneseq
    %v448 = vshrl.u32 %v447, 7
    %v449 = vsub.s32 2, %v448
    %v450 = vrot.slane %v437, %v449
    %v451 = vlaneseq
    %v452 = vshrl.u32 %v451, 7
    %v453 = vsub.s32 3, %v452
    %v454 = vrot.slane %v437, %v453
    %v587 = vunpack.c.l.b16 %v309
    %v588 = vunpack.c.h.b16 %v309
    %v589 = vunpack.c.l.b16 %v310
    %v590 = vunpack.c.h.b16 %v310
    %v591 = vunpack.c.l.b16 %v311
    %v592 = vunpack.c.h.b16 %v311
    %v593 = vunpack.c.l.b16 %v312
    %v594 = vunpack.c.h.b16 %v312
    %v595 = vunpack.c.l.b16 %v313
    %v596 = vunpack.c.h.b16 %v313
    %v597 = vunpack.c.l.b16 %v314
    %v598 = vunpack.c.h.b16 %v314
    %v599 = vunpack.c.l.b16 %v315
    %v600 = vunpack.c.h.b16 %v315
    %v601 = vunpack.c.l.b16 %v316
    %v602 = vunpack.c.h.b16 %v316
    %v603 = vunpack.c.l.b16 %v317
    %v604 = vunpack.c.h.b16 %v317
    %v605 = vunpack.c.l.b16 %v318
    %v606 = vunpack.c.h.b16 %v318
    %v607 = vunpack.c.l.b16 %v319
    %v608 = vunpack.c.h.b16 %v319
    %v609 = vunpack.c.l.b16 %v320
    %v610 = vunpack.c.h.b16 %v320
    %v611 = vunpack.c.l.b16 %v321
    %v612 = vunpack.c.h.b16 %v321
    %v613 = vunpack.c.l.b16 %v322
    %v614 = vunpack.c.h.b16 %v322
    %v615 = vunpack.c.l.b16 %v323
    %v616 = vunpack.c.h.b16 %v323
    %v617 = vunpack.c.l.b16 %v324
    %v618 = vunpack.c.h.b16 %v324
    %v619 = vunpack.c.l.b16 %v325
    %v620 = vunpack.c.h.b16 %v325
    %v621 = vunpack.c.l.b16 %v326
    %v622 = vunpack.c.h.b16 %v326
    %v623 = vunpack.c.l.b16 %v327
    %v624 = vunpack.c.h.b16 %v327
    %v625 = vunpack.c.l.b16 %v328
    %v626 = vunpack.c.h.b16 %v328
    %v627 = vunpack.c.l.b16 %v329
    %v628 = vunpack.c.h.b16 %v329
    %v629 = vunpack.c.l.b16 %v330
    %v630 = vunpack.c.h.b16 %v330
    %v631 = vunpack.c.l.b16 %v331
    %v632 = vunpack.c.h.b16 %v331
    %v633 = vunpack.c.l.b16 %v332
    %v634 = vunpack.c.h.b16 %v332
    %v635 = vunpack.c.l.b16 %v333
    %v636 = vunpack.c.h.b16 %v333
    %v637 = vunpack.c.l.b16 %v334
    %v638 = vunpack.c.h.b16 %v334
    %v639 = vunpack.c.l.b16 %v335
    %v640 = vunpack.c.h.b16 %v335
    %v641 = vunpack.c.l.b16 %v336
    %v642 = vunpack.c.h.b16 %v336
    %v643 = vunpack.c.l.b16 %v337
    %v644 = vunpack.c.h.b16 %v337
    %v645 = vunpack.c.l.b16 %v338
    %v646 = vunpack.c.h.b16 %v338
    %v647 = vunpack.c.l.b16 %v339
    %v648 = vunpack.c.h.b16 %v339
    %v649 = vunpack.c.l.b16 %v340
    %v650 = vunpack.c.h.b16 %v340
    %v651 = vunpack.c.l.b16 %v341
    %v652 = vunpack.c.h.b16 %v341
    %v653 = vunpack.c.l.b16 %v342
    %v654 = vunpack.c.h.b16 %v342
    %v655 = vunpack.c.l.b16 %v343
    %v656 = vunpack.c.h.b16 %v343
    %v657 = vunpack.c.l.b16 %v344
    %v658 = vunpack.c.h.b16 %v344
    %v659 = vunpack.c.l.b16 %v345
    %v660 = vunpack.c.h.b16 %v345
    %v661 = vunpack.c.l.b16 %v346
    %v662 = vunpack.c.h.b16 %v346
    %v663 = vunpack.c.l.b16 %v347
    %v664 = vunpack.c.h.b16 %v347
    %v665 = vunpack.c.l.b16 %v348
    %v666 = vunpack.c.h.b16 %v348
    %v667 = vunpack.c.l.b16 %v349
    %v668 = vunpack.c.h.b16 %v349
    %v669 = vunpack.c.l.b16 %v350
    %v670 = vunpack.c.h.b16 %v350
    %v671 = vunpack.c.l.b16 %v351
    %v672 = vunpack.c.h.b16 %v351
    %v673 = vunpack.c.l.b16 %v352
    %v674 = vunpack.c.h.b16 %v352
    %v675 = vunpack.c.l.b16 %v353
    %v676 = vunpack.c.h.b16 %v353
    %v677 = vunpack.c.l.b16 %v354
    %v678 = vunpack.c.h.b16 %v354
    %v679 = vunpack.c.l.b16 %v355
    %v680 = vunpack.c.h.b16 %v355
    %v681 = vunpack.c.l.b16 %v356
    %v682 = vunpack.c.h.b16 %v356
    %v683 = vunpack.c.l.b16 %v357
    %v684 = vunpack.c.h.b16 %v357
    %v685 = vunpack.c.l.b16 %v358
    %v686 = vunpack.c.h.b16 %v358
    %v687 = vunpack.c.l.b16 %v359
    %v688 = vunpack.c.h.b16 %v359
    %v689 = vunpack.c.l.b16 %v360
    %v690 = vunpack.c.h.b16 %v360
    %v691 = vunpack.c.l.b16 %v361
    %v692 = vunpack.c.h.b16 %v361
    %v693 = vunpack.c.l.b16 %v362
    %v694 = vunpack.c.h.b16 %v362
    %v695 = vunpack.c.l.b16 %v363
    %v696 = vunpack.c.h.b16 %v363
    %v697 = vunpack.c.l.b16 %v364
    %v698 = vunpack.c.h.b16 %v364
    %v699 = vunpack.c.l.b16 %v365
    %v700 = vunpack.c.h.b16 %v365
    %v701 = vunpack.c.l.b16 %v366
    %v702 = vunpack.c.h.b16 %v366
    %v703 = vunpack.c.l.b16 %v367
    %v704 = vunpack.c.h.b16 %v367
    %v705 = vunpack.c.l.b16 %v368
    %v706 = vunpack.c.h.b16 %v368
    %v707 = vunpack.c.l.b16 %v369
    %v708 = vunpack.c.h.b16 %v369
    %v709 = vunpack.c.l.b16 %v370
    %v710 = vunpack.c.h.b16 %v370
    %v711 = vunpack.c.l.b16 %v371
    %v712 = vunpack.c.h.b16 %v371
    %v713 = vunpack.c.l.b16 %v372
    %v714 = vunpack.c.h.b16 %v372
    %v715 = vunpack.c.l.b16 %v373
    %v716 = vunpack.c.h.b16 %v373
    %v717 = vunpack.c.l.b16 %v374
    %v718 = vunpack.c.h.b16 %v374
    %v719 = vunpack.c.l.b16 %v375
    %v720 = vunpack.c.h.b16 %v375
    %v721 = vunpack.c.l.b16 %v376
    %v722 = vunpack.c.h.b16 %v376
    %v723 = vunpack.c.l.b16 %v377
    %v724 = vunpack.c.h.b16 %v377
    %v725 = vunpack.c.l.b16 %v378
    %v726 = vunpack.c.h.b16 %v378
    %v727 = vunpack.c.l.b16 %v379
    %v728 = vunpack.c.h.b16 %v379
    %v729 = vunpack.c.l.b16 %v380
    %v730 = vunpack.c.h.b16 %v380
    %v731 = vunpack.c.l.b16 %v381
    %v732 = vunpack.c.h.b16 %v381
    %v733 = vunpack.c.l.b16 %v382
    %v734 = vunpack.c.h.b16 %v382
    %v735 = vunpack.c.l.b16 %v383
    %v736 = vunpack.c.h.b16 %v383
    %v737 = vunpack.c.l.b16 %v384
    %v738 = vunpack.c.h.b16 %v384
    %v739 = vunpack.c.l.b16 %v385
    %v740 = vunpack.c.h.b16 %v385
    %v741 = vunpack.c.l.b16 %v386
    %v742 = vunpack.c.h.b16 %v386
    %v743 = vunpack.c.l.b16 %v387
    %v744 = vunpack.c.h.b16 %v387
    %v745 = vunpack.c.l.b16 %v388
    %v746 = vunpack.c.h.b16 %v388
    %v747 = vunpack.c.l.b16 %v389
    %v748 = vunpack.c.h.b16 %v389
    %v749 = vunpack.c.l.b16 %v390
    %v750 = vunpack.c.h.b16 %v390
    %v751 = vunpack.c.l.b16 %v391
    %v752 = vunpack.c.h.b16 %v391
    %v753 = vunpack.c.l.b16 %v392
    %v754 = vunpack.c.h.b16 %v392
    %v755 = vunpack.c.l.b16 %v393
    %v756 = vunpack.c.h.b16 %v393
    %v757 = vunpack.c.l.b16 %v394
    %v758 = vunpack.c.h.b16 %v394
    %v759 = vunpack.c.l.b16 %v395
    %v760 = vunpack.c.h.b16 %v395
    %v761 = vunpack.c.l.b16 %v396
    %v762 = vunpack.c.h.b16 %v396
    %v763 = vunpack.c.l.b16 %v397
    %v764 = vunpack.c.h.b16 %v397
    %v765 = vunpack.c.l.b16 %v398
    %v766 = vunpack.c.h.b16 %v398
    %v767 = vunpack.c.l.b16 %v399
    %v768 = vunpack.c.h.b16 %v399
    %v769 = vunpack.c.l.b16 %v400
    %v770 = vunpack.c.h.b16 %v400
    %v771 = vunpack.c.l.b16 %v401
    %v772 = vunpack.c.h.b16 %v401
    %v773 = vunpack.c.l.b16 %v402
    %v774 = vunpack.c.h.b16 %v402
    %v775 = vunpack.c.l.b16 %v403
    %v776 = vunpack.c.h.b16 %v403
    %v777 = vunpack.c.l.b16 %v404
    %v778 = vunpack.c.h.b16 %v404
    %v779 = vunpack.c.l.b16 %v405
    %v780 = vunpack.c.h.b16 %v405
    %v781 = vunpack.c.l.b16 %v406
    %v782 = vunpack.c.h.b16 %v406
    %v783 = vunpack.c.l.b16 %v407
    %v784 = vunpack.c.h.b16 %v407
    %v785 = vunpack.c.l.b16 %v408
    %v786 = vunpack.c.h.b16 %v408
    %v787 = vunpack.c.l.b16 %v409
    %v788 = vunpack.c.h.b16 %v409
    %v789 = vunpack.c.l.b16 %v410
    %v790 = vunpack.c.h.b16 %v410
    %v791 = vunpack.c.l.b16 %v411
    %v792 = vunpack.c.h.b16 %v411
    %v793 = vunpack.c.l.b16 %v412
    %v794 = vunpack.c.h.b16 %v412
    %v795 = vunpack.c.l.b16 %v413
    %v796 = vunpack.c.h.b16 %v413
    %v797 = vunpack.c.l.b16 %v414
    %v798 = vunpack.c.h.b16 %v414
    %v799 = vunpack.c.l.b16 %v415
    %v800 = vunpack.c.h.b16 %v415
    %v801 = vunpack.c.l.b16 %v416
    %v802 = vunpack.c.h.b16 %v416
    %v803 = vunpack.c.l.b16 %v417
    %v804 = vunpack.c.h.b16 %v417
    %v805 = vunpack.c.l.b16 %v418
    %v806 = vunpack.c.h.b16 %v418
    %v807 = vunpack.c.l.b16 %v419
    %v808 = vunpack.c.h.b16 %v419
    %v809 = vunpack.c.l.b16 %v420
    %v810 = vunpack.c.h.b16 %v420
    %v811 = vunpack.c.l.b16 %v421
    %v812 = vunpack.c.h.b16 %v421
    %v813 = vunpack.c.l.b16 %v422
    %v814 = vunpack.c.h.b16 %v422
    %v815 = vunpack.c.l.b16 %v423
    %v816 = vunpack.c.h.b16 %v423
    %v817 = vunpack.c.l.b16 %v424
    %v818 = vunpack.c.h.b16 %v424
    %v819 = vunpack.c.l.b16 %v425
    %v820 = vunpack.c.h.b16 %v425
    %v821 = vunpack.c.l.b16 %v426
    %v822 = vunpack.c.h.b16 %v426
    %v823 = vunpack.c.l.b16 %v427
    %v824 = vunpack.c.h.b16 %v427
    %v825 = vunpack.c.l.b16 %v428
    %v826 = vunpack.c.h.b16 %v428
    %v827 = vunpack.c.l.b16 %v429
    %v828 = vunpack.c.h.b16 %v429
    %v829 = vunpack.c.l.b16 %v430
    %v830 = vunpack.c.h.b16 %v430
    %v831 = vunpack.c.l.b16 %v431
    %v832 = vunpack.c.h.b16 %v431
    %v833 = vunpack.c.l.b16 %v432
    %v834 = vunpack.c.h.b16 %v432
    %v835 = vunpack.c.l.b16 %v433
    %v836 = vunpack.c.h.b16 %v433
    %v837 = vunpack.c.l.b16 %v434
    %v838 = vunpack.c.h.b16 %v434
    %v839 = vunpack.c.l.b16 %v435
    %v840 = vunpack.c.h.b16 %v435
    %v841 = vunpack.c.l.b16 %v436
    %v842 = vunpack.c.h.b16 %v436
    %v843 = vpack.c.b16 %v591, %v587
    %v844 = vpack.c.b16 %v592, %v588
    %v845 = vpack.c.b16 %v593, %v589
    %v846 = vpack.c.b16 %v594, %v590
    %v847 = vpack.c.b16 %v599, %v595
    %v848 = vpack.c.b16 %v600, %v596
    %v849 = vpack.c.b16 %v601, %v597
    %v850 = vpack.c.b16 %v602, %v598
    %v851 = vpack.c.b16 %v607, %v603
    %v852 = vpack.c.b16 %v608, %v604
    %v853 = vpack.c.b16 %v609, %v605
    %v854 = vpack.c.b16 %v610, %v606
    %v855 = vpack.c.b16 %v615, %v611
    %v856 = vpack.c.b16 %v616, %v612
    %v857 = vpack.c.b16 %v617, %v613
    %v858 = vpack.c.b16 %v618, %v614
    %v859 = vpack.c.b16 %v623, %v619
    %v860 = vpack.c.b16 %v624, %v620
    %v861 = vpack.c.b16 %v625, %v621
    %v862 = vpack.c.b16 %v626, %v622
    %v863 = vpack.c.b16 %v631, %v627
    %v864 = vpack.c.b16 %v632, %v628
    %v865 = vpack.c.b16 %v633, %v629
    %v866 = vpack.c.b16 %v634, %v630
    %v867 = vpack.c.b16 %v639, %v635
    %v868 = vpack.c.b16 %v640, %v636
    %v869 = vpack.c.b16 %v641, %v637
    %v870 = vpack.c.b16 %v642, %v638
    %v871 = vpack.c.b16 %v647, %v643
    %v872 = vpack.c.b16 %v648, %v644
    %v873 = vpack.c.b16 %v649, %v645
    %v874 = vpack.c.b16 %v650, %v646
    %v875 = vpack.c.b16 %v655, %v651
    %v876 = vpack.c.b16 %v656, %v652
    %v877 = vpack.c.b16 %v657, %v653
    %v878 = vpack.c.b16 %v658, %v654
    %v879 = vpack.c.b16 %v663, %v659
    %v880 = vpack.c.b16 %v664, %v660
    %v881 = vpack.c.b16 %v665, %v661
    %v882 = vpack.c.b16 %v666, %v662
    %v883 = vpack.c.b16 %v671, %v667
    %v884 = vpack.c.b16 %v672, %v668
    %v885 = vpack.c.b16 %v673, %v669
    %v886 = vpack.c.b16 %v674, %v670
    %v887 = vpack.c.b16 %v679, %v675
    %v888 = vpack.c.b16 %v680, %v676
    %v889 = vpack.c.b16 %v681, %v677
    %v890 = vpack.c.b16 %v682, %v678
    %v891 = vpack.c.b16 %v687, %v683
    %v892 = vpack.c.b16 %v688, %v684
    %v893 = vpack.c.b16 %v689, %v685
    %v894 = vpack.c.b16 %v690, %v686
    %v895 = vpack.c.b16 %v695, %v691
    %v896 = vpack.c.b16 %v696, %v692
    %v897 = vpack.c.b16 %v697, %v693
    %v898 = vpack.c.b16 %v698, %v694
    %v899 = vpack.c.b16 %v703, %v699
    %v900 = vpack.c.b16 %v704, %v700
    %v901 = vpack.c.b16 %v705, %v701
    %v902 = vpack.c.b16 %v706, %v702
    %v903 = vpack.c.b16 %v711, %v707
    %v904 = vpack.c.b16 %v712, %v708
    %v905 = vpack.c.b16 %v713, %v709
    %v906 = vpack.c.b16 %v714, %v710
    %v907 = vpack.c.b16 %v719, %v715
    %v908 = vpack.c.b16 %v720, %v716
    %v909 = vpack.c.b16 %v721, %v717
    %v910 = vpack.c.b16 %v722, %v718
    %v911 = vpack.c.b16 %v727, %v723
    %v912 = vpack.c.b16 %v728, %v724
    %v913 = vpack.c.b16 %v729, %v725
    %v914 = vpack.c.b16 %v730, %v726
    %v915 = vpack.c.b16 %v735, %v731
    %v916 = vpack.c.b16 %v736, %v732
    %v917 = vpack.c.b16 %v737, %v733
    %v918 = vpack.c.b16 %v738, %v734
    %v919 = vpack.c.b16 %v743, %v739
    %v920 = vpack.c.b16 %v744, %v740
    %v921 = vpack.c.b16 %v745, %v741
    %v922 = vpack.c.b16 %v746, %v742
    %v923 = vpack.c.b16 %v751, %v747
    %v924 = vpack.c.b16 %v752, %v748
    %v925 = vpack.c.b16 %v753, %v749
    %v926 = vpack.c.b16 %v754, %v750
    %v927 = vpack.c.b16 %v759, %v755
    %v928 = vpack.c.b16 %v760, %v756
    %v929 = vpack.c.b16 %v761, %v757
    %v930 = vpack.c.b16 %v762, %v758
    %v931 = vpack.c.b16 %v767, %v763
    %v932 = vpack.c.b16 %v768, %v764
    %v933 = vpack.c.b16 %v769, %v765
    %v934 = vpack.c.b16 %v770, %v766
    %v935 = vpack.c.b16 %v775, %v771
    %v936 = vpack.c.b16 %v776, %v772
    %v937 = vpack.c.b16 %v777, %v773
    %v938 = vpack.c.b16 %v778, %v774
    %v939 = vpack.c.b16 %v783, %v779
    %v940 = vpack.c.b16 %v784, %v780
    %v941 = vpack.c.b16 %v785, %v781
    %v942 = vpack.c.b16 %v786, %v782
    %v943 = vpack.c.b16 %v791, %v787
    %v944 = vpack.c.b16 %v792, %v788
    %v945 = vpack.c.b16 %v793, %v789
    %v946 = vpack.c.b16 %v794, %v790
    %v947 = vpack.c.b16 %v799, %v795
    %v948 = vpack.c.b16 %v800, %v796
    %v949 = vpack.c.b16 %v801, %v797
    %v950 = vpack.c.b16 %v802, %v798
    %v951 = vpack.c.b16 %v807, %v803
    %v952 = vpack.c.b16 %v808, %v804
    %v953 = vpack.c.b16 %v809, %v805
    %v954 = vpack.c.b16 %v810, %v806
    %v955 = vpack.c.b16 %v815, %v811
    %v956 = vpack.c.b16 %v816, %v812
    %v957 = vpack.c.b16 %v817, %v813
    %v958 = vpack.c.b16 %v818, %v814
    %v959 = vpack.c.b16 %v823, %v819
    %v960 = vpack.c.b16 %v824, %v820
    %v961 = vpack.c.b16 %v825, %v821
    %v962 = vpack.c.b16 %v826, %v822
    %v963 = vpack.c.b16 %v831, %v827
    %v964 = vpack.c.b16 %v832, %v828
    %v965 = vpack.c.b16 %v833, %v829
    %v966 = vpack.c.b16 %v834, %v830
    %v967 = vpack.c.b16 %v839, %v835
    %v968 = vpack.c.b16 %v840, %v836
    %v969 = vpack.c.b16 %v841, %v837
    %v970 = vpack.c.b16 %v842, %v838
    %1099 = vmatprep.subr.bf16.mxu0 %v844
    %1100 = vmatpush1.bf16.msra.mxu0 %v843
    %1101 = vmatprep.subr.bf16.mxu0 %v848
    %1102 = vmatpush1.bf16.msra.mxu0 %v847
    %1103 = vmatprep.subr.bf16.mxu0 %v852
    %1104 = vmatpush1.bf16.msra.mxu0 %v851
    %1105 = vmatprep.subr.bf16.mxu0 %v856
    %1106 = vmatpush1.bf16.msra.mxu0 %v855
    %1107 = vmatprep.subr.bf16.mxu0 %v860
    %1108 = vmatpush1.bf16.msra.mxu0 %v859
    %1109 = vmatprep.subr.bf16.mxu0 %v864
    %1110 = vmatpush1.bf16.msra.mxu0 %v863
    %1111 = vmatprep.subr.bf16.mxu0 %v868
    %1112 = vmatpush1.bf16.msra.mxu0 %v867
    %1113 = vmatprep.subr.bf16.mxu0 %v872
    %1114 = vmatpush1.bf16.msra.mxu0 %v871
    %1115 = vmatprep.subr.bf16.mxu0 %v876
    %1116 = vmatpush1.bf16.msra.mxu0 %v875
    %1117 = vmatprep.subr.bf16.mxu0 %v880
    %1118 = vmatpush1.bf16.msra.mxu0 %v879
    %1119 = vmatprep.subr.bf16.mxu0 %v884
    %1120 = vmatpush1.bf16.msra.mxu0 %v883
    %1121 = vmatprep.subr.bf16.mxu0 %v888
    %1122 = vmatpush1.bf16.msra.mxu0 %v887
    %1123 = vmatprep.subr.bf16.mxu0 %v892
    %1124 = vmatpush1.bf16.msra.mxu0 %v891
    %1125 = vmatprep.subr.bf16.mxu0 %v896
    %1126 = vmatpush1.bf16.msra.mxu0 %v895
    %1127 = vmatprep.subr.bf16.mxu0 %v900
    %1128 = vmatpush1.bf16.msra.mxu0 %v899
    %1129 = vmatprep.subr.bf16.mxu0 %v904
    %1130 = vmatpush1.bf16.msra.mxu0 %v903
    %1131 = vmatprep.mubr.bf16.mxu0 %v306
    %1132 = vmatmul.mubr.bf16.gmra.mrb[0].mxu0 %v305
    %v1133 = vpop.f32.mrb[0].mxu0
    %v1134 = vadd.f32 %v442, %v1133
    %v1135 = vpop.f32.mrb[0].mxu0
    %v1136 = vadd.f32 %v446, %v1135
    %v1137 = vpop.f32.mrb[0].mxu0
    %v1138 = vadd.f32 %v442, %v1137
    %v1139 = vpop.f32.mrb[0].mxu0
    %v1140 = vadd.f32 %v446, %v1139
    %1141 = vdwg.mxu0
    %1142 = vmatprep.subr.bf16.mxu0 %v908
    %1143 = vmatpush1.bf16.msra.mxu0 %v907
    %1144 = vmatprep.subr.bf16.mxu0 %v912
    %1145 = vmatpush1.bf16.msra.mxu0 %v911
    %1146 = vmatprep.subr.bf16.mxu0 %v916
    %1147 = vmatpush1.bf16.msra.mxu0 %v915
    %1148 = vmatprep.subr.bf16.mxu0 %v920
    %1149 = vmatpush1.bf16.msra.mxu0 %v919
    %1150 = vmatprep.subr.bf16.mxu0 %v924
    %1151 = vmatpush1.bf16.msra.mxu0 %v923
    %1152 = vmatprep.subr.bf16.mxu0 %v928
    %1153 = vmatpush1.bf16.msra.mxu0 %v927
    %1154 = vmatprep.subr.bf16.mxu0 %v932
    %1155 = vmatpush1.bf16.msra.mxu0 %v931
    %1156 = vmatprep.subr.bf16.mxu0 %v936
    %1157 = vmatpush1.bf16.msra.mxu0 %v935
    %1158 = vmatprep.subr.bf16.mxu0 %v940
    %1159 = vmatpush1.bf16.msra.mxu0 %v939
    %1160 = vmatprep.subr.bf16.mxu0 %v944
    %1161 = vmatpush1.bf16.msra.mxu0 %v943
    %1162 = vmatprep.subr.bf16.mxu0 %v948
    %1163 = vmatpush1.bf16.msra.mxu0 %v947
    %1164 = vmatprep.subr.bf16.mxu0 %v952
    %1165 = vmatpush1.bf16.msra.mxu0 %v951
    %1166 = vmatprep.subr.bf16.mxu0 %v956
    %1167 = vmatpush1.bf16.msra.mxu0 %v955
    %1168 = vmatprep.subr.bf16.mxu0 %v960
    %1169 = vmatpush1.bf16.msra.mxu0 %v959
    %1170 = vmatprep.subr.bf16.mxu0 %v964
    %1171 = vmatpush1.bf16.msra.mxu0 %v963
    %1172 = vmatprep.subr.bf16.mxu0 %v968
    %1173 = vmatpush1.bf16.msra.mxu0 %v967
    %1174 = vmatprep.mubr.bf16.mxu0 %v308
    %1175 = vmatmul.mubr.bf16.gmra.mrb[0].mxu0 %v307
    %v1176 = vpop.f32.mrb[0].mxu0
    %v1177 = vadd.f32 %v1134, %v1176
    %v1178 = vpop.f32.mrb[0].mxu0
    %v1179 = vadd.f32 %v1136, %v1178
    %v1180 = vpop.f32.mrb[0].mxu0
    %v1181 = vadd.f32 %v1138, %v1180
    %v1182 = vpop.f32.mrb[0].mxu0
    %v1183 = vadd.f32 %v1140, %v1182
    %1184 = vdwg.mxu0
    %1185 = vmatprep.subr.bf16.mxu0 %v846
    %1186 = vmatpush1.bf16.msra.mxu0 %v845
    %1187 = vmatprep.subr.bf16.mxu0 %v850
    %1188 = vmatpush1.bf16.msra.mxu0 %v849
    %1189 = vmatprep.subr.bf16.mxu0 %v854
    %1190 = vmatpush1.bf16.msra.mxu0 %v853
    %1191 = vmatprep.subr.bf16.mxu0 %v858
    %1192 = vmatpush1.bf16.msra.mxu0 %v857
    %1193 = vmatprep.subr.bf16.mxu0 %v862
    %1194 = vmatpush1.bf16.msra.mxu0 %v861
    %1195 = vmatprep.subr.bf16.mxu0 %v866
    %1196 = vmatpush1.bf16.msra.mxu0 %v865
    %1197 = vmatprep.subr.bf16.mxu0 %v870
    %1198 = vmatpush1.bf16.msra.mxu0 %v869
    %1199 = vmatprep.subr.bf16.mxu0 %v874
    %1200 = vmatpush1.bf16.msra.mxu0 %v873
    %1201 = vmatprep.subr.bf16.mxu0 %v878
    %1202 = vmatpush1.bf16.msra.mxu0 %v877
    %1203 = vmatprep.subr.bf16.mxu0 %v882
    %1204 = vmatpush1.bf16.msra.mxu0 %v881
    %1205 = vmatprep.subr.bf16.mxu0 %v886
    %1206 = vmatpush1.bf16.msra.mxu0 %v885
    %1207 = vmatprep.subr.bf16.mxu0 %v890
    %1208 = vmatpush1.bf16.msra.mxu0 %v889
    %1209 = vmatprep.subr.bf16.mxu0 %v894
    %1210 = vmatpush1.bf16.msra.mxu0 %v893
    %1211 = vmatprep.subr.bf16.mxu0 %v898
    %1212 = vmatpush1.bf16.msra.mxu0 %v897
    %1213 = vmatprep.subr.bf16.mxu0 %v902
    %1214 = vmatpush1.bf16.msra.mxu0 %v901
    %1215 = vmatprep.subr.bf16.mxu0 %v906
    %1216 = vmatpush1.bf16.msra.mxu0 %v905
    %1217 = vmatprep.mubr.bf16.mxu0 %v306
    %1218 = vmatmul.mubr.bf16.gmra.mrb[0].mxu0 %v305
    %v1219 = vpop.f32.mrb[0].mxu0
    %v1220 = vadd.f32 %v450, %v1219
    %v1221 = vpop.f32.mrb[0].mxu0
    %v1222 = vadd.f32 %v454, %v1221
    %v1223 = vpop.f32.mrb[0].mxu0
    %v1224 = vadd.f32 %v450, %v1223
    %v1225 = vpop.f32.mrb[0].mxu0
    %v1226 = vadd.f32 %v454, %v1225
    %1227 = vdwg.mxu0
    %1228 = vmatprep.subr.bf16.mxu0 %v910
    %1229 = vmatpush1.bf16.msra.mxu0 %v909
    %1230 = vmatprep.subr.bf16.mxu0 %v914
    %1231 = vmatpush1.bf16.msra.mxu0 %v913
    %1232 = vmatprep.subr.bf16.mxu0 %v918
    %1233 = vmatpush1.bf16.msra.mxu0 %v917
    %1234 = vmatprep.subr.bf16.mxu0 %v922
    %1235 = vmatpush1.bf16.msra.mxu0 %v921
    %1236 = vmatprep.subr.bf16.mxu0 %v926
    %1237 = vmatpush1.bf16.msra.mxu0 %v925
    %1238 = vmatprep.subr.bf16.mxu0 %v930
    %1239 = vmatpush1.bf16.msra.mxu0 %v929
    %1240 = vmatprep.subr.bf16.mxu0 %v934
    %1241 = vmatpush1.bf16.msra.mxu0 %v933
    %1242 = vmatprep.subr.bf16.mxu0 %v938
    %1243 = vmatpush1.bf16.msra.mxu0 %v937
    %1244 = vmatprep.subr.bf16.mxu0 %v942
    %1245 = vmatpush1.bf16.msra.mxu0 %v941
    %1246 = vmatprep.subr.bf16.mxu0 %v946
    %1247 = vmatpush1.bf16.msra.mxu0 %v945
    %1248 = vmatprep.subr.bf16.mxu0 %v950
    %1249 = vmatpush1.bf16.msra.mxu0 %v949
    %1250 = vmatprep.subr.bf16.mxu0 %v954
    %1251 = vmatpush1.bf16.msra.mxu0 %v953
    %1252 = vmatprep.subr.bf16.mxu0 %v958
    %1253 = vmatpush1.bf16.msra.mxu0 %v957
    %1254 = vmatprep.subr.bf16.mxu0 %v962
    %1255 = vmatpush1.bf16.msra.mxu0 %v961
    %1256 = vmatprep.subr.bf16.mxu0 %v966
    %1257 = vmatpush1.bf16.msra.mxu0 %v965
    %1258 = vmatprep.subr.bf16.mxu0 %v970
    %1259 = vmatpush1.bf16.msra.mxu0 %v969
    %1260 = vmatprep.mubr.bf16.mxu0 %v308
    %1261 = vmatmul.mubr.bf16.gmra.mrb[0].mxu0 %v307
    %v1262 = vpop.f32.mrb[0].mxu0
    %v1263 = vadd.f32 %v1220, %v1262
    %v1264 = vpop.f32.mrb[0].mxu0
    %v1265 = vadd.f32 %v1222, %v1264
    %v1266 = vpop.f32.mrb[0].mxu0
    %v1267 = vadd.f32 %v1224, %v1266
    %v1268 = vpop.f32.mrb[0].mxu0
    %v1269 = vadd.f32 %v1226, %v1268
    %1270 = vdwg.mxu0
    %v1271 = vmax.f32 %v1177, 0.0
    %v1272 = vmax.f32 %v1179, 0.0
    %v1273 = vmax.f32 %v1263, 0.0
    %v1274 = vmax.f32 %v1265, 0.0
    %v1275 = vmax.f32 %v1181, 0.0
    %v1276 = vmax.f32 %v1183, 0.0
    %v1277 = vmax.f32 %v1267, 0.0
    %v1278 = vmax.f32 %v1269, 0.0
    %v1279 = vpack.c.bf16 %v1275, %v1271
    %v1280 = vpack.c.bf16 %v1276, %v1272
    %v1281 = vpack.c.bf16 %v1277, %v1273
    %v1282 = vpack.c.bf16 %v1278, %v1274
    %1283 = vst [vmem:[#allocation2] sm:$0xff] %v1279
    %1284 = vst [vmem:[#allocation2 + $0x8] sm:$0xff] %v1280
    %1285 = vst [vmem:[#allocation2 + $0x10] sm:$0xff] %v1281
    %1286 = vst [vmem:[#allocation2 + $0x18] sm:$0xff] %v1282
    %v1287 = vld [vmem:[#allocation2] sm:$0xff]
    %v1288 = vld [vmem:[#allocation2 + $0x8] sm:$0xff]
    %v1289 = vld [vmem:[#allocation2 + $0x10] sm:$0xff]
    %v1290 = vld [vmem:[#allocation2 + $0x18] sm:$0xff]
    %v1291 = vld [vmem:[#allocation9] sm:$0xff]
    %v1292 = vld [vmem:[#allocation9 + $0x8] sm:$0xff]
    %v1293 = vld [vmem:[#allocation9 + $0x10] sm:$0xff]
    %v1294 = vld [vmem:[#allocation9 + $0x18] sm:$0xff]
    %v1295 = vld [vmem:[#allocation9 + $0x20] sm:$0xff]
    %v1296 = vld [vmem:[#allocation9 + $0x28] sm:$0xff]
    %v1297 = vld [vmem:[#allocation9 + $0x30] sm:$0xff]
    %v1298 = vld [vmem:[#allocation9 + $0x38] sm:$0xff]
    %v1299 = vld [vmem:[#allocation9 + $0x40] sm:$0xff]
    %v1300 = vld [vmem:[#allocation9 + $0x48] sm:$0xff]
    %v1301 = vld [vmem:[#allocation9 + $0x50] sm:$0xff]
    %v1302 = vld [vmem:[#allocation9 + $0x58] sm:$0xff]
    %v1303 = vld [vmem:[#allocation9 + $0x60] sm:$0xff]
    %v1304 = vld [vmem:[#allocation9 + $0x68] sm:$0xff]
    %v1305 = vld [vmem:[#allocation9 + $0x70] sm:$0xff]
    %v1306 = vld [vmem:[#allocation9 + $0x78] sm:$0xff]
    %v1307 = vld [vmem:[#allocation9 + $0x80] sm:$0xff]
    %v1308 = vld [vmem:[#allocation9 + $0x88] sm:$0xff]
    %v1309 = vld [vmem:[#allocation9 + $0x90] sm:$0xff]
    %v1310 = vld [vmem:[#allocation9 + $0x98] sm:$0xff]
    %v1311 = vld [vmem:[#allocation9 + $0xa0] sm:$0xff]
    %v1312 = vld [vmem:[#allocation9 + $0xa8] sm:$0xff]
    %v1313 = vld [vmem:[#allocation9 + $0xb0] sm:$0xff]
    %v1314 = vld [vmem:[#allocation9 + $0xb8] sm:$0xff]
    %v1315 = vld [vmem:[#allocation9 + $0xc0] sm:$0xff]
    %v1316 = vld [vmem:[#allocation9 + $0xc8] sm:$0xff]
    %v1317 = vld [vmem:[#allocation9 + $0xd0] sm:$0xff]
    %v1318 = vld [vmem:[#allocation9 + $0xd8] sm:$0xff]
    %v1319 = vld [vmem:[#allocation9 + $0xe0] sm:$0xff]
    %v1320 = vld [vmem:[#allocation9 + $0xe8] sm:$0xff]
    %v1321 = vld [vmem:[#allocation9 + $0xf0] sm:$0xff]
    %v1322 = vld [vmem:[#allocation9 + $0xf8] sm:$0xff]
    %v1323 = vld [vmem:[#allocation9 + $0x100] sm:$0xff]
    %v1324 = vld [vmem:[#allocation9 + $0x108] sm:$0xff]
    %v1325 = vld [vmem:[#allocation9 + $0x110] sm:$0xff]
    %v1326 = vld [vmem:[#allocation9 + $0x118] sm:$0xff]
    %v1327 = vld [vmem:[#allocation9 + $0x120] sm:$0xff]
    %v1328 = vld [vmem:[#allocation9 + $0x128] sm:$0xff]
    %v1329 = vld [vmem:[#allocation9 + $0x130] sm:$0xff]
    %v1330 = vld [vmem:[#allocation9 + $0x138] sm:$0xff]
    %v1331 = vld [vmem:[#allocation9 + $0x140] sm:$0xff]
    %v1332 = vld [vmem:[#allocation9 + $0x148] sm:$0xff]
    %v1333 = vld [vmem:[#allocation9 + $0x150] sm:$0xff]
    %v1334 = vld [vmem:[#allocation9 + $0x158] sm:$0xff]
    %v1335 = vld [vmem:[#allocation9 + $0x160] sm:$0xff]
    %v1336 = vld [vmem:[#allocation9 + $0x168] sm:$0xff]
    %v1337 = vld [vmem:[#allocation9 + $0x170] sm:$0xff]
    %v1338 = vld [vmem:[#allocation9 + $0x178] sm:$0xff]
    %v1339 = vld [vmem:[#allocation9 + $0x180] sm:$0xff]
    %v1340 = vld [vmem:[#allocation9 + $0x188] sm:$0xff]
    %v1341 = vld [vmem:[#allocation9 + $0x190] sm:$0xff]
    %v1342 = vld [vmem:[#allocation9 + $0x198] sm:$0xff]
    %v1343 = vld [vmem:[#allocation9 + $0x1a0] sm:$0xff]
    %v1344 = vld [vmem:[#allocation9 + $0x1a8] sm:$0xff]
    %v1345 = vld [vmem:[#allocation9 + $0x1b0] sm:$0xff]
    %v1346 = vld [vmem:[#allocation9 + $0x1b8] sm:$0xff]
    %v1347 = vld [vmem:[#allocation9 + $0x1c0] sm:$0xff]
    %v1348 = vld [vmem:[#allocation9 + $0x1c8] sm:$0xff]
    %v1349 = vld [vmem:[#allocation9 + $0x1d0] sm:$0xff]
    %v1350 = vld [vmem:[#allocation9 + $0x1d8] sm:$0xff]
    %v1351 = vld [vmem:[#allocation9 + $0x1e0] sm:$0xff]
    %v1352 = vld [vmem:[#allocation9 + $0x1e8] sm:$0xff]
    %v1353 = vld [vmem:[#allocation9 + $0x1f0] sm:$0xff]
    %v1354 = vld [vmem:[#allocation9 + $0x1f8] sm:$0xff]
    %v1355 = vld [vmem:[#allocation9 + $0x200] sm:$0xff]
    %v1356 = vld [vmem:[#allocation9 + $0x208] sm:$0xff]
    %v1357 = vld [vmem:[#allocation9 + $0x210] sm:$0xff]
    %v1358 = vld [vmem:[#allocation9 + $0x218] sm:$0xff]
    %v1359 = vld [vmem:[#allocation9 + $0x220] sm:$0xff]
    %v1360 = vld [vmem:[#allocation9 + $0x228] sm:$0xff]
    %v1361 = vld [vmem:[#allocation9 + $0x230] sm:$0xff]
    %v1362 = vld [vmem:[#allocation9 + $0x238] sm:$0xff]
    %v1363 = vld [vmem:[#allocation9 + $0x240] sm:$0xff]
    %v1364 = vld [vmem:[#allocation9 + $0x248] sm:$0xff]
    %v1365 = vld [vmem:[#allocation9 + $0x250] sm:$0xff]
    %v1366 = vld [vmem:[#allocation9 + $0x258] sm:$0xff]
    %v1367 = vld [vmem:[#allocation9 + $0x260] sm:$0xff]
    %v1368 = vld [vmem:[#allocation9 + $0x268] sm:$0xff]
    %v1369 = vld [vmem:[#allocation9 + $0x270] sm:$0xff]
    %v1370 = vld [vmem:[#allocation9 + $0x278] sm:$0xff]
    %v1371 = vld [vmem:[#allocation9 + $0x280] sm:$0xff]
    %v1372 = vld [vmem:[#allocation9 + $0x288] sm:$0xff]
    %v1373 = vld [vmem:[#allocation9 + $0x290] sm:$0xff]
    %v1374 = vld [vmem:[#allocation9 + $0x298] sm:$0xff]
    %v1375 = vld [vmem:[#allocation9 + $0x2a0] sm:$0xff]
    %v1376 = vld [vmem:[#allocation9 + $0x2a8] sm:$0xff]
    %v1377 = vld [vmem:[#allocation9 + $0x2b0] sm:$0xff]
    %v1378 = vld [vmem:[#allocation9 + $0x2b8] sm:$0xff]
    %v1379 = vld [vmem:[#allocation9 + $0x2c0] sm:$0xff]
    %v1380 = vld [vmem:[#allocation9 + $0x2c8] sm:$0xff]
    %v1381 = vld [vmem:[#allocation9 + $0x2d0] sm:$0xff]
    %v1382 = vld [vmem:[#allocation9 + $0x2d8] sm:$0xff]
    %v1383 = vld [vmem:[#allocation9 + $0x2e0] sm:$0xff]
    %v1384 = vld [vmem:[#allocation9 + $0x2e8] sm:$0xff]
    %v1385 = vld [vmem:[#allocation9 + $0x2f0] sm:$0xff]
    %v1386 = vld [vmem:[#allocation9 + $0x2f8] sm:$0xff]
    %v1387 = vld [vmem:[#allocation9 + $0x300] sm:$0xff]
    %v1388 = vld [vmem:[#allocation9 + $0x308] sm:$0xff]
    %v1389 = vld [vmem:[#allocation9 + $0x310] sm:$0xff]
    %v1390 = vld [vmem:[#allocation9 + $0x318] sm:$0xff]
    %v1391 = vld [vmem:[#allocation9 + $0x320] sm:$0xff]
    %v1392 = vld [vmem:[#allocation9 + $0x328] sm:$0xff]
    %v1393 = vld [vmem:[#allocation9 + $0x330] sm:$0xff]
    %v1394 = vld [vmem:[#allocation9 + $0x338] sm:$0xff]
    %v1395 = vld [vmem:[#allocation9 + $0x340] sm:$0xff]
    %v1396 = vld [vmem:[#allocation9 + $0x348] sm:$0xff]
    %v1397 = vld [vmem:[#allocation9 + $0x350] sm:$0xff]
    %v1398 = vld [vmem:[#allocation9 + $0x358] sm:$0xff]
    %v1399 = vld [vmem:[#allocation9 + $0x360] sm:$0xff]
    %v1400 = vld [vmem:[#allocation9 + $0x368] sm:$0xff]
    %v1401 = vld [vmem:[#allocation9 + $0x370] sm:$0xff]
    %v1402 = vld [vmem:[#allocation9 + $0x378] sm:$0xff]
    %v1403 = vld [vmem:[#allocation9 + $0x380] sm:$0xff]
    %v1404 = vld [vmem:[#allocation9 + $0x388] sm:$0xff]
    %v1405 = vld [vmem:[#allocation9 + $0x390] sm:$0xff]
    %v1406 = vld [vmem:[#allocation9 + $0x398] sm:$0xff]
    %v1407 = vld [vmem:[#allocation9 + $0x3a0] sm:$0xff]
    %v1408 = vld [vmem:[#allocation9 + $0x3a8] sm:$0xff]
    %v1409 = vld [vmem:[#allocation9 + $0x3b0] sm:$0xff]
    %v1410 = vld [vmem:[#allocation9 + $0x3b8] sm:$0xff]
    %v1411 = vld [vmem:[#allocation9 + $0x3c0] sm:$0xff]
    %v1412 = vld [vmem:[#allocation9 + $0x3c8] sm:$0xff]
    %v1413 = vld [vmem:[#allocation9 + $0x3d0] sm:$0xff]
    %v1414 = vld [vmem:[#allocation9 + $0x3d8] sm:$0xff]
    %v1415 = vld [vmem:[#allocation9 + $0x3e0] sm:$0xff]
    %v1416 = vld [vmem:[#allocation9 + $0x3e8] sm:$0xff]
    %v1417 = vld [vmem:[#allocation9 + $0x3f0] sm:$0xff]
    %v1418 = vld [vmem:[#allocation9 + $0x3f8] sm:$0xff]
    %v1419 = vld [vmem:[%s6] sm:$0xf]
    %v1421 = vlaneseq
    %v1422 = vshrl.u32 %v1421, 7
    %v1423 = vsub.s32 0, %v1422
    %v1424 = vrot.slane %v1419, %v1423
    %v1425 = vlaneseq
    %v1426 = vshrl.u32 %v1425, 7
    %v1427 = vsub.s32 1, %v1426
    %v1428 = vrot.slane %v1419, %v1427
    %v1429 = vlaneseq
    %v1430 = vshrl.u32 %v1429, 7
    %v1431 = vsub.s32 2, %v1430
    %v1432 = vrot.slane %v1419, %v1431
    %v1433 = vlaneseq
    %v1434 = vshrl.u32 %v1433, 7
    %v1435 = vsub.s32 3, %v1434
    %v1436 = vrot.slane %v1419, %v1435
    %v1569 = vunpack.c.l.b16 %v1291
    %v1570 = vunpack.c.h.b16 %v1291
    %v1571 = vunpack.c.l.b16 %v1292
    %v1572 = vunpack.c.h.b16 %v1292
    %v1573 = vunpack.c.l.b16 %v1293
    %v1574 = vunpack.c.h.b16 %v1293
    %v1575 = vunpack.c.l.b16 %v1294
    %v1576 = vunpack.c.h.b16 %v1294
    %v1577 = vunpack.c.l.b16 %v1295
    %v1578 = vunpack.c.h.b16 %v1295
    %v1579 = vunpack.c.l.b16 %v1296
    %v1580 = vunpack.c.h.b16 %v1296
    %v1581 = vunpack.c.l.b16 %v1297
    %v1582 = vunpack.c.h.b16 %v1297
    %v1583 = vunpack.c.l.b16 %v1298
    %v1584 = vunpack.c.h.b16 %v1298
    %v1585 = vunpack.c.l.b16 %v1299
    %v1586 = vunpack.c.h.b16 %v1299
    %v1587 = vunpack.c.l.b16 %v1300
    %v1588 = vunpack.c.h.b16 %v1300
    %v1589 = vunpack.c.l.b16 %v1301
    %v1590 = vunpack.c.h.b16 %v1301
    %v1591 = vunpack.c.l.b16 %v1302
    %v1592 = vunpack.c.h.b16 %v1302
    %v1593 = vunpack.c.l.b16 %v1303
    %v1594 = vunpack.c.h.b16 %v1303
    %v1595 = vunpack.c.l.b16 %v1304
    %v1596 = vunpack.c.h.b16 %v1304
    %v1597 = vunpack.c.l.b16 %v1305
    %v1598 = vunpack.c.h.b16 %v1305
    %v1599 = vunpack.c.l.b16 %v1306
    %v1600 = vunpack.c.h.b16 %v1306
    %v1601 = vunpack.c.l.b16 %v1307
    %v1602 = vunpack.c.h.b16 %v1307
    %v1603 = vunpack.c.l.b16 %v1308
    %v1604 = vunpack.c.h.b16 %v1308
    %v1605 = vunpack.c.l.b16 %v1309
    %v1606 = vunpack.c.h.b16 %v1309
    %v1607 = vunpack.c.l.b16 %v1310
    %v1608 = vunpack.c.h.b16 %v1310
    %v1609 = vunpack.c.l.b16 %v1311
    %v1610 = vunpack.c.h.b16 %v1311
    %v1611 = vunpack.c.l.b16 %v1312
    %v1612 = vunpack.c.h.b16 %v1312
    %v1613 = vunpack.c.l.b16 %v1313
    %v1614 = vunpack.c.h.b16 %v1313
    %v1615 = vunpack.c.l.b16 %v1314
    %v1616 = vunpack.c.h.b16 %v1314
    %v1617 = vunpack.c.l.b16 %v1315
    %v1618 = vunpack.c.h.b16 %v1315
    %v1619 = vunpack.c.l.b16 %v1316
    %v1620 = vunpack.c.h.b16 %v1316
    %v1621 = vunpack.c.l.b16 %v1317
    %v1622 = vunpack.c.h.b16 %v1317
    %v1623 = vunpack.c.l.b16 %v1318
    %v1624 = vunpack.c.h.b16 %v1318
    %v1625 = vunpack.c.l.b16 %v1319
    %v1626 = vunpack.c.h.b16 %v1319
    %v1627 = vunpack.c.l.b16 %v1320
    %v1628 = vunpack.c.h.b16 %v1320
    %v1629 = vunpack.c.l.b16 %v1321
    %v1630 = vunpack.c.h.b16 %v1321
    %v1631 = vunpack.c.l.b16 %v1322
    %v1632 = vunpack.c.h.b16 %v1322
    %v1633 = vunpack.c.l.b16 %v1323
    %v1634 = vunpack.c.h.b16 %v1323
    %v1635 = vunpack.c.l.b16 %v1324
    %v1636 = vunpack.c.h.b16 %v1324
    %v1637 = vunpack.c.l.b16 %v1325
    %v1638 = vunpack.c.h.b16 %v1325
    %v1639 = vunpack.c.l.b16 %v1326
    %v1640 = vunpack.c.h.b16 %v1326
    %v1641 = vunpack.c.l.b16 %v1327
    %v1642 = vunpack.c.h.b16 %v1327
    %v1643 = vunpack.c.l.b16 %v1328
    %v1644 = vunpack.c.h.b16 %v1328
    %v1645 = vunpack.c.l.b16 %v1329
    %v1646 = vunpack.c.h.b16 %v1329
    %v1647 = vunpack.c.l.b16 %v1330
    %v1648 = vunpack.c.h.b16 %v1330
    %v1649 = vunpack.c.l.b16 %v1331
    %v1650 = vunpack.c.h.b16 %v1331
    %v1651 = vunpack.c.l.b16 %v1332
    %v1652 = vunpack.c.h.b16 %v1332
    %v1653 = vunpack.c.l.b16 %v1333
    %v1654 = vunpack.c.h.b16 %v1333
    %v1655 = vunpack.c.l.b16 %v1334
    %v1656 = vunpack.c.h.b16 %v1334
    %v1657 = vunpack.c.l.b16 %v1335
    %v1658 = vunpack.c.h.b16 %v1335
    %v1659 = vunpack.c.l.b16 %v1336
    %v1660 = vunpack.c.h.b16 %v1336
    %v1661 = vunpack.c.l.b16 %v1337
    %v1662 = vunpack.c.h.b16 %v1337
    %v1663 = vunpack.c.l.b16 %v1338
    %v1664 = vunpack.c.h.b16 %v1338
    %v1665 = vunpack.c.l.b16 %v1339
    %v1666 = vunpack.c.h.b16 %v1339
    %v1667 = vunpack.c.l.b16 %v1340
    %v1668 = vunpack.c.h.b16 %v1340
    %v1669 = vunpack.c.l.b16 %v1341
    %v1670 = vunpack.c.h.b16 %v1341
    %v1671 = vunpack.c.l.b16 %v1342
    %v1672 = vunpack.c.h.b16 %v1342
    %v1673 = vunpack.c.l.b16 %v1343
    %v1674 = vunpack.c.h.b16 %v1343
    %v1675 = vunpack.c.l.b16 %v1344
    %v1676 = vunpack.c.h.b16 %v1344
    %v1677 = vunpack.c.l.b16 %v1345
    %v1678 = vunpack.c.h.b16 %v1345
    %v1679 = vunpack.c.l.b16 %v1346
    %v1680 = vunpack.c.h.b16 %v1346
    %v1681 = vunpack.c.l.b16 %v1347
    %v1682 = vunpack.c.h.b16 %v1347
    %v1683 = vunpack.c.l.b16 %v1348
    %v1684 = vunpack.c.h.b16 %v1348
    %v1685 = vunpack.c.l.b16 %v1349
    %v1686 = vunpack.c.h.b16 %v1349
    %v1687 = vunpack.c.l.b16 %v1350
    %v1688 = vunpack.c.h.b16 %v1350
    %v1689 = vunpack.c.l.b16 %v1351
    %v1690 = vunpack.c.h.b16 %v1351
    %v1691 = vunpack.c.l.b16 %v1352
    %v1692 = vunpack.c.h.b16 %v1352
    %v1693 = vunpack.c.l.b16 %v1353
    %v1694 = vunpack.c.h.b16 %v1353
    %v1695 = vunpack.c.l.b16 %v1354
    %v1696 = vunpack.c.h.b16 %v1354
    %v1697 = vunpack.c.l.b16 %v1355
    %v1698 = vunpack.c.h.b16 %v1355
    %v1699 = vunpack.c.l.b16 %v1356
    %v1700 = vunpack.c.h.b16 %v1356
    %v1701 = vunpack.c.l.b16 %v1357
    %v1702 = vunpack.c.h.b16 %v1357
    %v1703 = vunpack.c.l.b16 %v1358
    %v1704 = vunpack.c.h.b16 %v1358
    %v1705 = vunpack.c.l.b16 %v1359
    %v1706 = vunpack.c.h.b16 %v1359
    %v1707 = vunpack.c.l.b16 %v1360
    %v1708 = vunpack.c.h.b16 %v1360
    %v1709 = vunpack.c.l.b16 %v1361
    %v1710 = vunpack.c.h.b16 %v1361
    %v1711 = vunpack.c.l.b16 %v1362
    %v1712 = vunpack.c.h.b16 %v1362
    %v1713 = vunpack.c.l.b16 %v1363
    %v1714 = vunpack.c.h.b16 %v1363
    %v1715 = vunpack.c.l.b16 %v1364
    %v1716 = vunpack.c.h.b16 %v1364
    %v1717 = vunpack.c.l.b16 %v1365
    %v1718 = vunpack.c.h.b16 %v1365
    %v1719 = vunpack.c.l.b16 %v1366
    %v1720 = vunpack.c.h.b16 %v1366
    %v1721 = vunpack.c.l.b16 %v1367
    %v1722 = vunpack.c.h.b16 %v1367
    %v1723 = vunpack.c.l.b16 %v1368
    %v1724 = vunpack.c.h.b16 %v1368
    %v1725 = vunpack.c.l.b16 %v1369
    %v1726 = vunpack.c.h.b16 %v1369
    %v1727 = vunpack.c.l.b16 %v1370
    %v1728 = vunpack.c.h.b16 %v1370
    %v1729 = vunpack.c.l.b16 %v1371
    %v1730 = vunpack.c.h.b16 %v1371
    %v1731 = vunpack.c.l.b16 %v1372
    %v1732 = vunpack.c.h.b16 %v1372
    %v1733 = vunpack.c.l.b16 %v1373
    %v1734 = vunpack.c.h.b16 %v1373
    %v1735 = vunpack.c.l.b16 %v1374
    %v1736 = vunpack.c.h.b16 %v1374
    %v1737 = vunpack.c.l.b16 %v1375
    %v1738 = vunpack.c.h.b16 %v1375
    %v1739 = vunpack.c.l.b16 %v1376
    %v1740 = vunpack.c.h.b16 %v1376
    %v1741 = vunpack.c.l.b16 %v1377
    %v1742 = vunpack.c.h.b16 %v1377
    %v1743 = vunpack.c.l.b16 %v1378
    %v1744 = vunpack.c.h.b16 %v1378
    %v1745 = vunpack.c.l.b16 %v1379
    %v1746 = vunpack.c.h.b16 %v1379
    %v1747 = vunpack.c.l.b16 %v1380
    %v1748 = vunpack.c.h.b16 %v1380
    %v1749 = vunpack.c.l.b16 %v1381
    %v1750 = vunpack.c.h.b16 %v1381
    %v1751 = vunpack.c.l.b16 %v1382
    %v1752 = vunpack.c.h.b16 %v1382
    %v1753 = vunpack.c.l.b16 %v1383
    %v1754 = vunpack.c.h.b16 %v1383
    %v1755 = vunpack.c.l.b16 %v1384
    %v1756 = vunpack.c.h.b16 %v1384
    %v1757 = vunpack.c.l.b16 %v1385
    %v1758 = vunpack.c.h.b16 %v1385
    %v1759 = vunpack.c.l.b16 %v1386
    %v1760 = vunpack.c.h.b16 %v1386
    %v1761 = vunpack.c.l.b16 %v1387
    %v1762 = vunpack.c.h.b16 %v1387
    %v1763 = vunpack.c.l.b16 %v1388
    %v1764 = vunpack.c.h.b16 %v1388
    %v1765 = vunpack.c.l.b16 %v1389
    %v1766 = vunpack.c.h.b16 %v1389
    %v1767 = vunpack.c.l.b16 %v1390
    %v1768 = vunpack.c.h.b16 %v1390
    %v1769 = vunpack.c.l.b16 %v1391
    %v1770 = vunpack.c.h.b16 %v1391
    %v1771 = vunpack.c.l.b16 %v1392
    %v1772 = vunpack.c.h.b16 %v1392
    %v1773 = vunpack.c.l.b16 %v1393
    %v1774 = vunpack.c.h.b16 %v1393
    %v1775 = vunpack.c.l.b16 %v1394
    %v1776 = vunpack.c.h.b16 %v1394
    %v1777 = vunpack.c.l.b16 %v1395
    %v1778 = vunpack.c.h.b16 %v1395
    %v1779 = vunpack.c.l.b16 %v1396
    %v1780 = vunpack.c.h.b16 %v1396
    %v1781 = vunpack.c.l.b16 %v1397
    %v1782 = vunpack.c.h.b16 %v1397
    %v1783 = vunpack.c.l.b16 %v1398
    %v1784 = vunpack.c.h.b16 %v1398
    %v1785 = vunpack.c.l.b16 %v1399
    %v1786 = vunpack.c.h.b16 %v1399
    %v1787 = vunpack.c.l.b16 %v1400
    %v1788 = vunpack.c.h.b16 %v1400
    %v1789 = vunpack.c.l.b16 %v1401
    %v1790 = vunpack.c.h.b16 %v1401
    %v1791 = vunpack.c.l.b16 %v1402
    %v1792 = vunpack.c.h.b16 %v1402
    %v1793 = vunpack.c.l.b16 %v1403
    %v1794 = vunpack.c.h.b16 %v1403
    %v1795 = vunpack.c.l.b16 %v1404
    %v1796 = vunpack.c.h.b16 %v1404
    %v1797 = vunpack.c.l.b16 %v1405
    %v1798 = vunpack.c.h.b16 %v1405
    %v1799 = vunpack.c.l.b16 %v1406
    %v1800 = vunpack.c.h.b16 %v1406
    %v1801 = vunpack.c.l.b16 %v1407
    %v1802 = vunpack.c.h.b16 %v1407
    %v1803 = vunpack.c.l.b16 %v1408
    %v1804 = vunpack.c.h.b16 %v1408
    %v1805 = vunpack.c.l.b16 %v1409
    %v1806 = vunpack.c.h.b16 %v1409
    %v1807 = vunpack.c.l.b16 %v1410
    %v1808 = vunpack.c.h.b16 %v1410
    %v1809 = vunpack.c.l.b16 %v1411
    %v1810 = vunpack.c.h.b16 %v1411
    %v1811 = vunpack.c.l.b16 %v1412
    %v1812 = vunpack.c.h.b16 %v1412
    %v1813 = vunpack.c.l.b16 %v1413
    %v1814 = vunpack.c.h.b16 %v1413
    %v1815 = vunpack.c.l.b16 %v1414
    %v1816 = vunpack.c.h.b16 %v1414
    %v1817 = vunpack.c.l.b16 %v1415
    %v1818 = vunpack.c.h.b16 %v1415
    %v1819 = vunpack.c.l.b16 %v1416
    %v1820 = vunpack.c.h.b16 %v1416
    %v1821 = vunpack.c.l.b16 %v1417
    %v1822 = vunpack.c.h.b16 %v1417
    %v1823 = vunpack.c.l.b16 %v1418
    %v1824 = vunpack.c.h.b16 %v1418
    %v1825 = vpack.c.b16 %v1573, %v1569
    %v1826 = vpack.c.b16 %v1574, %v1570
    %v1827 = vpack.c.b16 %v1575, %v1571
    %v1828 = vpack.c.b16 %v1576, %v1572
    %v1829 = vpack.c.b16 %v1581, %v1577
    %v1830 = vpack.c.b16 %v1582, %v1578
    %v1831 = vpack.c.b16 %v1583, %v1579
    %v1832 = vpack.c.b16 %v1584, %v1580
    %v1833 = vpack.c.b16 %v1589, %v1585
    %v1834 = vpack.c.b16 %v1590, %v1586
    %v1835 = vpack.c.b16 %v1591, %v1587
    %v1836 = vpack.c.b16 %v1592, %v1588
    %v1837 = vpack.c.b16 %v1597, %v1593
    %v1838 = vpack.c.b16 %v1598, %v1594
    %v1839 = vpack.c.b16 %v1599, %v1595
    %v1840 = vpack.c.b16 %v1600, %v1596
    %v1841 = vpack.c.b16 %v1605, %v1601
    %v1842 = vpack.c.b16 %v1606, %v1602
    %v1843 = vpack.c.b16 %v1607, %v1603
    %v1844 = vpack.c.b16 %v1608, %v1604
    %v1845 = vpack.c.b16 %v1613, %v1609
    %v1846 = vpack.c.b16 %v1614, %v1610
    %v1847 = vpack.c.b16 %v1615, %v1611
    %v1848 = vpack.c.b16 %v1616, %v1612
    %v1849 = vpack.c.b16 %v1621, %v1617
    %v1850 = vpack.c.b16 %v1622, %v1618
    %v1851 = vpack.c.b16 %v1623, %v1619
    %v1852 = vpack.c.b16 %v1624, %v1620
    %v1853 = vpack.c.b16 %v1629, %v1625
    %v1854 = vpack.c.b16 %v1630, %v1626
    %v1855 = vpack.c.b16 %v1631, %v1627
    %v1856 = vpack.c.b16 %v1632, %v1628
    %v1857 = vpack.c.b16 %v1637, %v1633
    %v1858 = vpack.c.b16 %v1638, %v1634
    %v1859 = vpack.c.b16 %v1639, %v1635
    %v1860 = vpack.c.b16 %v1640, %v1636
    %v1861 = vpack.c.b16 %v1645, %v1641
    %v1862 = vpack.c.b16 %v1646, %v1642
    %v1863 = vpack.c.b16 %v1647, %v1643
    %v1864 = vpack.c.b16 %v1648, %v1644
    %v1865 = vpack.c.b16 %v1653, %v1649
    %v1866 = vpack.c.b16 %v1654, %v1650
    %v1867 = vpack.c.b16 %v1655, %v1651
    %v1868 = vpack.c.b16 %v1656, %v1652
    %v1869 = vpack.c.b16 %v1661, %v1657
    %v1870 = vpack.c.b16 %v1662, %v1658
    %v1871 = vpack.c.b16 %v1663, %v1659
    %v1872 = vpack.c.b16 %v1664, %v1660
    %v1873 = vpack.c.b16 %v1669, %v1665
    %v1874 = vpack.c.b16 %v1670, %v1666
    %v1875 = vpack.c.b16 %v1671, %v1667
    %v1876 = vpack.c.b16 %v1672, %v1668
    %v1877 = vpack.c.b16 %v1677, %v1673
    %v1878 = vpack.c.b16 %v1678, %v1674
    %v1879 = vpack.c.b16 %v1679, %v1675
    %v1880 = vpack.c.b16 %v1680, %v1676
    %v1881 = vpack.c.b16 %v1685, %v1681
    %v1882 = vpack.c.b16 %v1686, %v1682
    %v1883 = vpack.c.b16 %v1687, %v1683
    %v1884 = vpack.c.b16 %v1688, %v1684
    %v1885 = vpack.c.b16 %v1693, %v1689
    %v1886 = vpack.c.b16 %v1694, %v1690
    %v1887 = vpack.c.b16 %v1695, %v1691
    %v1888 = vpack.c.b16 %v1696, %v1692
    %v1889 = vpack.c.b16 %v1701, %v1697
    %v1890 = vpack.c.b16 %v1702, %v1698
    %v1891 = vpack.c.b16 %v1703, %v1699
    %v1892 = vpack.c.b16 %v1704, %v1700
    %v1893 = vpack.c.b16 %v1709, %v1705
    %v1894 = vpack.c.b16 %v1710, %v1706
    %v1895 = vpack.c.b16 %v1711, %v1707
    %v1896 = vpack.c.b16 %v1712, %v1708
    %v1897 = vpack.c.b16 %v1717, %v1713
    %v1898 = vpack.c.b16 %v1718, %v1714
    %v1899 = vpack.c.b16 %v1719, %v1715
    %v1900 = vpack.c.b16 %v1720, %v1716
    %v1901 = vpack.c.b16 %v1725, %v1721
    %v1902 = vpack.c.b16 %v1726, %v1722
    %v1903 = vpack.c.b16 %v1727, %v1723
    %v1904 = vpack.c.b16 %v1728, %v1724
    %v1905 = vpack.c.b16 %v1733, %v1729
    %v1906 = vpack.c.b16 %v1734, %v1730
    %v1907 = vpack.c.b16 %v1735, %v1731
    %v1908 = vpack.c.b16 %v1736, %v1732
    %v1909 = vpack.c.b16 %v1741, %v1737
    %v1910 = vpack.c.b16 %v1742, %v1738
    %v1911 = vpack.c.b16 %v1743, %v1739
    %v1912 = vpack.c.b16 %v1744, %v1740
    %v1913 = vpack.c.b16 %v1749, %v1745
    %v1914 = vpack.c.b16 %v1750, %v1746
    %v1915 = vpack.c.b16 %v1751, %v1747
    %v1916 = vpack.c.b16 %v1752, %v1748
    %v1917 = vpack.c.b16 %v1757, %v1753
    %v1918 = vpack.c.b16 %v1758, %v1754
    %v1919 = vpack.c.b16 %v1759, %v1755
    %v1920 = vpack.c.b16 %v1760, %v1756
    %v1921 = vpack.c.b16 %v1765, %v1761
    %v1922 = vpack.c.b16 %v1766, %v1762
    %v1923 = vpack.c.b16 %v1767, %v1763
    %v1924 = vpack.c.b16 %v1768, %v1764
    %v1925 = vpack.c.b16 %v1773, %v1769
    %v1926 = vpack.c.b16 %v1774, %v1770
    %v1927 = vpack.c.b16 %v1775, %v1771
    %v1928 = vpack.c.b16 %v1776, %v1772
    %v1929 = vpack.c.b16 %v1781, %v1777
    %v1930 = vpack.c.b16 %v1782, %v1778
    %v1931 = vpack.c.b16 %v1783, %v1779
    %v1932 = vpack.c.b16 %v1784, %v1780
    %v1933 = vpack.c.b16 %v1789, %v1785
    %v1934 = vpack.c.b16 %v1790, %v1786
    %v1935 = vpack.c.b16 %v1791, %v1787
    %v1936 = vpack.c.b16 %v1792, %v1788
    %v1937 = vpack.c.b16 %v1797, %v1793
    %v1938 = vpack.c.b16 %v1798, %v1794
    %v1939 = vpack.c.b16 %v1799, %v1795
    %v1940 = vpack.c.b16 %v1800, %v1796
    %v1941 = vpack.c.b16 %v1805, %v1801
    %v1942 = vpack.c.b16 %v1806, %v1802
    %v1943 = vpack.c.b16 %v1807, %v1803
    %v1944 = vpack.c.b16 %v1808, %v1804
    %v1945 = vpack.c.b16 %v1813, %v1809
    %v1946 = vpack.c.b16 %v1814, %v1810
    %v1947 = vpack.c.b16 %v1815, %v1811
    %v1948 = vpack.c.b16 %v1816, %v1812
    %v1949 = vpack.c.b16 %v1821, %v1817
    %v1950 = vpack.c.b16 %v1822, %v1818
    %v1951 = vpack.c.b16 %v1823, %v1819
    %v1952 = vpack.c.b16 %v1824, %v1820
    %2081 = vmatprep.subr.bf16.mxu0 %v1826
    %2082 = vmatpush1.bf16.msra.mxu0 %v1825
    %2083 = vmatprep.subr.bf16.mxu0 %v1830
    %2084 = vmatpush1.bf16.msra.mxu0 %v1829
    %2085 = vmatprep.subr.bf16.mxu0 %v1834
    %2086 = vmatpush1.bf16.msra.mxu0 %v1833
    %2087 = vmatprep.subr.bf16.mxu0 %v1838
    %2088 = vmatpush1.bf16.msra.mxu0 %v1837
    %2089 = vmatprep.subr.bf16.mxu0 %v1842
    %2090 = vmatpush1.bf16.msra.mxu0 %v1841
    %2091 = vmatprep.subr.bf16.mxu0 %v1846
    %2092 = vmatpush1.bf16.msra.mxu0 %v1845
    %2093 = vmatprep.subr.bf16.mxu0 %v1850
    %2094 = vmatpush1.bf16.msra.mxu0 %v1849
    %2095 = vmatprep.subr.bf16.mxu0 %v1854
    %2096 = vmatpush1.bf16.msra.mxu0 %v1853
    %2097 = vmatprep.subr.bf16.mxu0 %v1858
    %2098 = vmatpush1.bf16.msra.mxu0 %v1857
    %2099 = vmatprep.subr.bf16.mxu0 %v1862
    %2100 = vmatpush1.bf16.msra.mxu0 %v1861
    %2101 = vmatprep.subr.bf16.mxu0 %v1866
    %2102 = vmatpush1.bf16.msra.mxu0 %v1865
    %2103 = vmatprep.subr.bf16.mxu0 %v1870
    %2104 = vmatpush1.bf16.msra.mxu0 %v1869
    %2105 = vmatprep.subr.bf16.mxu0 %v1874
    %2106 = vmatpush1.bf16.msra.mxu0 %v1873
    %2107 = vmatprep.subr.bf16.mxu0 %v1878
    %2108 = vmatpush1.bf16.msra.mxu0 %v1877
    %2109 = vmatprep.subr.bf16.mxu0 %v1882
    %2110 = vmatpush1.bf16.msra.mxu0 %v1881
    %2111 = vmatprep.subr.bf16.mxu0 %v1886
    %2112 = vmatpush1.bf16.msra.mxu0 %v1885
    %2113 = vmatprep.mubr.bf16.mxu0 %v1288
    %2114 = vmatmul.mubr.bf16.gmra.mrb[0].mxu0 %v1287
    %v2115 = vpop.f32.mrb[0].mxu0
    %v2116 = vadd.f32 %v1424, %v2115
    %v2117 = vpop.f32.mrb[0].mxu0
    %v2118 = vadd.f32 %v1428, %v2117
    %v2119 = vpop.f32.mrb[0].mxu0
    %v2120 = vadd.f32 %v1424, %v2119
    %v2121 = vpop.f32.mrb[0].mxu0
    %v2122 = vadd.f32 %v1428, %v2121
    %2123 = vdwg.mxu0
    %2124 = vmatprep.subr.bf16.mxu0 %v1890
    %2125 = vmatpush1.bf16.msra.mxu0 %v1889
    %2126 = vmatprep.subr.bf16.mxu0 %v1894
    %2127 = vmatpush1.bf16.msra.mxu0 %v1893
    %2128 = vmatprep.subr.bf16.mxu0 %v1898
    %2129 = vmatpush1.bf16.msra.mxu0 %v1897
    %2130 = vmatprep.subr.bf16.mxu0 %v1902
    %2131 = vmatpush1.bf16.msra.mxu0 %v1901
    %2132 = vmatprep.subr.bf16.mxu0 %v1906
    %2133 = vmatpush1.bf16.msra.mxu0 %v1905
    %2134 = vmatprep.subr.bf16.mxu0 %v1910
    %2135 = vmatpush1.bf16.msra.mxu0 %v1909
    %2136 = vmatprep.subr.bf16.mxu0 %v1914
    %2137 = vmatpush1.bf16.msra.mxu0 %v1913
    %2138 = vmatprep.subr.bf16.mxu0 %v1918
    %2139 = vmatpush1.bf16.msra.mxu0 %v1917
    %2140 = vmatprep.subr.bf16.mxu0 %v1922
    %2141 = vmatpush1.bf16.msra.mxu0 %v1921
    %2142 = vmatprep.subr.bf16.mxu0 %v1926
    %2143 = vmatpush1.bf16.msra.mxu0 %v1925
    %2144 = vmatprep.subr.bf16.mxu0 %v1930
    %2145 = vmatpush1.bf16.msra.mxu0 %v1929
    %2146 = vmatprep.subr.bf16.mxu0 %v1934
    %2147 = vmatpush1.bf16.msra.mxu0 %v1933
    %2148 = vmatprep.subr.bf16.mxu0 %v1938
    %2149 = vmatpush1.bf16.msra.mxu0 %v1937
    %2150 = vmatprep.subr.bf16.mxu0 %v1942
    %2151 = vmatpush1.bf16.msra.mxu0 %v1941
    %2152 = vmatprep.subr.bf16.mxu0 %v1946
    %2153 = vmatpush1.bf16.msra.mxu0 %v1945
    %2154 = vmatprep.subr.bf16.mxu0 %v1950
    %2155 = vmatpush1.bf16.msra.mxu0 %v1949
    %2156 = vmatprep.mubr.bf16.mxu0 %v1290
    %2157 = vmatmul.mubr.bf16.gmra.mrb[0].mxu0 %v1289
    %v2158 = vpop.f32.mrb[0].mxu0
    %v2159 = vadd.f32 %v2116, %v2158
    %v2160 = vpop.f32.mrb[0].mxu0
    %v2161 = vadd.f32 %v2118, %v2160
    %v2162 = vpop.f32.mrb[0].mxu0
    %v2163 = vadd.f32 %v2120, %v2162
    %v2164 = vpop.f32.mrb[0].mxu0
    %v2165 = vadd.f32 %v2122, %v2164
    %2166 = vdwg.mxu0
    %2167 = vmatprep.subr.bf16.mxu0 %v1828
    %2168 = vmatpush1.bf16.msra.mxu0 %v1827
    %2169 = vmatprep.subr.bf16.mxu0 %v1832
    %2170 = vmatpush1.bf16.msra.mxu0 %v1831
    %2171 = vmatprep.subr.bf16.mxu0 %v1836
    %2172 = vmatpush1.bf16.msra.mxu0 %v1835
    %2173 = vmatprep.subr.bf16.mxu0 %v1840
    %2174 = vmatpush1.bf16.msra.mxu0 %v1839
    %2175 = vmatprep.subr.bf16.mxu0 %v1844
    %2176 = vmatpush1.bf16.msra.mxu0 %v1843
    %2177 = vmatprep.subr.bf16.mxu0 %v1848
    %2178 = vmatpush1.bf16.msra.mxu0 %v1847
    %2179 = vmatprep.subr.bf16.mxu0 %v1852
    %2180 = vmatpush1.bf16.msra.mxu0 %v1851
    %2181 = vmatprep.subr.bf16.mxu0 %v1856
    %2182 = vmatpush1.bf16.msra.mxu0 %v1855
    %2183 = vmatprep.subr.bf16.mxu0 %v1860
    %2184 = vmatpush1.bf16.msra.mxu0 %v1859
    %2185 = vmatprep.subr.bf16.mxu0 %v1864
    %2186 = vmatpush1.bf16.msra.mxu0 %v1863
    %2187 = vmatprep.subr.bf16.mxu0 %v1868
    %2188 = vmatpush1.bf16.msra.mxu0 %v1867
    %2189 = vmatprep.subr.bf16.mxu0 %v1872
    %2190 = vmatpush1.bf16.msra.mxu0 %v1871
    %2191 = vmatprep.subr.bf16.mxu0 %v1876
    %2192 = vmatpush1.bf16.msra.mxu0 %v1875
    %2193 = vmatprep.subr.bf16.mxu0 %v1880
    %2194 = vmatpush1.bf16.msra.mxu0 %v1879
    %2195 = vmatprep.subr.bf16.mxu0 %v1884
    %2196 = vmatpush1.bf16.msra.mxu0 %v1883
    %2197 = vmatprep.subr.bf16.mxu0 %v1888
    %2198 = vmatpush1.bf16.msra.mxu0 %v1887
    %2199 = vmatprep.mubr.bf16.mxu0 %v1288
    %2200 = vmatmul.mubr.bf16.gmra.mrb[0].mxu0 %v1287
    %v2201 = vpop.f32.mrb[0].mxu0
    %v2202 = vadd.f32 %v1432, %v2201
    %v2203 = vpop.f32.mrb[0].mxu0
    %v2204 = vadd.f32 %v1436, %v2203
    %v2205 = vpop.f32.mrb[0].mxu0
    %v2206 = vadd.f32 %v1432, %v2205
    %v2207 = vpop.f32.mrb[0].mxu0
    %v2208 = vadd.f32 %v1436, %v2207
    %2209 = vdwg.mxu0
    %2210 = vmatprep.subr.bf16.mxu0 %v1892
    %2211 = vmatpush1.bf16.msra.mxu0 %v1891
    %2212 = vmatprep.subr.bf16.mxu0 %v1896
    %2213 = vmatpush1.bf16.msra.mxu0 %v1895
    %2214 = vmatprep.subr.bf16.mxu0 %v1900
    %2215 = vmatpush1.bf16.msra.mxu0 %v1899
    %2216 = vmatprep.subr.bf16.mxu0 %v1904
    %2217 = vmatpush1.bf16.msra.mxu0 %v1903
    %2218 = vmatprep.subr.bf16.mxu0 %v1908
    %2219 = vmatpush1.bf16.msra.mxu0 %v1907
    %2220 = vmatprep.subr.bf16.mxu0 %v1912
    %2221 = vmatpush1.bf16.msra.mxu0 %v1911
    %2222 = vmatprep.subr.bf16.mxu0 %v1916
    %2223 = vmatpush1.bf16.msra.mxu0 %v1915
    %2224 = vmatprep.subr.bf16.mxu0 %v1920
    %2225 = vmatpush1.bf16.msra.mxu0 %v1919
    %2226 = vmatprep.subr.bf16.mxu0 %v1924
    %2227 = vmatpush1.bf16.msra.mxu0 %v1923
    %2228 = vmatprep.subr.bf16.mxu0 %v1928
    %2229 = vmatpush1.bf16.msra.mxu0 %v1927
    %2230 = vmatprep.subr.bf16.mxu0 %v1932
    %2231 = vmatpush1.bf16.msra.mxu0 %v1931
    %2232 = vmatprep.subr.bf16.mxu0 %v1936
    %2233 = vmatpush1.bf16.msra.mxu0 %v1935
    %2234 = vmatprep.subr.bf16.mxu0 %v1940
    %2235 = vmatpush1.bf16.msra.mxu0 %v1939
    %2236 = vmatprep.subr.bf16.mxu0 %v1944
    %2237 = vmatpush1.bf16.msra.mxu0 %v1943
    %2238 = vmatprep.subr.bf16.mxu0 %v1948
    %2239 = vmatpush1.bf16.msra.mxu0 %v1947
    %2240 = vmatprep.subr.bf16.mxu0 %v1952
    %2241 = vmatpush1.bf16.msra.mxu0 %v1951
    %2242 = vmatprep.mubr.bf16.mxu0 %v1290
    %2243 = vmatmul.mubr.bf16.gmra.mrb[0].mxu0 %v1289
    %v2244 = vpop.f32.mrb[0].mxu0
    %v2245 = vadd.f32 %v2202, %v2244
    %v2246 = vpop.f32.mrb[0].mxu0
    %v2247 = vadd.f32 %v2204, %v2246
    %v2248 = vpop.f32.mrb[0].mxu0
    %v2249 = vadd.f32 %v2206, %v2248
    %v2250 = vpop.f32.mrb[0].mxu0
    %v2251 = vadd.f32 %v2208, %v2250
    %2252 = vdwg.mxu0
    %v2253 = vmax.f32 %v2159, 0.0
    %v2254 = vmax.f32 %v2161, 0.0
    %v2255 = vmax.f32 %v2245, 0.0
    %v2256 = vmax.f32 %v2247, 0.0
    %v2257 = vmax.f32 %v2163, 0.0
    %v2258 = vmax.f32 %v2165, 0.0
    %v2259 = vmax.f32 %v2249, 0.0
    %v2260 = vmax.f32 %v2251, 0.0
    %v2261 = vpack.c.bf16 %v2257, %v2253
    %v2262 = vpack.c.bf16 %v2258, %v2254
    %v2263 = vpack.c.bf16 %v2259, %v2255
    %v2264 = vpack.c.bf16 %v2260, %v2256
    %2265 = vst [vmem:[#allocation2] sm:$0xff] %v2261
    %2266 = vst [vmem:[#allocation2 + $0x8] sm:$0xff] %v2262
    %2267 = vst [vmem:[#allocation2 + $0x10] sm:$0xff] %v2263
    %2268 = vst [vmem:[#allocation2 + $0x18] sm:$0xff] %v2264
    %v2269 = vld [vmem:[#allocation2] sm:$0xff]
    %v2270 = vld [vmem:[#allocation2 + $0x8] sm:$0xff]
    %v2271 = vld [vmem:[#allocation2 + $0x10] sm:$0xff]
    %v2272 = vld [vmem:[#allocation2 + $0x18] sm:$0xff]
    %v2273 = vld [vmem:[#allocation11] sm:$0xff]
    %v2274 = vld [vmem:[#allocation11 + $0x8] sm:$0xff]
    %v2275 = vld [vmem:[#allocation11 + $0x10] sm:$0xff]
    %v2276 = vld [vmem:[#allocation11 + $0x18] sm:$0xff]
    %v2277 = vld [vmem:[#allocation11 + $0x20] sm:$0xff]
    %v2278 = vld [vmem:[#allocation11 + $0x28] sm:$0xff]
    %v2279 = vld [vmem:[#allocation11 + $0x30] sm:$0xff]
    %v2280 = vld [vmem:[#allocation11 + $0x38] sm:$0xff]
    %v2281 = vld [vmem:[#allocation11 + $0x40] sm:$0xff]
    %v2282 = vld [vmem:[#allocation11 + $0x48] sm:$0xff]
    %v2283 = vld [vmem:[#allocation11 + $0x50] sm:$0xff]
    %v2284 = vld [vmem:[#allocation11 + $0x58] sm:$0xff]
    %v2285 = vld [vmem:[#allocation11 + $0x60] sm:$0xff]
    %v2286 = vld [vmem:[#allocation11 + $0x68] sm:$0xff]
    %v2287 = vld [vmem:[#allocation11 + $0x70] sm:$0xff]
    %v2288 = vld [vmem:[#allocation11 + $0x78] sm:$0xff]
    %v2289 = vld [vmem:[#allocation11 + $0x80] sm:$0xff]
    %v2290 = vld [vmem:[#allocation11 + $0x88] sm:$0xff]
    %v2291 = vld [vmem:[#allocation11 + $0x90] sm:$0xff]
    %v2292 = vld [vmem:[#allocation11 + $0x98] sm:$0xff]
    %v2293 = vld [vmem:[#allocation11 + $0xa0] sm:$0xff]
    %v2294 = vld [vmem:[#allocation11 + $0xa8] sm:$0xff]
    %v2295 = vld [vmem:[#allocation11 + $0xb0] sm:$0xff]
    %v2296 = vld [vmem:[#allocation11 + $0xb8] sm:$0xff]
    %v2297 = vld [vmem:[#allocation11 + $0xc0] sm:$0xff]
    %v2298 = vld [vmem:[#allocation11 + $0xc8] sm:$0xff]
    %v2299 = vld [vmem:[#allocation11 + $0xd0] sm:$0xff]
    %v2300 = vld [vmem:[#allocation11 + $0xd8] sm:$0xff]
    %v2301 = vld [vmem:[#allocation11 + $0xe0] sm:$0xff]
    %v2302 = vld [vmem:[#allocation11 + $0xe8] sm:$0xff]
    %v2303 = vld [vmem:[#allocation11 + $0xf0] sm:$0xff]
    %v2304 = vld [vmem:[#allocation11 + $0xf8] sm:$0xff]
    %v2305 = vld [vmem:[#allocation11 + $0x100] sm:$0xff]
    %v2306 = vld [vmem:[#allocation11 + $0x108] sm:$0xff]
    %v2307 = vld [vmem:[#allocation11 + $0x110] sm:$0xff]
    %v2308 = vld [vmem:[#allocation11 + $0x118] sm:$0xff]
    %v2309 = vld [vmem:[#allocation11 + $0x120] sm:$0xff]
    %v2310 = vld [vmem:[#allocation11 + $0x128] sm:$0xff]
    %v2311 = vld [vmem:[#allocation11 + $0x130] sm:$0xff]
    %v2312 = vld [vmem:[#allocation11 + $0x138] sm:$0xff]
    %v2313 = vld [vmem:[#allocation11 + $0x140] sm:$0xff]
    %v2314 = vld [vmem:[#allocation11 + $0x148] sm:$0xff]
    %v2315 = vld [vmem:[#allocation11 + $0x150] sm:$0xff]
    %v2316 = vld [vmem:[#allocation11 + $0x158] sm:$0xff]
    %v2317 = vld [vmem:[#allocation11 + $0x160] sm:$0xff]
    %v2318 = vld [vmem:[#allocation11 + $0x168] sm:$0xff]
    %v2319 = vld [vmem:[#allocation11 + $0x170] sm:$0xff]
    %v2320 = vld [vmem:[#allocation11 + $0x178] sm:$0xff]
    %v2321 = vld [vmem:[#allocation11 + $0x180] sm:$0xff]
    %v2322 = vld [vmem:[#allocation11 + $0x188] sm:$0xff]
    %v2323 = vld [vmem:[#allocation11 + $0x190] sm:$0xff]
    %v2324 = vld [vmem:[#allocation11 + $0x198] sm:$0xff]
    %v2325 = vld [vmem:[#allocation11 + $0x1a0] sm:$0xff]
    %v2326 = vld [vmem:[#allocation11 + $0x1a8] sm:$0xff]
    %v2327 = vld [vmem:[#allocation11 + $0x1b0] sm:$0xff]
    %v2328 = vld [vmem:[#allocation11 + $0x1b8] sm:$0xff]
    %v2329 = vld [vmem:[#allocation11 + $0x1c0] sm:$0xff]
    %v2330 = vld [vmem:[#allocation11 + $0x1c8] sm:$0xff]
    %v2331 = vld [vmem:[#allocation11 + $0x1d0] sm:$0xff]
    %v2332 = vld [vmem:[#allocation11 + $0x1d8] sm:$0xff]
    %v2333 = vld [vmem:[#allocation11 + $0x1e0] sm:$0xff]
    %v2334 = vld [vmem:[#allocation11 + $0x1e8] sm:$0xff]
    %v2335 = vld [vmem:[#allocation11 + $0x1f0] sm:$0xff]
    %v2336 = vld [vmem:[#allocation11 + $0x1f8] sm:$0xff]
    %v2337 = vld [vmem:[#allocation11 + $0x200] sm:$0xff]
    %v2338 = vld [vmem:[#allocation11 + $0x208] sm:$0xff]
    %v2339 = vld [vmem:[#allocation11 + $0x210] sm:$0xff]
    %v2340 = vld [vmem:[#allocation11 + $0x218] sm:$0xff]
    %v2341 = vld [vmem:[#allocation11 + $0x220] sm:$0xff]
    %v2342 = vld [vmem:[#allocation11 + $0x228] sm:$0xff]
    %v2343 = vld [vmem:[#allocation11 + $0x230] sm:$0xff]
    %v2344 = vld [vmem:[#allocation11 + $0x238] sm:$0xff]
    %v2345 = vld [vmem:[#allocation11 + $0x240] sm:$0xff]
    %v2346 = vld [vmem:[#allocation11 + $0x248] sm:$0xff]
    %v2347 = vld [vmem:[#allocation11 + $0x250] sm:$0xff]
    %v2348 = vld [vmem:[#allocation11 + $0x258] sm:$0xff]
    %v2349 = vld [vmem:[#allocation11 + $0x260] sm:$0xff]
    %v2350 = vld [vmem:[#allocation11 + $0x268] sm:$0xff]
    %v2351 = vld [vmem:[#allocation11 + $0x270] sm:$0xff]
    %v2352 = vld [vmem:[#allocation11 + $0x278] sm:$0xff]
    %v2353 = vld [vmem:[#allocation11 + $0x280] sm:$0xff]
    %v2354 = vld [vmem:[#allocation11 + $0x288] sm:$0xff]
    %v2355 = vld [vmem:[#allocation11 + $0x290] sm:$0xff]
    %v2356 = vld [vmem:[#allocation11 + $0x298] sm:$0xff]
    %v2357 = vld [vmem:[#allocation11 + $0x2a0] sm:$0xff]
    %v2358 = vld [vmem:[#allocation11 + $0x2a8] sm:$0xff]
    %v2359 = vld [vmem:[#allocation11 + $0x2b0] sm:$0xff]
    %v2360 = vld [vmem:[#allocation11 + $0x2b8] sm:$0xff]
    %v2361 = vld [vmem:[#allocation11 + $0x2c0] sm:$0xff]
    %v2362 = vld [vmem:[#allocation11 + $0x2c8] sm:$0xff]
    %v2363 = vld [vmem:[#allocation11 + $0x2d0] sm:$0xff]
    %v2364 = vld [vmem:[#allocation11 + $0x2d8] sm:$0xff]
    %v2365 = vld [vmem:[#allocation11 + $0x2e0] sm:$0xff]
    %v2366 = vld [vmem:[#allocation11 + $0x2e8] sm:$0xff]
    %v2367 = vld [vmem:[#allocation11 + $0x2f0] sm:$0xff]
    %v2368 = vld [vmem:[#allocation11 + $0x2f8] sm:$0xff]
    %v2369 = vld [vmem:[#allocation11 + $0x300] sm:$0xff]
    %v2370 = vld [vmem:[#allocation11 + $0x308] sm:$0xff]
    %v2371 = vld [vmem:[#allocation11 + $0x310] sm:$0xff]
    %v2372 = vld [vmem:[#allocation11 + $0x318] sm:$0xff]
    %v2373 = vld [vmem:[#allocation11 + $0x320] sm:$0xff]
    %v2374 = vld [vmem:[#allocation11 + $0x328] sm:$0xff]
    %v2375 = vld [vmem:[#allocation11 + $0x330] sm:$0xff]
    %v2376 = vld [vmem:[#allocation11 + $0x338] sm:$0xff]
    %v2377 = vld [vmem:[#allocation11 + $0x340] sm:$0xff]
    %v2378 = vld [vmem:[#allocation11 + $0x348] sm:$0xff]
    %v2379 = vld [vmem:[#allocation11 + $0x350] sm:$0xff]
    %v2380 = vld [vmem:[#allocation11 + $0x358] sm:$0xff]
    %v2381 = vld [vmem:[#allocation11 + $0x360] sm:$0xff]
    %v2382 = vld [vmem:[#allocation11 + $0x368] sm:$0xff]
    %v2383 = vld [vmem:[#allocation11 + $0x370] sm:$0xff]
    %v2384 = vld [vmem:[#allocation11 + $0x378] sm:$0xff]
    %v2385 = vld [vmem:[#allocation11 + $0x380] sm:$0xff]
    %v2386 = vld [vmem:[#allocation11 + $0x388] sm:$0xff]
    %v2387 = vld [vmem:[#allocation11 + $0x390] sm:$0xff]
    %v2388 = vld [vmem:[#allocation11 + $0x398] sm:$0xff]
    %v2389 = vld [vmem:[#allocation11 + $0x3a0] sm:$0xff]
    %v2390 = vld [vmem:[#allocation11 + $0x3a8] sm:$0xff]
    %v2391 = vld [vmem:[#allocation11 + $0x3b0] sm:$0xff]
    %v2392 = vld [vmem:[#allocation11 + $0x3b8] sm:$0xff]
    %v2393 = vld [vmem:[#allocation11 + $0x3c0] sm:$0xff]
    %v2394 = vld [vmem:[#allocation11 + $0x3c8] sm:$0xff]
    %v2395 = vld [vmem:[#allocation11 + $0x3d0] sm:$0xff]
    %v2396 = vld [vmem:[#allocation11 + $0x3d8] sm:$0xff]
    %v2397 = vld [vmem:[#allocation11 + $0x3e0] sm:$0xff]
    %v2398 = vld [vmem:[#allocation11 + $0x3e8] sm:$0xff]
    %v2399 = vld [vmem:[#allocation11 + $0x3f0] sm:$0xff]
    %v2400 = vld [vmem:[#allocation11 + $0x3f8] sm:$0xff]
    %v2401 = vld [vmem:[%s8] sm:$0xf]
    %v2403 = vlaneseq
    %v2404 = vshrl.u32 %v2403, 7
    %v2405 = vsub.s32 0, %v2404
    %v2406 = vrot.slane %v2401, %v2405
    %v2407 = vlaneseq
    %v2408 = vshrl.u32 %v2407, 7
    %v2409 = vsub.s32 1, %v2408
    %v2410 = vrot.slane %v2401, %v2409
    %v2411 = vlaneseq
    %v2412 = vshrl.u32 %v2411, 7
    %v2413 = vsub.s32 2, %v2412
    %v2414 = vrot.slane %v2401, %v2413
    %v2415 = vlaneseq
    %v2416 = vshrl.u32 %v2415, 7
    %v2417 = vsub.s32 3, %v2416
    %v2418 = vrot.slane %v2401, %v2417
    %v2551 = vunpack.c.l.b16 %v2273
    %v2552 = vunpack.c.h.b16 %v2273
    %v2553 = vunpack.c.l.b16 %v2274
    %v2554 = vunpack.c.h.b16 %v2274
    %v2555 = vunpack.c.l.b16 %v2275
    %v2556 = vunpack.c.h.b16 %v2275
    %v2557 = vunpack.c.l.b16 %v2276
    %v2558 = vunpack.c.h.b16 %v2276
    %v2559 = vunpack.c.l.b16 %v2277
    %v2560 = vunpack.c.h.b16 %v2277
    %v2561 = vunpack.c.l.b16 %v2278
    %v2562 = vunpack.c.h.b16 %v2278
    %v2563 = vunpack.c.l.b16 %v2279
    %v2564 = vunpack.c.h.b16 %v2279
    %v2565 = vunpack.c.l.b16 %v2280
    %v2566 = vunpack.c.h.b16 %v2280
    %v2567 = vunpack.c.l.b16 %v2281
    %v2568 = vunpack.c.h.b16 %v2281
    %v2569 = vunpack.c.l.b16 %v2282
    %v2570 = vunpack.c.h.b16 %v2282
    %v2571 = vunpack.c.l.b16 %v2283
    %v2572 = vunpack.c.h.b16 %v2283
    %v2573 = vunpack.c.l.b16 %v2284
    %v2574 = vunpack.c.h.b16 %v2284
    %v2575 = vunpack.c.l.b16 %v2285
    %v2576 = vunpack.c.h.b16 %v2285
    %v2577 = vunpack.c.l.b16 %v2286
    %v2578 = vunpack.c.h.b16 %v2286
    %v2579 = vunpack.c.l.b16 %v2287
    %v2580 = vunpack.c.h.b16 %v2287
    %v2581 = vunpack.c.l.b16 %v2288
    %v2582 = vunpack.c.h.b16 %v2288
    %v2583 = vunpack.c.l.b16 %v2289
    %v2584 = vunpack.c.h.b16 %v2289
    %v2585 = vunpack.c.l.b16 %v2290
    %v2586 = vunpack.c.h.b16 %v2290
    %v2587 = vunpack.c.l.b16 %v2291
    %v2588 = vunpack.c.h.b16 %v2291
    %v2589 = vunpack.c.l.b16 %v2292
    %v2590 = vunpack.c.h.b16 %v2292
    %v2591 = vunpack.c.l.b16 %v2293
    %v2592 = vunpack.c.h.b16 %v2293
    %v2593 = vunpack.c.l.b16 %v2294
    %v2594 = vunpack.c.h.b16 %v2294
    %v2595 = vunpack.c.l.b16 %v2295
    %v2596 = vunpack.c.h.b16 %v2295
    %v2597 = vunpack.c.l.b16 %v2296
    %v2598 = vunpack.c.h.b16 %v2296
    %v2599 = vunpack.c.l.b16 %v2297
    %v2600 = vunpack.c.h.b16 %v2297
    %v2601 = vunpack.c.l.b16 %v2298
    %v2602 = vunpack.c.h.b16 %v2298
    %v2603 = vunpack.c.l.b16 %v2299
    %v2604 = vunpack.c.h.b16 %v2299
    %v2605 = vunpack.c.l.b16 %v2300
    %v2606 = vunpack.c.h.b16 %v2300
    %v2607 = vunpack.c.l.b16 %v2301
    %v2608 = vunpack.c.h.b16 %v2301
    %v2609 = vunpack.c.l.b16 %v2302
    %v2610 = vunpack.c.h.b16 %v2302
    %v2611 = vunpack.c.l.b16 %v2303
    %v2612 = vunpack.c.h.b16 %v2303
    %v2613 = vunpack.c.l.b16 %v2304
    %v2614 = vunpack.c.h.b16 %v2304
    %v2615 = vunpack.c.l.b16 %v2305
    %v2616 = vunpack.c.h.b16 %v2305
    %v2617 = vunpack.c.l.b16 %v2306
    %v2618 = vunpack.c.h.b16 %v2306
    %v2619 = vunpack.c.l.b16 %v2307
    %v2620 = vunpack.c.h.b16 %v2307
    %v2621 = vunpack.c.l.b16 %v2308
    %v2622 = vunpack.c.h.b16 %v2308
    %v2623 = vunpack.c.l.b16 %v2309
    %v2624 = vunpack.c.h.b16 %v2309
    %v2625 = vunpack.c.l.b16 %v2310
    %v2626 = vunpack.c.h.b16 %v2310
    %v2627 = vunpack.c.l.b16 %v2311
    %v2628 = vunpack.c.h.b16 %v2311
    %v2629 = vunpack.c.l.b16 %v2312
    %v2630 = vunpack.c.h.b16 %v2312
    %v2631 = vunpack.c.l.b16 %v2313
    %v2632 = vunpack.c.h.b16 %v2313
    %v2633 = vunpack.c.l.b16 %v2314
    %v2634 = vunpack.c.h.b16 %v2314
    %v2635 = vunpack.c.l.b16 %v2315
    %v2636 = vunpack.c.h.b16 %v2315
    %v2637 = vunpack.c.l.b16 %v2316
    %v2638 = vunpack.c.h.b16 %v2316
    %v2639 = vunpack.c.l.b16 %v2317
    %v2640 = vunpack.c.h.b16 %v2317
    %v2641 = vunpack.c.l.b16 %v2318
    %v2642 = vunpack.c.h.b16 %v2318
    %v2643 = vunpack.c.l.b16 %v2319
    %v2644 = vunpack.c.h.b16 %v2319
    %v2645 = vunpack.c.l.b16 %v2320
    %v2646 = vunpack.c.h.b16 %v2320
    %v2647 = vunpack.c.l.b16 %v2321
    %v2648 = vunpack.c.h.b16 %v2321
    %v2649 = vunpack.c.l.b16 %v2322
    %v2650 = vunpack.c.h.b16 %v2322
    %v2651 = vunpack.c.l.b16 %v2323
    %v2652 = vunpack.c.h.b16 %v2323
    %v2653 = vunpack.c.l.b16 %v2324
    %v2654 = vunpack.c.h.b16 %v2324
    %v2655 = vunpack.c.l.b16 %v2325
    %v2656 = vunpack.c.h.b16 %v2325
    %v2657 = vunpack.c.l.b16 %v2326
    %v2658 = vunpack.c.h.b16 %v2326
    %v2659 = vunpack.c.l.b16 %v2327
    %v2660 = vunpack.c.h.b16 %v2327
    %v2661 = vunpack.c.l.b16 %v2328
    %v2662 = vunpack.c.h.b16 %v2328
    %v2663 = vunpack.c.l.b16 %v2329
    %v2664 = vunpack.c.h.b16 %v2329
    %v2665 = vunpack.c.l.b16 %v2330
    %v2666 = vunpack.c.h.b16 %v2330
    %v2667 = vunpack.c.l.b16 %v2331
    %v2668 = vunpack.c.h.b16 %v2331
    %v2669 = vunpack.c.l.b16 %v2332
    %v2670 = vunpack.c.h.b16 %v2332
    %v2671 = vunpack.c.l.b16 %v2333
    %v2672 = vunpack.c.h.b16 %v2333
    %v2673 = vunpack.c.l.b16 %v2334
    %v2674 = vunpack.c.h.b16 %v2334
    %v2675 = vunpack.c.l.b16 %v2335
    %v2676 = vunpack.c.h.b16 %v2335
    %v2677 = vunpack.c.l.b16 %v2336
    %v2678 = vunpack.c.h.b16 %v2336
    %v2679 = vunpack.c.l.b16 %v2337
    %v2680 = vunpack.c.h.b16 %v2337
    %v2681 = vunpack.c.l.b16 %v2338
    %v2682 = vunpack.c.h.b16 %v2338
    %v2683 = vunpack.c.l.b16 %v2339
    %v2684 = vunpack.c.h.b16 %v2339
    %v2685 = vunpack.c.l.b16 %v2340
    %v2686 = vunpack.c.h.b16 %v2340
    %v2687 = vunpack.c.l.b16 %v2341
    %v2688 = vunpack.c.h.b16 %v2341
    %v2689 = vunpack.c.l.b16 %v2342
    %v2690 = vunpack.c.h.b16 %v2342
    %v2691 = vunpack.c.l.b16 %v2343
    %v2692 = vunpack.c.h.b16 %v2343
    %v2693 = vunpack.c.l.b16 %v2344
    %v2694 = vunpack.c.h.b16 %v2344
    %v2695 = vunpack.c.l.b16 %v2345
    %v2696 = vunpack.c.h.b16 %v2345
    %v2697 = vunpack.c.l.b16 %v2346
    %v2698 = vunpack.c.h.b16 %v2346
    %v2699 = vunpack.c.l.b16 %v2347
    %v2700 = vunpack.c.h.b16 %v2347
    %v2701 = vunpack.c.l.b16 %v2348
    %v2702 = vunpack.c.h.b16 %v2348
    %v2703 = vunpack.c.l.b16 %v2349
    %v2704 = vunpack.c.h.b16 %v2349
    %v2705 = vunpack.c.l.b16 %v2350
    %v2706 = vunpack.c.h.b16 %v2350
    %v2707 = vunpack.c.l.b16 %v2351
    %v2708 = vunpack.c.h.b16 %v2351
    %v2709 = vunpack.c.l.b16 %v2352
    %v2710 = vunpack.c.h.b16 %v2352
    %v2711 = vunpack.c.l.b16 %v2353
    %v2712 = vunpack.c.h.b16 %v2353
    %v2713 = vunpack.c.l.b16 %v2354
    %v2714 = vunpack.c.h.b16 %v2354
    %v2715 = vunpack.c.l.b16 %v2355
    %v2716 = vunpack.c.h.b16 %v2355
    %v2717 = vunpack.c.l.b16 %v2356
    %v2718 = vunpack.c.h.b16 %v2356
    %v2719 = vunpack.c.l.b16 %v2357
    %v2720 = vunpack.c.h.b16 %v2357
    %v2721 = vunpack.c.l.b16 %v2358
    %v2722 = vunpack.c.h.b16 %v2358
    %v2723 = vunpack.c.l.b16 %v2359
    %v2724 = vunpack.c.h.b16 %v2359
    %v2725 = vunpack.c.l.b16 %v2360
    %v2726 = vunpack.c.h.b16 %v2360
    %v2727 = vunpack.c.l.b16 %v2361
    %v2728 = vunpack.c.h.b16 %v2361
    %v2729 = vunpack.c.l.b16 %v2362
    %v2730 = vunpack.c.h.b16 %v2362
    %v2731 = vunpack.c.l.b16 %v2363
    %v2732 = vunpack.c.h.b16 %v2363
    %v2733 = vunpack.c.l.b16 %v2364
    %v2734 = vunpack.c.h.b16 %v2364
    %v2735 = vunpack.c.l.b16 %v2365
    %v2736 = vunpack.c.h.b16 %v2365
    %v2737 = vunpack.c.l.b16 %v2366
    %v2738 = vunpack.c.h.b16 %v2366
    %v2739 = vunpack.c.l.b16 %v2367
    %v2740 = vunpack.c.h.b16 %v2367
    %v2741 = vunpack.c.l.b16 %v2368
    %v2742 = vunpack.c.h.b16 %v2368
    %v2743 = vunpack.c.l.b16 %v2369
    %v2744 = vunpack.c.h.b16 %v2369
    %v2745 = vunpack.c.l.b16 %v2370
    %v2746 = vunpack.c.h.b16 %v2370
    %v2747 = vunpack.c.l.b16 %v2371
    %v2748 = vunpack.c.h.b16 %v2371
    %v2749 = vunpack.c.l.b16 %v2372
    %v2750 = vunpack.c.h.b16 %v2372
    %v2751 = vunpack.c.l.b16 %v2373
    %v2752 = vunpack.c.h.b16 %v2373
    %v2753 = vunpack.c.l.b16 %v2374
    %v2754 = vunpack.c.h.b16 %v2374
    %v2755 = vunpack.c.l.b16 %v2375
    %v2756 = vunpack.c.h.b16 %v2375
    %v2757 = vunpack.c.l.b16 %v2376
    %v2758 = vunpack.c.h.b16 %v2376
    %v2759 = vunpack.c.l.b16 %v2377
    %v2760 = vunpack.c.h.b16 %v2377
    %v2761 = vunpack.c.l.b16 %v2378
    %v2762 = vunpack.c.h.b16 %v2378
    %v2763 = vunpack.c.l.b16 %v2379
    %v2764 = vunpack.c.h.b16 %v2379
    %v2765 = vunpack.c.l.b16 %v2380
    %v2766 = vunpack.c.h.b16 %v2380
    %v2767 = vunpack.c.l.b16 %v2381
    %v2768 = vunpack.c.h.b16 %v2381
    %v2769 = vunpack.c.l.b16 %v2382
    %v2770 = vunpack.c.h.b16 %v2382
    %v2771 = vunpack.c.l.b16 %v2383
    %v2772 = vunpack.c.h.b16 %v2383
    %v2773 = vunpack.c.l.b16 %v2384
    %v2774 = vunpack.c.h.b16 %v2384
    %v2775 = vunpack.c.l.b16 %v2385
    %v2776 = vunpack.c.h.b16 %v2385
    %v2777 = vunpack.c.l.b16 %v2386
    %v2778 = vunpack.c.h.b16 %v2386
    %v2779 = vunpack.c.l.b16 %v2387
    %v2780 = vunpack.c.h.b16 %v2387
    %v2781 = vunpack.c.l.b16 %v2388
    %v2782 = vunpack.c.h.b16 %v2388
    %v2783 = vunpack.c.l.b16 %v2389
    %v2784 = vunpack.c.h.b16 %v2389
    %v2785 = vunpack.c.l.b16 %v2390
    %v2786 = vunpack.c.h.b16 %v2390
    %v2787 = vunpack.c.l.b16 %v2391
    %v2788 = vunpack.c.h.b16 %v2391
    %v2789 = vunpack.c.l.b16 %v2392
    %v2790 = vunpack.c.h.b16 %v2392
    %v2791 = vunpack.c.l.b16 %v2393
    %v2792 = vunpack.c.h.b16 %v2393
    %v2793 = vunpack.c.l.b16 %v2394
    %v2794 = vunpack.c.h.b16 %v2394
    %v2795 = vunpack.c.l.b16 %v2395
    %v2796 = vunpack.c.h.b16 %v2395
    %v2797 = vunpack.c.l.b16 %v2396
    %v2798 = vunpack.c.h.b16 %v2396
    %v2799 = vunpack.c.l.b16 %v2397
    %v2800 = vunpack.c.h.b16 %v2397
    %v2801 = vunpack.c.l.b16 %v2398
    %v2802 = vunpack.c.h.b16 %v2398
    %v2803 = vunpack.c.l.b16 %v2399
    %v2804 = vunpack.c.h.b16 %v2399
    %v2805 = vunpack.c.l.b16 %v2400
    %v2806 = vunpack.c.h.b16 %v2400
    %v2807 = vpack.c.b16 %v2555, %v2551
    %v2808 = vpack.c.b16 %v2556, %v2552
    %v2809 = vpack.c.b16 %v2557, %v2553
    %v2810 = vpack.c.b16 %v2558, %v2554
    %v2811 = vpack.c.b16 %v2563, %v2559
    %v2812 = vpack.c.b16 %v2564, %v2560
    %v2813 = vpack.c.b16 %v2565, %v2561
    %v2814 = vpack.c.b16 %v2566, %v2562
    %v2815 = vpack.c.b16 %v2571, %v2567
    %v2816 = vpack.c.b16 %v2572, %v2568
    %v2817 = vpack.c.b16 %v2573, %v2569
    %v2818 = vpack.c.b16 %v2574, %v2570
    %v2819 = vpack.c.b16 %v2579, %v2575
    %v2820 = vpack.c.b16 %v2580, %v2576
    %v2821 = vpack.c.b16 %v2581, %v2577
    %v2822 = vpack.c.b16 %v2582, %v2578
    %v2823 = vpack.c.b16 %v2587, %v2583
    %v2824 = vpack.c.b16 %v2588, %v2584
    %v2825 = vpack.c.b16 %v2589, %v2585
    %v2826 = vpack.c.b16 %v2590, %v2586
    %v2827 = vpack.c.b16 %v2595, %v2591
    %v2828 = vpack.c.b16 %v2596, %v2592
    %v2829 = vpack.c.b16 %v2597, %v2593
    %v2830 = vpack.c.b16 %v2598, %v2594
    %v2831 = vpack.c.b16 %v2603, %v2599
    %v2832 = vpack.c.b16 %v2604, %v2600
    %v2833 = vpack.c.b16 %v2605, %v2601
    %v2834 = vpack.c.b16 %v2606, %v2602
    %v2835 = vpack.c.b16 %v2611, %v2607
    %v2836 = vpack.c.b16 %v2612, %v2608
    %v2837 = vpack.c.b16 %v2613, %v2609
    %v2838 = vpack.c.b16 %v2614, %v2610
    %v2839 = vpack.c.b16 %v2619, %v2615
    %v2840 = vpack.c.b16 %v2620, %v2616
    %v2841 = vpack.c.b16 %v2621, %v2617
    %v2842 = vpack.c.b16 %v2622, %v2618
    %v2843 = vpack.c.b16 %v2627, %v2623
    %v2844 = vpack.c.b16 %v2628, %v2624
    %v2845 = vpack.c.b16 %v2629, %v2625
    %v2846 = vpack.c.b16 %v2630, %v2626
    %v2847 = vpack.c.b16 %v2635, %v2631
    %v2848 = vpack.c.b16 %v2636, %v2632
    %v2849 = vpack.c.b16 %v2637, %v2633
    %v2850 = vpack.c.b16 %v2638, %v2634
    %v2851 = vpack.c.b16 %v2643, %v2639
    %v2852 = vpack.c.b16 %v2644, %v2640
    %v2853 = vpack.c.b16 %v2645, %v2641
    %v2854 = vpack.c.b16 %v2646, %v2642
    %v2855 = vpack.c.b16 %v2651, %v2647
    %v2856 = vpack.c.b16 %v2652, %v2648
    %v2857 = vpack.c.b16 %v2653, %v2649
    %v2858 = vpack.c.b16 %v2654, %v2650
    %v2859 = vpack.c.b16 %v2659, %v2655
    %v2860 = vpack.c.b16 %v2660, %v2656
    %v2861 = vpack.c.b16 %v2661, %v2657
    %v2862 = vpack.c.b16 %v2662, %v2658
    %v2863 = vpack.c.b16 %v2667, %v2663
    %v2864 = vpack.c.b16 %v2668, %v2664
    %v2865 = vpack.c.b16 %v2669, %v2665
    %v2866 = vpack.c.b16 %v2670, %v2666
    %v2867 = vpack.c.b16 %v2675, %v2671
    %v2868 = vpack.c.b16 %v2676, %v2672
    %v2869 = vpack.c.b16 %v2677, %v2673
    %v2870 = vpack.c.b16 %v2678, %v2674
    %v2871 = vpack.c.b16 %v2683, %v2679
    %v2872 = vpack.c.b16 %v2684, %v2680
    %v2873 = vpack.c.b16 %v2685, %v2681
    %v2874 = vpack.c.b16 %v2686, %v2682
    %v2875 = vpack.c.b16 %v2691, %v2687
    %v2876 = vpack.c.b16 %v2692, %v2688
    %v2877 = vpack.c.b16 %v2693, %v2689
    %v2878 = vpack.c.b16 %v2694, %v2690
    %v2879 = vpack.c.b16 %v2699, %v2695
    %v2880 = vpack.c.b16 %v2700, %v2696
    %v2881 = vpack.c.b16 %v2701, %v2697
    %v2882 = vpack.c.b16 %v2702, %v2698
    %v2883 = vpack.c.b16 %v2707, %v2703
    %v2884 = vpack.c.b16 %v2708, %v2704
    %v2885 = vpack.c.b16 %v2709, %v2705
    %v2886 = vpack.c.b16 %v2710, %v2706
    %v2887 = vpack.c.b16 %v2715, %v2711
    %v2888 = vpack.c.b16 %v2716, %v2712
    %v2889 = vpack.c.b16 %v2717, %v2713
    %v2890 = vpack.c.b16 %v2718, %v2714
    %v2891 = vpack.c.b16 %v2723, %v2719
    %v2892 = vpack.c.b16 %v2724, %v2720
    %v2893 = vpack.c.b16 %v2725, %v2721
    %v2894 = vpack.c.b16 %v2726, %v2722
    %v2895 = vpack.c.b16 %v2731, %v2727
    %v2896 = vpack.c.b16 %v2732, %v2728
    %v2897 = vpack.c.b16 %v2733, %v2729
    %v2898 = vpack.c.b16 %v2734, %v2730
    %v2899 = vpack.c.b16 %v2739, %v2735
    %v2900 = vpack.c.b16 %v2740, %v2736
    %v2901 = vpack.c.b16 %v2741, %v2737
    %v2902 = vpack.c.b16 %v2742, %v2738
    %v2903 = vpack.c.b16 %v2747, %v2743
    %v2904 = vpack.c.b16 %v2748, %v2744
    %v2905 = vpack.c.b16 %v2749, %v2745
    %v2906 = vpack.c.b16 %v2750, %v2746
    %v2907 = vpack.c.b16 %v2755, %v2751
    %v2908 = vpack.c.b16 %v2756, %v2752
    %v2909 = vpack.c.b16 %v2757, %v2753
    %v2910 = vpack.c.b16 %v2758, %v2754
    %v2911 = vpack.c.b16 %v2763, %v2759
    %v2912 = vpack.c.b16 %v2764, %v2760
    %v2913 = vpack.c.b16 %v2765, %v2761
    %v2914 = vpack.c.b16 %v2766, %v2762
    %v2915 = vpack.c.b16 %v2771, %v2767
    %v2916 = vpack.c.b16 %v2772, %v2768
    %v2917 = vpack.c.b16 %v2773, %v2769
    %v2918 = vpack.c.b16 %v2774, %v2770
    %v2919 = vpack.c.b16 %v2779, %v2775
    %v2920 = vpack.c.b16 %v2780, %v2776
    %v2921 = vpack.c.b16 %v2781, %v2777
    %v2922 = vpack.c.b16 %v2782, %v2778
    %v2923 = vpack.c.b16 %v2787, %v2783
    %v2924 = vpack.c.b16 %v2788, %v2784
    %v2925 = vpack.c.b16 %v2789, %v2785
    %v2926 = vpack.c.b16 %v2790, %v2786
    %v2927 = vpack.c.b16 %v2795, %v2791
    %v2928 = vpack.c.b16 %v2796, %v2792
    %v2929 = vpack.c.b16 %v2797, %v2793
    %v2930 = vpack.c.b16 %v2798, %v2794
    %v2931 = vpack.c.b16 %v2803, %v2799
    %v2932 = vpack.c.b16 %v2804, %v2800
    %v2933 = vpack.c.b16 %v2805, %v2801
    %v2934 = vpack.c.b16 %v2806, %v2802
    %3063 = vmatprep.subr.bf16.mxu0 %v2808
    %3064 = vmatpush1.bf16.msra.mxu0 %v2807
    %3065 = vmatprep.subr.bf16.mxu0 %v2812
    %3066 = vmatpush1.bf16.msra.mxu0 %v2811
    %3067 = vmatprep.subr.bf16.mxu0 %v2816
    %3068 = vmatpush1.bf16.msra.mxu0 %v2815
    %3069 = vmatprep.subr.bf16.mxu0 %v2820
    %3070 = vmatpush1.bf16.msra.mxu0 %v2819
    %3071 = vmatprep.subr.bf16.mxu0 %v2824
    %3072 = vmatpush1.bf16.msra.mxu0 %v2823
    %3073 = vmatprep.subr.bf16.mxu0 %v2828
    %3074 = vmatpush1.bf16.msra.mxu0 %v2827
    %3075 = vmatprep.subr.bf16.mxu0 %v2832
    %3076 = vmatpush1.bf16.msra.mxu0 %v2831
    %3077 = vmatprep.subr.bf16.mxu0 %v2836
    %3078 = vmatpush1.bf16.msra.mxu0 %v2835
    %3079 = vmatprep.subr.bf16.mxu0 %v2840
    %3080 = vmatpush1.bf16.msra.mxu0 %v2839
    %3081 = vmatprep.subr.bf16.mxu0 %v2844
    %3082 = vmatpush1.bf16.msra.mxu0 %v2843
    %3083 = vmatprep.subr.bf16.mxu0 %v2848
    %3084 = vmatpush1.bf16.msra.mxu0 %v2847
    %3085 = vmatprep.subr.bf16.mxu0 %v2852
    %3086 = vmatpush1.bf16.msra.mxu0 %v2851
    %3087 = vmatprep.subr.bf16.mxu0 %v2856
    %3088 = vmatpush1.bf16.msra.mxu0 %v2855
    %3089 = vmatprep.subr.bf16.mxu0 %v2860
    %3090 = vmatpush1.bf16.msra.mxu0 %v2859
    %3091 = vmatprep.subr.bf16.mxu0 %v2864
    %3092 = vmatpush1.bf16.msra.mxu0 %v2863
    %3093 = vmatprep.subr.bf16.mxu0 %v2868
    %3094 = vmatpush1.bf16.msra.mxu0 %v2867
    %3095 = vmatprep.mubr.bf16.mxu0 %v2270
    %3096 = vmatmul.mubr.bf16.gmra.mrb[0].mxu0 %v2269
    %v3097 = vpop.f32.mrb[0].mxu0
    %v3098 = vadd.f32 %v2406, %v3097
    %v3099 = vpop.f32.mrb[0].mxu0
    %v3100 = vadd.f32 %v2410, %v3099
    %v3101 = vpop.f32.mrb[0].mxu0
    %v3102 = vadd.f32 %v2406, %v3101
    %v3103 = vpop.f32.mrb[0].mxu0
    %v3104 = vadd.f32 %v2410, %v3103
    %3105 = vdwg.mxu0
    %3106 = vmatprep.subr.bf16.mxu0 %v2872
    %3107 = vmatpush1.bf16.msra.mxu0 %v2871
    %3108 = vmatprep.subr.bf16.mxu0 %v2876
    %3109 = vmatpush1.bf16.msra.mxu0 %v2875
    %3110 = vmatprep.subr.bf16.mxu0 %v2880
    %3111 = vmatpush1.bf16.msra.mxu0 %v2879
    %3112 = vmatprep.subr.bf16.mxu0 %v2884
    %3113 = vmatpush1.bf16.msra.mxu0 %v2883
    %3114 = vmatprep.subr.bf16.mxu0 %v2888
    %3115 = vmatpush1.bf16.msra.mxu0 %v2887
    %3116 = vmatprep.subr.bf16.mxu0 %v2892
    %3117 = vmatpush1.bf16.msra.mxu0 %v2891
    %3118 = vmatprep.subr.bf16.mxu0 %v2896
    %3119 = vmatpush1.bf16.msra.mxu0 %v2895
    %3120 = vmatprep.subr.bf16.mxu0 %v2900
    %3121 = vmatpush1.bf16.msra.mxu0 %v2899
    %3122 = vmatprep.subr.bf16.mxu0 %v2904
    %3123 = vmatpush1.bf16.msra.mxu0 %v2903
    %3124 = vmatprep.subr.bf16.mxu0 %v2908
    %3125 = vmatpush1.bf16.msra.mxu0 %v2907
    %3126 = vmatprep.subr.bf16.mxu0 %v2912
    %3127 = vmatpush1.bf16.msra.mxu0 %v2911
    %3128 = vmatprep.subr.bf16.mxu0 %v2916
    %3129 = vmatpush1.bf16.msra.mxu0 %v2915
    %3130 = vmatprep.subr.bf16.mxu0 %v2920
    %3131 = vmatpush1.bf16.msra.mxu0 %v2919
    %3132 = vmatprep.subr.bf16.mxu0 %v2924
    %3133 = vmatpush1.bf16.msra.mxu0 %v2923
    %3134 = vmatprep.subr.bf16.mxu0 %v2928
    %3135 = vmatpush1.bf16.msra.mxu0 %v2927
    %3136 = vmatprep.subr.bf16.mxu0 %v2932
    %3137 = vmatpush1.bf16.msra.mxu0 %v2931
    %3138 = vmatprep.mubr.bf16.mxu0 %v2272
    %3139 = vmatmul.mubr.bf16.gmra.mrb[0].mxu0 %v2271
    %v3140 = vpop.f32.mrb[0].mxu0
    %v3141 = vadd.f32 %v3098, %v3140
    %v3142 = vpop.f32.mrb[0].mxu0
    %v3143 = vadd.f32 %v3100, %v3142
    %v3144 = vpop.f32.mrb[0].mxu0
    %v3145 = vadd.f32 %v3102, %v3144
    %v3146 = vpop.f32.mrb[0].mxu0
    %v3147 = vadd.f32 %v3104, %v3146
    %3148 = vdwg.mxu0
    %3149 = vmatprep.subr.bf16.mxu0 %v2810
    %3150 = vmatpush1.bf16.msra.mxu0 %v2809
    %3151 = vmatprep.subr.bf16.mxu0 %v2814
    %3152 = vmatpush1.bf16.msra.mxu0 %v2813
    %3153 = vmatprep.subr.bf16.mxu0 %v2818
    %3154 = vmatpush1.bf16.msra.mxu0 %v2817
    %3155 = vmatprep.subr.bf16.mxu0 %v2822
    %3156 = vmatpush1.bf16.msra.mxu0 %v2821
    %3157 = vmatprep.subr.bf16.mxu0 %v2826
    %3158 = vmatpush1.bf16.msra.mxu0 %v2825
    %3159 = vmatprep.subr.bf16.mxu0 %v2830
    %3160 = vmatpush1.bf16.msra.mxu0 %v2829
    %3161 = vmatprep.subr.bf16.mxu0 %v2834
    %3162 = vmatpush1.bf16.msra.mxu0 %v2833
    %3163 = vmatprep.subr.bf16.mxu0 %v2838
    %3164 = vmatpush1.bf16.msra.mxu0 %v2837
    %3165 = vmatprep.subr.bf16.mxu0 %v2842
    %3166 = vmatpush1.bf16.msra.mxu0 %v2841
    %3167 = vmatprep.subr.bf16.mxu0 %v2846
    %3168 = vmatpush1.bf16.msra.mxu0 %v2845
    %3169 = vmatprep.subr.bf16.mxu0 %v2850
    %3170 = vmatpush1.bf16.msra.mxu0 %v2849
    %3171 = vmatprep.subr.bf16.mxu0 %v2854
    %3172 = vmatpush1.bf16.msra.mxu0 %v2853
    %3173 = vmatprep.subr.bf16.mxu0 %v2858
    %3174 = vmatpush1.bf16.msra.mxu0 %v2857
    %3175 = vmatprep.subr.bf16.mxu0 %v2862
    %3176 = vmatpush1.bf16.msra.mxu0 %v2861
    %3177 = vmatprep.subr.bf16.mxu0 %v2866
    %3178 = vmatpush1.bf16.msra.mxu0 %v2865
    %3179 = vmatprep.subr.bf16.mxu0 %v2870
    %3180 = vmatpush1.bf16.msra.mxu0 %v2869
    %3181 = vmatprep.mubr.bf16.mxu0 %v2270
    %3182 = vmatmul.mubr.bf16.gmra.mrb[0].mxu0 %v2269
    %v3183 = vpop.f32.mrb[0].mxu0
    %v3184 = vadd.f32 %v2414, %v3183
    %v3185 = vpop.f32.mrb[0].mxu0
    %v3186 = vadd.f32 %v2418, %v3185
    %v3187 = vpop.f32.mrb[0].mxu0
    %v3188 = vadd.f32 %v2414, %v3187
    %v3189 = vpop.f32.mrb[0].mxu0
    %v3190 = vadd.f32 %v2418, %v3189
    %3191 = vdwg.mxu0
    %3192 = vmatprep.subr.bf16.mxu0 %v2874
    %3193 = vmatpush1.bf16.msra.mxu0 %v2873
    %3194 = vmatprep.subr.bf16.mxu0 %v2878
    %3195 = vmatpush1.bf16.msra.mxu0 %v2877
    %3196 = vmatprep.subr.bf16.mxu0 %v2882
    %3197 = vmatpush1.bf16.msra.mxu0 %v2881
    %3198 = vmatprep.subr.bf16.mxu0 %v2886
    %3199 = vmatpush1.bf16.msra.mxu0 %v2885
    %3200 = vmatprep.subr.bf16.mxu0 %v2890
    %3201 = vmatpush1.bf16.msra.mxu0 %v2889
    %3202 = vmatprep.subr.bf16.mxu0 %v2894
    %3203 = vmatpush1.bf16.msra.mxu0 %v2893
    %3204 = vmatprep.subr.bf16.mxu0 %v2898
    %3205 = vmatpush1.bf16.msra.mxu0 %v2897
    %3206 = vmatprep.subr.bf16.mxu0 %v2902
    %3207 = vmatpush1.bf16.msra.mxu0 %v2901
    %3208 = vmatprep.subr.bf16.mxu0 %v2906
    %3209 = vmatpush1.bf16.msra.mxu0 %v2905
    %3210 = vmatprep.subr.bf16.mxu0 %v2910
    %3211 = vmatpush1.bf16.msra.mxu0 %v2909
    %3212 = vmatprep.subr.bf16.mxu0 %v2914
    %3213 = vmatpush1.bf16.msra.mxu0 %v2913
    %3214 = vmatprep.subr.bf16.mxu0 %v2918
    %3215 = vmatpush1.bf16.msra.mxu0 %v2917
    %3216 = vmatprep.subr.bf16.mxu0 %v2922
    %3217 = vmatpush1.bf16.msra.mxu0 %v2921
    %3218 = vmatprep.subr.bf16.mxu0 %v2926
    %3219 = vmatpush1.bf16.msra.mxu0 %v2925
    %3220 = vmatprep.subr.bf16.mxu0 %v2930
    %3221 = vmatpush1.bf16.msra.mxu0 %v2929
    %3222 = vmatprep.subr.bf16.mxu0 %v2934
    %3223 = vmatpush1.bf16.msra.mxu0 %v2933
    %3224 = vmatprep.mubr.bf16.mxu0 %v2272
    %3225 = vmatmul.mubr.bf16.gmra.mrb[0].mxu0 %v2271
    %v3226 = vpop.f32.mrb[0].mxu0
    %v3227 = vadd.f32 %v3184, %v3226
    %v3228 = vpop.f32.mrb[0].mxu0
    %v3229 = vadd.f32 %v3186, %v3228
    %v3230 = vpop.f32.mrb[0].mxu0
    %v3231 = vadd.f32 %v3188, %v3230
    %v3232 = vpop.f32.mrb[0].mxu0
    %v3233 = vadd.f32 %v3190, %v3232
    %3234 = vdwg.mxu0
    %v3235 = vmax.f32 %v3141, 0.0
    %v3236 = vmax.f32 %v3143, 0.0
    %v3237 = vmax.f32 %v3227, 0.0
    %v3238 = vmax.f32 %v3229, 0.0
    %v3239 = vmax.f32 %v3145, 0.0
    %v3240 = vmax.f32 %v3147, 0.0
    %v3241 = vmax.f32 %v3231, 0.0
    %v3242 = vmax.f32 %v3233, 0.0
    %v3243 = vpack.c.bf16 %v3239, %v3235
    %v3244 = vpack.c.bf16 %v3240, %v3236
    %v3245 = vpack.c.bf16 %v3241, %v3237
    %v3246 = vpack.c.bf16 %v3242, %v3238
    %3247 = vst [vmem:[#allocation2] sm:$0xff] %v3243
    %3248 = vst [vmem:[#allocation2 + $0x8] sm:$0xff] %v3244
    %3249 = vst [vmem:[#allocation2 + $0x10] sm:$0xff] %v3245
    %3250 = vst [vmem:[#allocation2 + $0x18] sm:$0xff] %v3246
    %v3251 = vld [vmem:[#allocation2] sm:$0xff]
    %v3252 = vld [vmem:[#allocation2 + $0x8] sm:$0xff]
    %v3253 = vld [vmem:[#allocation2 + $0x10] sm:$0xff]
    %v3254 = vld [vmem:[#allocation2 + $0x18] sm:$0xff]
    %v3255 = vld [vmem:[#allocation12] sm:$0xf]
    %v3256 = vld [vmem:[#allocation12 + $0x4] sm:$0xf]
    %v3257 = vld [vmem:[#allocation12 + $0x8] sm:$0xf]
    %v3258 = vld [vmem:[#allocation12 + $0xc] sm:$0xf]
    %v3259 = vld [vmem:[#allocation12 + $0x10] sm:$0xf]
    %v3260 = vld [vmem:[#allocation12 + $0x14] sm:$0xf]
    %v3261 = vld [vmem:[#allocation12 + $0x18] sm:$0xf]
    %v3262 = vld [vmem:[#allocation12 + $0x1c] sm:$0xf]
    %v3263 = vld [vmem:[#allocation12 + $0x20] sm:$0xf]
    %v3264 = vld [vmem:[#allocation12 + $0x24] sm:$0xf]
    %v3265 = vld [vmem:[#allocation12 + $0x28] sm:$0xf]
    %v3266 = vld [vmem:[#allocation12 + $0x2c] sm:$0xf]
    %v3267 = vld [vmem:[#allocation12 + $0x30] sm:$0xf]
    %v3268 = vld [vmem:[#allocation12 + $0x34] sm:$0xf]
    %v3269 = vld [vmem:[#allocation12 + $0x38] sm:$0xf]
    %v3270 = vld [vmem:[#allocation12 + $0x3c] sm:$0xf]
    %v3271 = vld [vmem:[#allocation12 + $0x40] sm:$0xf]
    %v3272 = vld [vmem:[#allocation12 + $0x44] sm:$0xf]
    %v3273 = vld [vmem:[#allocation12 + $0x48] sm:$0xf]
    %v3274 = vld [vmem:[#allocation12 + $0x4c] sm:$0xf]
    %v3275 = vld [vmem:[#allocation12 + $0x50] sm:$0xf]
    %v3276 = vld [vmem:[#allocation12 + $0x54] sm:$0xf]
    %v3277 = vld [vmem:[#allocation12 + $0x58] sm:$0xf]
    %v3278 = vld [vmem:[#allocation12 + $0x5c] sm:$0xf]
    %v3279 = vld [vmem:[#allocation12 + $0x60] sm:$0xf]
    %v3280 = vld [vmem:[#allocation12 + $0x64] sm:$0xf]
    %v3281 = vld [vmem:[#allocation12 + $0x68] sm:$0xf]
    %v3282 = vld [vmem:[#allocation12 + $0x6c] sm:$0xf]
    %v3283 = vld [vmem:[#allocation12 + $0x70] sm:$0xf]
    %v3284 = vld [vmem:[#allocation12 + $0x74] sm:$0xf]
    %v3285 = vld [vmem:[#allocation12 + $0x78] sm:$0xf]
    %v3286 = vld [vmem:[#allocation12 + $0x7c] sm:$0xf]
    %v3287 = vld [vmem:[#allocation12 + $0x80] sm:$0xf]
    %v3288 = vld [vmem:[#allocation12 + $0x84] sm:$0xf]
    %v3289 = vld [vmem:[#allocation12 + $0x88] sm:$0xf]
    %v3290 = vld [vmem:[#allocation12 + $0x8c] sm:$0xf]
    %v3291 = vld [vmem:[#allocation12 + $0x90] sm:$0xf]
    %v3292 = vld [vmem:[#allocation12 + $0x94] sm:$0xf]
    %v3293 = vld [vmem:[#allocation12 + $0x98] sm:$0xf]
    %v3294 = vld [vmem:[#allocation12 + $0x9c] sm:$0xf]
    %v3295 = vld [vmem:[#allocation12 + $0xa0] sm:$0xf]
    %v3296 = vld [vmem:[#allocation12 + $0xa4] sm:$0xf]
    %v3297 = vld [vmem:[#allocation12 + $0xa8] sm:$0xf]
    %v3298 = vld [vmem:[#allocation12 + $0xac] sm:$0xf]
    %v3299 = vld [vmem:[#allocation12 + $0xb0] sm:$0xf]
    %v3300 = vld [vmem:[#allocation12 + $0xb4] sm:$0xf]
    %v3301 = vld [vmem:[#allocation12 + $0xb8] sm:$0xf]
    %v3302 = vld [vmem:[#allocation12 + $0xbc] sm:$0xf]
    %v3303 = vld [vmem:[#allocation12 + $0xc0] sm:$0xf]
    %v3304 = vld [vmem:[#allocation12 + $0xc4] sm:$0xf]
    %v3305 = vld [vmem:[#allocation12 + $0xc8] sm:$0xf]
    %v3306 = vld [vmem:[#allocation12 + $0xcc] sm:$0xf]
    %v3307 = vld [vmem:[#allocation12 + $0xd0] sm:$0xf]
    %v3308 = vld [vmem:[#allocation12 + $0xd4] sm:$0xf]
    %v3309 = vld [vmem:[#allocation12 + $0xd8] sm:$0xf]
    %v3310 = vld [vmem:[#allocation12 + $0xdc] sm:$0xf]
    %v3311 = vld [vmem:[#allocation12 + $0xe0] sm:$0xf]
    %v3312 = vld [vmem:[#allocation12 + $0xe4] sm:$0xf]
    %v3313 = vld [vmem:[#allocation12 + $0xe8] sm:$0xf]
    %v3314 = vld [vmem:[#allocation12 + $0xec] sm:$0xf]
    %v3315 = vld [vmem:[#allocation12 + $0xf0] sm:$0xf]
    %v3316 = vld [vmem:[#allocation12 + $0xf4] sm:$0xf]
    %v3317 = vld [vmem:[#allocation12 + $0xf8] sm:$0xf]
    %v3318 = vld [vmem:[#allocation12 + $0xfc] sm:$0xf]
    %v3319 = vld [vmem:[%s10] sm:$0x1]
    %v3321 = vlaneseq
    %v3322 = vshrl.u32 %v3321, 7
    %v3323 = vsub.s32 0, %v3322
    %v3324 = vrot.slane %v3319, %v3323
    %v3390 = vunpack.c.l.b16 %v3255
    %v3391 = vunpack.c.l.b16 %v3256
    %v3392 = vunpack.c.l.b16 %v3257
    %v3393 = vunpack.c.l.b16 %v3258
    %v3394 = vunpack.c.l.b16 %v3259
    %v3395 = vunpack.c.l.b16 %v3260
    %v3396 = vunpack.c.l.b16 %v3261
    %v3397 = vunpack.c.l.b16 %v3262
    %v3398 = vunpack.c.l.b16 %v3263
    %v3399 = vunpack.c.l.b16 %v3264
    %v3400 = vunpack.c.l.b16 %v3265
    %v3401 = vunpack.c.l.b16 %v3266
    %v3402 = vunpack.c.l.b16 %v3267
    %v3403 = vunpack.c.l.b16 %v3268
    %v3404 = vunpack.c.l.b16 %v3269
    %v3405 = vunpack.c.l.b16 %v3270
    %v3406 = vunpack.c.l.b16 %v3271
    %v3407 = vunpack.c.l.b16 %v3272
    %v3408 = vunpack.c.l.b16 %v3273
    %v3409 = vunpack.c.l.b16 %v3274
    %v3410 = vunpack.c.l.b16 %v3275
    %v3411 = vunpack.c.l.b16 %v3276
    %v3412 = vunpack.c.l.b16 %v3277
    %v3413 = vunpack.c.l.b16 %v3278
    %v3414 = vunpack.c.l.b16 %v3279
    %v3415 = vunpack.c.l.b16 %v3280
    %v3416 = vunpack.c.l.b16 %v3281
    %v3417 = vunpack.c.l.b16 %v3282
    %v3418 = vunpack.c.l.b16 %v3283
    %v3419 = vunpack.c.l.b16 %v3284
    %v3420 = vunpack.c.l.b16 %v3285
    %v3421 = vunpack.c.l.b16 %v3286
    %v3422 = vunpack.c.l.b16 %v3287
    %v3423 = vunpack.c.l.b16 %v3288
    %v3424 = vunpack.c.l.b16 %v3289
    %v3425 = vunpack.c.l.b16 %v3290
    %v3426 = vunpack.c.l.b16 %v3291
    %v3427 = vunpack.c.l.b16 %v3292
    %v3428 = vunpack.c.l.b16 %v3293
    %v3429 = vunpack.c.l.b16 %v3294
    %v3430 = vunpack.c.l.b16 %v3295
    %v3431 = vunpack.c.l.b16 %v3296
    %v3432 = vunpack.c.l.b16 %v3297
    %v3433 = vunpack.c.l.b16 %v3298
    %v3434 = vunpack.c.l.b16 %v3299
    %v3435 = vunpack.c.l.b16 %v3300
    %v3436 = vunpack.c.l.b16 %v3301
    %v3437 = vunpack.c.l.b16 %v3302
    %v3438 = vunpack.c.l.b16 %v3303
    %v3439 = vunpack.c.l.b16 %v3304
    %v3440 = vunpack.c.l.b16 %v3305
    %v3441 = vunpack.c.l.b16 %v3306
    %v3442 = vunpack.c.l.b16 %v3307
    %v3443 = vunpack.c.l.b16 %v3308
    %v3444 = vunpack.c.l.b16 %v3309
    %v3445 = vunpack.c.l.b16 %v3310
    %v3446 = vunpack.c.l.b16 %v3311
    %v3447 = vunpack.c.l.b16 %v3312
    %v3448 = vunpack.c.l.b16 %v3313
    %v3449 = vunpack.c.l.b16 %v3314
    %v3450 = vunpack.c.l.b16 %v3315
    %v3451 = vunpack.c.l.b16 %v3316
    %v3452 = vunpack.c.l.b16 %v3317
    %v3453 = vunpack.c.l.b16 %v3318
    %v3454 = vpack.c.b16 %v3391, %v3390
    %v3455 = vpack.c.b16 %v3393, %v3392
    %v3456 = vpack.c.b16 %v3395, %v3394
    %v3457 = vpack.c.b16 %v3397, %v3396
    %v3458 = vpack.c.b16 %v3399, %v3398
    %v3459 = vpack.c.b16 %v3401, %v3400
    %v3460 = vpack.c.b16 %v3403, %v3402
    %v3461 = vpack.c.b16 %v3405, %v3404
    %v3462 = vpack.c.b16 %v3407, %v3406
    %v3463 = vpack.c.b16 %v3409, %v3408
    %v3464 = vpack.c.b16 %v3411, %v3410
    %v3465 = vpack.c.b16 %v3413, %v3412
    %v3466 = vpack.c.b16 %v3415, %v3414
    %v3467 = vpack.c.b16 %v3417, %v3416
    %v3468 = vpack.c.b16 %v3419, %v3418
    %v3469 = vpack.c.b16 %v3421, %v3420
    %v3470 = vpack.c.b16 %v3423, %v3422
    %v3471 = vpack.c.b16 %v3425, %v3424
    %v3472 = vpack.c.b16 %v3427, %v3426
    %v3473 = vpack.c.b16 %v3429, %v3428
    %v3474 = vpack.c.b16 %v3431, %v3430
    %v3475 = vpack.c.b16 %v3433, %v3432
    %v3476 = vpack.c.b16 %v3435, %v3434
    %v3477 = vpack.c.b16 %v3437, %v3436
    %v3478 = vpack.c.b16 %v3439, %v3438
    %v3479 = vpack.c.b16 %v3441, %v3440
    %v3480 = vpack.c.b16 %v3443, %v3442
    %v3481 = vpack.c.b16 %v3445, %v3444
    %v3482 = vpack.c.b16 %v3447, %v3446
    %v3483 = vpack.c.b16 %v3449, %v3448
    %v3484 = vpack.c.b16 %v3451, %v3450
    %v3485 = vpack.c.b16 %v3453, %v3452
    %3518 = vmatprep.subr.bf16.mxu0 0
    %3519 = vmatpush1.bf16.msra.mxu0 %v3454
    %3520 = vmatprep.subr.bf16.mxu0 0
    %3521 = vmatpush1.bf16.msra.mxu0 %v3455
    %3522 = vmatprep.subr.bf16.mxu0 0
    %3523 = vmatpush1.bf16.msra.mxu0 %v3456
    %3524 = vmatprep.subr.bf16.mxu0 0
    %3525 = vmatpush1.bf16.msra.mxu0 %v3457
    %3526 = vmatprep.subr.bf16.mxu0 0
    %3527 = vmatpush1.bf16.msra.mxu0 %v3458
    %3528 = vmatprep.subr.bf16.mxu0 0
    %3529 = vmatpush1.bf16.msra.mxu0 %v3459
    %3530 = vmatprep.subr.bf16.mxu0 0
    %3531 = vmatpush1.bf16.msra.mxu0 %v3460
    %3532 = vmatprep.subr.bf16.mxu0 0
    %3533 = vmatpush1.bf16.msra.mxu0 %v3461
    %3534 = vmatprep.subr.bf16.mxu0 0
    %3535 = vmatpush1.bf16.msra.mxu0 %v3462
    %3536 = vmatprep.subr.bf16.mxu0 0
    %3537 = vmatpush1.bf16.msra.mxu0 %v3463
    %3538 = vmatprep.subr.bf16.mxu0 0
    %3539 = vmatpush1.bf16.msra.mxu0 %v3464
    %3540 = vmatprep.subr.bf16.mxu0 0
    %3541 = vmatpush1.bf16.msra.mxu0 %v3465
    %3542 = vmatprep.subr.bf16.mxu0 0
    %3543 = vmatpush1.bf16.msra.mxu0 %v3466
    %3544 = vmatprep.subr.bf16.mxu0 0
    %3545 = vmatpush1.bf16.msra.mxu0 %v3467
    %3546 = vmatprep.subr.bf16.mxu0 0
    %3547 = vmatpush1.bf16.msra.mxu0 %v3468
    %3548 = vmatprep.subr.bf16.mxu0 0
    %3549 = vmatpush1.bf16.msra.mxu0 %v3469
    %3550 = vmatprep.mubr.bf16.mxu0 %v3252
    %3551 = vmatmul.mubr.bf16.gmra.mrb[0].mxu0 %v3251
    %v3552 = vpop.f32.mrb[0].mxu0
    %v3553 = vadd.f32 %v3324, %v3552
    %v3554 = vpop.f32.mrb[0].mxu0
    %v3555 = vpop.f32.mrb[0].mxu0
    %v3556 = vadd.f32 %v3324, %v3555
    %v3557 = vpop.f32.mrb[0].mxu0
    %3558 = vdwg.mxu0
    %3559 = vmatprep.subr.bf16.mxu0 0
    %3560 = vmatpush1.bf16.msra.mxu0 %v3470
    %3561 = vmatprep.subr.bf16.mxu0 0
    %3562 = vmatpush1.bf16.msra.mxu0 %v3471
    %3563 = vmatprep.subr.bf16.mxu0 0
    %3564 = vmatpush1.bf16.msra.mxu0 %v3472
    %3565 = vmatprep.subr.bf16.mxu0 0
    %3566 = vmatpush1.bf16.msra.mxu0 %v3473
    %3567 = vmatprep.subr.bf16.mxu0 0
    %3568 = vmatpush1.bf16.msra.mxu0 %v3474
    %3569 = vmatprep.subr.bf16.mxu0 0
    %3570 = vmatpush1.bf16.msra.mxu0 %v3475
    %3571 = vmatprep.subr.bf16.mxu0 0
    %3572 = vmatpush1.bf16.msra.mxu0 %v3476
    %3573 = vmatprep.subr.bf16.mxu0 0
    %3574 = vmatpush1.bf16.msra.mxu0 %v3477
    %3575 = vmatprep.subr.bf16.mxu0 0
    %3576 = vmatpush1.bf16.msra.mxu0 %v3478
    %3577 = vmatprep.subr.bf16.mxu0 0
    %3578 = vmatpush1.bf16.msra.mxu0 %v3479
    %3579 = vmatprep.subr.bf16.mxu0 0
    %3580 = vmatpush1.bf16.msra.mxu0 %v3480
    %3581 = vmatprep.subr.bf16.mxu0 0
    %3582 = vmatpush1.bf16.msra.mxu0 %v3481
    %3583 = vmatprep.subr.bf16.mxu0 0
    %3584 = vmatpush1.bf16.msra.mxu0 %v3482
    %3585 = vmatprep.subr.bf16.mxu0 0
    %3586 = vmatpush1.bf16.msra.mxu0 %v3483
    %3587 = vmatprep.subr.bf16.mxu0 0
    %3588 = vmatpush1.bf16.msra.mxu0 %v3484
    %3589 = vmatprep.subr.bf16.mxu0 0
    %3590 = vmatpush1.bf16.msra.mxu0 %v3485
    %3591 = vmatprep.mubr.bf16.mxu0 %v3254
    %3592 = vmatmul.mubr.bf16.gmra.mrb[0].mxu0 %v3253
    %v3593 = vpop.f32.mrb[0].mxu0
    %v3594 = vadd.f32 %v3553, %v3593
    %v3595 = vpop.f32.mrb[0].mxu0
    %v3596 = vpop.f32.mrb[0].mxu0
    %v3597 = vadd.f32 %v3556, %v3596
    %v3598 = vpop.f32.mrb[0].mxu0
    %3599 = vdwg.mxu0
    %v3600 = vxor.u32 %v3594, 2147483648
    %v3601 = vxor.u32 %v3597, 2147483648
    %v3602 = vmul.f32 %v3600, 1.442695
    %v3603 = vpow.pop %v3602
    %v3604 = vmul.f32 %v3601, 1.442695
    %v3605 = vpow.pop %v3604
    %v3606 = vadd.f32 %v3603, 1.0
    %v3607 = vadd.f32 %v3605, 1.0
    %v3608 = vrcp.pop %v3606
    %v3609 = vmul.f32 1.0, %v3608
    %v3610 = vrcp.pop %v3607
    %v3611 = vmul.f32 1.0, %v3610
    %v3612 = vpack.c.bf16 %v3611, %v3609
    %v3614 = vunpack.c.l.b16 %v3612
    %v3615 = vunpack.c.h.b16 %v3612
    %v3616 = vpack.c.b16 %v3614, %v3614
    %v3617 = vpack.c.b16 %v3615, %v3615
    %3620 = vst [vmem:[#allocation14] sm:$0xf] %v3616
    %3621 = vst [vmem:[#allocation14 + $0x4] sm:$0xf] %v3617
    // Predicated region
    $region70: #{tpu_custom_call.1} parent=1 // pred_check
      _
    $region71: #{tpu_custom_call.1} parent=1 // pred_check_branch
      %3623 = sbr.rel (0) target = $region73
    $region72: #{tpu_custom_call.1} parent=1 // pred_region
      %s3625 = ssub.s32 128, 128
      %3626 = vsyncadd [#allocation5], %s3625
      %s3627 = sshll.u32 [#allocation14], 4
      %s3628 = int_to_ptr.vmem [resolvable:$true] %s3627
      %3633 = dma.vmem_to_hbm [thread:$0]  %s3628, 128, %s11, [#allocation5], 64, 64, 4
    $region73: #{tpu_custom_call.1} parent=1 // pred_fallthru
      _
    // Predicated region
    $region74: #{tpu_custom_call.1} parent=1 // pred_check
      _
    $region75: #{tpu_custom_call.1} parent=1 // pred_check_branch
      %3635 = sbr.rel (0) target = $region77
    $region76: #{tpu_custom_call.1} parent=1 // pred_region
      %3636 = dma.done [#allocation5], 128
    $region77: #{tpu_custom_call.1} parent=1 // pred_fallthru
      _
    %3637 = vsyncpa [#allocation4], 1
    %3638 = vsyncpa [#allocation7], 1
    %3639 = vsyncpa [#allocation10], 1
    %3640 = vsyncpa [#allocation13], 1
    %3641 = vsyncpa [#allocation5], 1

// kernel: tpu_custom_call.1
$region0: #{tpu_custom_call.1}
  #allocation0 [shape = 'u32[]', space=smem, size = 0x4, offset = 0x4, fixed_abs, tag = 'smem constant byte address 0x4 - core index']
  #allocation1 [shape = 'u32[144,128]{1,0:T(1,128)}', space=vmem, size = 0x12000, scoped, tag = 'internal scratch']
  #allocation2 [shape = 'bf16[16,512]{1,0:T(16,128)(2,1)}', space=vmem, size = 0x4000, scoped, tag = 'scratch operand']
  %s0 = inlined_call_operand.hbm [shape: bf16[16,32], index: 0, kind: input, shape index: {}]
  %s1 = inlined_call_operand.hbm [shape: bf16[32,512], index: 1, kind: input, shape index: {}]
  %s2 = inlined_call_operand.vmem [shape: f32[1,512], index: 2, kind: input, shape index: {}]
  %s3 = inlined_call_operand.hbm [shape: bf16[512,512], index: 3, kind: input, shape index: {}]
  %s4 = inlined_call_operand.vmem [shape: f32[1,512], index: 4, kind: input, shape index: {}]
  %s5 = inlined_call_operand.hbm [shape: bf16[512,512], index: 5, kind: input, shape index: {}]
  %s6 = inlined_call_operand.vmem [shape: f32[1,512], index: 6, kind: input, shape index: {}]
  %s7 = inlined_call_operand.hbm [shape: bf16[512,512], index: 7, kind: input, shape index: {}]
  %s8 = inlined_call_operand.vmem [shape: f32[1,512], index: 8, kind: input, shape index: {}]
  %s9 = inlined_call_operand.hbm [shape: bf16[512,128], index: 9, kind: input, shape index: {}]
  %s10 = inlined_call_operand.vmem [shape: f32[1,128], index: 10, kind: input, shape index: {}]
  %s11 = inlined_call_operand.hbm [shape: bf16[16,128], index: 11, kind: output, shape index: {}]
  %s12 = sld [smem:[#allocation0]]
  $region78: #{tpu_custom_call.1} parent=0
    _
  %s14 = ssub.s32 1, %s12
  %s15 = scalar_select 0, %s14, %s12
  $region1: #{tpu_custom_call.1} parent=0
    #allocation3 [shape = 'u8[4096]{0}', space=vmem, size = 0x1000, scoped, tag = 'input window, operand 0, single buffered']
    #allocation4 [shape = 's32[1]{0}', space=sflag, size = 0x4, scoped, tag = 'scoped memory for tpu_custom_call.1']
    #allocation5 [shape = 's32[1]{0}', space=sflag, size = 0x4, scoped, tag = 'scoped memory for tpu_custom_call.1']
    #allocation6 [shape = 'u8[32768]{0}', space=vmem, size = 0x8000, scoped, tag = 'input window, operand 1, single buffered']
    #allocation7 [shape = 's32[1]{0}', space=sflag, size = 0x4, scoped, tag = 'scoped memory for tpu_custom_call.1']
    #allocation8 [shape = 'u8[524288]{0}', space=vmem, size = 0x80000, scoped, tag = 'input window, operand 3, single buffered']
    #allocation9 [shape = 'u8[524288]{0}', space=vmem, size = 0x80000, scoped, tag = 'input window, operand 5, single buffered']
    #allocation10 [shape = 's32[1]{0}', space=sflag, size = 0x4, scoped, tag = 'scoped memory for tpu_custom_call.1']
    #allocation11 [shape = 'u8[524288]{0}', space=vmem, size = 0x80000, scoped, tag = 'input window, operand 7, single buffered']
    #allocation12 [shape = 'u8[131072]{0}', space=vmem, size = 0x20000, scoped, tag = 'input window, operand 9, single buffered']
    #allocation13 [shape = 's32[1]{0}', space=sflag, size = 0x4, scoped, tag = 'scoped memory for tpu_custom_call.1']
    #allocation14 [shape = 'u8[4096]{0}', space=vmem, size = 0x1000, scoped, tag = 'output window, operand 0, single buffered']
    %16 = vsyncpa [#allocation4], 0
    %17 = vsyncpa [#allocation7], 0
    %18 = vsyncpa [#allocation10], 0
    %19 = vsyncpa [#allocation13], 0
    %20 = vsyncpa [#allocation5], 0
    // Predicated region
    $region2: #{tpu_custom_call.1} parent=1 // pred_check
      _
    $region3: #{tpu_custom_call.1} parent=1 // pred_check_branch
      %22 = sbr.rel (0) target = $region5
    $region4: #{tpu_custom_call.1} parent=1 // pred_region
      %s24 = ssub.s32 128, 128
      %25 = vsyncadd [#allocation4], %s24
      %s26 = sshll.u32 [#allocation3], 4
      %s27 = int_to_ptr.vmem [resolvable:$true] %s26
      %32 = dma.hbm_to_vmem [thread:$0]  %s0, 128, %s27, [#allocation4], 64, 64, 4
    $region5: #{tpu_custom_call.1} parent=1 // pred_fallthru
      _
    // Predicated region
    $region6: #{tpu_custom_call.1} parent=1 // pred_check
      _
    $region7: #{tpu_custom_call.1} parent=1 // pred_check_branch
      %34 = sbr.rel (0) target = $region9
    $region8: #{tpu_custom_call.1} parent=1 // pred_region
      %s36 = ssub.s32 1024, 1024
      %37 = vsyncadd [#allocation7], %s36
      %s38 = sshll.u32 [#allocation6], 4
      %s39 = int_to_ptr.vmem [resolvable:$true] %s38
      %44 = dma.hbm_to_vmem [thread:$0]  %s1, 1024, %s39, [#allocation7], 256, 256, 16
    $region9: #{tpu_custom_call.1} parent=1 // pred_fallthru
      _
    // Predicated region
    $region10: #{tpu_custom_call.1} parent=1 // pred_check
      _
    $region11: #{tpu_custom_call.1} parent=1 // pred_check_branch
      %46 = sbr.rel (0) target = $region13
    $region12: #{tpu_custom_call.1} parent=1 // pred_region
      _
    $region13: #{tpu_custom_call.1} parent=1 // pred_fallthru
      _
    // Predicated region
    $region14: #{tpu_custom_call.1} parent=1 // pred_check
      _
    $region15: #{tpu_custom_call.1} parent=1 // pred_check_branch
      %48 = sbr.rel (0) target = $region17
    $region16: #{tpu_custom_call.1} parent=1 // pred_region
      %s50 = ssub.s32 16384, 16384
      %51 = vsyncadd [#allocation7], %s50
      %s52 = sshll.u32 [#allocation8], 4
      %s53 = int_to_ptr.vmem [resolvable:$true] %s52
      %58 = dma.hbm_to_vmem [thread:$0]  %s3, 16384, %s53, [#allocation7], 256, 256, 16
    $region17: #{tpu_custom_call.1} parent=1 // pred_fallthru
      _
    // Predicated region
    $region18: #{tpu_custom_call.1} parent=1 // pred_check
      _
    $region19: #{tpu_custom_call.1} parent=1 // pred_check_branch
      %60 = sbr.rel (0) target = $region21
    $region20: #{tpu_custom_call.1} parent=1 // pred_region
      _
    $region21: #{tpu_custom_call.1} parent=1 // pred_fallthru
      _
    // Predicated region
    $region22: #{tpu_custom_call.1} parent=1 // pred_check
      _
    $region23: #{tpu_custom_call.1} parent=1 // pred_check_branch
      %62 = sbr.rel (0) target = $region25
    $region24: #{tpu_custom_call.1} parent=1 // pred_region
      %s64 = ssub.s32 16384, 16384
      %65 = vsyncadd [#allocation10], %s64
      %s66 = sshll.u32 [#allocation9], 4
      %s67 = int_to_ptr.vmem [resolvable:$true] %s66
      %72 = dma.hbm_to_vmem [thread:$0]  %s5, 16384, %s67, [#allocation10], 256, 256, 16
    $region25: #{tpu_custom_call.1} parent=1 // pred_fallthru
      _
    // Predicated region
    $region26: #{tpu_custom_call.1} parent=1 // pred_check
      _
    $region27: #{tpu_custom_call.1} parent=1 // pred_check_branch
      %74 = sbr.rel (0) target = $region29
    $region28: #{tpu_custom_call.1} parent=1 // pred_region
      _
    $region29: #{tpu_custom_call.1} parent=1 // pred_fallthru
      _
    // Predicated region
    $region30: #{tpu_custom_call.1} parent=1 // pred_check
      _
    $region31: #{tpu_custom_call.1} parent=1 // pred_check_branch
      %76 = sbr.rel (0) target = $region33
    $region32: #{tpu_custom_call.1} parent=1 // pred_region
      %s78 = ssub.s32 16384, 16384
      %79 = vsyncadd [#allocation10], %s78
      %s80 = sshll.u32 [#allocation11], 4
      %s81 = int_to_ptr.vmem [resolvable:$true] %s80
      %86 = dma.hbm_to_vmem [thread:$0]  %s7, 16384, %s81, [#allocation10], 256, 256, 16
    $region33: #{tpu_custom_call.1} parent=1 // pred_fallthru
      _
    // Predicated region
    $region34: #{tpu_custom_call.1} parent=1 // pred_check
      _
    $region35: #{tpu_custom_call.1} parent=1 // pred_check_branch
      %88 = sbr.rel (0) target = $region37
    $region36: #{tpu_custom_call.1} parent=1 // pred_region
      _
    $region37: #{tpu_custom_call.1} parent=1 // pred_fallthru
      _
    // Predicated region
    $region38: #{tpu_custom_call.1} parent=1 // pred_check
      _
    $region39: #{tpu_custom_call.1} parent=1 // pred_check_branch
      %90 = sbr.rel (0) target = $region41
    $region40: #{tpu_custom_call.1} parent=1 // pred_region
      %s92 = ssub.s32 4096, 4096
      %93 = vsyncadd [#allocation13], %s92
      %s94 = sshll.u32 [#allocation12], 4
      %s95 = int_to_ptr.vmem [resolvable:$true] %s94
      %100 = dma.hbm_to_vmem [thread:$0]  %s9, 4096, %s95, [#allocation13], 64, 64, 4
    $region41: #{tpu_custom_call.1} parent=1 // pred_fallthru
      _
    // Predicated region
    $region42: #{tpu_custom_call.1} parent=1 // pred_check
      _
    $region43: #{tpu_custom_call.1} parent=1 // pred_check_branch
      %102 = sbr.rel (0) target = $region45
    $region44: #{tpu_custom_call.1} parent=1 // pred_region
      _
    $region45: #{tpu_custom_call.1} parent=1 // pred_fallthru
      _
    // Predicated region
    $region46: #{tpu_custom_call.1} parent=1 // pred_check
      _
    $region47: #{tpu_custom_call.1} parent=1 // pred_check_branch
      %104 = sbr.rel (0) target = $region49
    $region48: #{tpu_custom_call.1} parent=1 // pred_region
      %105 = dma.done [#allocation4], 128
    $region49: #{tpu_custom_call.1} parent=1 // pred_fallthru
      _
    // Predicated region
    $region50: #{tpu_custom_call.1} parent=1 // pred_check
      _
    $region51: #{tpu_custom_call.1} parent=1 // pred_check_branch
      %107 = sbr.rel (0) target = $region53
    $region52: #{tpu_custom_call.1} parent=1 // pred_region
      %108 = dma.done [#allocation7], 1024
    $region53: #{tpu_custom_call.1} parent=1 // pred_fallthru
      _
    // Predicated region
    $region54: #{tpu_custom_call.1} parent=1 // pred_check
      _
    $region55: #{tpu_custom_call.1} parent=1 // pred_check_branch
      %110 = sbr.rel (0) target = $region57
    $region56: #{tpu_custom_call.1} parent=1 // pred_region
      %111 = dma.done [#allocation7], 16384
    $region57: #{tpu_custom_call.1} parent=1 // pred_fallthru
      _
    // Predicated region
    $region58: #{tpu_custom_call.1} parent=1 // pred_check
      _
    $region59: #{tpu_custom_call.1} parent=1 // pred_check_branch
      %113 = sbr.rel (0) target = $region61
    $region60: #{tpu_custom_call.1} parent=1 // pred_region
      %114 = dma.done [#allocation10], 16384
    $region61: #{tpu_custom_call.1} parent=1 // pred_fallthru
      _
    // Predicated region
    $region62: #{tpu_custom_call.1} parent=1 // pred_check
      _
    $region63: #{tpu_custom_call.1} parent=1 // pred_check_branch
      %116 = sbr.rel (0) target = $region65
    $region64: #{tpu_custom_call.1} parent=1 // pred_region
      %117 = dma.done [#allocation10], 16384
    $region65: #{tpu_custom_call.1} parent=1 // pred_fallthru
      _
    // Predicated region
    $region66: #{tpu_custom_call.1} parent=1 // pred_check
      _
    $region67: #{tpu_custom_call.1} parent=1 // pred_check_branch
      %119 = sbr.rel (0) target = $region69
    $region68: #{tpu_custom_call.1} parent=1 // pred_region
      %120 = dma.done [#allocation13], 4096
    $region69: #{tpu_custom_call.1} parent=1 // pred_fallthru
      _
    %v122 = vld [vmem:[#allocation3] sm:$0xf]
    %v123 = vld [vmem:[#allocation3 + $0x4] sm:$0xf]
    %v124 = vld [vmem:[#allocation6] sm:$0xff]
    %v125 = vld [vmem:[#allocation6 + $0x8] sm:$0xff]
    %v126 = vld [vmem:[#allocation6 + $0x10] sm:$0xff]
    %v127 = vld [vmem:[#allocation6 + $0x18] sm:$0xff]
    %v128 = vld [vmem:[#allocation6 + $0x20] sm:$0xff]
    %v129 = vld [vmem:[#allocation6 + $0x28] sm:$0xff]
    %v130 = vld [vmem:[#allocation6 + $0x30] sm:$0xff]
    %v131 = vld [vmem:[#allocation6 + $0x38] sm:$0xff]
    %v132 = vld [vmem:[%s2] sm:$0xf]
    %v134 = vlaneseq
    %v135 = vshrl.u32 %v134, 7
    %v136 = vsub.s32 0, %v135
    %v137 = vrot.slane %v132, %v136
    %v138 = vlaneseq
    %v139 = vshrl.u32 %v138, 7
    %v140 = vsub.s32 1, %v139
    %v141 = vrot.slane %v132, %v140
    %v142 = vlaneseq
    %v143 = vshrl.u32 %v142, 7
    %v144 = vsub.s32 2, %v143
    %v145 = vrot.slane %v132, %v144
    %v146 = vlaneseq
    %v147 = vshrl.u32 %v146, 7
    %v148 = vsub.s32 3, %v147
    %v149 = vrot.slane %v132, %v148
    %v156 = vunpack.c.l.b16 %v122
    %v157 = vunpack.c.l.b16 %v123
    %v158 = vpack.c.b16 %v157, %v156
    %v167 = vunpack.c.l.b16 %v124
    %v168 = vunpack.c.h.b16 %v124
    %v169 = vunpack.c.l.b16 %v125
    %v170 = vunpack.c.h.b16 %v125
    %v171 = vunpack.c.l.b16 %v126
    %v172 = vunpack.c.h.b16 %v126
    %v173 = vunpack.c.l.b16 %v127
    %v174 = vunpack.c.h.b16 %v127
    %v175 = vunpack.c.l.b16 %v128
    %v176 = vunpack.c.h.b16 %v128
    %v177 = vunpack.c.l.b16 %v129
    %v178 = vunpack.c.h.b16 %v129
    %v179 = vunpack.c.l.b16 %v130
    %v180 = vunpack.c.h.b16 %v130
    %v181 = vunpack.c.l.b16 %v131
    %v182 = vunpack.c.h.b16 %v131
    %v183 = vpack.c.b16 %v171, %v167
    %v184 = vpack.c.b16 %v172, %v168
    %v185 = vpack.c.b16 %v173, %v169
    %v186 = vpack.c.b16 %v174, %v170
    %v187 = vpack.c.b16 %v179, %v175
    %v188 = vpack.c.b16 %v180, %v176
    %v189 = vpack.c.b16 %v181, %v177
    %v190 = vpack.c.b16 %v182, %v178
    %vm199 = vcmask 261120
    %v201 = vsel %vm199, %v158, 0
    %203 = vmatprep.subr.bf16.mxu0 %v184
    %204 = vmatpush1.bf16.msra.mxu0 %v183
    %205 = vmatprep.subr.bf16.mxu0 %v188
    %206 = vmatpush1.bf16.msra.mxu0 %v187
    %207 = vmatprep.subr.bf16.mxu0 0
    %208 = vmatpush1.bf16.msra.mxu0 0
    %209 = vmatprep.subr.bf16.mxu0 0
    %210 = vmatpush1.bf16.msra.mxu0 0
    %211 = vmatprep.subr.bf16.mxu0 0
    %212 = vmatpush1.bf16.msra.mxu0 0
    %213 = vmatprep.subr.bf16.mxu0 0
    %214 = vmatpush1.bf16.msra.mxu0 0
    %215 = vmatprep.subr.bf16.mxu0 0
    %216 = vmatpush1.bf16.msra.mxu0 0
    %217 = vmatprep.subr.bf16.mxu0 0
    %218 = vmatpush1.bf16.msra.mxu0 0
    %219 = vmatprep.subr.bf16.mxu0 0
    %220 = vmatpush1.bf16.msra.mxu0 0
    %221 = vmatprep.subr.bf16.mxu0 0
    %222 = vmatpush1.bf16.msra.mxu0 0
    %223 = vmatprep.subr.bf16.mxu0 0
    %224 = vmatpush1.bf16.msra.mxu0 0
    %225 = vmatprep.subr.bf16.mxu0 0
    %226 = vmatpush1.bf16.msra.mxu0 0
    %227 = vmatprep.subr.bf16.mxu0 0
    %228 = vmatpush1.bf16.msra.mxu0 0
    %229 = vmatprep.subr.bf16.mxu0 0
    %230 = vmatpush1.bf16.msra.mxu0 0
    %231 = vmatprep.subr.bf16.mxu0 0
    %232 = vmatpush1.bf16.msra.mxu0 0
    %233 = vmatprep.subr.bf16.mxu0 0
    %234 = vmatpush1.bf16.msra.mxu0 0
    %235 = vmatprep.mubr.bf16.mxu0 0
    %236 = vmatmul.mubr.bf16.gmra.mrb[0].mxu0 %v201
    %v237 = vpop.f32.mrb[0].mxu0
    %v238 = vadd.f32 %v137, %v237
    %v239 = vpop.f32.mrb[0].mxu0
    %v240 = vadd.f32 %v141, %v239
    %v241 = vpop.f32.mrb[0].mxu0
    %v242 = vadd.f32 %v137, %v241
    %v243 = vpop.f32.mrb[0].mxu0
    %v244 = vadd.f32 %v141, %v243
    %245 = vdwg.mxu0
    %246 = vmatprep.subr.bf16.mxu0 %v186
    %247 = vmatpush1.bf16.msra.mxu0 %v185
    %248 = vmatprep.subr.bf16.mxu0 %v190
    %249 = vmatpush1.bf16.msra.mxu0 %v189
    %250 = vmatprep.subr.bf16.mxu0 0
    %251 = vmatpush1.bf16.msra.mxu0 0
    %252 = vmatprep.subr.bf16.mxu0 0
    %253 = vmatpush1.bf16.msra.mxu0 0
    %254 = vmatprep.subr.bf16.mxu0 0
    %255 = vmatpush1.bf16.msra.mxu0 0
    %256 = vmatprep.subr.bf16.mxu0 0
    %257 = vmatpush1.bf16.msra.mxu0 0
    %258 = vmatprep.subr.bf16.mxu0 0
    %259 = vmatpush1.bf16.msra.mxu0 0
    %260 = vmatprep.subr.bf16.mxu0 0
    %261 = vmatpush1.bf16.msra.mxu0 0
    %262 = vmatprep.subr.bf16.mxu0 0
    %263 = vmatpush1.bf16.msra.mxu0 0
    %264 = vmatprep.subr.bf16.mxu0 0
    %265 = vmatpush1.bf16.msra.mxu0 0
    %266 = vmatprep.subr.bf16.mxu0 0
    %267 = vmatpush1.bf16.msra.mxu0 0
    %268 = vmatprep.subr.bf16.mxu0 0
    %269 = vmatpush1.bf16.msra.mxu0 0
    %270 = vmatprep.subr.bf16.mxu0 0
    %271 = vmatpush1.bf16.msra.mxu0 0
    %272 = vmatprep.subr.bf16.mxu0 0
    %273 = vmatpush1.bf16.msra.mxu0 0
    %274 = vmatprep.subr.bf16.mxu0 0
    %275 = vmatpush1.bf16.msra.mxu0 0
    %276 = vmatprep.subr.bf16.mxu0 0
    %277 = vmatpush1.bf16.msra.mxu0 0
    %278 = vmatprep.mubr.bf16.mxu0 0
    %279 = vmatmul.mubr.bf16.gmra.mrb[0].mxu0 %v201
    %v280 = vpop.f32.mrb[0].mxu0
    %v281 = vadd.f32 %v145, %v280
    %v282 = vpop.f32.mrb[0].mxu0
    %v283 = vadd.f32 %v149, %v282
    %v284 = vpop.f32.mrb[0].mxu0
    %v285 = vadd.f32 %v145, %v284
    %v286 = vpop.f32.mrb[0].mxu0
    %v287 = vadd.f32 %v149, %v286
    %288 = vdwg.mxu0
    %v289 = vmax.f32 %v238, 0.0
    %v290 = vmax.f32 %v240, 0.0
    %v291 = vmax.f32 %v281, 0.0
    %v292 = vmax.f32 %v283, 0.0
    %v293 = vmax.f32 %v242, 0.0
    %v294 = vmax.f32 %v244, 0.0
    %v295 = vmax.f32 %v285, 0.0
    %v296 = vmax.f32 %v287, 0.0
    %v297 = vpack.c.bf16 %v293, %v289
    %v298 = vpack.c.bf16 %v294, %v290
    %v299 = vpack.c.bf16 %v295, %v291
    %v300 = vpack.c.bf16 %v296, %v292
    %301 = vst [vmem:[#allocation2] sm:$0xff] %v297
    %302 = vst [vmem:[#allocation2 + $0x8] sm:$0xff] %v298
    %303 = vst [vmem:[#allocation2 + $0x10] sm:$0xff] %v299
    %304 = vst [vmem:[#allocation2 + $0x18] sm:$0xff] %v300
    %v305 = vld [vmem:[#allocation2] sm:$0xff]
    %v306 = vld [vmem:[#allocation2 + $0x8] sm:$0xff]
    %v307 = vld [vmem:[#allocation2 + $0x10] sm:$0xff]
    %v308 = vld [vmem:[#allocation2 + $0x18] sm:$0xff]
    %v309 = vld [vmem:[#allocation8] sm:$0xff]
    %v310 = vld [vmem:[#allocation8 + $0x8] sm:$0xff]
    %v311 = vld [vmem:[#allocation8 + $0x10] sm:$0xff]
    %v312 = vld [vmem:[#allocation8 + $0x18] sm:$0xff]
    %v313 = vld [vmem:[#allocation8 + $0x20] sm:$0xff]
    %v314 = vld [vmem:[#allocation8 + $0x28] sm:$0xff]
    %v315 = vld [vmem:[#allocation8 + $0x30] sm:$0xff]
    %v316 = vld [vmem:[#allocation8 + $0x38] sm:$0xff]
    %v317 = vld [vmem:[#allocation8 + $0x40] sm:$0xff]
    %v318 = vld [vmem:[#allocation8 + $0x48] sm:$0xff]
    %v319 = vld [vmem:[#allocation8 + $0x50] sm:$0xff]
    %v320 = vld [vmem:[#allocation8 + $0x58] sm:$0xff]
    %v321 = vld [vmem:[#allocation8 + $0x60] sm:$0xff]
    %v322 = vld [vmem:[#allocation8 + $0x68] sm:$0xff]
    %v323 = vld [vmem:[#allocation8 + $0x70] sm:$0xff]
    %v324 = vld [vmem:[#allocation8 + $0x78] sm:$0xff]
    %v325 = vld [vmem:[#allocation8 + $0x80] sm:$0xff]
    %v326 = vld [vmem:[#allocation8 + $0x88] sm:$0xff]
    %v327 = vld [vmem:[#allocation8 + $0x90] sm:$0xff]
    %v328 = vld [vmem:[#allocation8 + $0x98] sm:$0xff]
    %v329 = vld [vmem:[#allocation8 + $0xa0] sm:$0xff]
    %v330 = vld [vmem:[#allocation8 + $0xa8] sm:$0xff]
    %v331 = vld [vmem:[#allocation8 + $0xb0] sm:$0xff]
    %v332 = vld [vmem:[#allocation8 + $0xb8] sm:$0xff]
    %v333 = vld [vmem:[#allocation8 + $0xc0] sm:$0xff]
    %v334 = vld [vmem:[#allocation8 + $0xc8] sm:$0xff]
    %v335 = vld [vmem:[#allocation8 + $0xd0] sm:$0xff]
    %v336 = vld [vmem:[#allocation8 + $0xd8] sm:$0xff]
    %v337 = vld [vmem:[#allocation8 + $0xe0] sm:$0xff]
    %v338 = vld [vmem:[#allocation8 + $0xe8] sm:$0xff]
    %v339 = vld [vmem:[#allocation8 + $0xf0] sm:$0xff]
    %v340 = vld [vmem:[#allocation8 + $0xf8] sm:$0xff]
    %v341 = vld [vmem:[#allocation8 + $0x100] sm:$0xff]
    %v342 = vld [vmem:[#allocation8 + $0x108] sm:$0xff]
    %v343 = vld [vmem:[#allocation8 + $0x110] sm:$0xff]
    %v344 = vld [vmem:[#allocation8 + $0x118] sm:$0xff]
    %v345 = vld [vmem:[#allocation8 + $0x120] sm:$0xff]
    %v346 = vld [vmem:[#allocation8 + $0x128] sm:$0xff]
    %v347 = vld [vmem:[#allocation8 + $0x130] sm:$0xff]
    %v348 = vld [vmem:[#allocation8 + $0x138] sm:$0xff]
    %v349 = vld [vmem:[#allocation8 + $0x140] sm:$0xff]
    %v350 = vld [vmem:[#allocation8 + $0x148] sm:$0xff]
    %v351 = vld [vmem:[#allocation8 + $0x150] sm:$0xff]
    %v352 = vld [vmem:[#allocation8 + $0x158] sm:$0xff]
    %v353 = vld [vmem:[#allocation8 + $0x160] sm:$0xff]
    %v354 = vld [vmem:[#allocation8 + $0x168] sm:$0xff]
    %v355 = vld [vmem:[#allocation8 + $0x170] sm:$0xff]
    %v356 = vld [vmem:[#allocation8 + $0x178] sm:$0xff]
    %v357 = vld [vmem:[#allocation8 + $0x180] sm:$0xff]
    %v358 = vld [vmem:[#allocation8 + $0x188] sm:$0xff]
    %v359 = vld [vmem:[#allocation8 + $0x190] sm:$0xff]
    %v360 = vld [vmem:[#allocation8 + $0x198] sm:$0xff]
    %v361 = vld [vmem:[#allocation8 + $0x1a0] sm:$0xff]
    %v362 = vld [vmem:[#allocation8 + $0x1a8] sm:$0xff]
    %v363 = vld [vmem:[#allocation8 + $0x1b0] sm:$0xff]
    %v364 = vld [vmem:[#allocation8 + $0x1b8] sm:$0xff]
    %v365 = vld [vmem:[#allocation8 + $0x1c0] sm:$0xff]
    %v366 = vld [vmem:[#allocation8 + $0x1c8] sm:$0xff]
    %v367 = vld [vmem:[#allocation8 + $0x1d0] sm:$0xff]
    %v368 = vld [vmem:[#allocation8 + $0x1d8] sm:$0xff]
    %v369 = vld [vmem:[#allocation8 + $0x1e0] sm:$0xff]
    %v370 = vld [vmem:[#allocation8 + $0x1e8] sm:$0xff]
    %v371 = vld [vmem:[#allocation8 + $0x1f0] sm:$0xff]
    %v372 = vld [vmem:[#allocation8 + $0x1f8] sm:$0xff]
    %v373 = vld [vmem:[#allocation8 + $0x200] sm:$0xff]
    %v374 = vld [vmem:[#allocation8 + $0x208] sm:$0xff]
    %v375 = vld [vmem:[#allocation8 + $0x210] sm:$0xff]
    %v376 = vld [vmem:[#allocation8 + $0x218] sm:$0xff]
    %v377 = vld [vmem:[#allocation8 + $0x220] sm:$0xff]
    %v378 = vld [vmem:[#allocation8 + $0x228] sm:$0xff]
    %v379 = vld [vmem:[#allocation8 + $0x230] sm:$0xff]
    %v380 = vld [vmem:[#allocation8 + $0x238] sm:$0xff]
    %v381 = vld [vmem:[#allocation8 + $0x240] sm:$0xff]
    %v382 = vld [vmem:[#allocation8 + $0x248] sm:$0xff]
    %v383 = vld [vmem:[#allocation8 + $0x250] sm:$0xff]
    %v384 = vld [vmem:[#allocation8 + $0x258] sm:$0xff]
    %v385 = vld [vmem:[#allocation8 + $0x260] sm:$0xff]
    %v386 = vld [vmem:[#allocation8 + $0x268] sm:$0xff]
    %v387 = vld [vmem:[#allocation8 + $0x270] sm:$0xff]
    %v388 = vld [vmem:[#allocation8 + $0x278] sm:$0xff]
    %v389 = vld [vmem:[#allocation8 + $0x280] sm:$0xff]
    %v390 = vld [vmem:[#allocation8 + $0x288] sm:$0xff]
    %v391 = vld [vmem:[#allocation8 + $0x290] sm:$0xff]
    %v392 = vld [vmem:[#allocation8 + $0x298] sm:$0xff]
    %v393 = vld [vmem:[#allocation8 + $0x2a0] sm:$0xff]
    %v394 = vld [vmem:[#allocation8 + $0x2a8] sm:$0xff]
    %v395 = vld [vmem:[#allocation8 + $0x2b0] sm:$0xff]
    %v396 = vld [vmem:[#allocation8 + $0x2b8] sm:$0xff]
    %v397 = vld [vmem:[#allocation8 + $0x2c0] sm:$0xff]
    %v398 = vld [vmem:[#allocation8 + $0x2c8] sm:$0xff]
    %v399 = vld [vmem:[#allocation8 + $0x2d0] sm:$0xff]
    %v400 = vld [vmem:[#allocation8 + $0x2d8] sm:$0xff]
    %v401 = vld [vmem:[#allocation8 + $0x2e0] sm:$0xff]
    %v402 = vld [vmem:[#allocation8 + $0x2e8] sm:$0xff]
    %v403 = vld [vmem:[#allocation8 + $0x2f0] sm:$0xff]
    %v404 = vld [vmem:[#allocation8 + $0x2f8] sm:$0xff]
    %v405 = vld [vmem:[#allocation8 + $0x300] sm:$0xff]
    %v406 = vld [vmem:[#allocation8 + $0x308] sm:$0xff]
    %v407 = vld [vmem:[#allocation8 + $0x310] sm:$0xff]
    %v408 = vld [vmem:[#allocation8 + $0x318] sm:$0xff]
    %v409 = vld [vmem:[#allocation8 + $0x320] sm:$0xff]
    %v410 = vld [vmem:[#allocation8 + $0x328] sm:$0xff]
    %v411 = vld [vmem:[#allocation8 + $0x330] sm:$0xff]
    %v412 = vld [vmem:[#allocation8 + $0x338] sm:$0xff]
    %v413 = vld [vmem:[#allocation8 + $0x340] sm:$0xff]
    %v414 = vld [vmem:[#allocation8 + $0x348] sm:$0xff]
    %v415 = vld [vmem:[#allocation8 + $0x350] sm:$0xff]
    %v416 = vld [vmem:[#allocation8 + $0x358] sm:$0xff]
    %v417 = vld [vmem:[#allocation8 + $0x360] sm:$0xff]
    %v418 = vld [vmem:[#allocation8 + $0x368] sm:$0xff]
    %v419 = vld [vmem:[#allocation8 + $0x370] sm:$0xff]
    %v420 = vld [vmem:[#allocation8 + $0x378] sm:$0xff]
    %v421 = vld [vmem:[#allocation8 + $0x380] sm:$0xff]
    %v422 = vld [vmem:[#allocation8 + $0x388] sm:$0xff]
    %v423 = vld [vmem:[#allocation8 + $0x390] sm:$0xff]
    %v424 = vld [vmem:[#allocation8 + $0x398] sm:$0xff]
    %v425 = vld [vmem:[#allocation8 + $0x3a0] sm:$0xff]
    %v426 = vld [vmem:[#allocation8 + $0x3a8] sm:$0xff]
    %v427 = vld [vmem:[#allocation8 + $0x3b0] sm:$0xff]
    %v428 = vld [vmem:[#allocation8 + $0x3b8] sm:$0xff]
    %v429 = vld [vmem:[#allocation8 + $0x3c0] sm:$0xff]
    %v430 = vld [vmem:[#allocation8 + $0x3c8] sm:$0xff]
    %v431 = vld [vmem:[#allocation8 + $0x3d0] sm:$0xff]
    %v432 = vld [vmem:[#allocation8 + $0x3d8] sm:$0xff]
    %v433 = vld [vmem:[#allocation8 + $0x3e0] sm:$0xff]
    %v434 = vld [vmem:[#allocation8 + $0x3e8] sm:$0xff]
    %v435 = vld [vmem:[#allocation8 + $0x3f0] sm:$0xff]
    %v436 = vld [vmem:[#allocation8 + $0x3f8] sm:$0xff]
    %v437 = vld [vmem:[%s4] sm:$0xf]
    %v439 = vlaneseq
    %v440 = vshrl.u32 %v439, 7
    %v441 = vsub.s32 0, %v440
    %v442 = vrot.slane %v437, %v441
    %v443 = vlaneseq
    %v444 = vshrl.u32 %v443, 7
    %v445 = vsub.s32 1, %v444
    %v446 = vrot.slane %v437, %v445
    %v447 = vlaneseq
    %v448 = vshrl.u32 %v447, 7
    %v449 = vsub.s32 2, %v448
    %v450 = vrot.slane %v437, %v449
    %v451 = vlaneseq
    %v452 = vshrl.u32 %v451, 7
    %v453 = vsub.s32 3, %v452
    %v454 = vrot.slane %v437, %v453
    %v587 = vunpack.c.l.b16 %v309
    %v588 = vunpack.c.h.b16 %v309
    %v589 = vunpack.c.l.b16 %v310
    %v590 = vunpack.c.h.b16 %v310
    %v591 = vunpack.c.l.b16 %v311
    %v592 = vunpack.c.h.b16 %v311
    %v593 = vunpack.c.l.b16 %v312
    %v594 = vunpack.c.h.b16 %v312
    %v595 = vunpack.c.l.b16 %v313
    %v596 = vunpack.c.h.b16 %v313
    %v597 = vunpack.c.l.b16 %v314
    %v598 = vunpack.c.h.b16 %v314
    %v599 = vunpack.c.l.b16 %v315
    %v600 = vunpack.c.h.b16 %v315
    %v601 = vunpack.c.l.b16 %v316
    %v602 = vunpack.c.h.b16 %v316
    %v603 = vunpack.c.l.b16 %v317
    %v604 = vunpack.c.h.b16 %v317
    %v605 = vunpack.c.l.b16 %v318
    %v606 = vunpack.c.h.b16 %v318
    %v607 = vunpack.c.l.b16 %v319
    %v608 = vunpack.c.h.b16 %v319
    %v609 = vunpack.c.l.b16 %v320
    %v610 = vunpack.c.h.b16 %v320
    %v611 = vunpack.c.l.b16 %v321
    %v612 = vunpack.c.h.b16 %v321
    %v613 = vunpack.c.l.b16 %v322
    %v614 = vunpack.c.h.b16 %v322
    %v615 = vunpack.c.l.b16 %v323
    %v616 = vunpack.c.h.b16 %v323
    %v617 = vunpack.c.l.b16 %v324
    %v618 = vunpack.c.h.b16 %v324
    %v619 = vunpack.c.l.b16 %v325
    %v620 = vunpack.c.h.b16 %v325
    %v621 = vunpack.c.l.b16 %v326
    %v622 = vunpack.c.h.b16 %v326
    %v623 = vunpack.c.l.b16 %v327
    %v624 = vunpack.c.h.b16 %v327
    %v625 = vunpack.c.l.b16 %v328
    %v626 = vunpack.c.h.b16 %v328
    %v627 = vunpack.c.l.b16 %v329
    %v628 = vunpack.c.h.b16 %v329
    %v629 = vunpack.c.l.b16 %v330
    %v630 = vunpack.c.h.b16 %v330
    %v631 = vunpack.c.l.b16 %v331
    %v632 = vunpack.c.h.b16 %v331
    %v633 = vunpack.c.l.b16 %v332
    %v634 = vunpack.c.h.b16 %v332
    %v635 = vunpack.c.l.b16 %v333
    %v636 = vunpack.c.h.b16 %v333
    %v637 = vunpack.c.l.b16 %v334
    %v638 = vunpack.c.h.b16 %v334
    %v639 = vunpack.c.l.b16 %v335
    %v640 = vunpack.c.h.b16 %v335
    %v641 = vunpack.c.l.b16 %v336
    %v642 = vunpack.c.h.b16 %v336
    %v643 = vunpack.c.l.b16 %v337
    %v644 = vunpack.c.h.b16 %v337
    %v645 = vunpack.c.l.b16 %v338
    %v646 = vunpack.c.h.b16 %v338
    %v647 = vunpack.c.l.b16 %v339
    %v648 = vunpack.c.h.b16 %v339
    %v649 = vunpack.c.l.b16 %v340
    %v650 = vunpack.c.h.b16 %v340
    %v651 = vunpack.c.l.b16 %v341
    %v652 = vunpack.c.h.b16 %v341
    %v653 = vunpack.c.l.b16 %v342
    %v654 = vunpack.c.h.b16 %v342
    %v655 = vunpack.c.l.b16 %v343
    %v656 = vunpack.c.h.b16 %v343
    %v657 = vunpack.c.l.b16 %v344
    %v658 = vunpack.c.h.b16 %v344
    %v659 = vunpack.c.l.b16 %v345
    %v660 = vunpack.c.h.b16 %v345
    %v661 = vunpack.c.l.b16 %v346
    %v662 = vunpack.c.h.b16 %v346
    %v663 = vunpack.c.l.b16 %v347
    %v664 = vunpack.c.h.b16 %v347
    %v665 = vunpack.c.l.b16 %v348
    %v666 = vunpack.c.h.b16 %v348
    %v667 = vunpack.c.l.b16 %v349
    %v668 = vunpack.c.h.b16 %v349
    %v669 = vunpack.c.l.b16 %v350
    %v670 = vunpack.c.h.b16 %v350
    %v671 = vunpack.c.l.b16 %v351
    %v672 = vunpack.c.h.b16 %v351
    %v673 = vunpack.c.l.b16 %v352
    %v674 = vunpack.c.h.b16 %v352
    %v675 = vunpack.c.l.b16 %v353
    %v676 = vunpack.c.h.b16 %v353
    %v677 = vunpack.c.l.b16 %v354
    %v678 = vunpack.c.h.b16 %v354
    %v679 = vunpack.c.l.b16 %v355
    %v680 = vunpack.c.h.b16 %v355
    %v681 = vunpack.c.l.b16 %v356
    %v682 = vunpack.c.h.b16 %v356
    %v683 = vunpack.c.l.b16 %v357
    %v684 = vunpack.c.h.b16 %v357
    %v685 = vunpack.c.l.b16 %v358
    %v686 = vunpack.c.h.b16 %v358
    %v687 = vunpack.c.l.b16 %v359
    %v688 = vunpack.c.h.b16 %v359
    %v689 = vunpack.c.l.b16 %v360
    %v690 = vunpack.c.h.b16 %v360
    %v691 = vunpack.c.l.b16 %v361
    %v692 = vunpack.c.h.b16 %v361
    %v693 = vunpack.c.l.b16 %v362
    %v694 = vunpack.c.h.b16 %v362
    %v695 = vunpack.c.l.b16 %v363
    %v696 = vunpack.c.h.b16 %v363
    %v697 = vunpack.c.l.b16 %v364
    %v698 = vunpack.c.h.b16 %v364
    %v699 = vunpack.c.l.b16 %v365
    %v700 = vunpack.c.h.b16 %v365
    %v701 = vunpack.c.l.b16 %v366
    %v702 = vunpack.c.h.b16 %v366
    %v703 = vunpack.c.l.b16 %v367
    %v704 = vunpack.c.h.b16 %v367
    %v705 = vunpack.c.l.b16 %v368
    %v706 = vunpack.c.h.b16 %v368
    %v707 = vunpack.c.l.b16 %v369
    %v708 = vunpack.c.h.b16 %v369
    %v709 = vunpack.c.l.b16 %v370
    %v710 = vunpack.c.h.b16 %v370
    %v711 = vunpack.c.l.b16 %v371
    %v712 = vunpack.c.h.b16 %v371
    %v713 = vunpack.c.l.b16 %v372
    %v714 = vunpack.c.h.b16 %v372
    %v715 = vunpack.c.l.b16 %v373
    %v716 = vunpack.c.h.b16 %v373
    %v717 = vunpack.c.l.b16 %v374
    %v718 = vunpack.c.h.b16 %v374
    %v719 = vunpack.c.l.b16 %v375
    %v720 = vunpack.c.h.b16 %v375
    %v721 = vunpack.c.l.b16 %v376
    %v722 = vunpack.c.h.b16 %v376
    %v723 = vunpack.c.l.b16 %v377
    %v724 = vunpack.c.h.b16 %v377
    %v725 = vunpack.c.l.b16 %v378
    %v726 = vunpack.c.h.b16 %v378
    %v727 = vunpack.c.l.b16 %v379
    %v728 = vunpack.c.h.b16 %v379
    %v729 = vunpack.c.l.b16 %v380
    %v730 = vunpack.c.h.b16 %v380
    %v731 = vunpack.c.l.b16 %v381
    %v732 = vunpack.c.h.b16 %v381
    %v733 = vunpack.c.l.b16 %v382
    %v734 = vunpack.c.h.b16 %v382
    %v735 = vunpack.c.l.b16 %v383
    %v736 = vunpack.c.h.b16 %v383
    %v737 = vunpack.c.l.b16 %v384
    %v738 = vunpack.c.h.b16 %v384
    %v739 = vunpack.c.l.b16 %v385
    %v740 = vunpack.c.h.b16 %v385
    %v741 = vunpack.c.l.b16 %v386
    %v742 = vunpack.c.h.b16 %v386
    %v743 = vunpack.c.l.b16 %v387
    %v744 = vunpack.c.h.b16 %v387
    %v745 = vunpack.c.l.b16 %v388
    %v746 = vunpack.c.h.b16 %v388
    %v747 = vunpack.c.l.b16 %v389
    %v748 = vunpack.c.h.b16 %v389
    %v749 = vunpack.c.l.b16 %v390
    %v750 = vunpack.c.h.b16 %v390
    %v751 = vunpack.c.l.b16 %v391
    %v752 = vunpack.c.h.b16 %v391
    %v753 = vunpack.c.l.b16 %v392
    %v754 = vunpack.c.h.b16 %v392
    %v755 = vunpack.c.l.b16 %v393
    %v756 = vunpack.c.h.b16 %v393
    %v757 = vunpack.c.l.b16 %v394
    %v758 = vunpack.c.h.b16 %v394
    %v759 = vunpack.c.l.b16 %v395
    %v760 = vunpack.c.h.b16 %v395
    %v761 = vunpack.c.l.b16 %v396
    %v762 = vunpack.c.h.b16 %v396
    %v763 = vunpack.c.l.b16 %v397
    %v764 = vunpack.c.h.b16 %v397
    %v765 = vunpack.c.l.b16 %v398
    %v766 = vunpack.c.h.b16 %v398
    %v767 = vunpack.c.l.b16 %v399
    %v768 = vunpack.c.h.b16 %v399
    %v769 = vunpack.c.l.b16 %v400
    %v770 = vunpack.c.h.b16 %v400
    %v771 = vunpack.c.l.b16 %v401
    %v772 = vunpack.c.h.b16 %v401
    %v773 = vunpack.c.l.b16 %v402
    %v774 = vunpack.c.h.b16 %v402
    %v775 = vunpack.c.l.b16 %v403
    %v776 = vunpack.c.h.b16 %v403
    %v777 = vunpack.c.l.b16 %v404
    %v778 = vunpack.c.h.b16 %v404
    %v779 = vunpack.c.l.b16 %v405
    %v780 = vunpack.c.h.b16 %v405
    %v781 = vunpack.c.l.b16 %v406
    %v782 = vunpack.c.h.b16 %v406
    %v783 = vunpack.c.l.b16 %v407
    %v784 = vunpack.c.h.b16 %v407
    %v785 = vunpack.c.l.b16 %v408
    %v786 = vunpack.c.h.b16 %v408
    %v787 = vunpack.c.l.b16 %v409
    %v788 = vunpack.c.h.b16 %v409
    %v789 = vunpack.c.l.b16 %v410
    %v790 = vunpack.c.h.b16 %v410
    %v791 = vunpack.c.l.b16 %v411
    %v792 = vunpack.c.h.b16 %v411
    %v793 = vunpack.c.l.b16 %v412
    %v794 = vunpack.c.h.b16 %v412
    %v795 = vunpack.c.l.b16 %v413
    %v796 = vunpack.c.h.b16 %v413
    %v797 = vunpack.c.l.b16 %v414
    %v798 = vunpack.c.h.b16 %v414
    %v799 = vunpack.c.l.b16 %v415
    %v800 = vunpack.c.h.b16 %v415
    %v801 = vunpack.c.l.b16 %v416
    %v802 = vunpack.c.h.b16 %v416
    %v803 = vunpack.c.l.b16 %v417
    %v804 = vunpack.c.h.b16 %v417
    %v805 = vunpack.c.l.b16 %v418
    %v806 = vunpack.c.h.b16 %v418
    %v807 = vunpack.c.l.b16 %v419
    %v808 = vunpack.c.h.b16 %v419
    %v809 = vunpack.c.l.b16 %v420
    %v810 = vunpack.c.h.b16 %v420
    %v811 = vunpack.c.l.b16 %v421
    %v812 = vunpack.c.h.b16 %v421
    %v813 = vunpack.c.l.b16 %v422
    %v814 = vunpack.c.h.b16 %v422
    %v815 = vunpack.c.l.b16 %v423
    %v816 = vunpack.c.h.b16 %v423
    %v817 = vunpack.c.l.b16 %v424
    %v818 = vunpack.c.h.b16 %v424
    %v819 = vunpack.c.l.b16 %v425
    %v820 = vunpack.c.h.b16 %v425
    %v821 = vunpack.c.l.b16 %v426
    %v822 = vunpack.c.h.b16 %v426
    %v823 = vunpack.c.l.b16 %v427
    %v824 = vunpack.c.h.b16 %v427
    %v825 = vunpack.c.l.b16 %v428
    %v826 = vunpack.c.h.b16 %v428
    %v827 = vunpack.c.l.b16 %v429
    %v828 = vunpack.c.h.b16 %v429
    %v829 = vunpack.c.l.b16 %v430
    %v830 = vunpack.c.h.b16 %v430
    %v831 = vunpack.c.l.b16 %v431
    %v832 = vunpack.c.h.b16 %v431
    %v833 = vunpack.c.l.b16 %v432
    %v834 = vunpack.c.h.b16 %v432
    %v835 = vunpack.c.l.b16 %v433
    %v836 = vunpack.c.h.b16 %v433
    %v837 = vunpack.c.l.b16 %v434
    %v838 = vunpack.c.h.b16 %v434
    %v839 = vunpack.c.l.b16 %v435
    %v840 = vunpack.c.h.b16 %v435
    %v841 = vunpack.c.l.b16 %v436
    %v842 = vunpack.c.h.b16 %v436
    %v843 = vpack.c.b16 %v591, %v587
    %v844 = vpack.c.b16 %v592, %v588
    %v845 = vpack.c.b16 %v593, %v589
    %v846 = vpack.c.b16 %v594, %v590
    %v847 = vpack.c.b16 %v599, %v595
    %v848 = vpack.c.b16 %v600, %v596
    %v849 = vpack.c.b16 %v601, %v597
    %v850 = vpack.c.b16 %v602, %v598
    %v851 = vpack.c.b16 %v607, %v603
    %v852 = vpack.c.b16 %v608, %v604
    %v853 = vpack.c.b16 %v609, %v605
    %v854 = vpack.c.b16 %v610, %v606
    %v855 = vpack.c.b16 %v615, %v611
    %v856 = vpack.c.b16 %v616, %v612
    %v857 = vpack.c.b16 %v617, %v613
    %v858 = vpack.c.b16 %v618, %v614
    %v859 = vpack.c.b16 %v623, %v619
    %v860 = vpack.c.b16 %v624, %v620
    %v861 = vpack.c.b16 %v625, %v621
    %v862 = vpack.c.b16 %v626, %v622
    %v863 = vpack.c.b16 %v631, %v627
    %v864 = vpack.c.b16 %v632, %v628
    %v865 = vpack.c.b16 %v633, %v629
    %v866 = vpack.c.b16 %v634, %v630
    %v867 = vpack.c.b16 %v639, %v635
    %v868 = vpack.c.b16 %v640, %v636
    %v869 = vpack.c.b16 %v641, %v637
    %v870 = vpack.c.b16 %v642, %v638
    %v871 = vpack.c.b16 %v647, %v643
    %v872 = vpack.c.b16 %v648, %v644
    %v873 = vpack.c.b16 %v649, %v645
    %v874 = vpack.c.b16 %v650, %v646
    %v875 = vpack.c.b16 %v655, %v651
    %v876 = vpack.c.b16 %v656, %v652
    %v877 = vpack.c.b16 %v657, %v653
    %v878 = vpack.c.b16 %v658, %v654
    %v879 = vpack.c.b16 %v663, %v659
    %v880 = vpack.c.b16 %v664, %v660
    %v881 = vpack.c.b16 %v665, %v661
    %v882 = vpack.c.b16 %v666, %v662
    %v883 = vpack.c.b16 %v671, %v667
    %v884 = vpack.c.b16 %v672, %v668
    %v885 = vpack.c.b16 %v673, %v669
    %v886 = vpack.c.b16 %v674, %v670
    %v887 = vpack.c.b16 %v679, %v675
    %v888 = vpack.c.b16 %v680, %v676
    %v889 = vpack.c.b16 %v681, %v677
    %v890 = vpack.c.b16 %v682, %v678
    %v891 = vpack.c.b16 %v687, %v683
    %v892 = vpack.c.b16 %v688, %v684
    %v893 = vpack.c.b16 %v689, %v685
    %v894 = vpack.c.b16 %v690, %v686
    %v895 = vpack.c.b16 %v695, %v691
    %v896 = vpack.c.b16 %v696, %v692
    %v897 = vpack.c.b16 %v697, %v693
    %v898 = vpack.c.b16 %v698, %v694
    %v899 = vpack.c.b16 %v703, %v699
    %v900 = vpack.c.b16 %v704, %v700
    %v901 = vpack.c.b16 %v705, %v701
    %v902 = vpack.c.b16 %v706, %v702
    %v903 = vpack.c.b16 %v711, %v707
    %v904 = vpack.c.b16 %v712, %v708
    %v905 = vpack.c.b16 %v713, %v709
    %v906 = vpack.c.b16 %v714, %v710
    %v907 = vpack.c.b16 %v719, %v715
    %v908 = vpack.c.b16 %v720, %v716
    %v909 = vpack.c.b16 %v721, %v717
    %v910 = vpack.c.b16 %v722, %v718
    %v911 = vpack.c.b16 %v727, %v723
    %v912 = vpack.c.b16 %v728, %v724
    %v913 = vpack.c.b16 %v729, %v725
    %v914 = vpack.c.b16 %v730, %v726
    %v915 = vpack.c.b16 %v735, %v731
    %v916 = vpack.c.b16 %v736, %v732
    %v917 = vpack.c.b16 %v737, %v733
    %v918 = vpack.c.b16 %v738, %v734
    %v919 = vpack.c.b16 %v743, %v739
    %v920 = vpack.c.b16 %v744, %v740
    %v921 = vpack.c.b16 %v745, %v741
    %v922 = vpack.c.b16 %v746, %v742
    %v923 = vpack.c.b16 %v751, %v747
    %v924 = vpack.c.b16 %v752, %v748
    %v925 = vpack.c.b16 %v753, %v749
    %v926 = vpack.c.b16 %v754, %v750
    %v927 = vpack.c.b16 %v759, %v755
    %v928 = vpack.c.b16 %v760, %v756
    %v929 = vpack.c.b16 %v761, %v757
    %v930 = vpack.c.b16 %v762, %v758
    %v931 = vpack.c.b16 %v767, %v763
    %v932 = vpack.c.b16 %v768, %v764
    %v933 = vpack.c.b16 %v769, %v765
    %v934 = vpack.c.b16 %v770, %v766
    %v935 = vpack.c.b16 %v775, %v771
    %v936 = vpack.c.b16 %v776, %v772
    %v937 = vpack.c.b16 %v777, %v773
    %v938 = vpack.c.b16 %v778, %v774
    %v939 = vpack.c.b16 %v783, %v779
    %v940 = vpack.c.b16 %v784, %v780
    %v941 = vpack.c.b16 %v785, %v781
    %v942 = vpack.c.b16 %v786, %v782
    %v943 = vpack.c.b16 %v791, %v787
    %v944 = vpack.c.b16 %v792, %v788
    %v945 = vpack.c.b16 %v793, %v789
    %v946 = vpack.c.b16 %v794, %v790
    %v947 = vpack.c.b16 %v799, %v795
    %v948 = vpack.c.b16 %v800, %v796
    %v949 = vpack.c.b16 %v801, %v797
    %v950 = vpack.c.b16 %v802, %v798
    %v951 = vpack.c.b16 %v807, %v803
    %v952 = vpack.c.b16 %v808, %v804
    %v953 = vpack.c.b16 %v809, %v805
    %v954 = vpack.c.b16 %v810, %v806
    %v955 = vpack.c.b16 %v815, %v811
    %v956 = vpack.c.b16 %v816, %v812
    %v957 = vpack.c.b16 %v817, %v813
    %v958 = vpack.c.b16 %v818, %v814
    %v959 = vpack.c.b16 %v823, %v819
    %v960 = vpack.c.b16 %v824, %v820
    %v961 = vpack.c.b16 %v825, %v821
    %v962 = vpack.c.b16 %v826, %v822
    %v963 = vpack.c.b16 %v831, %v827
    %v964 = vpack.c.b16 %v832, %v828
    %v965 = vpack.c.b16 %v833, %v829
    %v966 = vpack.c.b16 %v834, %v830
    %v967 = vpack.c.b16 %v839, %v835
    %v968 = vpack.c.b16 %v840, %v836
    %v969 = vpack.c.b16 %v841, %v837
    %v970 = vpack.c.b16 %v842, %v838
    %1099 = vmatprep.subr.bf16.mxu0 %v844
    %1100 = vmatpush1.bf16.msra.mxu0 %v843
    %1101 = vmatprep.subr.bf16.mxu0 %v848
    %1102 = vmatpush1.bf16.msra.mxu0 %v847
    %1103 = vmatprep.subr.bf16.mxu0 %v852
    %1104 = vmatpush1.bf16.msra.mxu0 %v851
    %1105 = vmatprep.subr.bf16.mxu0 %v856
    %1106 = vmatpush1.bf16.msra.mxu0 %v855
    %1107 = vmatprep.subr.bf16.mxu0 %v860
    %1108 = vmatpush1.bf16.msra.mxu0 %v859
    %1109 = vmatprep.subr.bf16.mxu0 %v864
    %1110 = vmatpush1.bf16.msra.mxu0 %v863
    %1111 = vmatprep.subr.bf16.mxu0 %v868
    %1112 = vmatpush1.bf16.msra.mxu0 %v867
    %1113 = vmatprep.subr.bf16.mxu0 %v872
    %1114 = vmatpush1.bf16.msra.mxu0 %v871
    %1115 = vmatprep.subr.bf16.mxu0 %v876
    %1116 = vmatpush1.bf16.msra.mxu0 %v875
    %1117 = vmatprep.subr.bf16.mxu0 %v880
    %1118 = vmatpush1.bf16.msra.mxu0 %v879
    %1119 = vmatprep.subr.bf16.mxu0 %v884
    %1120 = vmatpush1.bf16.msra.mxu0 %v883
    %1121 = vmatprep.subr.bf16.mxu0 %v888
    %1122 = vmatpush1.bf16.msra.mxu0 %v887
    %1123 = vmatprep.subr.bf16.mxu0 %v892
    %1124 = vmatpush1.bf16.msra.mxu0 %v891
    %1125 = vmatprep.subr.bf16.mxu0 %v896
    %1126 = vmatpush1.bf16.msra.mxu0 %v895
    %1127 = vmatprep.subr.bf16.mxu0 %v900
    %1128 = vmatpush1.bf16.msra.mxu0 %v899
    %1129 = vmatprep.subr.bf16.mxu0 %v904
    %1130 = vmatpush1.bf16.msra.mxu0 %v903
    %1131 = vmatprep.mubr.bf16.mxu0 %v306
    %1132 = vmatmul.mubr.bf16.gmra.mrb[0].mxu0 %v305
    %v1133 = vpop.f32.mrb[0].mxu0
    %v1134 = vadd.f32 %v442, %v1133
    %v1135 = vpop.f32.mrb[0].mxu0
    %v1136 = vadd.f32 %v446, %v1135
    %v1137 = vpop.f32.mrb[0].mxu0
    %v1138 = vadd.f32 %v442, %v1137
    %v1139 = vpop.f32.mrb[0].mxu0
    %v1140 = vadd.f32 %v446, %v1139
    %1141 = vdwg.mxu0
    %1142 = vmatprep.subr.bf16.mxu0 %v908
    %1143 = vmatpush1.bf16.msra.mxu0 %v907
    %1144 = vmatprep.subr.bf16.mxu0 %v912
    %1145 = vmatpush1.bf16.msra.mxu0 %v911
    %1146 = vmatprep.subr.bf16.mxu0 %v916
    %1147 = vmatpush1.bf16.msra.mxu0 %v915
    %1148 = vmatprep.subr.bf16.mxu0 %v920
    %1149 = vmatpush1.bf16.msra.mxu0 %v919
    %1150 = vmatprep.subr.bf16.mxu0 %v924
    %1151 = vmatpush1.bf16.msra.mxu0 %v923
    %1152 = vmatprep.subr.bf16.mxu0 %v928
    %1153 = vmatpush1.bf16.msra.mxu0 %v927
    %1154 = vmatprep.subr.bf16.mxu0 %v932
    %1155 = vmatpush1.bf16.msra.mxu0 %v931
    %1156 = vmatprep.subr.bf16.mxu0 %v936
    %1157 = vmatpush1.bf16.msra.mxu0 %v935
    %1158 = vmatprep.subr.bf16.mxu0 %v940
    %1159 = vmatpush1.bf16.msra.mxu0 %v939
    %1160 = vmatprep.subr.bf16.mxu0 %v944
    %1161 = vmatpush1.bf16.msra.mxu0 %v943
    %1162 = vmatprep.subr.bf16.mxu0 %v948
    %1163 = vmatpush1.bf16.msra.mxu0 %v947
    %1164 = vmatprep.subr.bf16.mxu0 %v952
    %1165 = vmatpush1.bf16.msra.mxu0 %v951
    %1166 = vmatprep.subr.bf16.mxu0 %v956
    %1167 = vmatpush1.bf16.msra.mxu0 %v955
    %1168 = vmatprep.subr.bf16.mxu0 %v960
    %1169 = vmatpush1.bf16.msra.mxu0 %v959
    %1170 = vmatprep.subr.bf16.mxu0 %v964
    %1171 = vmatpush1.bf16.msra.mxu0 %v963
    %1172 = vmatprep.subr.bf16.mxu0 %v968
    %1173 = vmatpush1.bf16.msra.mxu0 %v967
    %1174 = vmatprep.mubr.bf16.mxu0 %v308
    %1175 = vmatmul.mubr.bf16.gmra.mrb[0].mxu0 %v307
    %v1176 = vpop.f32.mrb[0].mxu0
    %v1177 = vadd.f32 %v1134, %v1176
    %v1178 = vpop.f32.mrb[0].mxu0
    %v1179 = vadd.f32 %v1136, %v1178
    %v1180 = vpop.f32.mrb[0].mxu0
    %v1181 = vadd.f32 %v1138, %v1180
    %v1182 = vpop.f32.mrb[0].mxu0
    %v1183 = vadd.f32 %v1140, %v1182
    %1184 = vdwg.mxu0
    %1185 = vmatprep.subr.bf16.mxu0 %v846
    %1186 = vmatpush1.bf16.msra.mxu0 %v845
    %1187 = vmatprep.subr.bf16.mxu0 %v850
    %1188 = vmatpush1.bf16.msra.mxu0 %v849
    %1189 = vmatprep.subr.bf16.mxu0 %v854
    %1190 = vmatpush1.bf16.msra.mxu0 %v853
    %1191 = vmatprep.subr.bf16.mxu0 %v858
    %1192 = vmatpush1.bf16.msra.mxu0 %v857
    %1193 = vmatprep.subr.bf16.mxu0 %v862
    %1194 = vmatpush1.bf16.msra.mxu0 %v861
    %1195 = vmatprep.subr.bf16.mxu0 %v866
    %1196 = vmatpush1.bf16.msra.mxu0 %v865
    %1197 = vmatprep.subr.bf16.mxu0 %v870
    %1198 = vmatpush1.bf16.msra.mxu0 %v869
    %1199 = vmatprep.subr.bf16.mxu0 %v874
    %1200 = vmatpush1.bf16.msra.mxu0 %v873
    %1201 = vmatprep.subr.bf16.mxu0 %v878
    %1202 = vmatpush1.bf16.msra.mxu0 %v877
    %1203 = vmatprep.subr.bf16.mxu0 %v882
    %1204 = vmatpush1.bf16.msra.mxu0 %v881
    %1205 = vmatprep.subr.bf16.mxu0 %v886
    %1206 = vmatpush1.bf16.msra.mxu0 %v885
    %1207 = vmatprep.subr.bf16.mxu0 %v890
    %1208 = vmatpush1.bf16.msra.mxu0 %v889
    %1209 = vmatprep.subr.bf16.mxu0 %v894
    %1210 = vmatpush1.bf16.msra.mxu0 %v893
    %1211 = vmatprep.subr.bf16.mxu0 %v898
    %1212 = vmatpush1.bf16.msra.mxu0 %v897
    %1213 = vmatprep.subr.bf16.mxu0 %v902
    %1214 = vmatpush1.bf16.msra.mxu0 %v901
    %1215 = vmatprep.subr.bf16.mxu0 %v906
    %1216 = vmatpush1.bf16.msra.mxu0 %v905
    %1217 = vmatprep.mubr.bf16.mxu0 %v306
    %1218 = vmatmul.mubr.bf16.gmra.mrb[0].mxu0 %v305
    %v1219 = vpop.f32.mrb[0].mxu0
    %v1220 = vadd.f32 %v450, %v1219
    %v1221 = vpop.f32.mrb[0].mxu0
    %v1222 = vadd.f32 %v454, %v1221
    %v1223 = vpop.f32.mrb[0].mxu0
    %v1224 = vadd.f32 %v450, %v1223
    %v1225 = vpop.f32.mrb[0].mxu0
    %v1226 = vadd.f32 %v454, %v1225
    %1227 = vdwg.mxu0
    %1228 = vmatprep.subr.bf16.mxu0 %v910
    %1229 = vmatpush1.bf16.msra.mxu0 %v909
    %1230 = vmatprep.subr.bf16.mxu0 %v914
    %1231 = vmatpush1.bf16.msra.mxu0 %v913
    %1232 = vmatprep.subr.bf16.mxu0 %v918
    %1233 = vmatpush1.bf16.msra.mxu0 %v917
    %1234 = vmatprep.subr.bf16.mxu0 %v922
    %1235 = vmatpush1.bf16.msra.mxu0 %v921
    %1236 = vmatprep.subr.bf16.mxu0 %v926
    %1237 = vmatpush1.bf16.msra.mxu0 %v925
    %1238 = vmatprep.subr.bf16.mxu0 %v930
    %1239 = vmatpush1.bf16.msra.mxu0 %v929
    %1240 = vmatprep.subr.bf16.mxu0 %v934
    %1241 = vmatpush1.bf16.msra.mxu0 %v933
    %1242 = vmatprep.subr.bf16.mxu0 %v938
    %1243 = vmatpush1.bf16.msra.mxu0 %v937
    %1244 = vmatprep.subr.bf16.mxu0 %v942
    %1245 = vmatpush1.bf16.msra.mxu0 %v941
    %1246 = vmatprep.subr.bf16.mxu0 %v946
    %1247 = vmatpush1.bf16.msra.mxu0 %v945
    %1248 = vmatprep.subr.bf16.mxu0 %v950
    %1249 = vmatpush1.bf16.msra.mxu0 %v949
    %1250 = vmatprep.subr.bf16.mxu0 %v954
    %1251 = vmatpush1.bf16.msra.mxu0 %v953
    %1252 = vmatprep.subr.bf16.mxu0 %v958
    %1253 = vmatpush1.bf16.msra.mxu0 %v957
    %1254 = vmatprep.subr.bf16.mxu0 %v962
    %1255 = vmatpush1.bf16.msra.mxu0 %v961
    %1256 = vmatprep.subr.bf16.mxu0 %v966
    %1257 = vmatpush1.bf16.msra.mxu0 %v965
    %1258 = vmatprep.subr.bf16.mxu0 %v970
    %1259 = vmatpush1.bf16.msra.mxu0 %v969
    %1260 = vmatprep.mubr.bf16.mxu0 %v308
    %1261 = vmatmul.mubr.bf16.gmra.mrb[0].mxu0 %v307
    %v1262 = vpop.f32.mrb[0].mxu0
    %v1263 = vadd.f32 %v1220, %v1262
    %v1264 = vpop.f32.mrb[0].mxu0
    %v1265 = vadd.f32 %v1222, %v1264
    %v1266 = vpop.f32.mrb[0].mxu0
    %v1267 = vadd.f32 %v1224, %v1266
    %v1268 = vpop.f32.mrb[0].mxu0
    %v1269 = vadd.f32 %v1226, %v1268
    %1270 = vdwg.mxu0
    %v1271 = vmax.f32 %v1177, 0.0
    %v1272 = vmax.f32 %v1179, 0.0
    %v1273 = vmax.f32 %v1263, 0.0
    %v1274 = vmax.f32 %v1265, 0.0
    %v1275 = vmax.f32 %v1181, 0.0
    %v1276 = vmax.f32 %v1183, 0.0
    %v1277 = vmax.f32 %v1267, 0.0
    %v1278 = vmax.f32 %v1269, 0.0
    %v1279 = vpack.c.bf16 %v1275, %v1271
    %v1280 = vpack.c.bf16 %v1276, %v1272
    %v1281 = vpack.c.bf16 %v1277, %v1273
    %v1282 = vpack.c.bf16 %v1278, %v1274
    %1283 = vst [vmem:[#allocation2] sm:$0xff] %v1279
    %1284 = vst [vmem:[#allocation2 + $0x8] sm:$0xff] %v1280
    %1285 = vst [vmem:[#allocation2 + $0x10] sm:$0xff] %v1281
    %1286 = vst [vmem:[#allocation2 + $0x18] sm:$0xff] %v1282
    %v1287 = vld [vmem:[#allocation2] sm:$0xff]
    %v1288 = vld [vmem:[#allocation2 + $0x8] sm:$0xff]
    %v1289 = vld [vmem:[#allocation2 + $0x10] sm:$0xff]
    %v1290 = vld [vmem:[#allocation2 + $0x18] sm:$0xff]
    %v1291 = vld [vmem:[#allocation9] sm:$0xff]
    %v1292 = vld [vmem:[#allocation9 + $0x8] sm:$0xff]
    %v1293 = vld [vmem:[#allocation9 + $0x10] sm:$0xff]
    %v1294 = vld [vmem:[#allocation9 + $0x18] sm:$0xff]
    %v1295 = vld [vmem:[#allocation9 + $0x20] sm:$0xff]
    %v1296 = vld [vmem:[#allocation9 + $0x28] sm:$0xff]
    %v1297 = vld [vmem:[#allocation9 + $0x30] sm:$0xff]
    %v1298 = vld [vmem:[#allocation9 + $0x38] sm:$0xff]
    %v1299 = vld [vmem:[#allocation9 + $0x40] sm:$0xff]
    %v1300 = vld [vmem:[#allocation9 + $0x48] sm:$0xff]
    %v1301 = vld [vmem:[#allocation9 + $0x50] sm:$0xff]
    %v1302 = vld [vmem:[#allocation9 + $0x58] sm:$0xff]
    %v1303 = vld [vmem:[#allocation9 + $0x60] sm:$0xff]
    %v1304 = vld [vmem:[#allocation9 + $0x68] sm:$0xff]
    %v1305 = vld [vmem:[#allocation9 + $0x70] sm:$0xff]
    %v1306 = vld [vmem:[#allocation9 + $0x78] sm:$0xff]
    %v1307 = vld [vmem:[#allocation9 + $0x80] sm:$0xff]
    %v1308 = vld [vmem:[#allocation9 + $0x88] sm:$0xff]
    %v1309 = vld [vmem:[#allocation9 + $0x90] sm:$0xff]
    %v1310 = vld [vmem:[#allocation9 + $0x98] sm:$0xff]
    %v1311 = vld [vmem:[#allocation9 + $0xa0] sm:$0xff]
    %v1312 = vld [vmem:[#allocation9 + $0xa8] sm:$0xff]
    %v1313 = vld [vmem:[#allocation9 + $0xb0] sm:$0xff]
    %v1314 = vld [vmem:[#allocation9 + $0xb8] sm:$0xff]
    %v1315 = vld [vmem:[#allocation9 + $0xc0] sm:$0xff]
    %v1316 = vld [vmem:[#allocation9 + $0xc8] sm:$0xff]
    %v1317 = vld [vmem:[#allocation9 + $0xd0] sm:$0xff]
    %v1318 = vld [vmem:[#allocation9 + $0xd8] sm:$0xff]
    %v1319 = vld [vmem:[#allocation9 + $0xe0] sm:$0xff]
    %v1320 = vld [vmem:[#allocation9 + $0xe8] sm:$0xff]
    %v1321 = vld [vmem:[#allocation9 + $0xf0] sm:$0xff]
    %v1322 = vld [vmem:[#allocation9 + $0xf8] sm:$0xff]
    %v1323 = vld [vmem:[#allocation9 + $0x100] sm:$0xff]
    %v1324 = vld [vmem:[#allocation9 + $0x108] sm:$0xff]
    %v1325 = vld [vmem:[#allocation9 + $0x110] sm:$0xff]
    %v1326 = vld [vmem:[#allocation9 + $0x118] sm:$0xff]
    %v1327 = vld [vmem:[#allocation9 + $0x120] sm:$0xff]
    %v1328 = vld [vmem:[#allocation9 + $0x128] sm:$0xff]
    %v1329 = vld [vmem:[#allocation9 + $0x130] sm:$0xff]
    %v1330 = vld [vmem:[#allocation9 + $0x138] sm:$0xff]
    %v1331 = vld [vmem:[#allocation9 + $0x140] sm:$0xff]
    %v1332 = vld [vmem:[#allocation9 + $0x148] sm:$0xff]
    %v1333 = vld [vmem:[#allocation9 + $0x150] sm:$0xff]
    %v1334 = vld [vmem:[#allocation9 + $0x158] sm:$0xff]
    %v1335 = vld [vmem:[#allocation9 + $0x160] sm:$0xff]
    %v1336 = vld [vmem:[#allocation9 + $0x168] sm:$0xff]
    %v1337 = vld [vmem:[#allocation9 + $0x170] sm:$0xff]
    %v1338 = vld [vmem:[#allocation9 + $0x178] sm:$0xff]
    %v1339 = vld [vmem:[#allocation9 + $0x180] sm:$0xff]
    %v1340 = vld [vmem:[#allocation9 + $0x188] sm:$0xff]
    %v1341 = vld [vmem:[#allocation9 + $0x190] sm:$0xff]
    %v1342 = vld [vmem:[#allocation9 + $0x198] sm:$0xff]
    %v1343 = vld [vmem:[#allocation9 + $0x1a0] sm:$0xff]
    %v1344 = vld [vmem:[#allocation9 + $0x1a8] sm:$0xff]
    %v1345 = vld [vmem:[#allocation9 + $0x1b0] sm:$0xff]
    %v1346 = vld [vmem:[#allocation9 + $0x1b8] sm:$0xff]
    %v1347 = vld [vmem:[#allocation9 + $0x1c0] sm:$0xff]
    %v1348 = vld [vmem:[#allocation9 + $0x1c8] sm:$0xff]
    %v1349 = vld [vmem:[#allocation9 + $0x1d0] sm:$0xff]
    %v1350 = vld [vmem:[#allocation9 + $0x1d8] sm:$0xff]
    %v1351 = vld [vmem:[#allocation9 + $0x1e0] sm:$0xff]
    %v1352 = vld [vmem:[#allocation9 + $0x1e8] sm:$0xff]
    %v1353 = vld [vmem:[#allocation9 + $0x1f0] sm:$0xff]
    %v1354 = vld [vmem:[#allocation9 + $0x1f8] sm:$0xff]
    %v1355 = vld [vmem:[#allocation9 + $0x200] sm:$0xff]
    %v1356 = vld [vmem:[#allocation9 + $0x208] sm:$0xff]
    %v1357 = vld [vmem:[#allocation9 + $0x210] sm:$0xff]
    %v1358 = vld [vmem:[#allocation9 + $0x218] sm:$0xff]
    %v1359 = vld [vmem:[#allocation9 + $0x220] sm:$0xff]
    %v1360 = vld [vmem:[#allocation9 + $0x228] sm:$0xff]
    %v1361 = vld [vmem:[#allocation9 + $0x230] sm:$0xff]
    %v1362 = vld [vmem:[#allocation9 + $0x238] sm:$0xff]
    %v1363 = vld [vmem:[#allocation9 + $0x240] sm:$0xff]
    %v1364 = vld [vmem:[#allocation9 + $0x248] sm:$0xff]
    %v1365 = vld [vmem:[#allocation9 + $0x250] sm:$0xff]
    %v1366 = vld [vmem:[#allocation9 + $0x258] sm:$0xff]
    %v1367 = vld [vmem:[#allocation9 + $0x260] sm:$0xff]
    %v1368 = vld [vmem:[#allocation9 + $0x268] sm:$0xff]
    %v1369 = vld [vmem:[#allocation9 + $0x270] sm:$0xff]
    %v1370 = vld [vmem:[#allocation9 + $0x278] sm:$0xff]
    %v1371 = vld [vmem:[#allocation9 + $0x280] sm:$0xff]
    %v1372 = vld [vmem:[#allocation9 + $0x288] sm:$0xff]
    %v1373 = vld [vmem:[#allocation9 + $0x290] sm:$0xff]
    %v1374 = vld [vmem:[#allocation9 + $0x298] sm:$0xff]
    %v1375 = vld [vmem:[#allocation9 + $0x2a0] sm:$0xff]
    %v1376 = vld [vmem:[#allocation9 + $0x2a8] sm:$0xff]
    %v1377 = vld [vmem:[#allocation9 + $0x2b0] sm:$0xff]
    %v1378 = vld [vmem:[#allocation9 + $0x2b8] sm:$0xff]
    %v1379 = vld [vmem:[#allocation9 + $0x2c0] sm:$0xff]
    %v1380 = vld [vmem:[#allocation9 + $0x2c8] sm:$0xff]
    %v1381 = vld [vmem:[#allocation9 + $0x2d0] sm:$0xff]
    %v1382 = vld [vmem:[#allocation9 + $0x2d8] sm:$0xff]
    %v1383 = vld [vmem:[#allocation9 + $0x2e0] sm:$0xff]
    %v1384 = vld [vmem:[#allocation9 + $0x2e8] sm:$0xff]
    %v1385 = vld [vmem:[#allocation9 + $0x2f0] sm:$0xff]
    %v1386 = vld [vmem:[#allocation9 + $0x2f8] sm:$0xff]
    %v1387 = vld [vmem:[#allocation9 + $0x300] sm:$0xff]
    %v1388 = vld [vmem:[#allocation9 + $0x308] sm:$0xff]
    %v1389 = vld [vmem:[#allocation9 + $0x310] sm:$0xff]
    %v1390 = vld [vmem:[#allocation9 + $0x318] sm:$0xff]
    %v1391 = vld [vmem:[#allocation9 + $0x320] sm:$0xff]
    %v1392 = vld [vmem:[#allocation9 + $0x328] sm:$0xff]
    %v1393 = vld [vmem:[#allocation9 + $0x330] sm:$0xff]
    %v1394 = vld [vmem:[#allocation9 + $0x338] sm:$0xff]
    %v1395 = vld [vmem:[#allocation9 + $0x340] sm:$0xff]
    %v1396 = vld [vmem:[#allocation9 + $0x348] sm:$0xff]
    %v1397 = vld [vmem:[#allocation9 + $0x350] sm:$0xff]
    %v1398 = vld [vmem:[#allocation9 + $0x358] sm:$0xff]
    %v1399 = vld [vmem:[#allocation9 + $0x360] sm:$0xff]
    %v1400 = vld [vmem:[#allocation9 + $0x368] sm:$0xff]
    %v1401 = vld [vmem:[#allocation9 + $0x370] sm:$0xff]
    %v1402 = vld [vmem:[#allocation9 + $0x378] sm:$0xff]
    %v1403 = vld [vmem:[#allocation9 + $0x380] sm:$0xff]
    %v1404 = vld [vmem:[#allocation9 + $0x388] sm:$0xff]
    %v1405 = vld [vmem:[#allocation9 + $0x390] sm:$0xff]
    %v1406 = vld [vmem:[#allocation9 + $0x398] sm:$0xff]
    %v1407 = vld [vmem:[#allocation9 + $0x3a0] sm:$0xff]
    %v1408 = vld [vmem:[#allocation9 + $0x3a8] sm:$0xff]
    %v1409 = vld [vmem:[#allocation9 + $0x3b0] sm:$0xff]
    %v1410 = vld [vmem:[#allocation9 + $0x3b8] sm:$0xff]
    %v1411 = vld [vmem:[#allocation9 + $0x3c0] sm:$0xff]
    %v1412 = vld [vmem:[#allocation9 + $0x3c8] sm:$0xff]
    %v1413 = vld [vmem:[#allocation9 + $0x3d0] sm:$0xff]
    %v1414 = vld [vmem:[#allocation9 + $0x3d8] sm:$0xff]
    %v1415 = vld [vmem:[#allocation9 + $0x3e0] sm:$0xff]
    %v1416 = vld [vmem:[#allocation9 + $0x3e8] sm:$0xff]
    %v1417 = vld [vmem:[#allocation9 + $0x3f0] sm:$0xff]
    %v1418 = vld [vmem:[#allocation9 + $0x3f8] sm:$0xff]
    %v1419 = vld [vmem:[%s6] sm:$0xf]
    %v1421 = vlaneseq
    %v1422 = vshrl.u32 %v1421, 7
    %v1423 = vsub.s32 0, %v1422
    %v1424 = vrot.slane %v1419, %v1423
    %v1425 = vlaneseq
    %v1426 = vshrl.u32 %v1425, 7
    %v1427 = vsub.s32 1, %v1426
    %v1428 = vrot.slane %v1419, %v1427
    %v1429 = vlaneseq
    %v1430 = vshrl.u32 %v1429, 7
    %v1431 = vsub.s32 2, %v1430
    %v1432 = vrot.slane %v1419, %v1431
    %v1433 = vlaneseq
    %v1434 = vshrl.u32 %v1433, 7
    %v1435 = vsub.s32 3, %v1434
    %v1436 = vrot.slane %v1419, %v1435
    %v1569 = vunpack.c.l.b16 %v1291
    %v1570 = vunpack.c.h.b16 %v1291
    %v1571 = vunpack.c.l.b16 %v1292
    %v1572 = vunpack.c.h.b16 %v1292
    %v1573 = vunpack.c.l.b16 %v1293
    %v1574 = vunpack.c.h.b16 %v1293
    %v1575 = vunpack.c.l.b16 %v1294
    %v1576 = vunpack.c.h.b16 %v1294
    %v1577 = vunpack.c.l.b16 %v1295
    %v1578 = vunpack.c.h.b16 %v1295
    %v1579 = vunpack.c.l.b16 %v1296
    %v1580 = vunpack.c.h.b16 %v1296
    %v1581 = vunpack.c.l.b16 %v1297
    %v1582 = vunpack.c.h.b16 %v1297
    %v1583 = vunpack.c.l.b16 %v1298
    %v1584 = vunpack.c.h.b16 %v1298
    %v1585 = vunpack.c.l.b16 %v1299
    %v1586 = vunpack.c.h.b16 %v1299
    %v1587 = vunpack.c.l.b16 %v1300
    %v1588 = vunpack.c.h.b16 %v1300
    %v1589 = vunpack.c.l.b16 %v1301
    %v1590 = vunpack.c.h.b16 %v1301
    %v1591 = vunpack.c.l.b16 %v1302
    %v1592 = vunpack.c.h.b16 %v1302
    %v1593 = vunpack.c.l.b16 %v1303
    %v1594 = vunpack.c.h.b16 %v1303
    %v1595 = vunpack.c.l.b16 %v1304
    %v1596 = vunpack.c.h.b16 %v1304
    %v1597 = vunpack.c.l.b16 %v1305
    %v1598 = vunpack.c.h.b16 %v1305
    %v1599 = vunpack.c.l.b16 %v1306
    %v1600 = vunpack.c.h.b16 %v1306
    %v1601 = vunpack.c.l.b16 %v1307
    %v1602 = vunpack.c.h.b16 %v1307
    %v1603 = vunpack.c.l.b16 %v1308
    %v1604 = vunpack.c.h.b16 %v1308
    %v1605 = vunpack.c.l.b16 %v1309
    %v1606 = vunpack.c.h.b16 %v1309
    %v1607 = vunpack.c.l.b16 %v1310
    %v1608 = vunpack.c.h.b16 %v1310
    %v1609 = vunpack.c.l.b16 %v1311
    %v1610 = vunpack.c.h.b16 %v1311
    %v1611 = vunpack.c.l.b16 %v1312
    %v1612 = vunpack.c.h.b16 %v1312
    %v1613 = vunpack.c.l.b16 %v1313
    %v1614 = vunpack.c.h.b16 %v1313
    %v1615 = vunpack.c.l.b16 %v1314
    %v1616 = vunpack.c.h.b16 %v1314
    %v1617 = vunpack.c.l.b16 %v1315
    %v1618 = vunpack.c.h.b16 %v1315
    %v1619 = vunpack.c.l.b16 %v1316
    %v1620 = vunpack.c.h.b16 %v1316
    %v1621 = vunpack.c.l.b16 %v1317
    %v1622 = vunpack.c.h.b16 %v1317
    %v1623 = vunpack.c.l.b16 %v1318
    %v1624 = vunpack.c.h.b16 %v1318
    %v1625 = vunpack.c.l.b16 %v1319
    %v1626 = vunpack.c.h.b16 %v1319
    %v1627 = vunpack.c.l.b16 %v1320
    %v1628 = vunpack.c.h.b16 %v1320
    %v1629 = vunpack.c.l.b16 %v1321
    %v1630 = vunpack.c.h.b16 %v1321
    %v1631 = vunpack.c.l.b16 %v1322
    %v1632 = vunpack.c.h.b16 %v1322
    %v1633 = vunpack.c.l.b16 %v1323
    %v1634 = vunpack.c.h.b16 %v1323
    %v1635 = vunpack.c.l.b16 %v1324
    %v1636 = vunpack.c.h.b16 %v1324
    %v1637 = vunpack.c.l.b16 %v1325
    %v1638 = vunpack.c.h.b16 %v1325
    %v1639 = vunpack.c.l.b16 %v1326
    %v1640 = vunpack.c.h.b16 %v1326
    %v1641 = vunpack.c.l.b16 %v1327
    %v1642 = vunpack.c.h.b16 %v1327
    %v1643 = vunpack.c.l.b16 %v1328
    %v1644 = vunpack.c.h.b16 %v1328
    %v1645 = vunpack.c.l.b16 %v1329
    %v1646 = vunpack.c.h.b16 %v1329
    %v1647 = vunpack.c.l.b16 %v1330
    %v1648 = vunpack.c.h.b16 %v1330
    %v1649 = vunpack.c.l.b16 %v1331
    %v1650 = vunpack.c.h.b16 %v1331
    %v1651 = vunpack.c.l.b16 %v1332
    %v1652 = vunpack.c.h.b16 %v1332
    %v1653 = vunpack.c.l.b16 %v1333
    %v1654 = vunpack.c.h.b16 %v1333
    %v1655 = vunpack.c.l.b16 %v1334
    %v1656 = vunpack.c.h.b16 %v1334
    %v1657 = vunpack.c.l.b16 %v1335
    %v1658 = vunpack.c.h.b16 %v1335
    %v1659 = vunpack.c.l.b16 %v1336
    %v1660 = vunpack.c.h.b16 %v1336
    %v1661 = vunpack.c.l.b16 %v1337
    %v1662 = vunpack.c.h.b16 %v1337
    %v1663 = vunpack.c.l.b16 %v1338
    %v1664 = vunpack.c.h.b16 %v1338
    %v1665 = vunpack.c.l.b16 %v1339
    %v1666 = vunpack.c.h.b16 %v1339
    %v1667 = vunpack.c.l.b16 %v1340
    %v1668 = vunpack.c.h.b16 %v1340
    %v1669 = vunpack.c.l.b16 %v1341
    %v1670 = vunpack.c.h.b16 %v1341
    %v1671 = vunpack.c.l.b16 %v1342
    %v1672 = vunpack.c.h.b16 %v1342
    %v1673 = vunpack.c.l.b16 %v1343
    %v1674 = vunpack.c.h.b16 %v1343
    %v1675 = vunpack.c.l.b16 %v1344
    %v1676 = vunpack.c.h.b16 %v1344
    %v1677 = vunpack.c.l.b16 %v1345
    %v1678 = vunpack.c.h.b16 %v1345
    %v1679 = vunpack.c.l.b16 %v1346
    %v1680 = vunpack.c.h.b16 %v1346
    %v1681 = vunpack.c.l.b16 %v1347
    %v1682 = vunpack.c.h.b16 %v1347
    %v1683 = vunpack.c.l.b16 %v1348
    %v1684 = vunpack.c.h.b16 %v1348
    %v1685 = vunpack.c.l.b16 %v1349
    %v1686 = vunpack.c.h.b16 %v1349
    %v1687 = vunpack.c.l.b16 %v1350
    %v1688 = vunpack.c.h.b16 %v1350
    %v1689 = vunpack.c.l.b16 %v1351
    %v1690 = vunpack.c.h.b16 %v1351
    %v1691 = vunpack.c.l.b16 %v1352
    %v1692 = vunpack.c.h.b16 %v1352
    %v1693 = vunpack.c.l.b16 %v1353
    %v1694 = vunpack.c.h.b16 %v1353
    %v1695 = vunpack.c.l.b16 %v1354
    %v1696 = vunpack.c.h.b16 %v1354
    %v1697 = vunpack.c.l.b16 %v1355
    %v1698 = vunpack.c.h.b16 %v1355
    %v1699 = vunpack.c.l.b16 %v1356
    %v1700 = vunpack.c.h.b16 %v1356
    %v1701 = vunpack.c.l.b16 %v1357
    %v1702 = vunpack.c.h.b16 %v1357
    %v1703 = vunpack.c.l.b16 %v1358
    %v1704 = vunpack.c.h.b16 %v1358
    %v1705 = vunpack.c.l.b16 %v1359
    %v1706 = vunpack.c.h.b16 %v1359
    %v1707 = vunpack.c.l.b16 %v1360
    %v1708 = vunpack.c.h.b16 %v1360
    %v1709 = vunpack.c.l.b16 %v1361
    %v1710 = vunpack.c.h.b16 %v1361
    %v1711 = vunpack.c.l.b16 %v1362
    %v1712 = vunpack.c.h.b16 %v1362
    %v1713 = vunpack.c.l.b16 %v1363
    %v1714 = vunpack.c.h.b16 %v1363
    %v1715 = vunpack.c.l.b16 %v1364
    %v1716 = vunpack.c.h.b16 %v1364
    %v1717 = vunpack.c.l.b16 %v1365
    %v1718 = vunpack.c.h.b16 %v1365
    %v1719 = vunpack.c.l.b16 %v1366
    %v1720 = vunpack.c.h.b16 %v1366
    %v1721 = vunpack.c.l.b16 %v1367
    %v1722 = vunpack.c.h.b16 %v1367
    %v1723 = vunpack.c.l.b16 %v1368
    %v1724 = vunpack.c.h.b16 %v1368
    %v1725 = vunpack.c.l.b16 %v1369
    %v1726 = vunpack.c.h.b16 %v1369
    %v1727 = vunpack.c.l.b16 %v1370
    %v1728 = vunpack.c.h.b16 %v1370
    %v1729 = vunpack.c.l.b16 %v1371
    %v1730 = vunpack.c.h.b16 %v1371
    %v1731 = vunpack.c.l.b16 %v1372
    %v1732 = vunpack.c.h.b16 %v1372
    %v1733 = vunpack.c.l.b16 %v1373
    %v1734 = vunpack.c.h.b16 %v1373
    %v1735 = vunpack.c.l.b16 %v1374
    %v1736 = vunpack.c.h.b16 %v1374
    %v1737 = vunpack.c.l.b16 %v1375
    %v1738 = vunpack.c.h.b16 %v1375
    %v1739 = vunpack.c.l.b16 %v1376
    %v1740 = vunpack.c.h.b16 %v1376
    %v1741 = vunpack.c.l.b16 %v1377
    %v1742 = vunpack.c.h.b16 %v1377
    %v1743 = vunpack.c.l.b16 %v1378
    %v1744 = vunpack.c.h.b16 %v1378
    %v1745 = vunpack.c.l.b16 %v1379
    %v1746 = vunpack.c.h.b16 %v1379
    %v1747 = vunpack.c.l.b16 %v1380
    %v1748 = vunpack.c.h.b16 %v1380
    %v1749 = vunpack.c.l.b16 %v1381
    %v1750 = vunpack.c.h.b16 %v1381
    %v1751 = vunpack.c.l.b16 %v1382
    %v1752 = vunpack.c.h.b16 %v1382
    %v1753 = vunpack.c.l.b16 %v1383
    %v1754 = vunpack.c.h.b16 %v1383
    %v1755 = vunpack.c.l.b16 %v1384
    %v1756 = vunpack.c.h.b16 %v1384
    %v1757 = vunpack.c.l.b16 %v1385
    %v1758 = vunpack.c.h.b16 %v1385
    %v1759 = vunpack.c.l.b16 %v1386
    %v1760 = vunpack.c.h.b16 %v1386
    %v1761 = vunpack.c.l.b16 %v1387
    %v1762 = vunpack.c.h.b16 %v1387
    %v1763 = vunpack.c.l.b16 %v1388
    %v1764 = vunpack.c.h.b16 %v1388
    %v1765 = vunpack.c.l.b16 %v1389
    %v1766 = vunpack.c.h.b16 %v1389
    %v1767 = vunpack.c.l.b16 %v1390
    %v1768 = vunpack.c.h.b16 %v1390
    %v1769 = vunpack.c.l.b16 %v1391
    %v1770 = vunpack.c.h.b16 %v1391
    %v1771 = vunpack.c.l.b16 %v1392
    %v1772 = vunpack.c.h.b16 %v1392
    %v1773 = vunpack.c.l.b16 %v1393
    %v1774 = vunpack.c.h.b16 %v1393
    %v1775 = vunpack.c.l.b16 %v1394
    %v1776 = vunpack.c.h.b16 %v1394
    %v1777 = vunpack.c.l.b16 %v1395
    %v1778 = vunpack.c.h.b16 %v1395
    %v1779 = vunpack.c.l.b16 %v1396
    %v1780 = vunpack.c.h.b16 %v1396
    %v1781 = vunpack.c.l.b16 %v1397
    %v1782 = vunpack.c.h.b16 %v1397
    %v1783 = vunpack.c.l.b16 %v1398
    %v1784 = vunpack.c.h.b16 %v1398
    %v1785 = vunpack.c.l.b16 %v1399
    %v1786 = vunpack.c.h.b16 %v1399
    %v1787 = vunpack.c.l.b16 %v1400
    %v1788 = vunpack.c.h.b16 %v1400
    %v1789 = vunpack.c.l.b16 %v1401
    %v1790 = vunpack.c.h.b16 %v1401
    %v1791 = vunpack.c.l.b16 %v1402
    %v1792 = vunpack.c.h.b16 %v1402
    %v1793 = vunpack.c.l.b16 %v1403
    %v1794 = vunpack.c.h.b16 %v1403
    %v1795 = vunpack.c.l.b16 %v1404
    %v1796 = vunpack.c.h.b16 %v1404
    %v1797 = vunpack.c.l.b16 %v1405
    %v1798 = vunpack.c.h.b16 %v1405
    %v1799 = vunpack.c.l.b16 %v1406
    %v1800 = vunpack.c.h.b16 %v1406
    %v1801 = vunpack.c.l.b16 %v1407
    %v1802 = vunpack.c.h.b16 %v1407
    %v1803 = vunpack.c.l.b16 %v1408
    %v1804 = vunpack.c.h.b16 %v1408
    %v1805 = vunpack.c.l.b16 %v1409
    %v1806 = vunpack.c.h.b16 %v1409
    %v1807 = vunpack.c.l.b16 %v1410
    %v1808 = vunpack.c.h.b16 %v1410
    %v1809 = vunpack.c.l.b16 %v1411
    %v1810 = vunpack.c.h.b16 %v1411
    %v1811 = vunpack.c.l.b16 %v1412
    %v1812 = vunpack.c.h.b16 %v1412
    %v1813 = vunpack.c.l.b16 %v1413
    %v1814 = vunpack.c.h.b16 %v1413
    %v1815 = vunpack.c.l.b16 %v1414
    %v1816 = vunpack.c.h.b16 %v1414
    %v1817 = vunpack.c.l.b16 %v1415
    %v1818 = vunpack.c.h.b16 %v1415
    %v1819 = vunpack.c.l.b16 %v1416
    %v1820 = vunpack.c.h.b16 %v1416
    %v1821 = vunpack.c.l.b16 %v1417
    %v1822 = vunpack.c.h.b16 %v1417
    %v1823 = vunpack.c.l.b16 %v1418
    %v1824 = vunpack.c.h.b16 %v1418
    %v1825 = vpack.c.b16 %v1573, %v1569
    %v1826 = vpack.c.b16 %v1574, %v1570
    %v1827 = vpack.c.b16 %v1575, %v1571
    %v1828 = vpack.c.b16 %v1576, %v1572
    %v1829 = vpack.c.b16 %v1581, %v1577
    %v1830 = vpack.c.b16 %v1582, %v1578
    %v1831 = vpack.c.b16 %v1583, %v1579
    %v1832 = vpack.c.b16 %v1584, %v1580
    %v1833 = vpack.c.b16 %v1589, %v1585
    %v1834 = vpack.c.b16 %v1590, %v1586
    %v1835 = vpack.c.b16 %v1591, %v1587
    %v1836 = vpack.c.b16 %v1592, %v1588
    %v1837 = vpack.c.b16 %v1597, %v1593
    %v1838 = vpack.c.b16 %v1598, %v1594
    %v1839 = vpack.c.b16 %v1599, %v1595
    %v1840 = vpack.c.b16 %v1600, %v1596
    %v1841 = vpack.c.b16 %v1605, %v1601
    %v1842 = vpack.c.b16 %v1606, %v1602
    %v1843 = vpack.c.b16 %v1607, %v1603
    %v1844 = vpack.c.b16 %v1608, %v1604
    %v1845 = vpack.c.b16 %v1613, %v1609
    %v1846 = vpack.c.b16 %v1614, %v1610
    %v1847 = vpack.c.b16 %v1615, %v1611
    %v1848 = vpack.c.b16 %v1616, %v1612
    %v1849 = vpack.c.b16 %v1621, %v1617
    %v1850 = vpack.c.b16 %v1622, %v1618
    %v1851 = vpack.c.b16 %v1623, %v1619
    %v1852 = vpack.c.b16 %v1624, %v1620
    %v1853 = vpack.c.b16 %v1629, %v1625
    %v1854 = vpack.c.b16 %v1630, %v1626
    %v1855 = vpack.c.b16 %v1631, %v1627
    %v1856 = vpack.c.b16 %v1632, %v1628
    %v1857 = vpack.c.b16 %v1637, %v1633
    %v1858 = vpack.c.b16 %v1638, %v1634
    %v1859 = vpack.c.b16 %v1639, %v1635
    %v1860 = vpack.c.b16 %v1640, %v1636
    %v1861 = vpack.c.b16 %v1645, %v1641
    %v1862 = vpack.c.b16 %v1646, %v1642
    %v1863 = vpack.c.b16 %v1647, %v1643
    %v1864 = vpack.c.b16 %v1648, %v1644
    %v1865 = vpack.c.b16 %v1653, %v1649
    %v1866 = vpack.c.b16 %v1654, %v1650
    %v1867 = vpack.c.b16 %v1655, %v1651
    %v1868 = vpack.c.b16 %v1656, %v1652
    %v1869 = vpack.c.b16 %v1661, %v1657
    %v1870 = vpack.c.b16 %v1662, %v1658
    %v1871 = vpack.c.b16 %v1663, %v1659
    %v1872 = vpack.c.b16 %v1664, %v1660
    %v1873 = vpack.c.b16 %v1669, %v1665
    %v1874 = vpack.c.b16 %v1670, %v1666
    %v1875 = vpack.c.b16 %v1671, %v1667
    %v1876 = vpack.c.b16 %v1672, %v1668
    %v1877 = vpack.c.b16 %v1677, %v1673
    %v1878 = vpack.c.b16 %v1678, %v1674
    %v1879 = vpack.c.b16 %v1679, %v1675
    %v1880 = vpack.c.b16 %v1680, %v1676
    %v1881 = vpack.c.b16 %v1685, %v1681
    %v1882 = vpack.c.b16 %v1686, %v1682
    %v1883 = vpack.c.b16 %v1687, %v1683
    %v1884 = vpack.c.b16 %v1688, %v1684
    %v1885 = vpack.c.b16 %v1693, %v1689
    %v1886 = vpack.c.b16 %v1694, %v1690
    %v1887 = vpack.c.b16 %v1695, %v1691
    %v1888 = vpack.c.b16 %v1696, %v1692
    %v1889 = vpack.c.b16 %v1701, %v1697
    %v1890 = vpack.c.b16 %v1702, %v1698
    %v1891 = vpack.c.b16 %v1703, %v1699
    %v1892 = vpack.c.b16 %v1704, %v1700
    %v1893 = vpack.c.b16 %v1709, %v1705
    %v1894 = vpack.c.b16 %v1710, %v1706
    %v1895 = vpack.c.b16 %v1711, %v1707
    %v1896 = vpack.c.b16 %v1712, %v1708
    %v1897 = vpack.c.b16 %v1717, %v1713
    %v1898 = vpack.c.b16 %v1718, %v1714
    %v1899 = vpack.c.b16 %v1719, %v1715
    %v1900 = vpack.c.b16 %v1720, %v1716
    %v1901 = vpack.c.b16 %v1725, %v1721
    %v1902 = vpack.c.b16 %v1726, %v1722
    %v1903 = vpack.c.b16 %v1727, %v1723
    %v1904 = vpack.c.b16 %v1728, %v1724
    %v1905 = vpack.c.b16 %v1733, %v1729
    %v1906 = vpack.c.b16 %v1734, %v1730
    %v1907 = vpack.c.b16 %v1735, %v1731
    %v1908 = vpack.c.b16 %v1736, %v1732
    %v1909 = vpack.c.b16 %v1741, %v1737
    %v1910 = vpack.c.b16 %v1742, %v1738
    %v1911 = vpack.c.b16 %v1743, %v1739
    %v1912 = vpack.c.b16 %v1744, %v1740
    %v1913 = vpack.c.b16 %v1749, %v1745
    %v1914 = vpack.c.b16 %v1750, %v1746
    %v1915 = vpack.c.b16 %v1751, %v1747
    %v1916 = vpack.c.b16 %v1752, %v1748
    %v1917 = vpack.c.b16 %v1757, %v1753
    %v1918 = vpack.c.b16 %v1758, %v1754
    %v1919 = vpack.c.b16 %v1759, %v1755
    %v1920 = vpack.c.b16 %v1760, %v1756
    %v1921 = vpack.c.b16 %v1765, %v1761
    %v1922 = vpack.c.b16 %v1766, %v1762
    %v1923 = vpack.c.b16 %v1767, %v1763
    %v1924 = vpack.c.b16 %v1768, %v1764
    %v1925 = vpack.c.b16 %v1773, %v1769
    %v1926 = vpack.c.b16 %v1774, %v1770
    %v1927 = vpack.c.b16 %v1775, %v1771
    %v1928 = vpack.c.b16 %v1776, %v1772
    %v1929 = vpack.c.b16 %v1781, %v1777
    %v1930 = vpack.c.b16 %v1782, %v1778
    %v1931 = vpack.c.b16 %v1783, %v1779
    %v1932 = vpack.c.b16 %v1784, %v1780
    %v1933 = vpack.c.b16 %v1789, %v1785
    %v1934 = vpack.c.b16 %v1790, %v1786
    %v1935 = vpack.c.b16 %v1791, %v1787
    %v1936 = vpack.c.b16 %v1792, %v1788
    %v1937 = vpack.c.b16 %v1797, %v1793
    %v1938 = vpack.c.b16 %v1798, %v1794
    %v1939 = vpack.c.b16 %v1799, %v1795
    %v1940 = vpack.c.b16 %v1800, %v1796
    %v1941 = vpack.c.b16 %v1805, %v1801
    %v1942 = vpack.c.b16 %v1806, %v1802
    %v1943 = vpack.c.b16 %v1807, %v1803
    %v1944 = vpack.c.b16 %v1808, %v1804
    %v1945 = vpack.c.b16 %v1813, %v1809
    %v1946 = vpack.c.b16 %v1814, %v1810
    %v1947 = vpack.c.b16 %v1815, %v1811
    %v1948 = vpack.c.b16 %v1816, %v1812
    %v1949 = vpack.c.b16 %v1821, %v1817
    %v1950 = vpack.c.b16 %v1822, %v1818
    %v1951 = vpack.c.b16 %v1823, %v1819
    %v1952 = vpack.c.b16 %v1824, %v1820
    %2081 = vmatprep.subr.bf16.mxu0 %v1826
    %2082 = vmatpush1.bf16.msra.mxu0 %v1825
    %2083 = vmatprep.subr.bf16.mxu0 %v1830
    %2084 = vmatpush1.bf16.msra.mxu0 %v1829
    %2085 = vmatprep.subr.bf16.mxu0 %v1834
    %2086 = vmatpush1.bf16.msra.mxu0 %v1833
    %2087 = vmatprep.subr.bf16.mxu0 %v1838
    %2088 = vmatpush1.bf16.msra.mxu0 %v1837
    %2089 = vmatprep.subr.bf16.mxu0 %v1842
    %2090 = vmatpush1.bf16.msra.mxu0 %v1841
    %2091 = vmatprep.subr.bf16.mxu0 %v1846
    %2092 = vmatpush1.bf16.msra.mxu0 %v1845
    %2093 = vmatprep.subr.bf16.mxu0 %v1850
    %2094 = vmatpush1.bf16.msra.mxu0 %v1849
    %2095 = vmatprep.subr.bf16.mxu0 %v1854
    %2096 = vmatpush1.bf16.msra.mxu0 %v1853
    %2097 = vmatprep.subr.bf16.mxu0 %v1858
    %2098 = vmatpush1.bf16.msra.mxu0 %v1857
    %2099 = vmatprep.subr.bf16.mxu0 %v1862
    %2100 = vmatpush1.bf16.msra.mxu0 %v1861
    %2101 = vmatprep.subr.bf16.mxu0 %v1866
    %2102 = vmatpush1.bf16.msra.mxu0 %v1865
    %2103 = vmatprep.subr.bf16.mxu0 %v1870
    %2104 = vmatpush1.bf16.msra.mxu0 %v1869
    %2105 = vmatprep.subr.bf16.mxu0 %v1874
    %2106 = vmatpush1.bf16.msra.mxu0 %v1873
    %2107 = vmatprep.subr.bf16.mxu0 %v1878
    %2108 = vmatpush1.bf16.msra.mxu0 %v1877
    %2109 = vmatprep.subr.bf16.mxu0 %v1882
    %2110 = vmatpush1.bf16.msra.mxu0 %v1881
    %2111 = vmatprep.subr.bf16.mxu0 %v1886
    %2112 = vmatpush1.bf16.msra.mxu0 %v1885
    %2113 = vmatprep.mubr.bf16.mxu0 %v1288
    %2114 = vmatmul.mubr.bf16.gmra.mrb[0].mxu0 %v1287
    %v2115 = vpop.f32.mrb[0].mxu0
    %v2116 = vadd.f32 %v1424, %v2115
    %v2117 = vpop.f32.mrb[0].mxu0
    %v2118 = vadd.f32 %v1428, %v2117
    %v2119 = vpop.f32.mrb[0].mxu0
    %v2120 = vadd.f32 %v1424, %v2119
    %v2121 = vpop.f32.mrb[0].mxu0
    %v2122 = vadd.f32 %v1428, %v2121
    %2123 = vdwg.mxu0
    %2124 = vmatprep.subr.bf16.mxu0 %v1890
    %2125 = vmatpush1.bf16.msra.mxu0 %v1889
    %2126 = vmatprep.subr.bf16.mxu0 %v1894
    %2127 = vmatpush1.bf16.msra.mxu0 %v1893
    %2128 = vmatprep.subr.bf16.mxu0 %v1898
    %2129 = vmatpush1.bf16.msra.mxu0 %v1897
    %2130 = vmatprep.subr.bf16.mxu0 %v1902
    %2131 = vmatpush1.bf16.msra.mxu0 %v1901
    %2132 = vmatprep.subr.bf16.mxu0 %v1906
    %2133 = vmatpush1.bf16.msra.mxu0 %v1905
    %2134 = vmatprep.subr.bf16.mxu0 %v1910
    %2135 = vmatpush1.bf16.msra.mxu0 %v1909
    %2136 = vmatprep.subr.bf16.mxu0 %v1914
    %2137 = vmatpush1.bf16.msra.mxu0 %v1913
    %2138 = vmatprep.subr.bf16.mxu0 %v1918
    %2139 = vmatpush1.bf16.msra.mxu0 %v1917
    %2140 = vmatprep.subr.bf16.mxu0 %v1922
    %2141 = vmatpush1.bf16.msra.mxu0 %v1921
    %2142 = vmatprep.subr.bf16.mxu0 %v1926
    %2143 = vmatpush1.bf16.msra.mxu0 %v1925
    %2144 = vmatprep.subr.bf16.mxu0 %v1930
    %2145 = vmatpush1.bf16.msra.mxu0 %v1929
    %2146 = vmatprep.subr.bf16.mxu0 %v1934
    %2147 = vmatpush1.bf16.msra.mxu0 %v1933
    %2148 = vmatprep.subr.bf16.mxu0 %v1938
    %2149 = vmatpush1.bf16.msra.mxu0 %v1937
    %2150 = vmatprep.subr.bf16.mxu0 %v1942
    %2151 = vmatpush1.bf16.msra.mxu0 %v1941
    %2152 = vmatprep.subr.bf16.mxu0 %v1946
    %2153 = vmatpush1.bf16.msra.mxu0 %v1945
    %2154 = vmatprep.subr.bf16.mxu0 %v1950
    %2155 = vmatpush1.bf16.msra.mxu0 %v1949
    %2156 = vmatprep.mubr.bf16.mxu0 %v1290
    %2157 = vmatmul.mubr.bf16.gmra.mrb[0].mxu0 %v1289
    %v2158 = vpop.f32.mrb[0].mxu0
    %v2159 = vadd.f32 %v2116, %v2158
    %v2160 = vpop.f32.mrb[0].mxu0
    %v2161 = vadd.f32 %v2118, %v2160
    %v2162 = vpop.f32.mrb[0].mxu0
    %v2163 = vadd.f32 %v2120, %v2162
    %v2164 = vpop.f32.mrb[0].mxu0
    %v2165 = vadd.f32 %v2122, %v2164
    %2166 = vdwg.mxu0
    %2167 = vmatprep.subr.bf16.mxu0 %v1828
    %2168 = vmatpush1.bf16.msra.mxu0 %v1827
    %2169 = vmatprep.subr.bf16.mxu0 %v1832
    %2170 = vmatpush1.bf16.msra.mxu0 %v1831
    %2171 = vmatprep.subr.bf16.mxu0 %v1836
    %2172 = vmatpush1.bf16.msra.mxu0 %v1835
    %2173 = vmatprep.subr.bf16.mxu0 %v1840
    %2174 = vmatpush1.bf16.msra.mxu0 %v1839
    %2175 = vmatprep.subr.bf16.mxu0 %v1844
    %2176 = vmatpush1.bf16.msra.mxu0 %v1843
    %2177 = vmatprep.subr.bf16.mxu0 %v1848
    %2178 = vmatpush1.bf16.msra.mxu0 %v1847
    %2179 = vmatprep.subr.bf16.mxu0 %v1852
    %2180 = vmatpush1.bf16.msra.mxu0 %v1851
    %2181 = vmatprep.subr.bf16.mxu0 %v1856
    %2182 = vmatpush1.bf16.msra.mxu0 %v1855
    %2183 = vmatprep.subr.bf16.mxu0 %v1860
    %2184 = vmatpush1.bf16.msra.mxu0 %v1859
    %2185 = vmatprep.subr.bf16.mxu0 %v1864
    %2186 = vmatpush1.bf16.msra.mxu0 %v1863
    %2187 = vmatprep.subr.bf16.mxu0 %v1868
    %2188 = vmatpush1.bf16.msra.mxu0 %v1867
    %2189 = vmatprep.subr.bf16.mxu0 %v1872
    %2190 = vmatpush1.bf16.msra.mxu0 %v1871
    %2191 = vmatprep.subr.bf16.mxu0 %v1876
    %2192 = vmatpush1.bf16.msra.mxu0 %v1875
    %2193 = vmatprep.subr.bf16.mxu0 %v1880
    %2194 = vmatpush1.bf16.msra.mxu0 %v1879
    %2195 = vmatprep.subr.bf16.mxu0 %v1884
    %2196 = vmatpush1.bf16.msra.mxu0 %v1883
    %2197 = vmatprep.subr.bf16.mxu0 %v1888
    %2198 = vmatpush1.bf16.msra.mxu0 %v1887
    %2199 = vmatprep.mubr.bf16.mxu0 %v1288
    %2200 = vmatmul.mubr.bf16.gmra.mrb[0].mxu0 %v1287
    %v2201 = vpop.f32.mrb[0].mxu0
    %v2202 = vadd.f32 %v1432, %v2201
    %v2203 = vpop.f32.mrb[0].mxu0
    %v2204 = vadd.f32 %v1436, %v2203
    %v2205 = vpop.f32.mrb[0].mxu0
    %v2206 = vadd.f32 %v1432, %v2205
    %v2207 = vpop.f32.mrb[0].mxu0
    %v2208 = vadd.f32 %v1436, %v2207
    %2209 = vdwg.mxu0
    %2210 = vmatprep.subr.bf16.mxu0 %v1892
    %2211 = vmatpush1.bf16.msra.mxu0 %v1891
    %2212 = vmatprep.subr.bf16.mxu0 %v1896
    %2213 = vmatpush1.bf16.msra.mxu0 %v1895
    %2214 = vmatprep.subr.bf16.mxu0 %v1900
    %2215 = vmatpush1.bf16.msra.mxu0 %v1899
    %2216 = vmatprep.subr.bf16.mxu0 %v1904
    %2217 = vmatpush1.bf16.msra.mxu0 %v1903
    %2218 = vmatprep.subr.bf16.mxu0 %v1908
    %2219 = vmatpush1.bf16.msra.mxu0 %v1907
    %2220 = vmatprep.subr.bf16.mxu0 %v1912
    %2221 = vmatpush1.bf16.msra.mxu0 %v1911
    %2222 = vmatprep.subr.bf16.mxu0 %v1916
    %2223 = vmatpush1.bf16.msra.mxu0 %v1915
    %2224 = vmatprep.subr.bf16.mxu0 %v1920
    %2225 = vmatpush1.bf16.msra.mxu0 %v1919
    %2226 = vmatprep.subr.bf16.mxu0 %v1924
    %2227 = vmatpush1.bf16.msra.mxu0 %v1923
    %2228 = vmatprep.subr.bf16.mxu0 %v1928
    %2229 = vmatpush1.bf16.msra.mxu0 %v1927
    %2230 = vmatprep.subr.bf16.mxu0 %v1932
    %2231 = vmatpush1.bf16.msra.mxu0 %v1931
    %2232 = vmatprep.subr.bf16.mxu0 %v1936
    %2233 = vmatpush1.bf16.msra.mxu0 %v1935
    %2234 = vmatprep.subr.bf16.mxu0 %v1940
    %2235 = vmatpush1.bf16.msra.mxu0 %v1939
    %2236 = vmatprep.subr.bf16.mxu0 %v1944
    %2237 = vmatpush1.bf16.msra.mxu0 %v1943
    %2238 = vmatprep.subr.bf16.mxu0 %v1948
    %2239 = vmatpush1.bf16.msra.mxu0 %v1947
    %2240 = vmatprep.subr.bf16.mxu0 %v1952
    %2241 = vmatpush1.bf16.msra.mxu0 %v1951
    %2242 = vmatprep.mubr.bf16.mxu0 %v1290
    %2243 = vmatmul.mubr.bf16.gmra.mrb[0].mxu0 %v1289
    %v2244 = vpop.f32.mrb[0].mxu0
    %v2245 = vadd.f32 %v2202, %v2244
    %v2246 = vpop.f32.mrb[0].mxu0
    %v2247 = vadd.f32 %v2204, %v2246
    %v2248 = vpop.f32.mrb[0].mxu0
    %v2249 = vadd.f32 %v2206, %v2248
    %v2250 = vpop.f32.mrb[0].mxu0
    %v2251 = vadd.f32 %v2208, %v2250
    %2252 = vdwg.mxu0
    %v2253 = vmax.f32 %v2159, 0.0
    %v2254 = vmax.f32 %v2161, 0.0
    %v2255 = vmax.f32 %v2245, 0.0
    %v2256 = vmax.f32 %v2247, 0.0
    %v2257 = vmax.f32 %v2163, 0.0
    %v2258 = vmax.f32 %v2165, 0.0
    %v2259 = vmax.f32 %v2249, 0.0
    %v2260 = vmax.f32 %v2251, 0.0
    %v2261 = vpack.c.bf16 %v2257, %v2253
    %v2262 = vpack.c.bf16 %v2258, %v2254
    %v2263 = vpack.c.bf16 %v2259, %v2255
    %v2264 = vpack.c.bf16 %v2260, %v2256
    %2265 = vst [vmem:[#allocation2] sm:$0xff] %v2261
    %2266 = vst [vmem:[#allocation2 + $0x8] sm:$0xff] %v2262
    %2267 = vst [vmem:[#allocation2 + $0x10] sm:$0xff] %v2263
    %2268 = vst [vmem:[#allocation2 + $0x18] sm:$0xff] %v2264
    %v2269 = vld [vmem:[#allocation2] sm:$0xff]
    %v2270 = vld [vmem:[#allocation2 + $0x8] sm:$0xff]
    %v2271 = vld [vmem:[#allocation2 + $0x10] sm:$0xff]
    %v2272 = vld [vmem:[#allocation2 + $0x18] sm:$0xff]
    %v2273 = vld [vmem:[#allocation11] sm:$0xff]
    %v2274 = vld [vmem:[#allocation11 + $0x8] sm:$0xff]
    %v2275 = vld [vmem:[#allocation11 + $0x10] sm:$0xff]
    %v2276 = vld [vmem:[#allocation11 + $0x18] sm:$0xff]
    %v2277 = vld [vmem:[#allocation11 + $0x20] sm:$0xff]
    %v2278 = vld [vmem:[#allocation11 + $0x28] sm:$0xff]
    %v2279 = vld [vmem:[#allocation11 + $0x30] sm:$0xff]
    %v2280 = vld [vmem:[#allocation11 + $0x38] sm:$0xff]
    %v2281 = vld [vmem:[#allocation11 + $0x40] sm:$0xff]
    %v2282 = vld [vmem:[#allocation11 + $0x48] sm:$0xff]
    %v2283 = vld [vmem:[#allocation11 + $0x50] sm:$0xff]
    %v2284 = vld [vmem:[#allocation11 + $0x58] sm:$0xff]
    %v2285 = vld [vmem:[#allocation11 + $0x60] sm:$0xff]
    %v2286 = vld [vmem:[#allocation11 + $0x68] sm:$0xff]
    %v2287 = vld [vmem:[#allocation11 + $0x70] sm:$0xff]
    %v2288 = vld [vmem:[#allocation11 + $0x78] sm:$0xff]
    %v2289 = vld [vmem:[#allocation11 + $0x80] sm:$0xff]
    %v2290 = vld [vmem:[#allocation11 + $0x88] sm:$0xff]
    %v2291 = vld [vmem:[#allocation11 + $0x90] sm:$0xff]
    %v2292 = vld [vmem:[#allocation11 + $0x98] sm:$0xff]
    %v2293 = vld [vmem:[#allocation11 + $0xa0] sm:$0xff]
    %v2294 = vld [vmem:[#allocation11 + $0xa8] sm:$0xff]
    %v2295 = vld [vmem:[#allocation11 + $0xb0] sm:$0xff]
    %v2296 = vld [vmem:[#allocation11 + $0xb8] sm:$0xff]
    %v2297 = vld [vmem:[#allocation11 + $0xc0] sm:$0xff]
    %v2298 = vld [vmem:[#allocation11 + $0xc8] sm:$0xff]
    %v2299 = vld [vmem:[#allocation11 + $0xd0] sm:$0xff]
    %v2300 = vld [vmem:[#allocation11 + $0xd8] sm:$0xff]
    %v2301 = vld [vmem:[#allocation11 + $0xe0] sm:$0xff]
    %v2302 = vld [vmem:[#allocation11 + $0xe8] sm:$0xff]
    %v2303 = vld [vmem:[#allocation11 + $0xf0] sm:$0xff]
    %v2304 = vld [vmem:[#allocation11 + $0xf8] sm:$0xff]
    %v2305 = vld [vmem:[#allocation11 + $0x100] sm:$0xff]
    %v2306 = vld [vmem:[#allocation11 + $0x108] sm:$0xff]
    %v2307 = vld [vmem:[#allocation11 + $0x110] sm:$0xff]
    %v2308 = vld [vmem:[#allocation11 + $0x118] sm:$0xff]
    %v2309 = vld [vmem:[#allocation11 + $0x120] sm:$0xff]
    %v2310 = vld [vmem:[#allocation11 + $0x128] sm:$0xff]
    %v2311 = vld [vmem:[#allocation11 + $0x130] sm:$0xff]
    %v2312 = vld [vmem:[#allocation11 + $0x138] sm:$0xff]
    %v2313 = vld [vmem:[#allocation11 + $0x140] sm:$0xff]
    %v2314 = vld [vmem:[#allocation11 + $0x148] sm:$0xff]
    %v2315 = vld [vmem:[#allocation11 + $0x150] sm:$0xff]
    %v2316 = vld [vmem:[#allocation11 + $0x158] sm:$0xff]
    %v2317 = vld [vmem:[#allocation11 + $0x160] sm:$0xff]
    %v2318 = vld [vmem:[#allocation11 + $0x168] sm:$0xff]
    %v2319 = vld [vmem:[#allocation11 + $0x170] sm:$0xff]
    %v2320 = vld [vmem:[#allocation11 + $0x178] sm:$0xff]
    %v2321 = vld [vmem:[#allocation11 + $0x180] sm:$0xff]
    %v2322 = vld [vmem:[#allocation11 + $0x188] sm:$0xff]
    %v2323 = vld [vmem:[#allocation11 + $0x190] sm:$0xff]
    %v2324 = vld [vmem:[#allocation11 + $0x198] sm:$0xff]
    %v2325 = vld [vmem:[#allocation11 + $0x1a0] sm:$0xff]
    %v2326 = vld [vmem:[#allocation11 + $0x1a8] sm:$0xff]
    %v2327 = vld [vmem:[#allocation11 + $0x1b0] sm:$0xff]
    %v2328 = vld [vmem:[#allocation11 + $0x1b8] sm:$0xff]
    %v2329 = vld [vmem:[#allocation11 + $0x1c0] sm:$0xff]
    %v2330 = vld [vmem:[#allocation11 + $0x1c8] sm:$0xff]
    %v2331 = vld [vmem:[#allocation11 + $0x1d0] sm:$0xff]
    %v2332 = vld [vmem:[#allocation11 + $0x1d8] sm:$0xff]
    %v2333 = vld [vmem:[#allocation11 + $0x1e0] sm:$0xff]
    %v2334 = vld [vmem:[#allocation11 + $0x1e8] sm:$0xff]
    %v2335 = vld [vmem:[#allocation11 + $0x1f0] sm:$0xff]
    %v2336 = vld [vmem:[#allocation11 + $0x1f8] sm:$0xff]
    %v2337 = vld [vmem:[#allocation11 + $0x200] sm:$0xff]
    %v2338 = vld [vmem:[#allocation11 + $0x208] sm:$0xff]
    %v2339 = vld [vmem:[#allocation11 + $0x210] sm:$0xff]
    %v2340 = vld [vmem:[#allocation11 + $0x218] sm:$0xff]
    %v2341 = vld [vmem:[#allocation11 + $0x220] sm:$0xff]
    %v2342 = vld [vmem:[#allocation11 + $0x228] sm:$0xff]
    %v2343 = vld [vmem:[#allocation11 + $0x230] sm:$0xff]
    %v2344 = vld [vmem:[#allocation11 + $0x238] sm:$0xff]
    %v2345 = vld [vmem:[#allocation11 + $0x240] sm:$0xff]
    %v2346 = vld [vmem:[#allocation11 + $0x248] sm:$0xff]
    %v2347 = vld [vmem:[#allocation11 + $0x250] sm:$0xff]
    %v2348 = vld [vmem:[#allocation11 + $0x258] sm:$0xff]
    %v2349 = vld [vmem:[#allocation11 + $0x260] sm:$0xff]
    %v2350 = vld [vmem:[#allocation11 + $0x268] sm:$0xff]
    %v2351 = vld [vmem:[#allocation11 + $0x270] sm:$0xff]
    %v2352 = vld [vmem:[#allocation11 + $0x278] sm:$0xff]
    %v2353 = vld [vmem:[#allocation11 + $0x280] sm:$0xff]
    %v2354 = vld [vmem:[#allocation11 + $0x288] sm:$0xff]
    %v2355 = vld [vmem:[#allocation11 + $0x290] sm:$0xff]
    %v2356 = vld [vmem:[#allocation11 + $0x298] sm:$0xff]
    %v2357 = vld [vmem:[#allocation11 + $0x2a0] sm:$0xff]
    %v2358 = vld [vmem:[#allocation11 + $0x2a8] sm:$0xff]
    %v2359 = vld [vmem:[#allocation11 + $0x2b0] sm:$0xff]
    %v2360 = vld [vmem:[#allocation11 + $0x2b8] sm:$0xff]
    %v2361 = vld [vmem:[#allocation11 + $0x2c0] sm:$0xff]
    %v2362 = vld [vmem:[#allocation11 + $0x2c8] sm:$0xff]
    %v2363 = vld [vmem:[#allocation11 + $0x2d0] sm:$0xff]
    %v2364 = vld [vmem:[#allocation11 + $0x2d8] sm:$0xff]
    %v2365 = vld [vmem:[#allocation11 + $0x2e0] sm:$0xff]
    %v2366 = vld [vmem:[#allocation11 + $0x2e8] sm:$0xff]
    %v2367 = vld [vmem:[#allocation11 + $0x2f0] sm:$0xff]
    %v2368 = vld [vmem:[#allocation11 + $0x2f8] sm:$0xff]
    %v2369 = vld [vmem:[#allocation11 + $0x300] sm:$0xff]
    %v2370 = vld [vmem:[#allocation11 + $0x308] sm:$0xff]
    %v2371 = vld [vmem:[#allocation11 + $0x310] sm:$0xff]
    %v2372 = vld [vmem:[#allocation11 + $0x318] sm:$0xff]
    %v2373 = vld [vmem:[#allocation11 + $0x320] sm:$0xff]
    %v2374 = vld [vmem:[#allocation11 + $0x328] sm:$0xff]
    %v2375 = vld [vmem:[#allocation11 + $0x330] sm:$0xff]
    %v2376 = vld [vmem:[#allocation11 + $0x338] sm:$0xff]
    %v2377 = vld [vmem:[#allocation11 + $0x340] sm:$0xff]
    %v2378 = vld [vmem:[#allocation11 + $0x348] sm:$0xff]
    %v2379 = vld [vmem:[#allocation11 + $0x350] sm:$0xff]
    %v2380 = vld [vmem:[#allocation11 + $0x358] sm:$0xff]
    %v2381 = vld [vmem:[#allocation11 + $0x360] sm:$0xff]
    %v2382 = vld [vmem:[#allocation11 + $0x368] sm:$0xff]
    %v2383 = vld [vmem:[#allocation11 + $0x370] sm:$0xff]
    %v2384 = vld [vmem:[#allocation11 + $0x378] sm:$0xff]
    %v2385 = vld [vmem:[#allocation11 + $0x380] sm:$0xff]
    %v2386 = vld [vmem:[#allocation11 + $0x388] sm:$0xff]
    %v2387 = vld [vmem:[#allocation11 + $0x390] sm:$0xff]
    %v2388 = vld [vmem:[#allocation11 + $0x398] sm:$0xff]
    %v2389 = vld [vmem:[#allocation11 + $0x3a0] sm:$0xff]
    %v2390 = vld [vmem:[#allocation11 + $0x3a8] sm:$0xff]
    %v2391 = vld [vmem:[#allocation11 + $0x3b0] sm:$0xff]
    %v2392 = vld [vmem:[#allocation11 + $0x3b8] sm:$0xff]
    %v2393 = vld [vmem:[#allocation11 + $0x3c0] sm:$0xff]
    %v2394 = vld [vmem:[#allocation11 + $0x3c8] sm:$0xff]
    %v2395 = vld [vmem:[#allocation11 + $0x3d0] sm:$0xff]
    %v2396 = vld [vmem:[#allocation11 + $0x3d8] sm:$0xff]
    %v2397 = vld [vmem:[#allocation11 + $0x3e0] sm:$0xff]
    %v2398 = vld [vmem:[#allocation11 + $0x3e8] sm:$0xff]
    %v2399 = vld [vmem:[#allocation11 + $0x3f0] sm:$0xff]
    %v2400 = vld [vmem:[#allocation11 + $0x3f8] sm:$0xff]
    %v2401 = vld [vmem:[%s8] sm:$0xf]
    %v2403 = vlaneseq
    %v2404 = vshrl.u32 %v2403, 7
    %v2405 = vsub.s32 0, %v2404
    %v2406 = vrot.slane %v2401, %v2405
    %v2407 = vlaneseq
    %v2408 = vshrl.u32 %v2407, 7
    %v2409 = vsub.s32 1, %v2408
    %v2410 = vrot.slane %v2401, %v2409
    %v2411 = vlaneseq
    %v2412 = vshrl.u32 %v2411, 7
    %v2413 = vsub.s32 2, %v2412
    %v2414 = vrot.slane %v2401, %v2413
    %v2415 = vlaneseq
    %v2416 = vshrl.u32 %v2415, 7
    %v2417 = vsub.s32 3, %v2416
    %v2418 = vrot.slane %v2401, %v2417
    %v2551 = vunpack.c.l.b16 %v2273
    %v2552 = vunpack.c.h.b16 %v2273
    %v2553 = vunpack.c.l.b16 %v2274
    %v2554 = vunpack.c.h.b16 %v2274
    %v2555 = vunpack.c.l.b16 %v2275
    %v2556 = vunpack.c.h.b16 %v2275
    %v2557 = vunpack.c.l.b16 %v2276
    %v2558 = vunpack.c.h.b16 %v2276
    %v2559 = vunpack.c.l.b16 %v2277
    %v2560 = vunpack.c.h.b16 %v2277
    %v2561 = vunpack.c.l.b16 %v2278
    %v2562 = vunpack.c.h.b16 %v2278
    %v2563 = vunpack.c.l.b16 %v2279
    %v2564 = vunpack.c.h.b16 %v2279
    %v2565 = vunpack.c.l.b16 %v2280
    %v2566 = vunpack.c.h.b16 %v2280
    %v2567 = vunpack.c.l.b16 %v2281
    %v2568 = vunpack.c.h.b16 %v2281
    %v2569 = vunpack.c.l.b16 %v2282
    %v2570 = vunpack.c.h.b16 %v2282
    %v2571 = vunpack.c.l.b16 %v2283
    %v2572 = vunpack.c.h.b16 %v2283
    %v2573 = vunpack.c.l.b16 %v2284
    %v2574 = vunpack.c.h.b16 %v2284
    %v2575 = vunpack.c.l.b16 %v2285
    %v2576 = vunpack.c.h.b16 %v2285
    %v2577 = vunpack.c.l.b16 %v2286
    %v2578 = vunpack.c.h.b16 %v2286
    %v2579 = vunpack.c.l.b16 %v2287
    %v2580 = vunpack.c.h.b16 %v2287
    %v2581 = vunpack.c.l.b16 %v2288
    %v2582 = vunpack.c.h.b16 %v2288
    %v2583 = vunpack.c.l.b16 %v2289
    %v2584 = vunpack.c.h.b16 %v2289
    %v2585 = vunpack.c.l.b16 %v2290
    %v2586 = vunpack.c.h.b16 %v2290
    %v2587 = vunpack.c.l.b16 %v2291
    %v2588 = vunpack.c.h.b16 %v2291
    %v2589 = vunpack.c.l.b16 %v2292
    %v2590 = vunpack.c.h.b16 %v2292
    %v2591 = vunpack.c.l.b16 %v2293
    %v2592 = vunpack.c.h.b16 %v2293
    %v2593 = vunpack.c.l.b16 %v2294
    %v2594 = vunpack.c.h.b16 %v2294
    %v2595 = vunpack.c.l.b16 %v2295
    %v2596 = vunpack.c.h.b16 %v2295
    %v2597 = vunpack.c.l.b16 %v2296
    %v2598 = vunpack.c.h.b16 %v2296
    %v2599 = vunpack.c.l.b16 %v2297
    %v2600 = vunpack.c.h.b16 %v2297
    %v2601 = vunpack.c.l.b16 %v2298
    %v2602 = vunpack.c.h.b16 %v2298
    %v2603 = vunpack.c.l.b16 %v2299
    %v2604 = vunpack.c.h.b16 %v2299
    %v2605 = vunpack.c.l.b16 %v2300
    %v2606 = vunpack.c.h.b16 %v2300
    %v2607 = vunpack.c.l.b16 %v2301
    %v2608 = vunpack.c.h.b16 %v2301
    %v2609 = vunpack.c.l.b16 %v2302
    %v2610 = vunpack.c.h.b16 %v2302
    %v2611 = vunpack.c.l.b16 %v2303
    %v2612 = vunpack.c.h.b16 %v2303
    %v2613 = vunpack.c.l.b16 %v2304
    %v2614 = vunpack.c.h.b16 %v2304
    %v2615 = vunpack.c.l.b16 %v2305
    %v2616 = vunpack.c.h.b16 %v2305
    %v2617 = vunpack.c.l.b16 %v2306
    %v2618 = vunpack.c.h.b16 %v2306
    %v2619 = vunpack.c.l.b16 %v2307
    %v2620 = vunpack.c.h.b16 %v2307
    %v2621 = vunpack.c.l.b16 %v2308
    %v2622 = vunpack.c.h.b16 %v2308
    %v2623 = vunpack.c.l.b16 %v2309
    %v2624 = vunpack.c.h.b16 %v2309
    %v2625 = vunpack.c.l.b16 %v2310
    %v2626 = vunpack.c.h.b16 %v2310
    %v2627 = vunpack.c.l.b16 %v2311
    %v2628 = vunpack.c.h.b16 %v2311
    %v2629 = vunpack.c.l.b16 %v2312
    %v2630 = vunpack.c.h.b16 %v2312
    %v2631 = vunpack.c.l.b16 %v2313
    %v2632 = vunpack.c.h.b16 %v2313
    %v2633 = vunpack.c.l.b16 %v2314
    %v2634 = vunpack.c.h.b16 %v2314
    %v2635 = vunpack.c.l.b16 %v2315
    %v2636 = vunpack.c.h.b16 %v2315
    %v2637 = vunpack.c.l.b16 %v2316
    %v2638 = vunpack.c.h.b16 %v2316
    %v2639 = vunpack.c.l.b16 %v2317
    %v2640 = vunpack.c.h.b16 %v2317
    %v2641 = vunpack.c.l.b16 %v2318
    %v2642 = vunpack.c.h.b16 %v2318
    %v2643 = vunpack.c.l.b16 %v2319
    %v2644 = vunpack.c.h.b16 %v2319
    %v2645 = vunpack.c.l.b16 %v2320
    %v2646 = vunpack.c.h.b16 %v2320
    %v2647 = vunpack.c.l.b16 %v2321
    %v2648 = vunpack.c.h.b16 %v2321
    %v2649 = vunpack.c.l.b16 %v2322
    %v2650 = vunpack.c.h.b16 %v2322
    %v2651 = vunpack.c.l.b16 %v2323
    %v2652 = vunpack.c.h.b16 %v2323
    %v2653 = vunpack.c.l.b16 %v2324
    %v2654 = vunpack.c.h.b16 %v2324
    %v2655 = vunpack.c.l.b16 %v2325
    %v2656 = vunpack.c.h.b16 %v2325
    %v2657 = vunpack.c.l.b16 %v2326
    %v2658 = vunpack.c.h.b16 %v2326
    %v2659 = vunpack.c.l.b16 %v2327
    %v2660 = vunpack.c.h.b16 %v2327
    %v2661 = vunpack.c.l.b16 %v2328
    %v2662 = vunpack.c.h.b16 %v2328
    %v2663 = vunpack.c.l.b16 %v2329
    %v2664 = vunpack.c.h.b16 %v2329
    %v2665 = vunpack.c.l.b16 %v2330
    %v2666 = vunpack.c.h.b16 %v2330
    %v2667 = vunpack.c.l.b16 %v2331
    %v2668 = vunpack.c.h.b16 %v2331
    %v2669 = vunpack.c.l.b16 %v2332
    %v2670 = vunpack.c.h.b16 %v2332
    %v2671 = vunpack.c.l.b16 %v2333
    %v2672 = vunpack.c.h.b16 %v2333
    %v2673 = vunpack.c.l.b16 %v2334
    %v2674 = vunpack.c.h.b16 %v2334
    %v2675 = vunpack.c.l.b16 %v2335
    %v2676 = vunpack.c.h.b16 %v2335
    %v2677 = vunpack.c.l.b16 %v2336
    %v2678 = vunpack.c.h.b16 %v2336
    %v2679 = vunpack.c.l.b16 %v2337
    %v2680 = vunpack.c.h.b16 %v2337
    %v2681 = vunpack.c.l.b16 %v2338
    %v2682 = vunpack.c.h.b16 %v2338
    %v2683 = vunpack.c.l.b16 %v2339
    %v2684 = vunpack.c.h.b16 %v2339
    %v2685 = vunpack.c.l.b16 %v2340
    %v2686 = vunpack.c.h.b16 %v2340
    %v2687 = vunpack.c.l.b16 %v2341
    %v2688 = vunpack.c.h.b16 %v2341
    %v2689 = vunpack.c.l.b16 %v2342
    %v2690 = vunpack.c.h.b16 %v2342
    %v2691 = vunpack.c.l.b16 %v2343
    %v2692 = vunpack.c.h.b16 %v2343
    %v2693 = vunpack.c.l.b16 %v2344
    %v2694 = vunpack.c.h.b16 %v2344
    %v2695 = vunpack.c.l.b16 %v2345
    %v2696 = vunpack.c.h.b16 %v2345
    %v2697 = vunpack.c.l.b16 %v2346
    %v2698 = vunpack.c.h.b16 %v2346
    %v2699 = vunpack.c.l.b16 %v2347
    %v2700 = vunpack.c.h.b16 %v2347
    %v2701 = vunpack.c.l.b16 %v2348
    %v2702 = vunpack.c.h.b16 %v2348
    %v2703 = vunpack.c.l.b16 %v2349
    %v2704 = vunpack.c.h.b16 %v2349
    %v2705 = vunpack.c.l.b16 %v2350
    %v2706 = vunpack.c.h.b16 %v2350
    %v2707 = vunpack.c.l.b16 %v2351
    %v2708 = vunpack.c.h.b16 %v2351
    %v2709 = vunpack.c.l.b16 %v2352
    %v2710 = vunpack.c.h.b16 %v2352
    %v2711 = vunpack.c.l.b16 %v2353
    %v2712 = vunpack.c.h.b16 %v2353
    %v2713 = vunpack.c.l.b16 %v2354
    %v2714 = vunpack.c.h.b16 %v2354
    %v2715 = vunpack.c.l.b16 %v2355
    %v2716 = vunpack.c.h.b16 %v2355
    %v2717 = vunpack.c.l.b16 %v2356
    %v2718 = vunpack.c.h.b16 %v2356
    %v2719 = vunpack.c.l.b16 %v2357
    %v2720 = vunpack.c.h.b16 %v2357
    %v2721 = vunpack.c.l.b16 %v2358
    %v2722 = vunpack.c.h.b16 %v2358
    %v2723 = vunpack.c.l.b16 %v2359
    %v2724 = vunpack.c.h.b16 %v2359
    %v2725 = vunpack.c.l.b16 %v2360
    %v2726 = vunpack.c.h.b16 %v2360
    %v2727 = vunpack.c.l.b16 %v2361
    %v2728 = vunpack.c.h.b16 %v2361
    %v2729 = vunpack.c.l.b16 %v2362
    %v2730 = vunpack.c.h.b16 %v2362
    %v2731 = vunpack.c.l.b16 %v2363
    %v2732 = vunpack.c.h.b16 %v2363
    %v2733 = vunpack.c.l.b16 %v2364
    %v2734 = vunpack.c.h.b16 %v2364
    %v2735 = vunpack.c.l.b16 %v2365
    %v2736 = vunpack.c.h.b16 %v2365
    %v2737 = vunpack.c.l.b16 %v2366
    %v2738 = vunpack.c.h.b16 %v2366
    %v2739 = vunpack.c.l.b16 %v2367
    %v2740 = vunpack.c.h.b16 %v2367
    %v2741 = vunpack.c.l.b16 %v2368
    %v2742 = vunpack.c.h.b16 %v2368
    %v2743 = vunpack.c.l.b16 %v2369
    %v2744 = vunpack.c.h.b16 %v2369
    %v2745 = vunpack.c.l.b16 %v2370
    %v2746 = vunpack.c.h.b16 %v2370
    %v2747 = vunpack.c.l.b16 %v2371
    %v2748 = vunpack.c.h.b16 %v2371
    %v2749 = vunpack.c.l.b16 %v2372
    %v2750 = vunpack.c.h.b16 %v2372
    %v2751 = vunpack.c.l.b16 %v2373
    %v2752 = vunpack.c.h.b16 %v2373
    %v2753 = vunpack.c.l.b16 %v2374
    %v2754 = vunpack.c.h.b16 %v2374
    %v2755 = vunpack.c.l.b16 %v2375
    %v2756 = vunpack.c.h.b16 %v2375
    %v2757 = vunpack.c.l.b16 %v2376
    %v2758 = vunpack.c.h.b16 %v2376
    %v2759 = vunpack.c.l.b16 %v2377
    %v2760 = vunpack.c.h.b16 %v2377
    %v2761 = vunpack.c.l.b16 %v2378
    %v2762 = vunpack.c.h.b16 %v2378
    %v2763 = vunpack.c.l.b16 %v2379
    %v2764 = vunpack.c.h.b16 %v2379
    %v2765 = vunpack.c.l.b16 %v2380
    %v2766 = vunpack.c.h.b16 %v2380
    %v2767 = vunpack.c.l.b16 %v2381
    %v2768 = vunpack.c.h.b16 %v2381
    %v2769 = vunpack.c.l.b16 %v2382
    %v2770 = vunpack.c.h.b16 %v2382
    %v2771 = vunpack.c.l.b16 %v2383
    %v2772 = vunpack.c.h.b16 %v2383
    %v2773 = vunpack.c.l.b16 %v2384
    %v2774 = vunpack.c.h.b16 %v2384
    %v2775 = vunpack.c.l.b16 %v2385
    %v2776 = vunpack.c.h.b16 %v2385
    %v2777 = vunpack.c.l.b16 %v2386
    %v2778 = vunpack.c.h.b16 %v2386
    %v2779 = vunpack.c.l.b16 %v2387
    %v2780 = vunpack.c.h.b16 %v2387
    %v2781 = vunpack.c.l.b16 %v2388
    %v2782 = vunpack.c.h.b16 %v2388
    %v2783 = vunpack.c.l.b16 %v2389
    %v2784 = vunpack.c.h.b16 %v2389
    %v2785 = vunpack.c.l.b16 %v2390
    %v2786 = vunpack.c.h.b16 %v2390
    %v2787 = vunpack.c.l.b16 %v2391
    %v2788 = vunpack.c.h.b16 %v2391
    %v2789 = vunpack.c.l.b16 %v2392
    %v2790 = vunpack.c.h.b16 %v2392
    %v2791 = vunpack.c.l.b16 %v2393
    %v2792 = vunpack.c.h.b16 %v2393
    %v2793 = vunpack.c.l.b16 %v2394
    %v2794 = vunpack.c.h.b16 %v2394
    %v2795 = vunpack.c.l.b16 %v2395
    %v2796 = vunpack.c.h.b16 %v2395
    %v2797 = vunpack.c.l.b16 %v2396
    %v2798 = vunpack.c.h.b16 %v2396
    %v2799 = vunpack.c.l.b16 %v2397
    %v2800 = vunpack.c.h.b16 %v2397
    %v2801 = vunpack.c.l.b16 %v2398
    %v2802 = vunpack.c.h.b16 %v2398
    %v2803 = vunpack.c.l.b16 %v2399
    %v2804 = vunpack.c.h.b16 %v2399
    %v2805 = vunpack.c.l.b16 %v2400
    %v2806 = vunpack.c.h.b16 %v2400
    %v2807 = vpack.c.b16 %v2555, %v2551
    %v2808 = vpack.c.b16 %v2556, %v2552
    %v2809 = vpack.c.b16 %v2557, %v2553
    %v2810 = vpack.c.b16 %v2558, %v2554
    %v2811 = vpack.c.b16 %v2563, %v2559
    %v2812 = vpack.c.b16 %v2564, %v2560
    %v2813 = vpack.c.b16 %v2565, %v2561
    %v2814 = vpack.c.b16 %v2566, %v2562
    %v2815 = vpack.c.b16 %v2571, %v2567
    %v2816 = vpack.c.b16 %v2572, %v2568
    %v2817 = vpack.c.b16 %v2573, %v2569
    %v2818 = vpack.c.b16 %v2574, %v2570
    %v2819 = vpack.c.b16 %v2579, %v2575
    %v2820 = vpack.c.b16 %v2580, %v2576
    %v2821 = vpack.c.b16 %v2581, %v2577
    %v2822 = vpack.c.b16 %v2582, %v2578
    %v2823 = vpack.c.b16 %v2587, %v2583
    %v2824 = vpack.c.b16 %v2588, %v2584
    %v2825 = vpack.c.b16 %v2589, %v2585
    %v2826 = vpack.c.b16 %v2590, %v2586
    %v2827 = vpack.c.b16 %v2595, %v2591
    %v2828 = vpack.c.b16 %v2596, %v2592
    %v2829 = vpack.c.b16 %v2597, %v2593
    %v2830 = vpack.c.b16 %v2598, %v2594
    %v2831 = vpack.c.b16 %v2603, %v2599
    %v2832 = vpack.c.b16 %v2604, %v2600
    %v2833 = vpack.c.b16 %v2605, %v2601
    %v2834 = vpack.c.b16 %v2606, %v2602
    %v2835 = vpack.c.b16 %v2611, %v2607
    %v2836 = vpack.c.b16 %v2612, %v2608
    %v2837 = vpack.c.b16 %v2613, %v2609
    %v2838 = vpack.c.b16 %v2614, %v2610
    %v2839 = vpack.c.b16 %v2619, %v2615
    %v2840 = vpack.c.b16 %v2620, %v2616
    %v2841 = vpack.c.b16 %v2621, %v2617
    %v2842 = vpack.c.b16 %v2622, %v2618
    %v2843 = vpack.c.b16 %v2627, %v2623
    %v2844 = vpack.c.b16 %v2628, %v2624
    %v2845 = vpack.c.b16 %v2629, %v2625
    %v2846 = vpack.c.b16 %v2630, %v2626
    %v2847 = vpack.c.b16 %v2635, %v2631
    %v2848 = vpack.c.b16 %v2636, %v2632
    %v2849 = vpack.c.b16 %v2637, %v2633
    %v2850 = vpack.c.b16 %v2638, %v2634
    %v2851 = vpack.c.b16 %v2643, %v2639
    %v2852 = vpack.c.b16 %v2644, %v2640
    %v2853 = vpack.c.b16 %v2645, %v2641
    %v2854 = vpack.c.b16 %v2646, %v2642
    %v2855 = vpack.c.b16 %v2651, %v2647
    %v2856 = vpack.c.b16 %v2652, %v2648
    %v2857 = vpack.c.b16 %v2653, %v2649
    %v2858 = vpack.c.b16 %v2654, %v2650
    %v2859 = vpack.c.b16 %v2659, %v2655
    %v2860 = vpack.c.b16 %v2660, %v2656
    %v2861 = vpack.c.b16 %v2661, %v2657
    %v2862 = vpack.c.b16 %v2662, %v2658
    %v2863 = vpack.c.b16 %v2667, %v2663
    %v2864 = vpack.c.b16 %v2668, %v2664
    %v2865 = vpack.c.b16 %v2669, %v2665
    %v2866 = vpack.c.b16 %v2670, %v2666
    %v2867 = vpack.c.b16 %v2675, %v2671
    %v2868 = vpack.c.b16 %v2676, %v2672
    %v2869 = vpack.c.b16 %v2677, %v2673
    %v2870 = vpack.c.b16 %v2678, %v2674
    %v2871 = vpack.c.b16 %v2683, %v2679
    %v2872 = vpack.c.b16 %v2684, %v2680
    %v2873 = vpack.c.b16 %v2685, %v2681
    %v2874 = vpack.c.b16 %v2686, %v2682
    %v2875 = vpack.c.b16 %v2691, %v2687
    %v2876 = vpack.c.b16 %v2692, %v2688
    %v2877 = vpack.c.b16 %v2693, %v2689
    %v2878 = vpack.c.b16 %v2694, %v2690
    %v2879 = vpack.c.b16 %v2699, %v2695
    %v2880 = vpack.c.b16 %v2700, %v2696
    %v2881 = vpack.c.b16 %v2701, %v2697
    %v2882 = vpack.c.b16 %v2702, %v2698
    %v2883 = vpack.c.b16 %v2707, %v2703
    %v2884 = vpack.c.b16 %v2708, %v2704
    %v2885 = vpack.c.b16 %v2709, %v2705
    %v2886 = vpack.c.b16 %v2710, %v2706
    %v2887 = vpack.c.b16 %v2715, %v2711
    %v2888 = vpack.c.b16 %v2716, %v2712
    %v2889 = vpack.c.b16 %v2717, %v2713
    %v2890 = vpack.c.b16 %v2718, %v2714
    %v2891 = vpack.c.b16 %v2723, %v2719
    %v2892 = vpack.c.b16 %v2724, %v2720
    %v2893 = vpack.c.b16 %v2725, %v2721
    %v2894 = vpack.c.b16 %v2726, %v2722
    %v2895 = vpack.c.b16 %v2731, %v2727
    %v2896 = vpack.c.b16 %v2732, %v2728
    %v2897 = vpack.c.b16 %v2733, %v2729
    %v2898 = vpack.c.b16 %v2734, %v2730
    %v2899 = vpack.c.b16 %v2739, %v2735
    %v2900 = vpack.c.b16 %v2740, %v2736
    %v2901 = vpack.c.b16 %v2741, %v2737
    %v2902 = vpack.c.b16 %v2742, %v2738
    %v2903 = vpack.c.b16 %v2747, %v2743
    %v2904 = vpack.c.b16 %v2748, %v2744
    %v2905 = vpack.c.b16 %v2749, %v2745
    %v2906 = vpack.c.b16 %v2750, %v2746
    %v2907 = vpack.c.b16 %v2755, %v2751
    %v2908 = vpack.c.b16 %v2756, %v2752
    %v2909 = vpack.c.b16 %v2757, %v2753
    %v2910 = vpack.c.b16 %v2758, %v2754
    %v2911 = vpack.c.b16 %v2763, %v2759
    %v2912 = vpack.c.b16 %v2764, %v2760
    %v2913 = vpack.c.b16 %v2765, %v2761
    %v2914 = vpack.c.b16 %v2766, %v2762
    %v2915 = vpack.c.b16 %v2771, %v2767
    %v2916 = vpack.c.b16 %v2772, %v2768
    %v2917 = vpack.c.b16 %v2773, %v2769
    %v2918 = vpack.c.b16 %v2774, %v2770
    %v2919 = vpack.c.b16 %v2779, %v2775
    %v2920 = vpack.c.b16 %v2780, %v2776
    %v2921 = vpack.c.b16 %v2781, %v2777
    %v2922 = vpack.c.b16 %v2782, %v2778
    %v2923 = vpack.c.b16 %v2787, %v2783
    %v2924 = vpack.c.b16 %v2788, %v2784
    %v2925 = vpack.c.b16 %v2789, %v2785
    %v2926 = vpack.c.b16 %v2790, %v2786
    %v2927 = vpack.c.b16 %v2795, %v2791
    %v2928 = vpack.c.b16 %v2796, %v2792
    %v2929 = vpack.c.b16 %v2797, %v2793
    %v2930 = vpack.c.b16 %v2798, %v2794
    %v2931 = vpack.c.b16 %v2803, %v2799
    %v2932 = vpack.c.b16 %v2804, %v2800
    %v2933 = vpack.c.b16 %v2805, %v2801
    %v2934 = vpack.c.b16 %v2806, %v2802
    %3063 = vmatprep.subr.bf16.mxu0 %v2808
    %3064 = vmatpush1.bf16.msra.mxu0 %v2807
    %3065 = vmatprep.subr.bf16.mxu0 %v2812
    %3066 = vmatpush1.bf16.msra.mxu0 %v2811
    %3067 = vmatprep.subr.bf16.mxu0 %v2816
    %3068 = vmatpush1.bf16.msra.mxu0 %v2815
    %3069 = vmatprep.subr.bf16.mxu0 %v2820
    %3070 = vmatpush1.bf16.msra.mxu0 %v2819
    %3071 = vmatprep.subr.bf16.mxu0 %v2824
    %3072 = vmatpush1.bf16.msra.mxu0 %v2823
    %3073 = vmatprep.subr.bf16.mxu0 %v2828
    %3074 = vmatpush1.bf16.msra.mxu0 %v2827
    %3075 = vmatprep.subr.bf16.mxu0 %v2832
    %3076 = vmatpush1.bf16.msra.mxu0 %v2831
    %3077 = vmatprep.subr.bf16.mxu0 %v2836
    %3078 = vmatpush1.bf16.msra.mxu0 %v2835
    %3079 = vmatprep.subr.bf16.mxu0 %v2840
    %3080 = vmatpush1.bf16.msra.mxu0 %v2839
    %3081 = vmatprep.subr.bf16.mxu0 %v2844
    %3082 = vmatpush1.bf16.msra.mxu0 %v2843
    %3083 = vmatprep.subr.bf16.mxu0 %v2848
    %3084 = vmatpush1.bf16.msra.mxu0 %v2847
    %3085 = vmatprep.subr.bf16.mxu0 %v2852
    %3086 = vmatpush1.bf16.msra.mxu0 %v2851
    %3087 = vmatprep.subr.bf16.mxu0 %v2856
    %3088 = vmatpush1.bf16.msra.mxu0 %v2855
    %3089 = vmatprep.subr.bf16.mxu0 %v2860
    %3090 = vmatpush1.bf16.msra.mxu0 %v2859
    %3091 = vmatprep.subr.bf16.mxu0 %v2864
    %3092 = vmatpush1.bf16.msra.mxu0 %v2863
    %3093 = vmatprep.subr.bf16.mxu0 %v2868
    %3094 = vmatpush1.bf16.msra.mxu0 %v2867
    %3095 = vmatprep.mubr.bf16.mxu0 %v2270
    %3096 = vmatmul.mubr.bf16.gmra.mrb[0].mxu0 %v2269
    %v3097 = vpop.f32.mrb[0].mxu0
    %v3098 = vadd.f32 %v2406, %v3097
    %v3099 = vpop.f32.mrb[0].mxu0
    %v3100 = vadd.f32 %v2410, %v3099
    %v3101 = vpop.f32.mrb[0].mxu0
    %v3102 = vadd.f32 %v2406, %v3101
    %v3103 = vpop.f32.mrb[0].mxu0
    %v3104 = vadd.f32 %v2410, %v3103
    %3105 = vdwg.mxu0
    %3106 = vmatprep.subr.bf16.mxu0 %v2872
    %3107 = vmatpush1.bf16.msra.mxu0 %v2871
    %3108 = vmatprep.subr.bf16.mxu0 %v2876
    %3109 = vmatpush1.bf16.msra.mxu0 %v2875
    %3110 = vmatprep.subr.bf16.mxu0 %v2880
    %3111 = vmatpush1.bf16.msra.mxu0 %v2879
    %3112 = vmatprep.subr.bf16.mxu0 %v2884
    %3113 = vmatpush1.bf16.msra.mxu0 %v2883
    %3114 = vmatprep.subr.bf16.mxu0 %v2888
    %3115 = vmatpush1.bf16.msra.mxu0 %v2887
    %3116 = vmatprep.subr.bf16.mxu0 %v2892
    %3117 = vmatpush1.bf16.msra.mxu0 %v2891
    %3118 = vmatprep.subr.bf16.mxu0 %v2896
    %3119 = vmatpush1.bf16.msra.mxu0 %v2895
    %3120 = vmatprep.subr.bf16.mxu0 %v2900
    %3121 = vmatpush1.bf16.msra.mxu0 %v2899
    %3122 = vmatprep.subr.bf16.mxu0 %v2904
    %3123 = vmatpush1.bf16.msra.mxu0 %v2903
    %3124 = vmatprep.subr.bf16.mxu0 %v2908
    %3125 = vmatpush1.bf16.msra.mxu0 %v2907
    %3126 = vmatprep.subr.bf16.mxu0 %v2912
    %3127 = vmatpush1.bf16.msra.mxu0 %v2911
    %3128 = vmatprep.subr.bf16.mxu0 %v2916
    %3129 = vmatpush1.bf16.msra.mxu0 %v2915
    %3130 = vmatprep.subr.bf16.mxu0 %v2920
    %3131 = vmatpush1.bf16.msra.mxu0 %v2919
    %3132 = vmatprep.subr.bf16.mxu0 %v2924
    %3133 = vmatpush1.bf16.msra.mxu0 %v2923
    %3134 = vmatprep.subr.bf16.mxu0 %v2928
    %3135 = vmatpush1.bf16.msra.mxu0 %v2927
    %3136 = vmatprep.subr.bf16.mxu0 %v2932
    %3137 = vmatpush1.bf16.msra.mxu0 %v2931
    %3138 = vmatprep.mubr.bf16.mxu0 %v2272
    %3139 = vmatmul.mubr.bf16.gmra.mrb[0].mxu0 %v2271
    %v3140 = vpop.f32.mrb[0].mxu0
    %v3141 = vadd.f32 %v3098, %v3140
    %v3142 = vpop.f32.mrb[0].mxu0
    %v3143 = vadd.f32 %v3100, %v3142
    %v3144 = vpop.f32.mrb[0].mxu0
    %v3145 = vadd.f32 %v3102, %v3144
    %v3146 = vpop.f32.mrb[0].mxu0
    %v3147 = vadd.f32 %v3104, %v3146
    %3148 = vdwg.mxu0
    %3149 = vmatprep.subr.bf16.mxu0 %v2810
    %3150 = vmatpush1.bf16.msra.mxu0 %v2809
    %3151 = vmatprep.subr.bf16.mxu0 %v2814
    %3152 = vmatpush1.bf16.msra.mxu0 %v2813
    %3153 = vmatprep.subr.bf16.mxu0 %v2818
    %3154 = vmatpush1.bf16.msra.mxu0 %v2817
    %3155 = vmatprep.subr.bf16.mxu0 %v2822
    %3156 = vmatpush1.bf16.msra.mxu0 %v2821
    %3157 = vmatprep.subr.bf16.mxu0 %v2826
    %3158 = vmatpush1.bf16.msra.mxu0 %v2825
    %3159 = vmatprep.subr.bf16.mxu0 %v2830
    %3160 = vmatpush1.bf16.msra.mxu0 %v2829
    %3161 = vmatprep.subr.bf16.mxu0 %v2834
    %3162 = vmatpush1.bf16.msra.mxu0 %v2833
    %3163 = vmatprep.subr.bf16.mxu0 %v2838
    %3164 = vmatpush1.bf16.msra.mxu0 %v2837
    %3165 = vmatprep.subr.bf16.mxu0 %v2842
    %3166 = vmatpush1.bf16.msra.mxu0 %v2841
    %3167 = vmatprep.subr.bf16.mxu0 %v2846
    %3168 = vmatpush1.bf16.msra.mxu0 %v2845
    %3169 = vmatprep.subr.bf16.mxu0 %v2850
    %3170 = vmatpush1.bf16.msra.mxu0 %v2849
    %3171 = vmatprep.subr.bf16.mxu0 %v2854
    %3172 = vmatpush1.bf16.msra.mxu0 %v2853
    %3173 = vmatprep.subr.bf16.mxu0 %v2858
    %3174 = vmatpush1.bf16.msra.mxu0 %v2857
    %3175 = vmatprep.subr.bf16.mxu0 %v2862
    %3176 = vmatpush1.bf16.msra.mxu0 %v2861
    %3177 = vmatprep.subr.bf16.mxu0 %v2866
    %3178 = vmatpush1.bf16.msra.mxu0 %v2865
    %3179 = vmatprep.subr.bf16.mxu0 %v2870
    %3180 = vmatpush1.bf16.msra.mxu0 %v2869
    %3181 = vmatprep.mubr.bf16.mxu0 %v2270
    %3182 = vmatmul.mubr.bf16.gmra.mrb[0].mxu0 %v2269
    %v3183 = vpop.f32.mrb[0].mxu0
    %v3184 = vadd.f32 %v2414, %v3183
    %v3185 = vpop.f32.mrb[0].mxu0
    %v3186 = vadd.f32 %v2418, %v3185
    %v3187 = vpop.f32.mrb[0].mxu0
    %v3188 = vadd.f32 %v2414, %v3187
    %v3189 = vpop.f32.mrb[0].mxu0
    %v3190 = vadd.f32 %v2418, %v3189
    %3191 = vdwg.mxu0
    %3192 = vmatprep.subr.bf16.mxu0 %v2874
    %3193 = vmatpush1.bf16.msra.mxu0 %v2873
    %3194 = vmatprep.subr.bf16.mxu0 %v2878
    %3195 = vmatpush1.bf16.msra.mxu0 %v2877
    %3196 = vmatprep.subr.bf16.mxu0 %v2882
    %3197 = vmatpush1.bf16.msra.mxu0 %v2881
    %3198 = vmatprep.subr.bf16.mxu0 %v2886
    %3199 = vmatpush1.bf16.msra.mxu0 %v2885
    %3200 = vmatprep.subr.bf16.mxu0 %v2890
    %3201 = vmatpush1.bf16.msra.mxu0 %v2889
    %3202 = vmatprep.subr.bf16.mxu0 %v2894
    %3203 = vmatpush1.bf16.msra.mxu0 %v2893
    %3204 = vmatprep.subr.bf16.mxu0 %v2898
    %3205 = vmatpush1.bf16.msra.mxu0 %v2897
    %3206 = vmatprep.subr.bf16.mxu0 %v2902
    %3207 = vmatpush1.bf16.msra.mxu0 %v2901
    %3208 = vmatprep.subr.bf16.mxu0 %v2906
    %3209 = vmatpush1.bf16.msra.mxu0 %v2905
    %3210 = vmatprep.subr.bf16.mxu0 %v2910
    %3211 = vmatpush1.bf16.msra.mxu0 %v2909
    %3212 = vmatprep.subr.bf16.mxu0 %v2914
    %3213 = vmatpush1.bf16.msra.mxu0 %v2913
    %3214 = vmatprep.subr.bf16.mxu0 %v2918
    %3215 = vmatpush1.bf16.msra.mxu0 %v2917
    %3216 = vmatprep.subr.bf16.mxu0 %v2922
    %3217 = vmatpush1.bf16.msra.mxu0 %v2921
    %3218 = vmatprep.subr.bf16.mxu0 %v2926
    %3219 = vmatpush1.bf16.msra.mxu0 %v2925
    %3220 = vmatprep.subr.bf16.mxu0 %v2930
    %3221 = vmatpush1.bf16.msra.mxu0 %v2929
    %3222 = vmatprep.subr.bf16.mxu0 %v2934
    %3223 = vmatpush1.bf16.msra.mxu0 %v2933
    %3224 = vmatprep.mubr.bf16.mxu0 %v2272
    %3225 = vmatmul.mubr.bf16.gmra.mrb[0].mxu0 %v2271
    %v3226 = vpop.f32.mrb[0].mxu0
    %v3227 = vadd.f32 %v3184, %v3226
    %v3228 = vpop.f32.mrb[0].mxu0
    %v3229 = vadd.f32 %v3186, %v3228
    %v3230 = vpop.f32.mrb[0].mxu0
    %v3231 = vadd.f32 %v3188, %v3230
    %v3232 = vpop.f32.mrb[0].mxu0
    %v3233 = vadd.f32 %v3190, %v3232
    %3234 = vdwg.mxu0
    %v3235 = vmax.f32 %v3141, 0.0
    %v3236 = vmax.f32 %v3143, 0.0
    %v3237 = vmax.f32 %v3227, 0.0
    %v3238 = vmax.f32 %v3229, 0.0
    %v3239 = vmax.f32 %v3145, 0.0
    %v3240 = vmax.f32 %v3147, 0.0
    %v3241 = vmax.f32 %v3231, 0.0
    %v3242 = vmax.f32 %v3233, 0.0
    %v3243 = vpack.c.bf16 %v3239, %v3235
    %v3244 = vpack.c.bf16 %v3240, %v3236
    %v3245 = vpack.c.bf16 %v3241, %v3237
    %v3246 = vpack.c.bf16 %v3242, %v3238
    %3247 = vst [vmem:[#allocation2] sm:$0xff] %v3243
    %3248 = vst [vmem:[#allocation2 + $0x8] sm:$0xff] %v3244
    %3249 = vst [vmem:[#allocation2 + $0x10] sm:$0xff] %v3245
    %3250 = vst [vmem:[#allocation2 + $0x18] sm:$0xff] %v3246
    %v3251 = vld [vmem:[#allocation2] sm:$0xff]
    %v3252 = vld [vmem:[#allocation2 + $0x8] sm:$0xff]
    %v3253 = vld [vmem:[#allocation2 + $0x10] sm:$0xff]
    %v3254 = vld [vmem:[#allocation2 + $0x18] sm:$0xff]
    %v3255 = vld [vmem:[#allocation12] sm:$0xf]
    %v3256 = vld [vmem:[#allocation12 + $0x4] sm:$0xf]
    %v3257 = vld [vmem:[#allocation12 + $0x8] sm:$0xf]
    %v3258 = vld [vmem:[#allocation12 + $0xc] sm:$0xf]
    %v3259 = vld [vmem:[#allocation12 + $0x10] sm:$0xf]
    %v3260 = vld [vmem:[#allocation12 + $0x14] sm:$0xf]
    %v3261 = vld [vmem:[#allocation12 + $0x18] sm:$0xf]
    %v3262 = vld [vmem:[#allocation12 + $0x1c] sm:$0xf]
    %v3263 = vld [vmem:[#allocation12 + $0x20] sm:$0xf]
    %v3264 = vld [vmem:[#allocation12 + $0x24] sm:$0xf]
    %v3265 = vld [vmem:[#allocation12 + $0x28] sm:$0xf]
    %v3266 = vld [vmem:[#allocation12 + $0x2c] sm:$0xf]
    %v3267 = vld [vmem:[#allocation12 + $0x30] sm:$0xf]
    %v3268 = vld [vmem:[#allocation12 + $0x34] sm:$0xf]
    %v3269 = vld [vmem:[#allocation12 + $0x38] sm:$0xf]
    %v3270 = vld [vmem:[#allocation12 + $0x3c] sm:$0xf]
    %v3271 = vld [vmem:[#allocation12 + $0x40] sm:$0xf]
    %v3272 = vld [vmem:[#allocation12 + $0x44] sm:$0xf]
    %v3273 = vld [vmem:[#allocation12 + $0x48] sm:$0xf]
    %v3274 = vld [vmem:[#allocation12 + $0x4c] sm:$0xf]
    %v3275 = vld [vmem:[#allocation12 + $0x50] sm:$0xf]
    %v3276 = vld [vmem:[#allocation12 + $0x54] sm:$0xf]
    %v3277 = vld [vmem:[#allocation12 + $0x58] sm:$0xf]
    %v3278 = vld [vmem:[#allocation12 + $0x5c] sm:$0xf]
    %v3279 = vld [vmem:[#allocation12 + $0x60] sm:$0xf]
    %v3280 = vld [vmem:[#allocation12 + $0x64] sm:$0xf]
    %v3281 = vld [vmem:[#allocation12 + $0x68] sm:$0xf]
    %v3282 = vld [vmem:[#allocation12 + $0x6c] sm:$0xf]
    %v3283 = vld [vmem:[#allocation12 + $0x70] sm:$0xf]
    %v3284 = vld [vmem:[#allocation12 + $0x74] sm:$0xf]
    %v3285 = vld [vmem:[#allocation12 + $0x78] sm:$0xf]
    %v3286 = vld [vmem:[#allocation12 + $0x7c] sm:$0xf]
    %v3287 = vld [vmem:[#allocation12 + $0x80] sm:$0xf]
    %v3288 = vld [vmem:[#allocation12 + $0x84] sm:$0xf]
    %v3289 = vld [vmem:[#allocation12 + $0x88] sm:$0xf]
    %v3290 = vld [vmem:[#allocation12 + $0x8c] sm:$0xf]
    %v3291 = vld [vmem:[#allocation12 + $0x90] sm:$0xf]
    %v3292 = vld [vmem:[#allocation12 + $0x94] sm:$0xf]
    %v3293 = vld [vmem:[#allocation12 + $0x98] sm:$0xf]
    %v3294 = vld [vmem:[#allocation12 + $0x9c] sm:$0xf]
    %v3295 = vld [vmem:[#allocation12 + $0xa0] sm:$0xf]
    %v3296 = vld [vmem:[#allocation12 + $0xa4] sm:$0xf]
    %v3297 = vld [vmem:[#allocation12 + $0xa8] sm:$0xf]
    %v3298 = vld [vmem:[#allocation12 + $0xac] sm:$0xf]
    %v3299 = vld [vmem:[#allocation12 + $0xb0] sm:$0xf]
    %v3300 = vld [vmem:[#allocation12 + $0xb4] sm:$0xf]
    %v3301 = vld [vmem:[#allocation12 + $0xb8] sm:$0xf]
    %v3302 = vld [vmem:[#allocation12 + $0xbc] sm:$0xf]
    %v3303 = vld [vmem:[#allocation12 + $0xc0] sm:$0xf]
    %v3304 = vld [vmem:[#allocation12 + $0xc4] sm:$0xf]
    %v3305 = vld [vmem:[#allocation12 + $0xc8] sm:$0xf]
    %v3306 = vld [vmem:[#allocation12 + $0xcc] sm:$0xf]
    %v3307 = vld [vmem:[#allocation12 + $0xd0] sm:$0xf]
    %v3308 = vld [vmem:[#allocation12 + $0xd4] sm:$0xf]
    %v3309 = vld [vmem:[#allocation12 + $0xd8] sm:$0xf]
    %v3310 = vld [vmem:[#allocation12 + $0xdc] sm:$0xf]
    %v3311 = vld [vmem:[#allocation12 + $0xe0] sm:$0xf]
    %v3312 = vld [vmem:[#allocation12 + $0xe4] sm:$0xf]
    %v3313 = vld [vmem:[#allocation12 + $0xe8] sm:$0xf]
    %v3314 = vld [vmem:[#allocation12 + $0xec] sm:$0xf]
    %v3315 = vld [vmem:[#allocation12 + $0xf0] sm:$0xf]
    %v3316 = vld [vmem:[#allocation12 + $0xf4] sm:$0xf]
    %v3317 = vld [vmem:[#allocation12 + $0xf8] sm:$0xf]
    %v3318 = vld [vmem:[#allocation12 + $0xfc] sm:$0xf]
    %v3319 = vld [vmem:[%s10] sm:$0x1]
    %v3321 = vlaneseq
    %v3322 = vshrl.u32 %v3321, 7
    %v3323 = vsub.s32 0, %v3322
    %v3324 = vrot.slane %v3319, %v3323
    %v3390 = vunpack.c.l.b16 %v3255
    %v3391 = vunpack.c.l.b16 %v3256
    %v3392 = vunpack.c.l.b16 %v3257
    %v3393 = vunpack.c.l.b16 %v3258
    %v3394 = vunpack.c.l.b16 %v3259
    %v3395 = vunpack.c.l.b16 %v3260
    %v3396 = vunpack.c.l.b16 %v3261
    %v3397 = vunpack.c.l.b16 %v3262
    %v3398 = vunpack.c.l.b16 %v3263
    %v3399 = vunpack.c.l.b16 %v3264
    %v3400 = vunpack.c.l.b16 %v3265
    %v3401 = vunpack.c.l.b16 %v3266
    %v3402 = vunpack.c.l.b16 %v3267
    %v3403 = vunpack.c.l.b16 %v3268
    %v3404 = vunpack.c.l.b16 %v3269
    %v3405 = vunpack.c.l.b16 %v3270
    %v3406 = vunpack.c.l.b16 %v3271
    %v3407 = vunpack.c.l.b16 %v3272
    %v3408 = vunpack.c.l.b16 %v3273
    %v3409 = vunpack.c.l.b16 %v3274
    %v3410 = vunpack.c.l.b16 %v3275
    %v3411 = vunpack.c.l.b16 %v3276
    %v3412 = vunpack.c.l.b16 %v3277
    %v3413 = vunpack.c.l.b16 %v3278
    %v3414 = vunpack.c.l.b16 %v3279
    %v3415 = vunpack.c.l.b16 %v3280
    %v3416 = vunpack.c.l.b16 %v3281
    %v3417 = vunpack.c.l.b16 %v3282
    %v3418 = vunpack.c.l.b16 %v3283
    %v3419 = vunpack.c.l.b16 %v3284
    %v3420 = vunpack.c.l.b16 %v3285
    %v3421 = vunpack.c.l.b16 %v3286
    %v3422 = vunpack.c.l.b16 %v3287
    %v3423 = vunpack.c.l.b16 %v3288
    %v3424 = vunpack.c.l.b16 %v3289
    %v3425 = vunpack.c.l.b16 %v3290
    %v3426 = vunpack.c.l.b16 %v3291
    %v3427 = vunpack.c.l.b16 %v3292
    %v3428 = vunpack.c.l.b16 %v3293
    %v3429 = vunpack.c.l.b16 %v3294
    %v3430 = vunpack.c.l.b16 %v3295
    %v3431 = vunpack.c.l.b16 %v3296
    %v3432 = vunpack.c.l.b16 %v3297
    %v3433 = vunpack.c.l.b16 %v3298
    %v3434 = vunpack.c.l.b16 %v3299
    %v3435 = vunpack.c.l.b16 %v3300
    %v3436 = vunpack.c.l.b16 %v3301
    %v3437 = vunpack.c.l.b16 %v3302
    %v3438 = vunpack.c.l.b16 %v3303
    %v3439 = vunpack.c.l.b16 %v3304
    %v3440 = vunpack.c.l.b16 %v3305
    %v3441 = vunpack.c.l.b16 %v3306
    %v3442 = vunpack.c.l.b16 %v3307
    %v3443 = vunpack.c.l.b16 %v3308
    %v3444 = vunpack.c.l.b16 %v3309
    %v3445 = vunpack.c.l.b16 %v3310
    %v3446 = vunpack.c.l.b16 %v3311
    %v3447 = vunpack.c.l.b16 %v3312
    %v3448 = vunpack.c.l.b16 %v3313
    %v3449 = vunpack.c.l.b16 %v3314
    %v3450 = vunpack.c.l.b16 %v3315
    %v3451 = vunpack.c.l.b16 %v3316
    %v3452 = vunpack.c.l.b16 %v3317
    %v3453 = vunpack.c.l.b16 %v3318
    %v3454 = vpack.c.b16 %v3391, %v3390
    %v3455 = vpack.c.b16 %v3393, %v3392
    %v3456 = vpack.c.b16 %v3395, %v3394
    %v3457 = vpack.c.b16 %v3397, %v3396
    %v3458 = vpack.c.b16 %v3399, %v3398
    %v3459 = vpack.c.b16 %v3401, %v3400
    %v3460 = vpack.c.b16 %v3403, %v3402
    %v3461 = vpack.c.b16 %v3405, %v3404
    %v3462 = vpack.c.b16 %v3407, %v3406
    %v3463 = vpack.c.b16 %v3409, %v3408
    %v3464 = vpack.c.b16 %v3411, %v3410
    %v3465 = vpack.c.b16 %v3413, %v3412
    %v3466 = vpack.c.b16 %v3415, %v3414
    %v3467 = vpack.c.b16 %v3417, %v3416
    %v3468 = vpack.c.b16 %v3419, %v3418
    %v3469 = vpack.c.b16 %v3421, %v3420
    %v3470 = vpack.c.b16 %v3423, %v3422
    %v3471 = vpack.c.b16 %v3425, %v3424
    %v3472 = vpack.c.b16 %v3427, %v3426
    %v3473 = vpack.c.b16 %v3429, %v3428
    %v3474 = vpack.c.b16 %v3431, %v3430
    %v3475 = vpack.c.b16 %v3433, %v3432
    %v3476 = vpack.c.b16 %v3435, %v3434
    %v3477 = vpack.c.b16 %v3437, %v3436
    %v3478 = vpack.c.b16 %v3439, %v3438
    %v3479 = vpack.c.b16 %v3441, %v3440
    %v3480 = vpack.c.b16 %v3443, %v3442
    %v3481 = vpack.c.b16 %v3445, %v3444
    %v3482 = vpack.c.b16 %v3447, %v3446
    %v3483 = vpack.c.b16 %v3449, %v3448
    %v3484 = vpack.c.b16 %v3451, %v3450
    %v3485 = vpack.c.b16 %v3453, %v3452
    %3518 = vmatprep.subr.bf16.mxu0 0
    %3519 = vmatpush1.bf16.msra.mxu0 %v3454
    %3520 = vmatprep.subr.bf16.mxu0 0
    %3521 = vmatpush1.bf16.msra.mxu0 %v3455
    %3522 = vmatprep.subr.bf16.mxu0 0
    %3523 = vmatpush1.bf16.msra.mxu0 %v3456
    %3524 = vmatprep.subr.bf16.mxu0 0
    %3525 = vmatpush1.bf16.msra.mxu0 %v3457
    %3526 = vmatprep.subr.bf16.mxu0 0
    %3527 = vmatpush1.bf16.msra.mxu0 %v3458
    %3528 = vmatprep.subr.bf16.mxu0 0
    %3529 = vmatpush1.bf16.msra.mxu0 %v3459
    %3530 = vmatprep.subr.bf16.mxu0 0
    %3531 = vmatpush1.bf16.msra.mxu0 %v3460
    %3532 = vmatprep.subr.bf16.mxu0 0
    %3533 = vmatpush1.bf16.msra.mxu0 %v3461
    %3534 = vmatprep.subr.bf16.mxu0 0
    %3535 = vmatpush1.bf16.msra.mxu0 %v3462
    %3536 = vmatprep.subr.bf16.mxu0 0
    %3537 = vmatpush1.bf16.msra.mxu0 %v3463
    %3538 = vmatprep.subr.bf16.mxu0 0
    %3539 = vmatpush1.bf16.msra.mxu0 %v3464
    %3540 = vmatprep.subr.bf16.mxu0 0
    %3541 = vmatpush1.bf16.msra.mxu0 %v3465
    %3542 = vmatprep.subr.bf16.mxu0 0
    %3543 = vmatpush1.bf16.msra.mxu0 %v3466
    %3544 = vmatprep.subr.bf16.mxu0 0
    %3545 = vmatpush1.bf16.msra.mxu0 %v3467
    %3546 = vmatprep.subr.bf16.mxu0 0
    %3547 = vmatpush1.bf16.msra.mxu0 %v3468
    %3548 = vmatprep.subr.bf16.mxu0 0
    %3549 = vmatpush1.bf16.msra.mxu0 %v3469
    %3550 = vmatprep.mubr.bf16.mxu0 %v3252
    %3551 = vmatmul.mubr.bf16.gmra.mrb[0].mxu0 %v3251
    %v3552 = vpop.f32.mrb[0].mxu0
    %v3553 = vadd.f32 %v3324, %v3552
    %v3554 = vpop.f32.mrb[0].mxu0
    %v3555 = vpop.f32.mrb[0].mxu0
    %v3556 = vadd.f32 %v3324, %v3555
    %v3557 = vpop.f32.mrb[0].mxu0
    %3558 = vdwg.mxu0
    %3559 = vmatprep.subr.bf16.mxu0 0
    %3560 = vmatpush1.bf16.msra.mxu0 %v3470
    %3561 = vmatprep.subr.bf16.mxu0 0
    %3562 = vmatpush1.bf16.msra.mxu0 %v3471
    %3563 = vmatprep.subr.bf16.mxu0 0
    %3564 = vmatpush1.bf16.msra.mxu0 %v3472
    %3565 = vmatprep.subr.bf16.mxu0 0
    %3566 = vmatpush1.bf16.msra.mxu0 %v3473
    %3567 = vmatprep.subr.bf16.mxu0 0
    %3568 = vmatpush1.bf16.msra.mxu0 %v3474
    %3569 = vmatprep.subr.bf16.mxu0 0
    %3570 = vmatpush1.bf16.msra.mxu0 %v3475
    %3571 = vmatprep.subr.bf16.mxu0 0
    %3572 = vmatpush1.bf16.msra.mxu0 %v3476
    %3573 = vmatprep.subr.bf16.mxu0 0
    %3574 = vmatpush1.bf16.msra.mxu0 %v3477
    %3575 = vmatprep.subr.bf16.mxu0 0
    %3576 = vmatpush1.bf16.msra.mxu0 %v3478
    %3577 = vmatprep.subr.bf16.mxu0 0
    %3578 = vmatpush1.bf16.msra.mxu0 %v3479
    %3579 = vmatprep.subr.bf16.mxu0 0
    %3580 = vmatpush1.bf16.msra.mxu0 %v3480
    %3581 = vmatprep.subr.bf16.mxu0 0
    %3582 = vmatpush1.bf16.msra.mxu0 %v3481
    %3583 = vmatprep.subr.bf16.mxu0 0
    %3584 = vmatpush1.bf16.msra.mxu0 %v3482
    %3585 = vmatprep.subr.bf16.mxu0 0
    %3586 = vmatpush1.bf16.msra.mxu0 %v3483
    %3587 = vmatprep.subr.bf16.mxu0 0
    %3588 = vmatpush1.bf16.msra.mxu0 %v3484
    %3589 = vmatprep.subr.bf16.mxu0 0
    %3590 = vmatpush1.bf16.msra.mxu0 %v3485
    %3591 = vmatprep.mubr.bf16.mxu0 %v3254
    %3592 = vmatmul.mubr.bf16.gmra.mrb[0].mxu0 %v3253
    %v3593 = vpop.f32.mrb[0].mxu0
    %v3594 = vadd.f32 %v3553, %v3593
    %v3595 = vpop.f32.mrb[0].mxu0
    %v3596 = vpop.f32.mrb[0].mxu0
    %v3597 = vadd.f32 %v3556, %v3596
    %v3598 = vpop.f32.mrb[0].mxu0
    %3599 = vdwg.mxu0
    %v3600 = vxor.u32 %v3594, 2147483648
    %v3601 = vxor.u32 %v3597, 2147483648
    %v3602 = vmul.f32 %v3600, 1.442695
    %v3603 = vpow.pop %v3602
    %v3604 = vmul.f32 %v3601, 1.442695
    %v3605 = vpow.pop %v3604
    %v3606 = vadd.f32 %v3603, 1.0
    %v3607 = vadd.f32 %v3605, 1.0
    %v3608 = vrcp.pop %v3606
    %v3609 = vmul.f32 1.0, %v3608
    %v3610 = vrcp.pop %v3607
    %v3611 = vmul.f32 1.0, %v3610
    %v3612 = vpack.c.bf16 %v3611, %v3609
    %v3614 = vunpack.c.l.b16 %v3612
    %v3615 = vunpack.c.h.b16 %v3612
    %v3616 = vpack.c.b16 %v3614, %v3614
    %v3617 = vpack.c.b16 %v3615, %v3615
    %3620 = vst [vmem:[#allocation14] sm:$0xf] %v3616
    %3621 = vst [vmem:[#allocation14 + $0x4] sm:$0xf] %v3617
    // Predicated region
    $region70: #{tpu_custom_call.1} parent=1 // pred_check
      _
    $region71: #{tpu_custom_call.1} parent=1 // pred_check_branch
      %3623 = sbr.rel (0) target = $region73
    $region72: #{tpu_custom_call.1} parent=1 // pred_region
      %s3625 = ssub.s32 128, 128
      %3626 = vsyncadd [#allocation5], %s3625
      %s3627 = sshll.u32 [#allocation14], 4
      %s3628 = int_to_ptr.vmem [resolvable:$true] %s3627
      %3633 = dma.vmem_to_hbm [thread:$0]  %s3628, 128, %s11, [#allocation5], 64, 64, 4
    $region73: #{tpu_custom_call.1} parent=1 // pred_fallthru
      _
    // Predicated region
    $region74: #{tpu_custom_call.1} parent=1 // pred_check
      _
    $region75: #{tpu_custom_call.1} parent=1 // pred_check_branch
      %3635 = sbr.rel (0) target = $region77
    $region76: #{tpu_custom_call.1} parent=1 // pred_region
      %3636 = dma.done [#allocation5], 128
    $region77: #{tpu_custom_call.1} parent=1 // pred_fallthru
      _
    %3637 = vsyncpa [#allocation4], 1
    %3638 = vsyncpa [#allocation7], 1
    %3639 = vsyncpa [#allocation10], 1
    %3640 = vsyncpa [#allocation13], 1
    %3641 = vsyncpa [#allocation5], 1

</llo_original>
